<compile_context>
chip_gen: v7x
topology: tpu7x:2x2x1
jax: 0.10.0
libtpu: 0.0.40
codegen_flags: <defaults>
</compile_context>

<pallas_src>
import functools
import math

import jax
import jax.numpy as jnp
from jax import lax
from jax.experimental import pallas as pl
from jax.experimental.pallas import tpu as pltpu

# ----------------------------- constants (match the PyTorch module) -----------------
SAMPLE_RATE = 16000
N_FFT = 512
WIN_LENGTH = int(round(SAMPLE_RATE / 1000.0 * 32))   # 512 samples (32 ms)
HOP_LENGTH = int(round(SAMPLE_RATE / 1000.0 * 16))   # 256 samples (16 ms)
N_FREQ = N_FFT // 2 + 1                              # 257 (onesided)
DIM_EXTRACTOR = 257
HIDDEN = DIM_EXTRACTOR // 2                          # 128
ATT_DIM = DIM_EXTRACTOR - 1                          # 256 (= 2 * HIDDEN, BiLSTM output)
SPEC_EPS = 1e-14                                     # speechbrain spectral_magnitude eps


# ----------------------------- Pallas kernels ---------------------------------------
def stft_mag_kernel(fr_ref, cre_ref, cim_ref, o_ref):
    """frames (tile, N_FFT) @ windowed-DFT (N_FFT, N_FREQ) -> log1p(sqrt(re^2+im^2+eps))."""
    fr = fr_ref[...]
    re = jnp.dot(fr, cre_ref[...], preferred_element_type=jnp.float32)
    im = jnp.dot(fr, cim_ref[...], preferred_element_type=jnp.float32)
    mag = jnp.sqrt(re * re + im * im + SPEC_EPS)     # spectral_magnitude(power=0.5)
    o_ref[...] = jnp.log1p(mag)


def bilstm_layer_kernel(x_ref, wih_ref, b_ref, whh_ref, o_ref, xp_sc, *, batch, seq):
    """One full bidirectional LSTM layer (all batches + both directions fused).

    x_ref   : (T*B, D)   time-major input, row index = t*B + b
    wih_ref : (D, 8H)    [W_ih_fwd^T | W_ih_bwd^T]
    b_ref   : (1, 8H)    [b_fwd | b_bwd]  (each = b_ih + b_hh)
    whh_ref : (2H, 4H)   block-stacked [W_hh_fwd^T ; W_hh_bwd^T]
    o_ref   : (T*B, 2H)  [h_fwd | h_bwd] per (t, b), written in-place per timestep
    xp_sc   : (T*B, 8H)  VMEM scratch holding both directions' input projections
    """
    B, T, H = batch, seq, HIDDEN
    G4 = 4 * H

    # One fused input projection for both directions; result stays in VMEM scratch.
    xp_sc[...] = (jnp.dot(x_ref[...], wih_ref[...], preferred_element_type=jnp.float32)
                  + b_ref[...])

    whh = whh_ref[...]                                               # (2H, 4H), resident

    # Block-diagonal masks: rows < B are the forward direction, rows >= B backward.
    row = lax.broadcasted_iota(jnp.int32, (2 * B, 1), 0)
    fwd_mask = (row < B).astype(jnp.float32)
    bwd_mask = 1.0 - fwd_mask

    def step(t, carry):
        hpad, c = carry                                              # (2B,2H), (2B,H)
        fbase = t * B                                                # forward: time t
        rbase = (T - 1 - t) * B                                      # backward: time T-1-t
        xg = jnp.concatenate(
            [xp_sc[pl.ds(fbase, B), pl.ds(0, G4)],
             xp_sc[pl.ds(rbase, B), pl.ds(G4, G4)]], axis=0)         # (2B, 4H)
        gates = xg + jnp.dot(hpad, whh, preferred_element_type=jnp.float32)   # (2B, 4H)
        i = jax.nn.sigmoid(gates[:, 0 * H:1 * H])
        f = jax.nn.sigmoid(gates[:, 1 * H:2 * H])
        g = jnp.tanh(gates[:, 2 * H:3 * H])
        o = jax.nn.sigmoid(gates[:, 3 * H:4 * H])
        c_new = f * c + i * g
        h = o * jnp.tanh(c_new)                                      # (2B, H)
        # Write directly into the output block; both stores are 128-lane aligned.
        o_ref[pl.ds(fbase, B), pl.ds(0, H)] = h[:B, :]
        o_ref[pl.ds(rbase, B), pl.ds(H, H)] = h[B:, :]
        hpad_new = jnp.concatenate([h * fwd_mask, h * bwd_mask], axis=1)       # (2B, 2H)
        return (hpad_new, c_new)

    init = (jnp.zeros((2 * B, 2 * H), jnp.float32), jnp.zeros((2 * B, H), jnp.float32))
    unroll = True if T <= 32 else 8
    lax.fori_loop(0, T, step, init, unroll=unroll)


def attn_pool_kernel(x_ref, w1_ref, b1_ref, w2_ref, b2_ref, w3_ref, b3_ref, o_ref):
    """PoolAttFF for one batch element: x (T, D) -> sigmoid(linear3(softmax-pooled x))."""
    x = x_ref[...]                                                           # (T, D)
    h = jnp.maximum(
        jnp.dot(x, w1_ref[...], preferred_element_type=jnp.float32) + b1_ref[...], 0.0
    )                                                                        # (T, 2D)
    s = jnp.dot(h, w2_ref[...], preferred_element_type=jnp.float32) + b2_ref[...]  # (T, 1)
    m = jnp.max(s, axis=0, keepdims=True)
    e = jnp.exp(s - m)
    att = e * pl.reciprocal(jnp.sum(e, axis=0, keepdims=True), approx=True)  # softmax over T
    pooled = jnp.sum(att * x, axis=0, keepdims=True)                         # (1, D)
    y = jnp.dot(pooled, w3_ref[...], preferred_element_type=jnp.float32) + b3_ref[...]
    o_ref[...] = jax.nn.sigmoid(y)                                           # (1, 1)


# ----------------------------- pallas_call wrappers ----------------------------------
def stft_mag_call(frames2d, cre, cim):
    """Tiled over frames (grid 'parallel'); DFT matrices stay resident."""
    M = frames2d.shape[0]
    tile_m = 256 if M >= 256 else max(8, ((M + 7) // 8) * 8)
    Mp = ((M + tile_m - 1) // tile_m) * tile_m
    if Mp != M:
        frames2d = jnp.pad(frames2d, ((0, Mp - M), (0, 0)))
    out = pl.pallas_call(
        stft_mag_kernel,
        out_shape=jax.ShapeDtypeStruct((Mp, N_FREQ), jnp.float32),
        grid=(Mp // tile_m,),
        in_specs=[
            pl.BlockSpec((tile_m, N_FFT), lambda i: (i, 0)),
            pl.BlockSpec((N_FFT, N_FREQ), lambda i: (0, 0)),
            pl.BlockSpec((N_FFT, N_FREQ), lambda i: (0, 0)),
        ],
        out_specs=pl.BlockSpec((tile_m, N_FREQ), lambda i: (i, 0)),
        compiler_params=pltpu.CompilerParams(dimension_semantics=("parallel",)),
    )(frames2d, cre, cim)
    return out[:M] if Mp != M else out


def bilstm_layer_call(x_tm, layer, *, batch, seq):
    """x_tm: (T*B, D) time-major -> (T*B, 2H) time-major BiLSTM layer output."""
    D = x_tm.shape[-1]
    wih = jnp.concatenate([layer["fwd"]["w_ih"], layer["bwd"]["w_ih"]], axis=1)  # (D, 8H)
    b = jnp.concatenate([layer["fwd"]["b"], layer["bwd"]["b"]], axis=1)          # (1, 8H)
    whh = jnp.concatenate([layer["fwd"]["w_hh"], layer["bwd"]["w_hh"]], axis=0)  # (2H, 4H)
    TB = seq * batch
    kernel = functools.partial(bilstm_layer_kernel, batch=batch, seq=seq)
    # TODO(synk): for very long sequences the xp scratch (T*B, 8H) should be tiled over time.
    return pl.pallas_call(
        kernel,
        out_shape=jax.ShapeDtypeStruct((TB, 2 * HIDDEN), jnp.float32),
        grid=(1,),
        in_specs=[
            pl.BlockSpec((TB, D), lambda i: (0, 0)),
            pl.BlockSpec((D, 8 * HIDDEN), lambda i: (0, 0)),
            pl.BlockSpec((1, 8 * HIDDEN), lambda i: (0, 0)),
            pl.BlockSpec((2 * HIDDEN, 4 * HIDDEN), lambda i: (0, 0)),
        ],
        out_specs=pl.BlockSpec((TB, 2 * HIDDEN), lambda i: (0, 0)),
        scratch_shapes=[pltpu.VMEM((TB, 8 * HIDDEN), jnp.float32)],
        compiler_params=pltpu.CompilerParams(dimension_semantics=("arbitrary",)),
    )(x_tm, wih, b, whh)


def attn_pool_call(x_tm2, w1, b1, w2, b2, w3, b3, *, batch, seq):
    """x_tm2: (T, B*D) time-major (free reshape of LSTM output) -> (B, 1).

    Grid over batch ('parallel'); each step reads its lane-blocked (T, D) slab —
    no HBM transpose of the LSTM output is needed.
    """
    B, T, D = batch, seq, ATT_DIM
    out = pl.pallas_call(
        attn_pool_kernel,
        out_shape=jax.ShapeDtypeStruct((B, 1, 1), jnp.float32),
        grid=(B,),
        in_specs=[
            pl.BlockSpec((T, D), lambda b: (0, b)),
            pl.BlockSpec(w1.shape, lambda b: (0, 0)),
            pl.BlockSpec(b1.shape, lambda b: (0, 0)),
            pl.BlockSpec(w2.shape, lambda b: (0, 0)),
            pl.BlockSpec(b2.shape, lambda b: (0, 0)),
            pl.BlockSpec(w3.shape, lambda b: (0, 0)),
            pl.BlockSpec(b3.shape, lambda b: (0, 0)),
        ],
        out_specs=pl.BlockSpec((None, 1, 1), lambda b: (b, 0, 0)),
        compiler_params=pltpu.CompilerParams(dimension_semantics=("parallel",)),
    )(x_tm2, w1, b1, w2, b2, w3, b3)
    return out.reshape(B, 1)


# ----------------------------- plain-JAX glue -----------------------------------------
def dft_matrices():
    """Windowed real/imag DFT matrices (N_FFT, N_FREQ), hamming window folded in."""
    n = jnp.arange(N_FFT, dtype=jnp.float32)[:, None]
    k = jnp.arange(N_FREQ, dtype=jnp.float32)[None, :]
    ang = 2.0 * jnp.pi * n * k / N_FFT
    # torch.hamming_window(512, periodic=True)
    win = 0.54 - 0.46 * jnp.cos(2.0 * jnp.pi * jnp.arange(N_FFT, dtype=jnp.float32) / N_FFT)
    cre = win[:, None] * jnp.cos(ang)
    cim = -win[:, None] * jnp.sin(ang)
    return cre.astype(jnp.float32), cim.astype(jnp.float32)


def frame_signal(x):
    """Center-padded framing identical to torch.stft(center=True, pad_mode='constant')."""
    B, L = x.shape
    pad = N_FFT // 2
    xp = jnp.pad(x, ((0, 0), (pad, pad)))
    T = L // HOP_LENGTH + 1
    idx = jnp.arange(T)[:, None] * HOP_LENGTH + jnp.arange(N_FFT)[None, :]
    return xp[:, idx]  # (B, T, N_FFT)


def spec_metric_predictor(x, params):
    """Forward pass. Returns (sigmoid score (B, 1), out_feats (B, T, 257))."""
    B, L = x.shape
    T = L // HOP_LENGTH + 1

    # --- STFT -> magnitude (power=0.5) -> log1p (tiled Pallas kernel) ---
    frames = frame_signal(x).reshape(B * T, N_FFT)
    cre, cim = dft_matrices()
    out_feats = stft_mag_call(frames, cre, cim).reshape(B, T, N_FREQ)

    # --- 2-layer bidirectional LSTM (hidden=128), fused per-layer kernels ---
    # TODO(synk): inter-layer dropout (p=0.1) is a no-op in inference mode and is omitted.
    x_tm = out_feats.transpose(1, 0, 2).reshape(T * B, N_FREQ)   # time-major rows t*B+b
    for layer in params["lstm"]:
        x_tm = bilstm_layer_call(x_tm, layer, batch=B, seq=T)    # (T*B, 256)

    # --- PoolAttFF + sigmoid (Pallas kernel); free reshape keeps data time-major ---
    feats_tm2 = x_tm.reshape(T, B * 2 * HIDDEN)                  # (T, B*256), no transpose
    pa = params["att"]
    out = attn_pool_call(feats_tm2, pa["w1"], pa["b1"], pa["w2"], pa["b2"],
                         pa["w3"], pa["b3"], batch=B, seq=T)
    return out, out_feats


# ----------------------------- deterministic parameter init ---------------------------
def init_params(key):
    def unif(k, shape, fan_in):
        bound = 1.0 / math.sqrt(fan_in)
        return jax.random.uniform(k, shape, jnp.float32, -bound, bound)

    keys = iter(jax.random.split(key, 64))
    lstm_layers = []
    for layer_idx in range(2):
        in_dim = DIM_EXTRACTOR if layer_idx == 0 else 2 * HIDDEN
        layer = {}
        for name in ("fwd", "bwd"):
            layer[name] = {
                "w_ih": unif(next(keys), (in_dim, 4 * HIDDEN), HIDDEN),    # W_ih^T
                "w_hh": unif(next(keys), (HIDDEN, 4 * HIDDEN), HIDDEN),    # W_hh^T
                "b": unif(next(keys), (1, 4 * HIDDEN), HIDDEN)
                + unif(next(keys), (1, 4 * HIDDEN), HIDDEN),               # b_ih + b_hh
            }
        lstm_layers.append(layer)

    att = {
        "w1": unif(next(keys), (ATT_DIM, 2 * ATT_DIM), ATT_DIM),
        "b1": unif(next(keys), (1, 2 * ATT_DIM), ATT_DIM),
        "w2": unif(next(keys), (2 * ATT_DIM, 1), 2 * ATT_DIM),
        "b2": unif(next(keys), (1, 1), 2 * ATT_DIM),
        "w3": unif(next(keys), (ATT_DIM, 1), ATT_DIM),
        "b3": unif(next(keys), (1, 1), ATT_DIM),
    }
    return {"lstm": lstm_layers, "att": att}


# ----------------------------- main ----------------------------------------------------
if __name__ == "__main__":
    key = jax.random.PRNGKey(0)
    k_x, k_p = jax.random.split(key)

    B, L = 2, 1792                        # -> T = L // 256 + 1 = 8 frames
    x = jax.random.normal(k_x, (B, L), dtype=jnp.float32)
    params = init_params(k_p)

    fwd = jax.jit(spec_metric_predictor)
    out, out_feats = fwd(x, params)
    jax.block_until_ready((out, out_feats))

    assert out.shape == (B, 1)
    assert out_feats.shape == (B, L // HOP_LENGTH + 1, N_FREQ)
    assert bool(jnp.all((out >= 0.0) & (out <= 1.0)))
    print("KERNEL_OK")
</pallas_src>

<mosaic_0001>
module attributes {stable_mosaic.version = 11 : i64} {
  func.func private @main(%arg0: i32) attributes {dimension_semantics = [#tpu.dimension_semantics<core_parallel>], iteration_bounds = array<i64: 2>, tpu.core_type = #tpu.core_type<sc_scalar_subcore>, window_params = []} {
    return
  }
}

module attributes {stable_mosaic.version = 11 : i64} {
  func.func private @main(%arg0: i32) attributes {dimension_semantics = [#tpu.dimension_semantics<core_parallel>], iteration_bounds = array<i64: 2>, tpu.core_type = #tpu.core_type<sc_scalar_subcore>, window_params = []} {
    return
  }
}

module attributes {stable_mosaic.version = 11 : i64} {
  func.func @stft_mag_kernel(%arg0: i32, %arg1: memref<16x512xf32, #tpu.memory_space<vmem>>, %arg2: memref<512x257xf32, #tpu.memory_space<vmem>>, %arg3: memref<512x257xf32, #tpu.memory_space<vmem>>, %arg4: memref<16x257xf32, #tpu.memory_space<vmem>>) attributes {dimension_semantics = [#tpu.dimension_semantics<parallel>], iteration_bounds = array<i64: 1>, scalar_prefetch = 0 : i64, scratch_operands = 0 : i64, tpu.core_type = #tpu.core_type<tc>, window_params = [{transform_indices = @transform_0, window_bounds = array<i64: 16, 512>}, {pipeline_mode = #tpu.pipeline_mode<synchronous>, transform_indices = @transform_1, window_bounds = array<i64: 512, 257>}, {pipeline_mode = #tpu.pipeline_mode<synchronous>, transform_indices = @transform_2, window_bounds = array<i64: 512, 257>}, {transform_indices = @transform_3, window_bounds = array<i64: 16, 257>}]} {
    %c0 = arith.constant 0 : index
    %c0_0 = arith.constant 0 : index
    %0 = vector.load %arg1[%c0, %c0_0] : memref<16x512xf32, #tpu.memory_space<vmem>>, vector<16x512xf32>
    %c0_1 = arith.constant 0 : index
    %c0_2 = arith.constant 0 : index
    %1 = vector.load %arg2[%c0_1, %c0_2] : memref<512x257xf32, #tpu.memory_space<vmem>>, vector<512x257xf32>
    %cst = arith.constant dense<0.000000e+00> : vector<16x257xf32>
    %2 = tpu.matmul %0, %1, %cst {dimension_numbers = #tpu.dot_dimension_numbers<[1], [0], [0], [1], [0, 0, 1, 1], [], []>} : vector<16x512xf32>, vector<512x257xf32>, vector<16x257xf32> -> vector<16x257xf32>
    %c0_3 = arith.constant 0 : index
    %c0_4 = arith.constant 0 : index
    %3 = vector.load %arg3[%c0_3, %c0_4] : memref<512x257xf32, #tpu.memory_space<vmem>>, vector<512x257xf32>
    %cst_5 = arith.constant dense<0.000000e+00> : vector<16x257xf32>
    %4 = tpu.matmul %0, %3, %cst_5 {dimension_numbers = #tpu.dot_dimension_numbers<[1], [0], [0], [1], [0, 0, 1, 1], [], []>} : vector<16x512xf32>, vector<512x257xf32>, vector<16x257xf32> -> vector<16x257xf32>
    %5 = arith.mulf %2, %2 : vector<16x257xf32>
    %6 = arith.mulf %4, %4 : vector<16x257xf32>
    %7 = arith.addf %5, %6 : vector<16x257xf32>
    %cst_6 = arith.constant 9.99999982E-15 : f32
    %8 = vector.broadcast %cst_6 : f32 to vector<16x257xf32>
    %9 = arith.addf %7, %8 : vector<16x257xf32>
    %10 = math.sqrt %9 : vector<16x257xf32>
    %11 = math.log1p %10 : vector<16x257xf32>
    %c0_7 = arith.constant 0 : index
    %c0_8 = arith.constant 0 : index
    %12 = vector.load %arg4[%c0_7, %c0_8] : memref<16x257xf32, #tpu.memory_space<vmem>>, vector<16x257xf32>
    tpu.vector_store %arg4[%c0_7, %c0_8], %11 {strides = array<i32>} : memref<16x257xf32, #tpu.memory_space<vmem>>, vector<16x257xf32>,
    return
  }
  func.func @transform_0(%arg0: i32) -> (i32, i32) {
    %c0_i32 = arith.constant 0 : i32
    %c0_i32_0 = arith.constant 0 : i32
    return %arg0, %c0_i32 : i32, i32
  }
  func.func @transform_1(%arg0: i32) -> (i32, i32) {
    %c0_i32 = arith.constant 0 : i32
    %c0_i32_0 = arith.constant 0 : i32
    %c0_i32_1 = arith.constant 0 : i32
    return %c0_i32, %c0_i32_0 : i32, i32
  }
  func.func @transform_2(%arg0: i32) -> (i32, i32) {
    %c0_i32 = arith.constant 0 : i32
    %c0_i32_0 = arith.constant 0 : i32
    %c0_i32_1 = arith.constant 0 : i32
    return %c0_i32, %c0_i32_0 : i32, i32
  }
  func.func @transform_3(%arg0: i32) -> (i32, i32) {
    %c0_i32 = arith.constant 0 : i32
    %c0_i32_0 = arith.constant 0 : i32
    return %arg0, %c0_i32 : i32, i32
  }
}

module attributes {stable_mosaic.version = 11 : i64} {
  func.func @bilstm_layer_kernel(%arg0: i32, %arg1: memref<16x257xf32, #tpu.memory_space<vmem>>, %arg2: memref<257x1024xf32, #tpu.memory_space<vmem>>, %arg3: memref<1x1024xf32, #tpu.memory_space<vmem>>, %arg4: memref<256x512xf32, #tpu.memory_space<vmem>>, %arg5: memref<16x256xf32, #tpu.memory_space<vmem>>, %arg6: memref<16x1024xf32, #tpu.memory_space<vmem>>) attributes {dimension_semantics = [#tpu.dimension_semantics<arbitrary>], iteration_bounds = array<i64: 1>, scalar_prefetch = 0 : i64, scratch_operands = 1 : i64, tpu.core_type = #tpu.core_type<tc>, window_params = [{pipeline_mode = #tpu.pipeline_mode<synchronous>, transform_indices = @transform_0, window_bounds = array<i64: 16, 257>}, {pipeline_mode = #tpu.pipeline_mode<synchronous>, transform_indices = @transform_1, window_bounds = array<i64: 257, 1024>}, {pipeline_mode = #tpu.pipeline_mode<synchronous>, transform_indices = @transform_2, window_bounds = array<i64: 1, 1024>}, {pipeline_mode = #tpu.pipeline_mode<synchronous>, transform_indices = @transform_3, window_bounds = array<i64: 256, 512>}, {pipeline_mode = #tpu.pipeline_mode<synchronous>, transform_indices = @transform_4, window_bounds = array<i64: 16, 256>}]} {
    %c0 = arith.constant 0 : index
    %c0_0 = arith.constant 0 : index
    %0 = vector.load %arg1[%c0, %c0_0] : memref<16x257xf32, #tpu.memory_space<vmem>>, vector<16x257xf32>
    %c0_1 = arith.constant 0 : index
    %c0_2 = arith.constant 0 : index
    %1 = vector.load %arg2[%c0_1, %c0_2] : memref<257x1024xf32, #tpu.memory_space<vmem>>, vector<257x1024xf32>
    %cst = arith.constant dense<0.000000e+00> : vector<16x1024xf32>
    %2 = tpu.matmul %0, %1, %cst {dimension_numbers = #tpu.dot_dimension_numbers<[1], [0], [0], [1], [0, 0, 1, 1], [], []>} : vector<16x257xf32>, vector<257x1024xf32>, vector<16x1024xf32> -> vector<16x1024xf32>
    %c0_3 = arith.constant 0 : index
    %c0_4 = arith.constant 0 : index
    %3 = vector.load %arg3[%c0_3, %c0_4] : memref<1x1024xf32, #tpu.memory_space<vmem>>, vector<1x1024xf32>
    %4 = vector.broadcast %3 : vector<1x1024xf32> to vector<16x1024xf32>
    %5 = arith.addf %2, %4 : vector<16x1024xf32>
    %c0_5 = arith.constant 0 : index
    %c0_6 = arith.constant 0 : index
    %6 = vector.load %arg6[%c0_5, %c0_6] : memref<16x1024xf32, #tpu.memory_space<vmem>>, vector<16x1024xf32>
    tpu.vector_store %arg6[%c0_5, %c0_6], %5 {strides = array<i32>} : memref<16x1024xf32, #tpu.memory_space<vmem>>, vector<16x1024xf32>,
    %c0_7 = arith.constant 0 : index
    %c0_8 = arith.constant 0 : index
    %7 = vector.load %arg4[%c0_7, %c0_8] : memref<256x512xf32, #tpu.memory_space<vmem>>, vector<256x512xf32>
    %8 = tpu.iota {dimensions = array<i32: 0>} : vector<4x1xi32>
    %c2_i32 = arith.constant 2 : i32
    %9 = vector.broadcast %c2_i32 : i32 to vector<4x1xi32>
    %10 = arith.cmpi slt, %8, %9 : vector<4x1xi32>
    %11 = arith.extui %10 : vector<4x1xi1> to vector<4x1xi32>
    %12 = arith.sitofp %11 : vector<4x1xi32> to vector<4x1xf32>
    %cst_9 = arith.constant 1.000000e+00 : f32
    %13 = vector.broadcast %cst_9 : f32 to vector<4x1xf32>
    %14 = arith.subf %13, %12 : vector<4x1xf32>
    %cst_10 = arith.constant 0.000000e+00 : f32
    %15 = vector.broadcast %cst_10 : f32 to vector<4x256xf32>
    %cst_11 = arith.constant 0.000000e+00 : f32
    %16 = vector.broadcast %cst_11 : f32 to vector<4x128xf32>
    %c0_i32 = arith.constant 0 : i32
    %c2_i32_12 = arith.constant 2 : i32
    %17 = arith.muli %c0_i32, %c2_i32_12 : i32
    %c7_i32 = arith.constant 7 : i32
    %18 = arith.subi %c7_i32, %c0_i32 : i32
    %c2_i32_13 = arith.constant 2 : i32
    %19 = arith.muli %18, %c2_i32_13 : i32
    %20 = arith.index_cast %17 : i32 to index
    %c0_14 = arith.constant 0 : index
    %21 = vector.load %arg6[%20, %c0_14] : memref<16x1024xf32, #tpu.memory_space<vmem>>, vector<2x512xf32>
    %22 = arith.index_cast %19 : i32 to index
    %c512 = arith.constant 512 : index
    %23 = vector.load %arg6[%22, %c512] : memref<16x1024xf32, #tpu.memory_space<vmem>>, vector<2x512xf32>
    %24 = tpu.concatenate %21, %23 in 0 : vector<2x512xf32>, vector<2x512xf32> -> vector<4x512xf32>
    %cst_15 = arith.constant dense<0.000000e+00> : vector<4x512xf32>
    %25 = tpu.matmul %15, %7, %cst_15 {dimension_numbers = #tpu.dot_dimension_numbers<[1], [0], [0], [1], [0, 0, 1, 1], [], []>} : vector<4x256xf32>, vector<256x512xf32>, vector<4x512xf32> -> vector<4x512xf32>
    %26 = arith.addf %24, %25 : vector<4x512xf32>
    %27 = vector.extract_strided_slice %26 {offsets = [0, 0], sizes = [4, 128], strides = [1, 1]} : vector<4x512xf32> to vector<4x128xf32>
    %28 = arith.negf %27 : vector<4x128xf32>
    %29 = math.exp %28 : vector<4x128xf32>
    %cst_16 = arith.constant 1.000000e+00 : f32
    %30 = vector.broadcast %cst_16 : f32 to vector<4x128xf32>
    %31 = arith.addf %30, %29 : vector<4x128xf32>
    %32 = arith.divf %30, %31 : vector<4x128xf32>
    %33 = vector.extract_strided_slice %26 {offsets = [0, 128], sizes = [4, 128], strides = [1, 1]} : vector<4x512xf32> to vector<4x128xf32>
    %34 = arith.negf %33 : vector<4x128xf32>
    %35 = math.exp %34 : vector<4x128xf32>
    %cst_17 = arith.constant 1.000000e+00 : f32
    %36 = vector.broadcast %cst_17 : f32 to vector<4x128xf32>
    %37 = arith.addf %36, %35 : vector<4x128xf32>
    %38 = arith.divf %36, %37 : vector<4x128xf32>
    %39 = vector.extract_strided_slice %26 {offsets = [0, 256], sizes = [4, 128], strides = [1, 1]} : vector<4x512xf32> to vector<4x128xf32>
    %40 = math.tanh %39 : vector<4x128xf32>
    %41 = vector.extract_strided_slice %26 {offsets = [0, 384], sizes = [4, 128], strides = [1, 1]} : vector<4x512xf32> to vector<4x128xf32>
    %42 = arith.negf %41 : vector<4x128xf32>
    %43 = math.exp %42 : vector<4x128xf32>
    %cst_18 = arith.constant 1.000000e+00 : f32
    %44 = vector.broadcast %cst_18 : f32 to vector<4x128xf32>
    %45 = arith.addf %44, %43 : vector<4x128xf32>
    %46 = arith.divf %44, %45 : vector<4x128xf32>
    %47 = arith.mulf %38, %16 : vector<4x128xf32>
    %48 = arith.mulf %32, %40 : vector<4x128xf32>
    %49 = arith.addf %47, %48 : vector<4x128xf32>
    %50 = math.tanh %49 : vector<4x128xf32>
    %51 = arith.mulf %46, %50 : vector<4x128xf32>
    %52 = vector.extract_strided_slice %51 {offsets = [0, 0], sizes = [2, 128], strides = [1, 1]} : vector<4x128xf32> to vector<2x128xf32>
    %53 = arith.index_cast %17 : i32 to index
    %c0_19 = arith.constant 0 : index
    %54 = vector.load %arg5[%53, %c0_19] : memref<16x256xf32, #tpu.memory_space<vmem>>, vector<2x128xf32>
    tpu.vector_store %arg5[%53, %c0_19], %52 {strides = array<i32>} : memref<16x256xf32, #tpu.memory_space<vmem>>, vector<2x128xf32>,
    %55 = vector.extract_strided_slice %51 {offsets = [2, 0], sizes = [2, 128], strides = [1, 1]} : vector<4x128xf32> to vector<2x128xf32>
    %56 = arith.index_cast %19 : i32 to index
    %c128 = arith.constant 128 : index
    %57 = vector.load %arg5[%56, %c128] : memref<16x256xf32, #tpu.memory_space<vmem>>, vector<2x128xf32>
    tpu.vector_store %arg5[%56, %c128], %55 {strides = array<i32>} : memref<16x256xf32, #tpu.memory_space<vmem>>, vector<2x128xf32>,
    %58 = vector.broadcast %12 : vector<4x1xf32> to vector<4x128xf32>
    %59 = arith.mulf %51, %58 : vector<4x128xf32>
    %60 = vector.broadcast %14 : vector<4x1xf32> to vector<4x128xf32>
    %61 = arith.mulf %51, %60 : vector<4x128xf32>
    %62 = tpu.concatenate %59, %61 in 1 : vector<4x128xf32>, vector<4x128xf32> -> vector<4x256xf32>
    %c1_i32 = arith.constant 1 : i32
    %c2_i32_20 = arith.constant 2 : i32
    %63 = arith.muli %c1_i32, %c2_i32_20 : i32
    %c7_i32_21 = arith.constant 7 : i32
    %64 = arith.subi %c7_i32_21, %c1_i32 : i32
    %c2_i32_22 = arith.constant 2 : i32
    %65 = arith.muli %64, %c2_i32_22 : i32
    %66 = arith.index_cast %63 : i32 to index
    %c0_23 = arith.constant 0 : index
    %67 = vector.load %arg6[%66, %c0_23] : memref<16x1024xf32, #tpu.memory_space<vmem>>, vector<2x512xf32>
    %68 = arith.index_cast %65 : i32 to index
    %c512_24 = arith.constant 512 : index
    %69 = vector.load %arg6[%68, %c512_24] : memref<16x1024xf32, #tpu.memory_space<vmem>>, vector<2x512xf32>
    %70 = tpu.concatenate %67, %69 in 0 : vector<2x512xf32>, vector<2x512xf32> -> vector<4x512xf32>
    %cst_25 = arith.constant dense<0.000000e+00> : vector<4x512xf32>
    %71 = tpu.matmul %62, %7, %cst_25 {dimension_numbers = #tpu.dot_dimension_numbers<[1], [0], [0], [1], [0, 0, 1, 1], [], []>} : vector<4x256xf32>, vector<256x512xf32>, vector<4x512xf32> -> vector<4x512xf32>
    %72 = arith.addf %70, %71 : vector<4x512xf32>
    %73 = vector.extract_strided_slice %72 {offsets = [0, 0], sizes = [4, 128], strides = [1, 1]} : vector<4x512xf32> to vector<4x128xf32>
    %74 = arith.negf %73 : vector<4x128xf32>
    %75 = math.exp %74 : vector<4x128xf32>
    %cst_26 = arith.constant 1.000000e+00 : f32
    %76 = vector.broadcast %cst_26 : f32 to vector<4x128xf32>
    %77 = arith.addf %76, %75 : vector<4x128xf32>
    %78 = arith.divf %76, %77 : vector<4x128xf32>
    %79 = vector.extract_strided_slice %72 {offsets = [0, 128], sizes = [4, 128], strides = [1, 1]} : vector<4x512xf32> to vector<4x128xf32>
    %80 = arith.negf %79 : vector<4x128xf32>
    %81 = math.exp %80 : vector<4x128xf32>
    %cst_27 = arith.constant 1.000000e+00 : f32
    %82 = vector.broadcast %cst_27 : f32 to vector<4x128xf32>
    %83 = arith.addf %82, %81 : vector<4x128xf32>
    %84 = arith.divf %82, %83 : vector<4x128xf32>
    %85 = vector.extract_strided_slice %72 {offsets = [0, 256], sizes = [4, 128], strides = [1, 1]} : vector<4x512xf32> to vector<4x128xf32>
    %86 = math.tanh %85 : vector<4x128xf32>
    %87 = vector.extract_strided_slice %72 {offsets = [0, 384], sizes = [4, 128], strides = [1, 1]} : vector<4x512xf32> to vector<4x128xf32>
    %88 = arith.negf %87 : vector<4x128xf32>
    %89 = math.exp %88 : vector<4x128xf32>
    %cst_28 = arith.constant 1.000000e+00 : f32
    %90 = vector.broadcast %cst_28 : f32 to vector<4x128xf32>
    %91 = arith.addf %90, %89 : vector<4x128xf32>
    %92 = arith.divf %90, %91 : vector<4x128xf32>
    %93 = arith.mulf %84, %49 : vector<4x128xf32>
    %94 = arith.mulf %78, %86 : vector<4x128xf32>
    %95 = arith.addf %93, %94 : vector<4x128xf32>
    %96 = math.tanh %95 : vector<4x128xf32>
    %97 = arith.mulf %92, %96 : vector<4x128xf32>
    %98 = vector.extract_strided_slice %97 {offsets = [0, 0], sizes = [2, 128], strides = [1, 1]} : vector<4x128xf32> to vector<2x128xf32>
    %99 = arith.index_cast %63 : i32 to index
    %c0_29 = arith.constant 0 : index
    %100 = vector.load %arg5[%99, %c0_29] : memref<16x256xf32, #tpu.memory_space<vmem>>, vector<2x128xf32>
    tpu.vector_store %arg5[%99, %c0_29], %98 {strides = array<i32>} : memref<16x256xf32, #tpu.memory_space<vmem>>, vector<2x128xf32>,
    %101 = vector.extract_strided_slice %97 {offsets = [2, 0], sizes = [2, 128], strides = [1, 1]} : vector<4x128xf32> to vector<2x128xf32>
    %102 = arith.index_cast %65 : i32 to index
    %c128_30 = arith.constant 128 : index
    %103 = vector.load %arg5[%102, %c128_30] : memref<16x256xf32, #tpu.memory_space<vmem>>, vector<2x128xf32>
    tpu.vector_store %arg5[%102, %c128_30], %101 {strides = array<i32>} : memref<16x256xf32, #tpu.memory_space<vmem>>, vector<2x128xf32>,
    %104 = vector.broadcast %12 : vector<4x1xf32> to vector<4x128xf32>
    %105 = arith.mulf %97, %104 : vector<4x128xf32>
    %106 = vector.broadcast %14 : vector<4x1xf32> to vector<4x128xf32>
    %107 = arith.mulf %97, %106 : vector<4x128xf32>
    %108 = tpu.concatenate %105, %107 in 1 : vector<4x128xf32>, vector<4x128xf32> -> vector<4x256xf32>
    %c2_i32_31 = arith.constant 2 : i32
    %c2_i32_32 = arith.constant 2 : i32
    %109 = arith.muli %c2_i32_31, %c2_i32_32 : i32
    %c7_i32_33 = arith.constant 7 : i32
    %110 = arith.subi %c7_i32_33, %c2_i32_31 : i32
    %c2_i32_34 = arith.constant 2 : i32
    %111 = arith.muli %110, %c2_i32_34 : i32
    %112 = arith.index_cast %109 : i32 to index
    %c0_35 = arith.constant 0 : index
    %113 = vector.load %arg6[%112, %c0_35] : memref<16x1024xf32, #tpu.memory_space<vmem>>, vector<2x512xf32>
    %114 = arith.index_cast %111 : i32 to index
    %c512_36 = arith.constant 512 : index
    %115 = vector.load %arg6[%114, %c512_36] : memref<16x1024xf32, #tpu.memory_space<vmem>>, vector<2x512xf32>
    %116 = tpu.concatenate %113, %115 in 0 : vector<2x512xf32>, vector<2x512xf32> -> vector<4x512xf32>
    %cst_37 = arith.constant dense<0.000000e+00> : vector<4x512xf32>
    %117 = tpu.matmul %108, %7, %cst_37 {dimension_numbers = #tpu.dot_dimension_numbers<[1], [0], [0], [1], [0, 0, 1, 1], [], []>} : vector<4x256xf32>, vector<256x512xf32>, vector<4x512xf32> -> vector<4x512xf32>
    %118 = arith.addf %116, %117 : vector<4x512xf32>
    %119 = vector.extract_strided_slice %118 {offsets = [0, 0], sizes = [4, 128], strides = [1, 1]} : vector<4x512xf32> to vector<4x128xf32>
    %120 = arith.negf %119 : vector<4x128xf32>
    %121 = math.exp %120 : vector<4x128xf32>
    %cst_38 = arith.constant 1.000000e+00 : f32
    %122 = vector.broadcast %cst_38 : f32 to vector<4x128xf32>
    %123 = arith.addf %122, %121 : vector<4x128xf32>
    %124 = arith.divf %122, %123 : vector<4x128xf32>
    %125 = vector.extract_strided_slice %118 {offsets = [0, 128], sizes = [4, 128], strides = [1, 1]} : vector<4x512xf32> to vector<4x128xf32>
    %126 = arith.negf %125 : vector<4x128xf32>
    %127 = math.exp %126 : vector<4x128xf32>
    %cst_39 = arith.constant 1.000000e+00 : f32
    %128 = vector.broadcast %cst_39 : f32 to vector<4x128xf32>
    %129 = arith.addf %128, %127 : vector<4x128xf32>
    %130 = arith.divf %128, %129 : vector<4x128xf32>
    %131 = vector.extract_strided_slice %118 {offsets = [0, 256], sizes = [4, 128], strides = [1, 1]} : vector<4x512xf32> to vector<4x128xf32>
    %132 = math.tanh %131 : vector<4x128xf32>
    %133 = vector.extract_strided_slice %118 {offsets = [0, 384], sizes = [4, 128], strides = [1, 1]} : vector<4x512xf32> to vector<4x128xf32>
    %134 = arith.negf %133 : vector<4x128xf32>
    %135 = math.exp %134 : vector<4x128xf32>
    %cst_40 = arith.constant 1.000000e+00 : f32
    %136 = vector.broadcast %cst_40 : f32 to vector<4x128xf32>
    %137 = arith.addf %136, %135 : vector<4x128xf32>
    %138 = arith.divf %136, %137 : vector<4x128xf32>
    %139 = arith.mulf %130, %95 : vector<4x128xf32>
    %140 = arith.mulf %124, %132 : vector<4x128xf32>
    %141 = arith.addf %139, %140 : vector<4x128xf32>
    %142 = math.tanh %141 : vector<4x128xf32>
    %143 = arith.mulf %138, %142 : vector<4x128xf32>
    %144 = vector.extract_strided_slice %143 {offsets = [0, 0], sizes = [2, 128], strides = [1, 1]} : vector<4x128xf32> to vector<2x128xf32>
    %145 = arith.index_cast %109 : i32 to index
    %c0_41 = arith.constant 0 : index
    %146 = vector.load %arg5[%145, %c0_41] : memref<16x256xf32, #tpu.memory_space<vmem>>, vector<2x128xf32>
    tpu.vector_store %arg5[%145, %c0_41], %144 {strides = array<i32>} : memref<16x256xf32, #tpu.memory_space<vmem>>, vector<2x128xf32>,
    %147 = vector.extract_strided_slice %143 {offsets = [2, 0], sizes = [2, 128], strides = [1, 1]} : vector<4x128xf32> to vector<2x128xf32>
    %148 = arith.index_cast %111 : i32 to index
    %c128_42 = arith.constant 128 : index
    %149 = vector.load %arg5[%148, %c128_42] : memref<16x256xf32, #tpu.memory_space<vmem>>, vector<2x128xf32>
    tpu.vector_store %arg5[%148, %c128_42], %147 {strides = array<i32>} : memref<16x256xf32, #tpu.memory_space<vmem>>, vector<2x128xf32>,
    %150 = vector.broadcast %12 : vector<4x1xf32> to vector<4x128xf32>
    %151 = arith.mulf %143, %150 : vector<4x128xf32>
    %152 = vector.broadcast %14 : vector<4x1xf32> to vector<4x128xf32>
    %153 = arith.mulf %143, %152 : vector<4x128xf32>
    %154 = tpu.concatenate %151, %153 in 1 : vector<4x128xf32>, vector<4x128xf32> -> vector<4x256xf32>
    %c3_i32 = arith.constant 3 : i32
    %c2_i32_43 = arith.constant 2 : i32
    %155 = arith.muli %c3_i32, %c2_i32_43 : i32
    %c7_i32_44 = arith.constant 7 : i32
    %156 = arith.subi %c7_i32_44, %c3_i32 : i32
    %c2_i32_45 = arith.constant 2 : i32
    %157 = arith.muli %156, %c2_i32_45 : i32
    %158 = arith.index_cast %155 : i32 to index
    %c0_46 = arith.constant 0 : index
    %159 = vector.load %arg6[%158, %c0_46] : memref<16x1024xf32, #tpu.memory_space<vmem>>, vector<2x512xf32>
    %160 = arith.index_cast %157 : i32 to index
    %c512_47 = arith.constant 512 : index
    %161 = vector.load %arg6[%160, %c512_47] : memref<16x1024xf32, #tpu.memory_space<vmem>>, vector<2x512xf32>
    %162 = tpu.concatenate %159, %161 in 0 : vector<2x512xf32>, vector<2x512xf32> -> vector<4x512xf32>
    %cst_48 = arith.constant dense<0.000000e+00> : vector<4x512xf32>
    %163 = tpu.matmul %154, %7, %cst_48 {dimension_numbers = #tpu.dot_dimension_numbers<[1], [0], [0], [1], [0, 0, 1, 1], [], []>} : vector<4x256xf32>, vector<256x512xf32>, vector<4x512xf32> -> vector<4x512xf32>
    %164 = arith.addf %162, %163 : vector<4x512xf32>
    %165 = vector.extract_strided_slice %164 {offsets = [0, 0], sizes = [4, 128], strides = [1, 1]} : vector<4x512xf32> to vector<4x128xf32>
    %166 = arith.negf %165 : vector<4x128xf32>
    %167 = math.exp %166 : vector<4x128xf32>
    %cst_49 = arith.constant 1.000000e+00 : f32
    %168 = vector.broadcast %cst_49 : f32 to vector<4x128xf32>
    %169 = arith.addf %168, %167 : vector<4x128xf32>
    %170 = arith.divf %168, %169 : vector<4x128xf32>
    %171 = vector.extract_strided_slice %164 {offsets = [0, 128], sizes = [4, 128], strides = [1, 1]} : vector<4x512xf32> to vector<4x128xf32>
    %172 = arith.negf %171 : vector<4x128xf32>
    %173 = math.exp %172 : vector<4x128xf32>
    %cst_50 = arith.constant 1.000000e+00 : f32
    %174 = vector.broadcast %cst_50 : f32 to vector<4x128xf32>
    %175 = arith.addf %174, %173 : vector<4x128xf32>
    %176 = arith.divf %174, %175 : vector<4x128xf32>
    %177 = vector.extract_strided_slice %164 {offsets = [0, 256], sizes = [4, 128], strides = [1, 1]} : vector<4x512xf32> to vector<4x128xf32>
    %178 = math.tanh %177 : vector<4x128xf32>
    %179 = vector.extract_strided_slice %164 {offsets = [0, 384], sizes = [4, 128], strides = [1, 1]} : vector<4x512xf32> to vector<4x128xf32>
    %180 = arith.negf %179 : vector<4x128xf32>
    %181 = math.exp %180 : vector<4x128xf32>
    %cst_51 = arith.constant 1.000000e+00 : f32
    %182 = vector.broadcast %cst_51 : f32 to vector<4x128xf32>
    %183 = arith.addf %182, %181 : vector<4x128xf32>
    %184 = arith.divf %182, %183 : vector<4x128xf32>
    %185 = arith.mulf %176, %141 : vector<4x128xf32>
    %186 = arith.mulf %170, %178 : vector<4x128xf32>
    %187 = arith.addf %185, %186 : vector<4x128xf32>
    %188 = math.tanh %187 : vector<4x128xf32>
    %189 = arith.mulf %184, %188 : vector<4x128xf32>
    %190 = vector.extract_strided_slice %189 {offsets = [0, 0], sizes = [2, 128], strides = [1, 1]} : vector<4x128xf32> to vector<2x128xf32>
    %191 = arith.index_cast %155 : i32 to index
    %c0_52 = arith.constant 0 : index
    %192 = vector.load %arg5[%191, %c0_52] : memref<16x256xf32, #tpu.memory_space<vmem>>, vector<2x128xf32>
    tpu.vector_store %arg5[%191, %c0_52], %190 {strides = array<i32>} : memref<16x256xf32, #tpu.memory_space<vmem>>, vector<2x128xf32>,
    %193 = vector.extract_strided_slice %189 {offsets = [2, 0], sizes = [2, 128], strides = [1, 1]} : vector<4x128xf32> to vector<2x128xf32>
    %194 = arith.index_cast %157 : i32 to index
    %c128_53 = arith.constant 128 : index
    %195 = vector.load %arg5[%194, %c128_53] : memref<16x256xf32, #tpu.memory_space<vmem>>, vector<2x128xf32>
    tpu.vector_store %arg5[%194, %c128_53], %193 {strides = array<i32>} : memref<16x256xf32, #tpu.memory_space<vmem>>, vector<2x128xf32>,
    %196 = vector.broadcast %12 : vector<4x1xf32> to vector<4x128xf32>
    %197 = arith.mulf %189, %196 : vector<4x128xf32>
    %198 = vector.broadcast %14 : vector<4x1xf32> to vector<4x128xf32>
    %199 = arith.mulf %189, %198 : vector<4x128xf32>
    %200 = tpu.concatenate %197, %199 in 1 : vector<4x128xf32>, vector<4x128xf32> -> vector<4x256xf32>
    %c4_i32 = arith.constant 4 : i32
    %c2_i32_54 = arith.constant 2 : i32
    %201 = arith.muli %c4_i32, %c2_i32_54 : i32
    %c7_i32_55 = arith.constant 7 : i32
    %202 = arith.subi %c7_i32_55, %c4_i32 : i32
    %c2_i32_56 = arith.constant 2 : i32
    %203 = arith.muli %202, %c2_i32_56 : i32
    %204 = arith.index_cast %201 : i32 to index
    %c0_57 = arith.constant 0 : index
    %205 = vector.load %arg6[%204, %c0_57] : memref<16x1024xf32, #tpu.memory_space<vmem>>, vector<2x512xf32>
    %206 = arith.index_cast %203 : i32 to index
    %c512_58 = arith.constant 512 : index
    %207 = vector.load %arg6[%206, %c512_58] : memref<16x1024xf32, #tpu.memory_space<vmem>>, vector<2x512xf32>
    %208 = tpu.concatenate %205, %207 in 0 : vector<2x512xf32>, vector<2x512xf32> -> vector<4x512xf32>
    %cst_59 = arith.constant dense<0.000000e+00> : vector<4x512xf32>
    %209 = tpu.matmul %200, %7, %cst_59 {dimension_numbers = #tpu.dot_dimension_numbers<[1], [0], [0], [1], [0, 0, 1, 1], [], []>} : vector<4x256xf32>, vector<256x512xf32>, vector<4x512xf32> -> vector<4x512xf32>
    %210 = arith.addf %208, %209 : vector<4x512xf32>
    %211 = vector.extract_strided_slice %210 {offsets = [0, 0], sizes = [4, 128], strides = [1, 1]} : vector<4x512xf32> to vector<4x128xf32>
    %212 = arith.negf %211 : vector<4x128xf32>
    %213 = math.exp %212 : vector<4x128xf32>
    %cst_60 = arith.constant 1.000000e+00 : f32
    %214 = vector.broadcast %cst_60 : f32 to vector<4x128xf32>
    %215 = arith.addf %214, %213 : vector<4x128xf32>
    %216 = arith.divf %214, %215 : vector<4x128xf32>
    %217 = vector.extract_strided_slice %210 {offsets = [0, 128], sizes = [4, 128], strides = [1, 1]} : vector<4x512xf32> to vector<4x128xf32>
    %218 = arith.negf %217 : vector<4x128xf32>
    %219 = math.exp %218 : vector<4x128xf32>
    %cst_61 = arith.constant 1.000000e+00 : f32
    %220 = vector.broadcast %cst_61 : f32 to vector<4x128xf32>
    %221 = arith.addf %220, %219 : vector<4x128xf32>
    %222 = arith.divf %220, %221 : vector<4x128xf32>
    %223 = vector.extract_strided_slice %210 {offsets = [0, 256], sizes = [4, 128], strides = [1, 1]} : vector<4x512xf32> to vector<4x128xf32>
    %224 = math.tanh %223 : vector<4x128xf32>
    %225 = vector.extract_strided_slice %210 {offsets = [0, 384], sizes = [4, 128], strides = [1, 1]} : vector<4x512xf32> to vector<4x128xf32>
    %226 = arith.negf %225 : vector<4x128xf32>
    %227 = math.exp %226 : vector<4x128xf32>
    %cst_62 = arith.constant 1.000000e+00 : f32
    %228 = vector.broadcast %cst_62 : f32 to vector<4x128xf32>
    %229 = arith.addf %228, %227 : vector<4x128xf32>
    %230 = arith.divf %228, %229 : vector<4x128xf32>
    %231 = arith.mulf %222, %187 : vector<4x128xf32>
    %232 = arith.mulf %216, %224 : vector<4x128xf32>
    %233 = arith.addf %231, %232 : vector<4x128xf32>
    %234 = math.tanh %233 : vector<4x128xf32>
    %235 = arith.mulf %230, %234 : vector<4x128xf32>
    %236 = vector.extract_strided_slice %235 {offsets = [0, 0], sizes = [2, 128], strides = [1, 1]} : vector<4x128xf32> to vector<2x128xf32>
    %237 = arith.index_cast %201 : i32 to index
    %c0_63 = arith.constant 0 : index
    %238 = vector.load %arg5[%237, %c0_63] : memref<16x256xf32, #tpu.memory_space<vmem>>, vector<2x128xf32>
    tpu.vector_store %arg5[%237, %c0_63], %236 {strides = array<i32>} : memref<16x256xf32, #tpu.memory_space<vmem>>, vector<2x128xf32>,
    %239 = vector.extract_strided_slice %235 {offsets = [2, 0], sizes = [2, 128], strides = [1, 1]} : vector<4x128xf32> to vector<2x128xf32>
    %240 = arith.index_cast %203 : i32 to index
    %c128_64 = arith.constant 128 : index
    %241 = vector.load %arg5[%240, %c128_64] : memref<16x256xf32, #tpu.memory_space<vmem>>, vector<2x128xf32>
    tpu.vector_store %arg5[%240, %c128_64], %239 {strides = array<i32>} : memref<16x256xf32, #tpu.memory_space<vmem>>, vector<2x128xf32>,
    %242 = vector.broadcast %12 : vector<4x1xf32> to vector<4x128xf32>
    %243 = arith.mulf %235, %242 : vector<4x128xf32>
    %244 = vector.broadcast %14 : vector<4x1xf32> to vector<4x128xf32>
    %245 = arith.mulf %235, %244 : vector<4x128xf32>
    %246 = tpu.concatenate %243, %245 in 1 : vector<4x128xf32>, vector<4x128xf32> -> vector<4x256xf32>
    %c5_i32 = arith.constant 5 : i32
    %c2_i32_65 = arith.constant 2 : i32
    %247 = arith.muli %c5_i32, %c2_i32_65 : i32
    %c7_i32_66 = arith.constant 7 : i32
    %248 = arith.subi %c7_i32_66, %c5_i32 : i32
    %c2_i32_67 = arith.constant 2 : i32
    %249 = arith.muli %248, %c2_i32_67 : i32
    %250 = arith.index_cast %247 : i32 to index
    %c0_68 = arith.constant 0 : index
    %251 = vector.load %arg6[%250, %c0_68] : memref<16x1024xf32, #tpu.memory_space<vmem>>, vector<2x512xf32>
    %252 = arith.index_cast %249 : i32 to index
    %c512_69 = arith.constant 512 : index
    %253 = vector.load %arg6[%252, %c512_69] : memref<16x1024xf32, #tpu.memory_space<vmem>>, vector<2x512xf32>
    %254 = tpu.concatenate %251, %253 in 0 : vector<2x512xf32>, vector<2x512xf32> -> vector<4x512xf32>
    %cst_70 = arith.constant dense<0.000000e+00> : vector<4x512xf32>
    %255 = tpu.matmul %246, %7, %cst_70 {dimension_numbers = #tpu.dot_dimension_numbers<[1], [0], [0], [1], [0, 0, 1, 1], [], []>} : vector<4x256xf32>, vector<256x512xf32>, vector<4x512xf32> -> vector<4x512xf32>
    %256 = arith.addf %254, %255 : vector<4x512xf32>
    %257 = vector.extract_strided_slice %256 {offsets = [0, 0], sizes = [4, 128], strides = [1, 1]} : vector<4x512xf32> to vector<4x128xf32>
    %258 = arith.negf %257 : vector<4x128xf32>
    %259 = math.exp %258 : vector<4x128xf32>
    %cst_71 = arith.constant 1.000000e+00 : f32
    %260 = vector.broadcast %cst_71 : f32 to vector<4x128xf32>
    %261 = arith.addf %260, %259 : vector<4x128xf32>
    %262 = arith.divf %260, %261 : vector<4x128xf32>
    %263 = vector.extract_strided_slice %256 {offsets = [0, 128], sizes = [4, 128], strides = [1, 1]} : vector<4x512xf32> to vector<4x128xf32>
    %264 = arith.negf %263 : vector<4x128xf32>
    %265 = math.exp %264 : vector<4x128xf32>
    %cst_72 = arith.constant 1.000000e+00 : f32
    %266 = vector.broadcast %cst_72 : f32 to vector<4x128xf32>
    %267 = arith.addf %266, %265 : vector<4x128xf32>
    %268 = arith.divf %266, %267 : vector<4x128xf32>
    %269 = vector.extract_strided_slice %256 {offsets = [0, 256], sizes = [4, 128], strides = [1, 1]} : vector<4x512xf32> to vector<4x128xf32>
    %270 = math.tanh %269 : vector<4x128xf32>
    %271 = vector.extract_strided_slice %256 {offsets = [0, 384], sizes = [4, 128], strides = [1, 1]} : vector<4x512xf32> to vector<4x128xf32>
    %272 = arith.negf %271 : vector<4x128xf32>
    %273 = math.exp %272 : vector<4x128xf32>
    %cst_73 = arith.constant 1.000000e+00 : f32
    %274 = vector.broadcast %cst_73 : f32 to vector<4x128xf32>
    %275 = arith.addf %274, %273 : vector<4x128xf32>
    %276 = arith.divf %274, %275 : vector<4x128xf32>
    %277 = arith.mulf %268, %233 : vector<4x128xf32>
    %278 = arith.mulf %262, %270 : vector<4x128xf32>
    %279 = arith.addf %277, %278 : vector<4x128xf32>
    %280 = math.tanh %279 : vector<4x128xf32>
    %281 = arith.mulf %276, %280 : vector<4x128xf32>
    %282 = vector.extract_strided_slice %281 {offsets = [0, 0], sizes = [2, 128], strides = [1, 1]} : vector<4x128xf32> to vector<2x128xf32>
    %283 = arith.index_cast %247 : i32 to index
    %c0_74 = arith.constant 0 : index
    %284 = vector.load %arg5[%283, %c0_74] : memref<16x256xf32, #tpu.memory_space<vmem>>, vector<2x128xf32>
    tpu.vector_store %arg5[%283, %c0_74], %282 {strides = array<i32>} : memref<16x256xf32, #tpu.memory_space<vmem>>, vector<2x128xf32>,
    %285 = vector.extract_strided_slice %281 {offsets = [2, 0], sizes = [2, 128], strides = [1, 1]} : vector<4x128xf32> to vector<2x128xf32>
    %286 = arith.index_cast %249 : i32 to index
    %c128_75 = arith.constant 128 : index
    %287 = vector.load %arg5[%286, %c128_75] : memref<16x256xf32, #tpu.memory_space<vmem>>, vector<2x128xf32>
    tpu.vector_store %arg5[%286, %c128_75], %285 {strides = array<i32>} : memref<16x256xf32, #tpu.memory_space<vmem>>, vector<2x128xf32>,
    %288 = vector.broadcast %12 : vector<4x1xf32> to vector<4x128xf32>
    %289 = arith.mulf %281, %288 : vector<4x128xf32>
    %290 = vector.broadcast %14 : vector<4x1xf32> to vector<4x128xf32>
    %291 = arith.mulf %281, %290 : vector<4x128xf32>
    %292 = tpu.concatenate %289, %291 in 1 : vector<4x128xf32>, vector<4x128xf32> -> vector<4x256xf32>
    %c6_i32 = arith.constant 6 : i32
    %c2_i32_76 = arith.constant 2 : i32
    %293 = arith.muli %c6_i32, %c2_i32_76 : i32
    %c7_i32_77 = arith.constant 7 : i32
    %294 = arith.subi %c7_i32_77, %c6_i32 : i32
    %c2_i32_78 = arith.constant 2 : i32
    %295 = arith.muli %294, %c2_i32_78 : i32
    %296 = arith.index_cast %293 : i32 to index
    %c0_79 = arith.constant 0 : index
    %297 = vector.load %arg6[%296, %c0_79] : memref<16x1024xf32, #tpu.memory_space<vmem>>, vector<2x512xf32>
    %298 = arith.index_cast %295 : i32 to index
    %c512_80 = arith.constant 512 : index
    %299 = vector.load %arg6[%298, %c512_80] : memref<16x1024xf32, #tpu.memory_space<vmem>>, vector<2x512xf32>
    %300 = tpu.concatenate %297, %299 in 0 : vector<2x512xf32>, vector<2x512xf32> -> vector<4x512xf32>
    %cst_81 = arith.constant dense<0.000000e+00> : vector<4x512xf32>
    %301 = tpu.matmul %292, %7, %cst_81 {dimension_numbers = #tpu.dot_dimension_numbers<[1], [0], [0], [1], [0, 0, 1, 1], [], []>} : vector<4x256xf32>, vector<256x512xf32>, vector<4x512xf32> -> vector<4x512xf32>
    %302 = arith.addf %300, %301 : vector<4x512xf32>
    %303 = vector.extract_strided_slice %302 {offsets = [0, 0], sizes = [4, 128], strides = [1, 1]} : vector<4x512xf32> to vector<4x128xf32>
    %304 = arith.negf %303 : vector<4x128xf32>
    %305 = math.exp %304 : vector<4x128xf32>
    %cst_82 = arith.constant 1.000000e+00 : f32
    %306 = vector.broadcast %cst_82 : f32 to vector<4x128xf32>
    %307 = arith.addf %306, %305 : vector<4x128xf32>
    %308 = arith.divf %306, %307 : vector<4x128xf32>
    %309 = vector.extract_strided_slice %302 {offsets = [0, 128], sizes = [4, 128], strides = [1, 1]} : vector<4x512xf32> to vector<4x128xf32>
    %310 = arith.negf %309 : vector<4x128xf32>
    %311 = math.exp %310 : vector<4x128xf32>
    %cst_83 = arith.constant 1.000000e+00 : f32
    %312 = vector.broadcast %cst_83 : f32 to vector<4x128xf32>
    %313 = arith.addf %312, %311 : vector<4x128xf32>
    %314 = arith.divf %312, %313 : vector<4x128xf32>
    %315 = vector.extract_strided_slice %302 {offsets = [0, 256], sizes = [4, 128], strides = [1, 1]} : vector<4x512xf32> to vector<4x128xf32>
    %316 = math.tanh %315 : vector<4x128xf32>
    %317 = vector.extract_strided_slice %302 {offsets = [0, 384], sizes = [4, 128], strides = [1, 1]} : vector<4x512xf32> to vector<4x128xf32>
    %318 = arith.negf %317 : vector<4x128xf32>
    %319 = math.exp %318 : vector<4x128xf32>
    %cst_84 = arith.constant 1.000000e+00 : f32
    %320 = vector.broadcast %cst_84 : f32 to vector<4x128xf32>
    %321 = arith.addf %320, %319 : vector<4x128xf32>
    %322 = arith.divf %320, %321 : vector<4x128xf32>
    %323 = arith.mulf %314, %279 : vector<4x128xf32>
    %324 = arith.mulf %308, %316 : vector<4x128xf32>
    %325 = arith.addf %323, %324 : vector<4x128xf32>
    %326 = math.tanh %325 : vector<4x128xf32>
    %327 = arith.mulf %322, %326 : vector<4x128xf32>
    %328 = vector.extract_strided_slice %327 {offsets = [0, 0], sizes = [2, 128], strides = [1, 1]} : vector<4x128xf32> to vector<2x128xf32>
    %329 = arith.index_cast %293 : i32 to index
    %c0_85 = arith.constant 0 : index
    %330 = vector.load %arg5[%329, %c0_85] : memref<16x256xf32, #tpu.memory_space<vmem>>, vector<2x128xf32>
    tpu.vector_store %arg5[%329, %c0_85], %328 {strides = array<i32>} : memref<16x256xf32, #tpu.memory_space<vmem>>, vector<2x128xf32>,
    %331 = vector.extract_strided_slice %327 {offsets = [2, 0], sizes = [2, 128], strides = [1, 1]} : vector<4x128xf32> to vector<2x128xf32>
    %332 = arith.index_cast %295 : i32 to index
    %c128_86 = arith.constant 128 : index
    %333 = vector.load %arg5[%332, %c128_86] : memref<16x256xf32, #tpu.memory_space<vmem>>, vector<2x128xf32>
    tpu.vector_store %arg5[%332, %c128_86], %331 {strides = array<i32>} : memref<16x256xf32, #tpu.memory_space<vmem>>, vector<2x128xf32>,
    %334 = vector.broadcast %12 : vector<4x1xf32> to vector<4x128xf32>
    %335 = arith.mulf %327, %334 : vector<4x128xf32>
    %336 = vector.broadcast %14 : vector<4x1xf32> to vector<4x128xf32>
    %337 = arith.mulf %327, %336 : vector<4x128xf32>
    %338 = tpu.concatenate %335, %337 in 1 : vector<4x128xf32>, vector<4x128xf32> -> vector<4x256xf32>
    %c7_i32_87 = arith.constant 7 : i32
    %c2_i32_88 = arith.constant 2 : i32
    %339 = arith.muli %c7_i32_87, %c2_i32_88 : i32
    %c7_i32_89 = arith.constant 7 : i32
    %340 = arith.subi %c7_i32_89, %c7_i32_87 : i32
    %c2_i32_90 = arith.constant 2 : i32
    %341 = arith.muli %340, %c2_i32_90 : i32
    %342 = arith.index_cast %339 : i32 to index
    %c0_91 = arith.constant 0 : index
    %343 = vector.load %arg6[%342, %c0_91] : memref<16x1024xf32, #tpu.memory_space<vmem>>, vector<2x512xf32>
    %344 = arith.index_cast %341 : i32 to index
    %c512_92 = arith.constant 512 : index
    %345 = vector.load %arg6[%344, %c512_92] : memref<16x1024xf32, #tpu.memory_space<vmem>>, vector<2x512xf32>
    %346 = tpu.concatenate %343, %345 in 0 : vector<2x512xf32>, vector<2x512xf32> -> vector<4x512xf32>
    %cst_93 = arith.constant dense<0.000000e+00> : vector<4x512xf32>
    %347 = tpu.matmul %338, %7, %cst_93 {dimension_numbers = #tpu.dot_dimension_numbers<[1], [0], [0], [1], [0, 0, 1, 1], [], []>} : vector<4x256xf32>, vector<256x512xf32>, vector<4x512xf32> -> vector<4x512xf32>
    %348 = arith.addf %346, %347 : vector<4x512xf32>
    %349 = vector.extract_strided_slice %348 {offsets = [0, 0], sizes = [4, 128], strides = [1, 1]} : vector<4x512xf32> to vector<4x128xf32>
    %350 = arith.negf %349 : vector<4x128xf32>
    %351 = math.exp %350 : vector<4x128xf32>
    %cst_94 = arith.constant 1.000000e+00 : f32
    %352 = vector.broadcast %cst_94 : f32 to vector<4x128xf32>
    %353 = arith.addf %352, %351 : vector<4x128xf32>
    %354 = arith.divf %352, %353 : vector<4x128xf32>
    %355 = vector.extract_strided_slice %348 {offsets = [0, 128], sizes = [4, 128], strides = [1, 1]} : vector<4x512xf32> to vector<4x128xf32>
    %356 = arith.negf %355 : vector<4x128xf32>
    %357 = math.exp %356 : vector<4x128xf32>
    %cst_95 = arith.constant 1.000000e+00 : f32
    %358 = vector.broadcast %cst_95 : f32 to vector<4x128xf32>
    %359 = arith.addf %358, %357 : vector<4x128xf32>
    %360 = arith.divf %358, %359 : vector<4x128xf32>
    %361 = vector.extract_strided_slice %348 {offsets = [0, 256], sizes = [4, 128], strides = [1, 1]} : vector<4x512xf32> to vector<4x128xf32>
    %362 = math.tanh %361 : vector<4x128xf32>
    %363 = vector.extract_strided_slice %348 {offsets = [0, 384], sizes = [4, 128], strides = [1, 1]} : vector<4x512xf32> to vector<4x128xf32>
    %364 = arith.negf %363 : vector<4x128xf32>
    %365 = math.exp %364 : vector<4x128xf32>
    %cst_96 = arith.constant 1.000000e+00 : f32
    %366 = vector.broadcast %cst_96 : f32 to vector<4x128xf32>
    %367 = arith.addf %366, %365 : vector<4x128xf32>
    %368 = arith.divf %366, %367 : vector<4x128xf32>
    %369 = arith.mulf %360, %325 : vector<4x128xf32>
    %370 = arith.mulf %354, %362 : vector<4x128xf32>
    %371 = arith.addf %369, %370 : vector<4x128xf32>
    %372 = math.tanh %371 : vector<4x128xf32>
    %373 = arith.mulf %368, %372 : vector<4x128xf32>
    %374 = vector.extract_strided_slice %373 {offsets = [0, 0], sizes = [2, 128], strides = [1, 1]} : vector<4x128xf32> to vector<2x128xf32>
    %375 = arith.index_cast %339 : i32 to index
    %c0_97 = arith.constant 0 : index
    %376 = vector.load %arg5[%375, %c0_97] : memref<16x256xf32, #tpu.memory_space<vmem>>, vector<2x128xf32>
    tpu.vector_store %arg5[%375, %c0_97], %374 {strides = array<i32>} : memref<16x256xf32, #tpu.memory_space<vmem>>, vector<2x128xf32>,
    %377 = vector.extract_strided_slice %373 {offsets = [2, 0], sizes = [2, 128], strides = [1, 1]} : vector<4x128xf32> to vector<2x128xf32>
    %378 = arith.index_cast %341 : i32 to index
    %c128_98 = arith.constant 128 : index
    %379 = vector.load %arg5[%378, %c128_98] : memref<16x256xf32, #tpu.memory_space<vmem>>, vector<2x128xf32>
    tpu.vector_store %arg5[%378, %c128_98], %377 {strides = array<i32>} : memref<16x256xf32, #tpu.memory_space<vmem>>, vector<2x128xf32>,
    %380 = vector.broadcast %12 : vector<4x1xf32> to vector<4x128xf32>
    %381 = arith.mulf %373, %380 : vector<4x128xf32>
    %382 = vector.broadcast %14 : vector<4x1xf32> to vector<4x128xf32>
    %383 = arith.mulf %373, %382 : vector<4x128xf32>
    %384 = tpu.concatenate %381, %383 in 1 : vector<4x128xf32>, vector<4x128xf32> -> vector<4x256xf32>
    %c8_i32 = arith.constant 8 : i32
    return
  }
  func.func @transform_0(%arg0: i32) -> (i32, i32) {
    %c0_i32 = arith.constant 0 : i32
    %c0_i32_0 = arith.constant 0 : i32
    %c0_i32_1 = arith.constant 0 : i32
    return %c0_i32, %c0_i32_0 : i32, i32
  }
  func.func @transform_1(%arg0: i32) -> (i32, i32) {
    %c0_i32 = arith.constant 0 : i32
    %c0_i32_0 = arith.constant 0 : i32
    %c0_i32_1 = arith.constant 0 : i32
    return %c0_i32, %c0_i32_0 : i32, i32
  }
  func.func @transform_2(%arg0: i32) -> (i32, i32) {
    %c0_i32 = arith.constant 0 : i32
    %c0_i32_0 = arith.constant 0 : i32
    %c0_i32_1 = arith.constant 0 : i32
    return %c0_i32, %c0_i32_0 : i32, i32
  }
  func.func @transform_3(%arg0: i32) -> (i32, i32) {
    %c0_i32 = arith.constant 0 : i32
    %c0_i32_0 = arith.constant 0 : i32
    %c0_i32_1 = arith.constant 0 : i32
    return %c0_i32, %c0_i32_0 : i32, i32
  }
  func.func @transform_4(%arg0: i32) -> (i32, i32) {
    %c0_i32 = arith.constant 0 : i32
    %c0_i32_0 = arith.constant 0 : i32
    %c0_i32_1 = arith.constant 0 : i32
    return %c0_i32, %c0_i32_0 : i32, i32
  }
}

module attributes {stable_mosaic.version = 11 : i64} {
  func.func @bilstm_layer_kernel(%arg0: i32, %arg1: memref<16x256xf32, #tpu.memory_space<vmem>>, %arg2: memref<256x1024xf32, #tpu.memory_space<vmem>>, %arg3: memref<1x1024xf32, #tpu.memory_space<vmem>>, %arg4: memref<256x512xf32, #tpu.memory_space<vmem>>, %arg5: memref<16x256xf32, #tpu.memory_space<vmem>>, %arg6: memref<16x1024xf32, #tpu.memory_space<vmem>>) attributes {dimension_semantics = [#tpu.dimension_semantics<arbitrary>], iteration_bounds = array<i64: 1>, scalar_prefetch = 0 : i64, scratch_operands = 1 : i64, tpu.core_type = #tpu.core_type<tc>, window_params = [{pipeline_mode = #tpu.pipeline_mode<synchronous>, transform_indices = @transform_0, window_bounds = array<i64: 16, 256>}, {pipeline_mode = #tpu.pipeline_mode<synchronous>, transform_indices = @transform_1, window_bounds = array<i64: 256, 1024>}, {pipeline_mode = #tpu.pipeline_mode<synchronous>, transform_indices = @transform_2, window_bounds = array<i64: 1, 1024>}, {pipeline_mode = #tpu.pipeline_mode<synchronous>, transform_indices = @transform_3, window_bounds = array<i64: 256, 512>}, {pipeline_mode = #tpu.pipeline_mode<synchronous>, transform_indices = @transform_4, window_bounds = array<i64: 16, 256>}]} {
    %c0 = arith.constant 0 : index
    %c0_0 = arith.constant 0 : index
    %0 = vector.load %arg1[%c0, %c0_0] : memref<16x256xf32, #tpu.memory_space<vmem>>, vector<16x256xf32>
    %c0_1 = arith.constant 0 : index
    %c0_2 = arith.constant 0 : index
    %1 = vector.load %arg2[%c0_1, %c0_2] : memref<256x1024xf32, #tpu.memory_space<vmem>>, vector<256x1024xf32>
    %cst = arith.constant dense<0.000000e+00> : vector<16x1024xf32>
    %2 = tpu.matmul %0, %1, %cst {dimension_numbers = #tpu.dot_dimension_numbers<[1], [0], [0], [1], [0, 0, 1, 1], [], []>} : vector<16x256xf32>, vector<256x1024xf32>, vector<16x1024xf32> -> vector<16x1024xf32>
    %c0_3 = arith.constant 0 : index
    %c0_4 = arith.constant 0 : index
    %3 = vector.load %arg3[%c0_3, %c0_4] : memref<1x1024xf32, #tpu.memory_space<vmem>>, vector<1x1024xf32>
    %4 = vector.broadcast %3 : vector<1x1024xf32> to vector<16x1024xf32>
    %5 = arith.addf %2, %4 : vector<16x1024xf32>
    %c0_5 = arith.constant 0 : index
    %c0_6 = arith.constant 0 : index
    %6 = vector.load %arg6[%c0_5, %c0_6] : memref<16x1024xf32, #tpu.memory_space<vmem>>, vector<16x1024xf32>
    tpu.vector_store %arg6[%c0_5, %c0_6], %5 {strides = array<i32>} : memref<16x1024xf32, #tpu.memory_space<vmem>>, vector<16x1024xf32>,
    %c0_7 = arith.constant 0 : index
    %c0_8 = arith.constant 0 : index
    %7 = vector.load %arg4[%c0_7, %c0_8] : memref<256x512xf32, #tpu.memory_space<vmem>>, vector<256x512xf32>
    %8 = tpu.iota {dimensions = array<i32: 0>} : vector<4x1xi32>
    %c2_i32 = arith.constant 2 : i32
    %9 = vector.broadcast %c2_i32 : i32 to vector<4x1xi32>
    %10 = arith.cmpi slt, %8, %9 : vector<4x1xi32>
    %11 = arith.extui %10 : vector<4x1xi1> to vector<4x1xi32>
    %12 = arith.sitofp %11 : vector<4x1xi32> to vector<4x1xf32>
    %cst_9 = arith.constant 1.000000e+00 : f32
    %13 = vector.broadcast %cst_9 : f32 to vector<4x1xf32>
    %14 = arith.subf %13, %12 : vector<4x1xf32>
    %cst_10 = arith.constant 0.000000e+00 : f32
    %15 = vector.broadcast %cst_10 : f32 to vector<4x256xf32>
    %cst_11 = arith.constant 0.000000e+00 : f32
    %16 = vector.broadcast %cst_11 : f32 to vector<4x128xf32>
    %c0_i32 = arith.constant 0 : i32
    %c2_i32_12 = arith.constant 2 : i32
    %17 = arith.muli %c0_i32, %c2_i32_12 : i32
    %c7_i32 = arith.constant 7 : i32
    %18 = arith.subi %c7_i32, %c0_i32 : i32
    %c2_i32_13 = arith.constant 2 : i32
    %19 = arith.muli %18, %c2_i32_13 : i32
    %20 = arith.index_cast %17 : i32 to index
    %c0_14 = arith.constant 0 : index
    %21 = vector.load %arg6[%20, %c0_14] : memref<16x1024xf32, #tpu.memory_space<vmem>>, vector<2x512xf32>
    %22 = arith.index_cast %19 : i32 to index
    %c512 = arith.constant 512 : index
    %23 = vector.load %arg6[%22, %c512] : memref<16x1024xf32, #tpu.memory_space<vmem>>, vector<2x512xf32>
    %24 = tpu.concatenate %21, %23 in 0 : vector<2x512xf32>, vector<2x512xf32> -> vector<4x512xf32>
    %cst_15 = arith.constant dense<0.000000e+00> : vector<4x512xf32>
    %25 = tpu.matmul %15, %7, %cst_15 {dimension_numbers = #tpu.dot_dimension_numbers<[1], [0], [0], [1], [0, 0, 1, 1], [], []>} : vector<4x256xf32>, vector<256x512xf32>, vector<4x512xf32> -> vector<4x512xf32>
    %26 = arith.addf %24, %25 : vector<4x512xf32>
    %27 = vector.extract_strided_slice %26 {offsets = [0, 0], sizes = [4, 128], strides = [1, 1]} : vector<4x512xf32> to vector<4x128xf32>
    %28 = arith.negf %27 : vector<4x128xf32>
    %29 = math.exp %28 : vector<4x128xf32>
    %cst_16 = arith.constant 1.000000e+00 : f32
    %30 = vector.broadcast %cst_16 : f32 to vector<4x128xf32>
    %31 = arith.addf %30, %29 : vector<4x128xf32>
    %32 = arith.divf %30, %31 : vector<4x128xf32>
    %33 = vector.extract_strided_slice %26 {offsets = [0, 128], sizes = [4, 128], strides = [1, 1]} : vector<4x512xf32> to vector<4x128xf32>
    %34 = arith.negf %33 : vector<4x128xf32>
    %35 = math.exp %34 : vector<4x128xf32>
    %cst_17 = arith.constant 1.000000e+00 : f32
    %36 = vector.broadcast %cst_17 : f32 to vector<4x128xf32>
    %37 = arith.addf %36, %35 : vector<4x128xf32>
    %38 = arith.divf %36, %37 : vector<4x128xf32>
    %39 = vector.extract_strided_slice %26 {offsets = [0, 256], sizes = [4, 128], strides = [1, 1]} : vector<4x512xf32> to vector<4x128xf32>
    %40 = math.tanh %39 : vector<4x128xf32>
    %41 = vector.extract_strided_slice %26 {offsets = [0, 384], sizes = [4, 128], strides = [1, 1]} : vector<4x512xf32> to vector<4x128xf32>
    %42 = arith.negf %41 : vector<4x128xf32>
    %43 = math.exp %42 : vector<4x128xf32>
    %cst_18 = arith.constant 1.000000e+00 : f32
    %44 = vector.broadcast %cst_18 : f32 to vector<4x128xf32>
    %45 = arith.addf %44, %43 : vector<4x128xf32>
    %46 = arith.divf %44, %45 : vector<4x128xf32>
    %47 = arith.mulf %38, %16 : vector<4x128xf32>
    %48 = arith.mulf %32, %40 : vector<4x128xf32>
    %49 = arith.addf %47, %48 : vector<4x128xf32>
    %50 = math.tanh %49 : vector<4x128xf32>
    %51 = arith.mulf %46, %50 : vector<4x128xf32>
    %52 = vector.extract_strided_slice %51 {offsets = [0, 0], sizes = [2, 128], strides = [1, 1]} : vector<4x128xf32> to vector<2x128xf32>
    %53 = arith.index_cast %17 : i32 to index
    %c0_19 = arith.constant 0 : index
    %54 = vector.load %arg5[%53, %c0_19] : memref<16x256xf32, #tpu.memory_space<vmem>>, vector<2x128xf32>
    tpu.vector_store %arg5[%53, %c0_19], %52 {strides = array<i32>} : memref<16x256xf32, #tpu.memory_space<vmem>>, vector<2x128xf32>,
    %55 = vector.extract_strided_slice %51 {offsets = [2, 0], sizes = [2, 128], strides = [1, 1]} : vector<4x128xf32> to vector<2x128xf32>
    %56 = arith.index_cast %19 : i32 to index
    %c128 = arith.constant 128 : index
    %57 = vector.load %arg5[%56, %c128] : memref<16x256xf32, #tpu.memory_space<vmem>>, vector<2x128xf32>
    tpu.vector_store %arg5[%56, %c128], %55 {strides = array<i32>} : memref<16x256xf32, #tpu.memory_space<vmem>>, vector<2x128xf32>,
    %58 = vector.broadcast %12 : vector<4x1xf32> to vector<4x128xf32>
    %59 = arith.mulf %51, %58 : vector<4x128xf32>
    %60 = vector.broadcast %14 : vector<4x1xf32> to vector<4x128xf32>
    %61 = arith.mulf %51, %60 : vector<4x128xf32>
    %62 = tpu.concatenate %59, %61 in 1 : vector<4x128xf32>, vector<4x128xf32> -> vector<4x256xf32>
    %c1_i32 = arith.constant 1 : i32
    %c2_i32_20 = arith.constant 2 : i32
    %63 = arith.muli %c1_i32, %c2_i32_20 : i32
    %c7_i32_21 = arith.constant 7 : i32
    %64 = arith.subi %c7_i32_21, %c1_i32 : i32
    %c2_i32_22 = arith.constant 2 : i32
    %65 = arith.muli %64, %c2_i32_22 : i32
    %66 = arith.index_cast %63 : i32 to index
    %c0_23 = arith.constant 0 : index
    %67 = vector.load %arg6[%66, %c0_23] : memref<16x1024xf32, #tpu.memory_space<vmem>>, vector<2x512xf32>
    %68 = arith.index_cast %65 : i32 to index
    %c512_24 = arith.constant 512 : index
    %69 = vector.load %arg6[%68, %c512_24] : memref<16x1024xf32, #tpu.memory_space<vmem>>, vector<2x512xf32>
    %70 = tpu.concatenate %67, %69 in 0 : vector<2x512xf32>, vector<2x512xf32> -> vector<4x512xf32>
    %cst_25 = arith.constant dense<0.000000e+00> : vector<4x512xf32>
    %71 = tpu.matmul %62, %7, %cst_25 {dimension_numbers = #tpu.dot_dimension_numbers<[1], [0], [0], [1], [0, 0, 1, 1], [], []>} : vector<4x256xf32>, vector<256x512xf32>, vector<4x512xf32> -> vector<4x512xf32>
    %72 = arith.addf %70, %71 : vector<4x512xf32>
    %73 = vector.extract_strided_slice %72 {offsets = [0, 0], sizes = [4, 128], strides = [1, 1]} : vector<4x512xf32> to vector<4x128xf32>
    %74 = arith.negf %73 : vector<4x128xf32>
    %75 = math.exp %74 : vector<4x128xf32>
    %cst_26 = arith.constant 1.000000e+00 : f32
    %76 = vector.broadcast %cst_26 : f32 to vector<4x128xf32>
    %77 = arith.addf %76, %75 : vector<4x128xf32>
    %78 = arith.divf %76, %77 : vector<4x128xf32>
    %79 = vector.extract_strided_slice %72 {offsets = [0, 128], sizes = [4, 128], strides = [1, 1]} : vector<4x512xf32> to vector<4x128xf32>
    %80 = arith.negf %79 : vector<4x128xf32>
    %81 = math.exp %80 : vector<4x128xf32>
    %cst_27 = arith.constant 1.000000e+00 : f32
    %82 = vector.broadcast %cst_27 : f32 to vector<4x128xf32>
    %83 = arith.addf %82, %81 : vector<4x128xf32>
    %84 = arith.divf %82, %83 : vector<4x128xf32>
    %85 = vector.extract_strided_slice %72 {offsets = [0, 256], sizes = [4, 128], strides = [1, 1]} : vector<4x512xf32> to vector<4x128xf32>
    %86 = math.tanh %85 : vector<4x128xf32>
    %87 = vector.extract_strided_slice %72 {offsets = [0, 384], sizes = [4, 128], strides = [1, 1]} : vector<4x512xf32> to vector<4x128xf32>
    %88 = arith.negf %87 : vector<4x128xf32>
    %89 = math.exp %88 : vector<4x128xf32>
    %cst_28 = arith.constant 1.000000e+00 : f32
    %90 = vector.broadcast %cst_28 : f32 to vector<4x128xf32>
    %91 = arith.addf %90, %89 : vector<4x128xf32>
    %92 = arith.divf %90, %91 : vector<4x128xf32>
    %93 = arith.mulf %84, %49 : vector<4x128xf32>
    %94 = arith.mulf %78, %86 : vector<4x128xf32>
    %95 = arith.addf %93, %94 : vector<4x128xf32>
    %96 = math.tanh %95 : vector<4x128xf32>
    %97 = arith.mulf %92, %96 : vector<4x128xf32>
    %98 = vector.extract_strided_slice %97 {offsets = [0, 0], sizes = [2, 128], strides = [1, 1]} : vector<4x128xf32> to vector<2x128xf32>
    %99 = arith.index_cast %63 : i32 to index
    %c0_29 = arith.constant 0 : index
    %100 = vector.load %arg5[%99, %c0_29] : memref<16x256xf32, #tpu.memory_space<vmem>>, vector<2x128xf32>
    tpu.vector_store %arg5[%99, %c0_29], %98 {strides = array<i32>} : memref<16x256xf32, #tpu.memory_space<vmem>>, vector<2x128xf32>,
    %101 = vector.extract_strided_slice %97 {offsets = [2, 0], sizes = [2, 128], strides = [1, 1]} : vector<4x128xf32> to vector<2x128xf32>
    %102 = arith.index_cast %65 : i32 to index
    %c128_30 = arith.constant 128 : index
    %103 = vector.load %arg5[%102, %c128_30] : memref<16x256xf32, #tpu.memory_space<vmem>>, vector<2x128xf32>
    tpu.vector_store %arg5[%102, %c128_30], %101 {strides = array<i32>} : memref<16x256xf32, #tpu.memory_space<vmem>>, vector<2x128xf32>,
    %104 = vector.broadcast %12 : vector<4x1xf32> to vector<4x128xf32>
    %105 = arith.mulf %97, %104 : vector<4x128xf32>
    %106 = vector.broadcast %14 : vector<4x1xf32> to vector<4x128xf32>
    %107 = arith.mulf %97, %106 : vector<4x128xf32>
    %108 = tpu.concatenate %105, %107 in 1 : vector<4x128xf32>, vector<4x128xf32> -> vector<4x256xf32>
    %c2_i32_31 = arith.constant 2 : i32
    %c2_i32_32 = arith.constant 2 : i32
    %109 = arith.muli %c2_i32_31, %c2_i32_32 : i32
    %c7_i32_33 = arith.constant 7 : i32
    %110 = arith.subi %c7_i32_33, %c2_i32_31 : i32
    %c2_i32_34 = arith.constant 2 : i32
    %111 = arith.muli %110, %c2_i32_34 : i32
    %112 = arith.index_cast %109 : i32 to index
    %c0_35 = arith.constant 0 : index
    %113 = vector.load %arg6[%112, %c0_35] : memref<16x1024xf32, #tpu.memory_space<vmem>>, vector<2x512xf32>
    %114 = arith.index_cast %111 : i32 to index
    %c512_36 = arith.constant 512 : index
    %115 = vector.load %arg6[%114, %c512_36] : memref<16x1024xf32, #tpu.memory_space<vmem>>, vector<2x512xf32>
    %116 = tpu.concatenate %113, %115 in 0 : vector<2x512xf32>, vector<2x512xf32> -> vector<4x512xf32>
    %cst_37 = arith.constant dense<0.000000e+00> : vector<4x512xf32>
    %117 = tpu.matmul %108, %7, %cst_37 {dimension_numbers = #tpu.dot_dimension_numbers<[1], [0], [0], [1], [0, 0, 1, 1], [], []>} : vector<4x256xf32>, vector<256x512xf32>, vector<4x512xf32> -> vector<4x512xf32>
    %118 = arith.addf %116, %117 : vector<4x512xf32>
    %119 = vector.extract_strided_slice %118 {offsets = [0, 0], sizes = [4, 128], strides = [1, 1]} : vector<4x512xf32> to vector<4x128xf32>
    %120 = arith.negf %119 : vector<4x128xf32>
    %121 = math.exp %120 : vector<4x128xf32>
    %cst_38 = arith.constant 1.000000e+00 : f32
    %122 = vector.broadcast %cst_38 : f32 to vector<4x128xf32>
    %123 = arith.addf %122, %121 : vector<4x128xf32>
    %124 = arith.divf %122, %123 : vector<4x128xf32>
    %125 = vector.extract_strided_slice %118 {offsets = [0, 128], sizes = [4, 128], strides = [1, 1]} : vector<4x512xf32> to vector<4x128xf32>
    %126 = arith.negf %125 : vector<4x128xf32>
    %127 = math.exp %126 : vector<4x128xf32>
    %cst_39 = arith.constant 1.000000e+00 : f32
    %128 = vector.broadcast %cst_39 : f32 to vector<4x128xf32>
    %129 = arith.addf %128, %127 : vector<4x128xf32>
    %130 = arith.divf %128, %129 : vector<4x128xf32>
    %131 = vector.extract_strided_slice %118 {offsets = [0, 256], sizes = [4, 128], strides = [1, 1]} : vector<4x512xf32> to vector<4x128xf32>
    %132 = math.tanh %131 : vector<4x128xf32>
    %133 = vector.extract_strided_slice %118 {offsets = [0, 384], sizes = [4, 128], strides = [1, 1]} : vector<4x512xf32> to vector<4x128xf32>
    %134 = arith.negf %133 : vector<4x128xf32>
    %135 = math.exp %134 : vector<4x128xf32>
    %cst_40 = arith.constant 1.000000e+00 : f32
    %136 = vector.broadcast %cst_40 : f32 to vector<4x128xf32>
    %137 = arith.addf %136, %135 : vector<4x128xf32>
    %138 = arith.divf %136, %137 : vector<4x128xf32>
    %139 = arith.mulf %130, %95 : vector<4x128xf32>
    %140 = arith.mulf %124, %132 : vector<4x128xf32>
    %141 = arith.addf %139, %140 : vector<4x128xf32>
    %142 = math.tanh %141 : vector<4x128xf32>
    %143 = arith.mulf %138, %142 : vector<4x128xf32>
    %144 = vector.extract_strided_slice %143 {offsets = [0, 0], sizes = [2, 128], strides = [1, 1]} : vector<4x128xf32> to vector<2x128xf32>
    %145 = arith.index_cast %109 : i32 to index
    %c0_41 = arith.constant 0 : index
    %146 = vector.load %arg5[%145, %c0_41] : memref<16x256xf32, #tpu.memory_space<vmem>>, vector<2x128xf32>
    tpu.vector_store %arg5[%145, %c0_41], %144 {strides = array<i32>} : memref<16x256xf32, #tpu.memory_space<vmem>>, vector<2x128xf32>,
    %147 = vector.extract_strided_slice %143 {offsets = [2, 0], sizes = [2, 128], strides = [1, 1]} : vector<4x128xf32> to vector<2x128xf32>
    %148 = arith.index_cast %111 : i32 to index
    %c128_42 = arith.constant 128 : index
    %149 = vector.load %arg5[%148, %c128_42] : memref<16x256xf32, #tpu.memory_space<vmem>>, vector<2x128xf32>
    tpu.vector_store %arg5[%148, %c128_42], %147 {strides = array<i32>} : memref<16x256xf32, #tpu.memory_space<vmem>>, vector<2x128xf32>,
    %150 = vector.broadcast %12 : vector<4x1xf32> to vector<4x128xf32>
    %151 = arith.mulf %143, %150 : vector<4x128xf32>
    %152 = vector.broadcast %14 : vector<4x1xf32> to vector<4x128xf32>
    %153 = arith.mulf %143, %152 : vector<4x128xf32>
    %154 = tpu.concatenate %151, %153 in 1 : vector<4x128xf32>, vector<4x128xf32> -> vector<4x256xf32>
    %c3_i32 = arith.constant 3 : i32
    %c2_i32_43 = arith.constant 2 : i32
    %155 = arith.muli %c3_i32, %c2_i32_43 : i32
    %c7_i32_44 = arith.constant 7 : i32
    %156 = arith.subi %c7_i32_44, %c3_i32 : i32
    %c2_i32_45 = arith.constant 2 : i32
    %157 = arith.muli %156, %c2_i32_45 : i32
    %158 = arith.index_cast %155 : i32 to index
    %c0_46 = arith.constant 0 : index
    %159 = vector.load %arg6[%158, %c0_46] : memref<16x1024xf32, #tpu.memory_space<vmem>>, vector<2x512xf32>
    %160 = arith.index_cast %157 : i32 to index
    %c512_47 = arith.constant 512 : index
    %161 = vector.load %arg6[%160, %c512_47] : memref<16x1024xf32, #tpu.memory_space<vmem>>, vector<2x512xf32>
    %162 = tpu.concatenate %159, %161 in 0 : vector<2x512xf32>, vector<2x512xf32> -> vector<4x512xf32>
    %cst_48 = arith.constant dense<0.000000e+00> : vector<4x512xf32>
    %163 = tpu.matmul %154, %7, %cst_48 {dimension_numbers = #tpu.dot_dimension_numbers<[1], [0], [0], [1], [0, 0, 1, 1], [], []>} : vector<4x256xf32>, vector<256x512xf32>, vector<4x512xf32> -> vector<4x512xf32>
    %164 = arith.addf %162, %163 : vector<4x512xf32>
    %165 = vector.extract_strided_slice %164 {offsets = [0, 0], sizes = [4, 128], strides = [1, 1]} : vector<4x512xf32> to vector<4x128xf32>
    %166 = arith.negf %165 : vector<4x128xf32>
    %167 = math.exp %166 : vector<4x128xf32>
    %cst_49 = arith.constant 1.000000e+00 : f32
    %168 = vector.broadcast %cst_49 : f32 to vector<4x128xf32>
    %169 = arith.addf %168, %167 : vector<4x128xf32>
    %170 = arith.divf %168, %169 : vector<4x128xf32>
    %171 = vector.extract_strided_slice %164 {offsets = [0, 128], sizes = [4, 128], strides = [1, 1]} : vector<4x512xf32> to vector<4x128xf32>
    %172 = arith.negf %171 : vector<4x128xf32>
    %173 = math.exp %172 : vector<4x128xf32>
    %cst_50 = arith.constant 1.000000e+00 : f32
    %174 = vector.broadcast %cst_50 : f32 to vector<4x128xf32>
    %175 = arith.addf %174, %173 : vector<4x128xf32>
    %176 = arith.divf %174, %175 : vector<4x128xf32>
    %177 = vector.extract_strided_slice %164 {offsets = [0, 256], sizes = [4, 128], strides = [1, 1]} : vector<4x512xf32> to vector<4x128xf32>
    %178 = math.tanh %177 : vector<4x128xf32>
    %179 = vector.extract_strided_slice %164 {offsets = [0, 384], sizes = [4, 128], strides = [1, 1]} : vector<4x512xf32> to vector<4x128xf32>
    %180 = arith.negf %179 : vector<4x128xf32>
    %181 = math.exp %180 : vector<4x128xf32>
    %cst_51 = arith.constant 1.000000e+00 : f32
    %182 = vector.broadcast %cst_51 : f32 to vector<4x128xf32>
    %183 = arith.addf %182, %181 : vector<4x128xf32>
    %184 = arith.divf %182, %183 : vector<4x128xf32>
    %185 = arith.mulf %176, %141 : vector<4x128xf32>
    %186 = arith.mulf %170, %178 : vector<4x128xf32>
    %187 = arith.addf %185, %186 : vector<4x128xf32>
    %188 = math.tanh %187 : vector<4x128xf32>
    %189 = arith.mulf %184, %188 : vector<4x128xf32>
    %190 = vector.extract_strided_slice %189 {offsets = [0, 0], sizes = [2, 128], strides = [1, 1]} : vector<4x128xf32> to vector<2x128xf32>
    %191 = arith.index_cast %155 : i32 to index
    %c0_52 = arith.constant 0 : index
    %192 = vector.load %arg5[%191, %c0_52] : memref<16x256xf32, #tpu.memory_space<vmem>>, vector<2x128xf32>
    tpu.vector_store %arg5[%191, %c0_52], %190 {strides = array<i32>} : memref<16x256xf32, #tpu.memory_space<vmem>>, vector<2x128xf32>,
    %193 = vector.extract_strided_slice %189 {offsets = [2, 0], sizes = [2, 128], strides = [1, 1]} : vector<4x128xf32> to vector<2x128xf32>
    %194 = arith.index_cast %157 : i32 to index
    %c128_53 = arith.constant 128 : index
    %195 = vector.load %arg5[%194, %c128_53] : memref<16x256xf32, #tpu.memory_space<vmem>>, vector<2x128xf32>
    tpu.vector_store %arg5[%194, %c128_53], %193 {strides = array<i32>} : memref<16x256xf32, #tpu.memory_space<vmem>>, vector<2x128xf32>,
    %196 = vector.broadcast %12 : vector<4x1xf32> to vector<4x128xf32>
    %197 = arith.mulf %189, %196 : vector<4x128xf32>
    %198 = vector.broadcast %14 : vector<4x1xf32> to vector<4x128xf32>
    %199 = arith.mulf %189, %198 : vector<4x128xf32>
    %200 = tpu.concatenate %197, %199 in 1 : vector<4x128xf32>, vector<4x128xf32> -> vector<4x256xf32>
    %c4_i32 = arith.constant 4 : i32
    %c2_i32_54 = arith.constant 2 : i32
    %201 = arith.muli %c4_i32, %c2_i32_54 : i32
    %c7_i32_55 = arith.constant 7 : i32
    %202 = arith.subi %c7_i32_55, %c4_i32 : i32
    %c2_i32_56 = arith.constant 2 : i32
    %203 = arith.muli %202, %c2_i32_56 : i32
    %204 = arith.index_cast %201 : i32 to index
    %c0_57 = arith.constant 0 : index
    %205 = vector.load %arg6[%204, %c0_57] : memref<16x1024xf32, #tpu.memory_space<vmem>>, vector<2x512xf32>
    %206 = arith.index_cast %203 : i32 to index
    %c512_58 = arith.constant 512 : index
    %207 = vector.load %arg6[%206, %c512_58] : memref<16x1024xf32, #tpu.memory_space<vmem>>, vector<2x512xf32>
    %208 = tpu.concatenate %205, %207 in 0 : vector<2x512xf32>, vector<2x512xf32> -> vector<4x512xf32>
    %cst_59 = arith.constant dense<0.000000e+00> : vector<4x512xf32>
    %209 = tpu.matmul %200, %7, %cst_59 {dimension_numbers = #tpu.dot_dimension_numbers<[1], [0], [0], [1], [0, 0, 1, 1], [], []>} : vector<4x256xf32>, vector<256x512xf32>, vector<4x512xf32> -> vector<4x512xf32>
    %210 = arith.addf %208, %209 : vector<4x512xf32>
    %211 = vector.extract_strided_slice %210 {offsets = [0, 0], sizes = [4, 128], strides = [1, 1]} : vector<4x512xf32> to vector<4x128xf32>
    %212 = arith.negf %211 : vector<4x128xf32>
    %213 = math.exp %212 : vector<4x128xf32>
    %cst_60 = arith.constant 1.000000e+00 : f32
    %214 = vector.broadcast %cst_60 : f32 to vector<4x128xf32>
    %215 = arith.addf %214, %213 : vector<4x128xf32>
    %216 = arith.divf %214, %215 : vector<4x128xf32>
    %217 = vector.extract_strided_slice %210 {offsets = [0, 128], sizes = [4, 128], strides = [1, 1]} : vector<4x512xf32> to vector<4x128xf32>
    %218 = arith.negf %217 : vector<4x128xf32>
    %219 = math.exp %218 : vector<4x128xf32>
    %cst_61 = arith.constant 1.000000e+00 : f32
    %220 = vector.broadcast %cst_61 : f32 to vector<4x128xf32>
    %221 = arith.addf %220, %219 : vector<4x128xf32>
    %222 = arith.divf %220, %221 : vector<4x128xf32>
    %223 = vector.extract_strided_slice %210 {offsets = [0, 256], sizes = [4, 128], strides = [1, 1]} : vector<4x512xf32> to vector<4x128xf32>
    %224 = math.tanh %223 : vector<4x128xf32>
    %225 = vector.extract_strided_slice %210 {offsets = [0, 384], sizes = [4, 128], strides = [1, 1]} : vector<4x512xf32> to vector<4x128xf32>
    %226 = arith.negf %225 : vector<4x128xf32>
    %227 = math.exp %226 : vector<4x128xf32>
    %cst_62 = arith.constant 1.000000e+00 : f32
    %228 = vector.broadcast %cst_62 : f32 to vector<4x128xf32>
    %229 = arith.addf %228, %227 : vector<4x128xf32>
    %230 = arith.divf %228, %229 : vector<4x128xf32>
    %231 = arith.mulf %222, %187 : vector<4x128xf32>
    %232 = arith.mulf %216, %224 : vector<4x128xf32>
    %233 = arith.addf %231, %232 : vector<4x128xf32>
    %234 = math.tanh %233 : vector<4x128xf32>
    %235 = arith.mulf %230, %234 : vector<4x128xf32>
    %236 = vector.extract_strided_slice %235 {offsets = [0, 0], sizes = [2, 128], strides = [1, 1]} : vector<4x128xf32> to vector<2x128xf32>
    %237 = arith.index_cast %201 : i32 to index
    %c0_63 = arith.constant 0 : index
    %238 = vector.load %arg5[%237, %c0_63] : memref<16x256xf32, #tpu.memory_space<vmem>>, vector<2x128xf32>
    tpu.vector_store %arg5[%237, %c0_63], %236 {strides = array<i32>} : memref<16x256xf32, #tpu.memory_space<vmem>>, vector<2x128xf32>,
    %239 = vector.extract_strided_slice %235 {offsets = [2, 0], sizes = [2, 128], strides = [1, 1]} : vector<4x128xf32> to vector<2x128xf32>
    %240 = arith.index_cast %203 : i32 to index
    %c128_64 = arith.constant 128 : index
    %241 = vector.load %arg5[%240, %c128_64] : memref<16x256xf32, #tpu.memory_space<vmem>>, vector<2x128xf32>
    tpu.vector_store %arg5[%240, %c128_64], %239 {strides = array<i32>} : memref<16x256xf32, #tpu.memory_space<vmem>>, vector<2x128xf32>,
    %242 = vector.broadcast %12 : vector<4x1xf32> to vector<4x128xf32>
    %243 = arith.mulf %235, %242 : vector<4x128xf32>
    %244 = vector.broadcast %14 : vector<4x1xf32> to vector<4x128xf32>
    %245 = arith.mulf %235, %244 : vector<4x128xf32>
    %246 = tpu.concatenate %243, %245 in 1 : vector<4x128xf32>, vector<4x128xf32> -> vector<4x256xf32>
    %c5_i32 = arith.constant 5 : i32
    %c2_i32_65 = arith.constant 2 : i32
    %247 = arith.muli %c5_i32, %c2_i32_65 : i32
    %c7_i32_66 = arith.constant 7 : i32
    %248 = arith.subi %c7_i32_66, %c5_i32 : i32
    %c2_i32_67 = arith.constant 2 : i32
    %249 = arith.muli %248, %c2_i32_67 : i32
    %250 = arith.index_cast %247 : i32 to index
    %c0_68 = arith.constant 0 : index
    %251 = vector.load %arg6[%250, %c0_68] : memref<16x1024xf32, #tpu.memory_space<vmem>>, vector<2x512xf32>
    %252 = arith.index_cast %249 : i32 to index
    %c512_69 = arith.constant 512 : index
    %253 = vector.load %arg6[%252, %c512_69] : memref<16x1024xf32, #tpu.memory_space<vmem>>, vector<2x512xf32>
    %254 = tpu.concatenate %251, %253 in 0 : vector<2x512xf32>, vector<2x512xf32> -> vector<4x512xf32>
    %cst_70 = arith.constant dense<0.000000e+00> : vector<4x512xf32>
    %255 = tpu.matmul %246, %7, %cst_70 {dimension_numbers = #tpu.dot_dimension_numbers<[1], [0], [0], [1], [0, 0, 1, 1], [], []>} : vector<4x256xf32>, vector<256x512xf32>, vector<4x512xf32> -> vector<4x512xf32>
    %256 = arith.addf %254, %255 : vector<4x512xf32>
    %257 = vector.extract_strided_slice %256 {offsets = [0, 0], sizes = [4, 128], strides = [1, 1]} : vector<4x512xf32> to vector<4x128xf32>
    %258 = arith.negf %257 : vector<4x128xf32>
    %259 = math.exp %258 : vector<4x128xf32>
    %cst_71 = arith.constant 1.000000e+00 : f32
    %260 = vector.broadcast %cst_71 : f32 to vector<4x128xf32>
    %261 = arith.addf %260, %259 : vector<4x128xf32>
    %262 = arith.divf %260, %261 : vector<4x128xf32>
    %263 = vector.extract_strided_slice %256 {offsets = [0, 128], sizes = [4, 128], strides = [1, 1]} : vector<4x512xf32> to vector<4x128xf32>
    %264 = arith.negf %263 : vector<4x128xf32>
    %265 = math.exp %264 : vector<4x128xf32>
    %cst_72 = arith.constant 1.000000e+00 : f32
    %266 = vector.broadcast %cst_72 : f32 to vector<4x128xf32>
    %267 = arith.addf %266, %265 : vector<4x128xf32>
    %268 = arith.divf %266, %267 : vector<4x128xf32>
    %269 = vector.extract_strided_slice %256 {offsets = [0, 256], sizes = [4, 128], strides = [1, 1]} : vector<4x512xf32> to vector<4x128xf32>
    %270 = math.tanh %269 : vector<4x128xf32>
    %271 = vector.extract_strided_slice %256 {offsets = [0, 384], sizes = [4, 128], strides = [1, 1]} : vector<4x512xf32> to vector<4x128xf32>
    %272 = arith.negf %271 : vector<4x128xf32>
    %273 = math.exp %272 : vector<4x128xf32>
    %cst_73 = arith.constant 1.000000e+00 : f32
    %274 = vector.broadcast %cst_73 : f32 to vector<4x128xf32>
    %275 = arith.addf %274, %273 : vector<4x128xf32>
    %276 = arith.divf %274, %275 : vector<4x128xf32>
    %277 = arith.mulf %268, %233 : vector<4x128xf32>
    %278 = arith.mulf %262, %270 : vector<4x128xf32>
    %279 = arith.addf %277, %278 : vector<4x128xf32>
    %280 = math.tanh %279 : vector<4x128xf32>
    %281 = arith.mulf %276, %280 : vector<4x128xf32>
    %282 = vector.extract_strided_slice %281 {offsets = [0, 0], sizes = [2, 128], strides = [1, 1]} : vector<4x128xf32> to vector<2x128xf32>
    %283 = arith.index_cast %247 : i32 to index
    %c0_74 = arith.constant 0 : index
    %284 = vector.load %arg5[%283, %c0_74] : memref<16x256xf32, #tpu.memory_space<vmem>>, vector<2x128xf32>
    tpu.vector_store %arg5[%283, %c0_74], %282 {strides = array<i32>} : memref<16x256xf32, #tpu.memory_space<vmem>>, vector<2x128xf32>,
    %285 = vector.extract_strided_slice %281 {offsets = [2, 0], sizes = [2, 128], strides = [1, 1]} : vector<4x128xf32> to vector<2x128xf32>
    %286 = arith.index_cast %249 : i32 to index
    %c128_75 = arith.constant 128 : index
    %287 = vector.load %arg5[%286, %c128_75] : memref<16x256xf32, #tpu.memory_space<vmem>>, vector<2x128xf32>
    tpu.vector_store %arg5[%286, %c128_75], %285 {strides = array<i32>} : memref<16x256xf32, #tpu.memory_space<vmem>>, vector<2x128xf32>,
    %288 = vector.broadcast %12 : vector<4x1xf32> to vector<4x128xf32>
    %289 = arith.mulf %281, %288 : vector<4x128xf32>
    %290 = vector.broadcast %14 : vector<4x1xf32> to vector<4x128xf32>
    %291 = arith.mulf %281, %290 : vector<4x128xf32>
    %292 = tpu.concatenate %289, %291 in 1 : vector<4x128xf32>, vector<4x128xf32> -> vector<4x256xf32>
    %c6_i32 = arith.constant 6 : i32
    %c2_i32_76 = arith.constant 2 : i32
    %293 = arith.muli %c6_i32, %c2_i32_76 : i32
    %c7_i32_77 = arith.constant 7 : i32
    %294 = arith.subi %c7_i32_77, %c6_i32 : i32
    %c2_i32_78 = arith.constant 2 : i32
    %295 = arith.muli %294, %c2_i32_78 : i32
    %296 = arith.index_cast %293 : i32 to index
    %c0_79 = arith.constant 0 : index
    %297 = vector.load %arg6[%296, %c0_79] : memref<16x1024xf32, #tpu.memory_space<vmem>>, vector<2x512xf32>
    %298 = arith.index_cast %295 : i32 to index
    %c512_80 = arith.constant 512 : index
    %299 = vector.load %arg6[%298, %c512_80] : memref<16x1024xf32, #tpu.memory_space<vmem>>, vector<2x512xf32>
    %300 = tpu.concatenate %297, %299 in 0 : vector<2x512xf32>, vector<2x512xf32> -> vector<4x512xf32>
    %cst_81 = arith.constant dense<0.000000e+00> : vector<4x512xf32>
    %301 = tpu.matmul %292, %7, %cst_81 {dimension_numbers = #tpu.dot_dimension_numbers<[1], [0], [0], [1], [0, 0, 1, 1], [], []>} : vector<4x256xf32>, vector<256x512xf32>, vector<4x512xf32> -> vector<4x512xf32>
    %302 = arith.addf %300, %301 : vector<4x512xf32>
    %303 = vector.extract_strided_slice %302 {offsets = [0, 0], sizes = [4, 128], strides = [1, 1]} : vector<4x512xf32> to vector<4x128xf32>
    %304 = arith.negf %303 : vector<4x128xf32>
    %305 = math.exp %304 : vector<4x128xf32>
    %cst_82 = arith.constant 1.000000e+00 : f32
    %306 = vector.broadcast %cst_82 : f32 to vector<4x128xf32>
    %307 = arith.addf %306, %305 : vector<4x128xf32>
    %308 = arith.divf %306, %307 : vector<4x128xf32>
    %309 = vector.extract_strided_slice %302 {offsets = [0, 128], sizes = [4, 128], strides = [1, 1]} : vector<4x512xf32> to vector<4x128xf32>
    %310 = arith.negf %309 : vector<4x128xf32>
    %311 = math.exp %310 : vector<4x128xf32>
    %cst_83 = arith.constant 1.000000e+00 : f32
    %312 = vector.broadcast %cst_83 : f32 to vector<4x128xf32>
    %313 = arith.addf %312, %311 : vector<4x128xf32>
    %314 = arith.divf %312, %313 : vector<4x128xf32>
    %315 = vector.extract_strided_slice %302 {offsets = [0, 256], sizes = [4, 128], strides = [1, 1]} : vector<4x512xf32> to vector<4x128xf32>
    %316 = math.tanh %315 : vector<4x128xf32>
    %317 = vector.extract_strided_slice %302 {offsets = [0, 384], sizes = [4, 128], strides = [1, 1]} : vector<4x512xf32> to vector<4x128xf32>
    %318 = arith.negf %317 : vector<4x128xf32>
    %319 = math.exp %318 : vector<4x128xf32>
    %cst_84 = arith.constant 1.000000e+00 : f32
    %320 = vector.broadcast %cst_84 : f32 to vector<4x128xf32>
    %321 = arith.addf %320, %319 : vector<4x128xf32>
    %322 = arith.divf %320, %321 : vector<4x128xf32>
    %323 = arith.mulf %314, %279 : vector<4x128xf32>
    %324 = arith.mulf %308, %316 : vector<4x128xf32>
    %325 = arith.addf %323, %324 : vector<4x128xf32>
    %326 = math.tanh %325 : vector<4x128xf32>
    %327 = arith.mulf %322, %326 : vector<4x128xf32>
    %328 = vector.extract_strided_slice %327 {offsets = [0, 0], sizes = [2, 128], strides = [1, 1]} : vector<4x128xf32> to vector<2x128xf32>
    %329 = arith.index_cast %293 : i32 to index
    %c0_85 = arith.constant 0 : index
    %330 = vector.load %arg5[%329, %c0_85] : memref<16x256xf32, #tpu.memory_space<vmem>>, vector<2x128xf32>
    tpu.vector_store %arg5[%329, %c0_85], %328 {strides = array<i32>} : memref<16x256xf32, #tpu.memory_space<vmem>>, vector<2x128xf32>,
    %331 = vector.extract_strided_slice %327 {offsets = [2, 0], sizes = [2, 128], strides = [1, 1]} : vector<4x128xf32> to vector<2x128xf32>
    %332 = arith.index_cast %295 : i32 to index
    %c128_86 = arith.constant 128 : index
    %333 = vector.load %arg5[%332, %c128_86] : memref<16x256xf32, #tpu.memory_space<vmem>>, vector<2x128xf32>
    tpu.vector_store %arg5[%332, %c128_86], %331 {strides = array<i32>} : memref<16x256xf32, #tpu.memory_space<vmem>>, vector<2x128xf32>,
    %334 = vector.broadcast %12 : vector<4x1xf32> to vector<4x128xf32>
    %335 = arith.mulf %327, %334 : vector<4x128xf32>
    %336 = vector.broadcast %14 : vector<4x1xf32> to vector<4x128xf32>
    %337 = arith.mulf %327, %336 : vector<4x128xf32>
    %338 = tpu.concatenate %335, %337 in 1 : vector<4x128xf32>, vector<4x128xf32> -> vector<4x256xf32>
    %c7_i32_87 = arith.constant 7 : i32
    %c2_i32_88 = arith.constant 2 : i32
    %339 = arith.muli %c7_i32_87, %c2_i32_88 : i32
    %c7_i32_89 = arith.constant 7 : i32
    %340 = arith.subi %c7_i32_89, %c7_i32_87 : i32
    %c2_i32_90 = arith.constant 2 : i32
    %341 = arith.muli %340, %c2_i32_90 : i32
    %342 = arith.index_cast %339 : i32 to index
    %c0_91 = arith.constant 0 : index
    %343 = vector.load %arg6[%342, %c0_91] : memref<16x1024xf32, #tpu.memory_space<vmem>>, vector<2x512xf32>
    %344 = arith.index_cast %341 : i32 to index
    %c512_92 = arith.constant 512 : index
    %345 = vector.load %arg6[%344, %c512_92] : memref<16x1024xf32, #tpu.memory_space<vmem>>, vector<2x512xf32>
    %346 = tpu.concatenate %343, %345 in 0 : vector<2x512xf32>, vector<2x512xf32> -> vector<4x512xf32>
    %cst_93 = arith.constant dense<0.000000e+00> : vector<4x512xf32>
    %347 = tpu.matmul %338, %7, %cst_93 {dimension_numbers = #tpu.dot_dimension_numbers<[1], [0], [0], [1], [0, 0, 1, 1], [], []>} : vector<4x256xf32>, vector<256x512xf32>, vector<4x512xf32> -> vector<4x512xf32>
    %348 = arith.addf %346, %347 : vector<4x512xf32>
    %349 = vector.extract_strided_slice %348 {offsets = [0, 0], sizes = [4, 128], strides = [1, 1]} : vector<4x512xf32> to vector<4x128xf32>
    %350 = arith.negf %349 : vector<4x128xf32>
    %351 = math.exp %350 : vector<4x128xf32>
    %cst_94 = arith.constant 1.000000e+00 : f32
    %352 = vector.broadcast %cst_94 : f32 to vector<4x128xf32>
    %353 = arith.addf %352, %351 : vector<4x128xf32>
    %354 = arith.divf %352, %353 : vector<4x128xf32>
    %355 = vector.extract_strided_slice %348 {offsets = [0, 128], sizes = [4, 128], strides = [1, 1]} : vector<4x512xf32> to vector<4x128xf32>
    %356 = arith.negf %355 : vector<4x128xf32>
    %357 = math.exp %356 : vector<4x128xf32>
    %cst_95 = arith.constant 1.000000e+00 : f32
    %358 = vector.broadcast %cst_95 : f32 to vector<4x128xf32>
    %359 = arith.addf %358, %357 : vector<4x128xf32>
    %360 = arith.divf %358, %359 : vector<4x128xf32>
    %361 = vector.extract_strided_slice %348 {offsets = [0, 256], sizes = [4, 128], strides = [1, 1]} : vector<4x512xf32> to vector<4x128xf32>
    %362 = math.tanh %361 : vector<4x128xf32>
    %363 = vector.extract_strided_slice %348 {offsets = [0, 384], sizes = [4, 128], strides = [1, 1]} : vector<4x512xf32> to vector<4x128xf32>
    %364 = arith.negf %363 : vector<4x128xf32>
    %365 = math.exp %364 : vector<4x128xf32>
    %cst_96 = arith.constant 1.000000e+00 : f32
    %366 = vector.broadcast %cst_96 : f32 to vector<4x128xf32>
    %367 = arith.addf %366, %365 : vector<4x128xf32>
    %368 = arith.divf %366, %367 : vector<4x128xf32>
    %369 = arith.mulf %360, %325 : vector<4x128xf32>
    %370 = arith.mulf %354, %362 : vector<4x128xf32>
    %371 = arith.addf %369, %370 : vector<4x128xf32>
    %372 = math.tanh %371 : vector<4x128xf32>
    %373 = arith.mulf %368, %372 : vector<4x128xf32>
    %374 = vector.extract_strided_slice %373 {offsets = [0, 0], sizes = [2, 128], strides = [1, 1]} : vector<4x128xf32> to vector<2x128xf32>
    %375 = arith.index_cast %339 : i32 to index
    %c0_97 = arith.constant 0 : index
    %376 = vector.load %arg5[%375, %c0_97] : memref<16x256xf32, #tpu.memory_space<vmem>>, vector<2x128xf32>
    tpu.vector_store %arg5[%375, %c0_97], %374 {strides = array<i32>} : memref<16x256xf32, #tpu.memory_space<vmem>>, vector<2x128xf32>,
    %377 = vector.extract_strided_slice %373 {offsets = [2, 0], sizes = [2, 128], strides = [1, 1]} : vector<4x128xf32> to vector<2x128xf32>
    %378 = arith.index_cast %341 : i32 to index
    %c128_98 = arith.constant 128 : index
    %379 = vector.load %arg5[%378, %c128_98] : memref<16x256xf32, #tpu.memory_space<vmem>>, vector<2x128xf32>
    tpu.vector_store %arg5[%378, %c128_98], %377 {strides = array<i32>} : memref<16x256xf32, #tpu.memory_space<vmem>>, vector<2x128xf32>,
    %380 = vector.broadcast %12 : vector<4x1xf32> to vector<4x128xf32>
    %381 = arith.mulf %373, %380 : vector<4x128xf32>
    %382 = vector.broadcast %14 : vector<4x1xf32> to vector<4x128xf32>
    %383 = arith.mulf %373, %382 : vector<4x128xf32>
    %384 = tpu.concatenate %381, %383 in 1 : vector<4x128xf32>, vector<4x128xf32> -> vector<4x256xf32>
    %c8_i32 = arith.constant 8 : i32
    return
  }
  func.func @transform_0(%arg0: i32) -> (i32, i32) {
    %c0_i32 = arith.constant 0 : i32
    %c0_i32_0 = arith.constant 0 : i32
    %c0_i32_1 = arith.constant 0 : i32
    return %c0_i32, %c0_i32_0 : i32, i32
  }
  func.func @transform_1(%arg0: i32) -> (i32, i32) {
    %c0_i32 = arith.constant 0 : i32
    %c0_i32_0 = arith.constant 0 : i32
    %c0_i32_1 = arith.constant 0 : i32
    return %c0_i32, %c0_i32_0 : i32, i32
  }
  func.func @transform_2(%arg0: i32) -> (i32, i32) {
    %c0_i32 = arith.constant 0 : i32
    %c0_i32_0 = arith.constant 0 : i32
    %c0_i32_1 = arith.constant 0 : i32
    return %c0_i32, %c0_i32_0 : i32, i32
  }
  func.func @transform_3(%arg0: i32) -> (i32, i32) {
    %c0_i32 = arith.constant 0 : i32
    %c0_i32_0 = arith.constant 0 : i32
    %c0_i32_1 = arith.constant 0 : i32
    return %c0_i32, %c0_i32_0 : i32, i32
  }
  func.func @transform_4(%arg0: i32) -> (i32, i32) {
    %c0_i32 = arith.constant 0 : i32
    %c0_i32_0 = arith.constant 0 : i32
    %c0_i32_1 = arith.constant 0 : i32
    return %c0_i32, %c0_i32_0 : i32, i32
  }
}

module attributes {stable_mosaic.version = 11 : i64} {
  func.func @attn_pool_kernel(%arg0: i32, %arg1: memref<8x256xf32, #tpu.memory_space<vmem>>, %arg2: memref<256x512xf32, #tpu.memory_space<vmem>>, %arg3: memref<1x512xf32, #tpu.memory_space<vmem>>, %arg4: memref<512x1xf32, #tpu.memory_space<vmem>>, %arg5: memref<1x1xf32, #tpu.memory_space<vmem>>, %arg6: memref<256x1xf32, #tpu.memory_space<vmem>>, %arg7: memref<1x1xf32, #tpu.memory_space<vmem>>, %arg8: memref<1x1x1xf32, #tpu.memory_space<vmem>>) attributes {dimension_semantics = [#tpu.dimension_semantics<parallel>], iteration_bounds = array<i64: 2>, scalar_prefetch = 0 : i64, scratch_operands = 0 : i64, tpu.core_type = #tpu.core_type<tc>, window_params = [{transform_indices = @transform_0, window_bounds = array<i64: 8, 256>}, {pipeline_mode = #tpu.pipeline_mode<synchronous>, transform_indices = @transform_1, window_bounds = array<i64: 256, 512>}, {pipeline_mode = #tpu.pipeline_mode<synchronous>, transform_indices = @transform_2, window_bounds = array<i64: 1, 512>}, {pipeline_mode = #tpu.pipeline_mode<synchronous>, transform_indices = @transform_3, window_bounds = array<i64: 512, 1>}, {pipeline_mode = #tpu.pipeline_mode<synchronous>, transform_indices = @transform_4, window_bounds = array<i64: 1, 1>}, {pipeline_mode = #tpu.pipeline_mode<synchronous>, transform_indices = @transform_5, window_bounds = array<i64: 256, 1>}, {pipeline_mode = #tpu.pipeline_mode<synchronous>, transform_indices = @transform_6, window_bounds = array<i64: 1, 1>}, {transform_indices = @transform_7, window_bounds = array<i64: 1, 1, 1>}]} {
    %c0 = arith.constant 0 : index
    %c0_0 = arith.constant 0 : index
    %0 = vector.load %arg1[%c0, %c0_0] : memref<8x256xf32, #tpu.memory_space<vmem>>, vector<8x256xf32>
    %c0_1 = arith.constant 0 : index
    %c0_2 = arith.constant 0 : index
    %1 = vector.load %arg2[%c0_1, %c0_2] : memref<256x512xf32, #tpu.memory_space<vmem>>, vector<256x512xf32>
    %cst = arith.constant dense<0.000000e+00> : vector<8x512xf32>
    %2 = tpu.matmul %0, %1, %cst {dimension_numbers = #tpu.dot_dimension_numbers<[1], [0], [0], [1], [0, 0, 1, 1], [], []>} : vector<8x256xf32>, vector<256x512xf32>, vector<8x512xf32> -> vector<8x512xf32>
    %c0_3 = arith.constant 0 : index
    %c0_4 = arith.constant 0 : index
    %3 = vector.load %arg3[%c0_3, %c0_4] : memref<1x512xf32, #tpu.memory_space<vmem>>, vector<1x512xf32>
    %4 = vector.broadcast %3 : vector<1x512xf32> to vector<8x512xf32>
    %5 = arith.addf %2, %4 : vector<8x512xf32>
    %cst_5 = arith.constant 0.000000e+00 : f32
    %6 = vector.broadcast %cst_5 : f32 to vector<8x512xf32>
    %7 = arith.maximumf %5, %6 : vector<8x512xf32>
    %c0_6 = arith.constant 0 : index
    %c0_7 = arith.constant 0 : index
    %8 = vector.load %arg4[%c0_6, %c0_7] : memref<512x1xf32, #tpu.memory_space<vmem>>, vector<512x1xf32>
    %cst_8 = arith.constant dense<0.000000e+00> : vector<8x1xf32>
    %9 = tpu.matmul %7, %8, %cst_8 {dimension_numbers = #tpu.dot_dimension_numbers<[1], [0], [0], [1], [0, 0, 1, 1], [], []>} : vector<8x512xf32>, vector<512x1xf32>, vector<8x1xf32> -> vector<8x1xf32>
    %c0_9 = arith.constant 0 : index
    %c0_10 = arith.constant 0 : index
    %10 = vector.load %arg5[%c0_9, %c0_10] : memref<1x1xf32, #tpu.memory_space<vmem>>, vector<1x1xf32>
    %11 = vector.broadcast %10 : vector<1x1xf32> to vector<8x1xf32>
    %12 = arith.addf %9, %11 : vector<8x1xf32>
    %cst_11 = arith.constant dense<0xFF800000> : vector<1xf32>
    %13 = vector.multi_reduction <maximumf>, %12, %cst_11 [0] : vector<8x1xf32> to vector<1xf32>
    %14 = vector.shape_cast %13 : vector<1xf32> to vector<1x1xf32>
    %15 = vector.broadcast %14 : vector<1x1xf32> to vector<8x1xf32>
    %16 = arith.subf %12, %15 : vector<8x1xf32>
    %17 = math.exp %16 : vector<8x1xf32>
    %cst_12 = arith.constant dense<0.000000e+00> : vector<1xf32>
    %18 = vector.multi_reduction <add>, %17, %cst_12 [0] : vector<8x1xf32> to vector<1xf32>
    %19 = vector.shape_cast %18 : vector<1xf32> to vector<1x1xf32>
    %20 = tpu.reciprocal %19 {approx = true} : vector<1x1xf32> -> vector<1x1xf32>
    %21 = vector.broadcast %20 : vector<1x1xf32> to vector<8x1xf32>
    %22 = arith.mulf %17, %21 : vector<8x1xf32>
    %23 = vector.broadcast %22 : vector<8x1xf32> to vector<8x256xf32>
    %24 = arith.mulf %23, %0 : vector<8x256xf32>
    %cst_13 = arith.constant dense<0.000000e+00> : vector<256xf32>
    %25 = vector.multi_reduction <add>, %24, %cst_13 [0] : vector<8x256xf32> to vector<256xf32>
    %26 = vector.shape_cast %25 : vector<256xf32> to vector<1x256xf32>
    %c0_14 = arith.constant 0 : index
    %c0_15 = arith.constant 0 : index
    %27 = vector.load %arg6[%c0_14, %c0_15] : memref<256x1xf32, #tpu.memory_space<vmem>>, vector<256x1xf32>
    %cst_16 = arith.constant dense<0.000000e+00> : vector<1x1xf32>
    %28 = tpu.matmul %26, %27, %cst_16 {dimension_numbers = #tpu.dot_dimension_numbers<[1], [0], [0], [1], [0, 0, 1, 1], [], []>} : vector<1x256xf32>, vector<256x1xf32>, vector<1x1xf32> -> vector<1x1xf32>
    %c0_17 = arith.constant 0 : index
    %c0_18 = arith.constant 0 : index
    %29 = vector.load %arg7[%c0_17, %c0_18] : memref<1x1xf32, #tpu.memory_space<vmem>>, vector<1x1xf32>
    %30 = arith.addf %28, %29 : vector<1x1xf32>
    %31 = arith.negf %30 : vector<1x1xf32>
    %32 = math.exp %31 : vector<1x1xf32>
    %cst_19 = arith.constant 1.000000e+00 : f32
    %33 = vector.broadcast %cst_19 : f32 to vector<1x1xf32>
    %34 = arith.addf %33, %32 : vector<1x1xf32>
    %35 = arith.divf %33, %34 : vector<1x1xf32>
    %c0_20 = arith.constant 0 : index
    %c0_21 = arith.constant 0 : index
    %c0_22 = arith.constant 0 : index
    %36 = vector.load %arg8[%c0_20, %c0_21, %c0_22] : memref<1x1x1xf32, #tpu.memory_space<vmem>>, vector<1x1x1xf32>
    %37 = vector.shape_cast %36 : vector<1x1x1xf32> to vector<1x1xf32>
    %38 = vector.shape_cast %35 : vector<1x1xf32> to vector<1x1x1xf32>
    tpu.vector_store %arg8[%c0_20, %c0_21, %c0_22], %38 {strides = array<i32>} : memref<1x1x1xf32, #tpu.memory_space<vmem>>, vector<1x1x1xf32>,
    return
  }
  func.func @transform_0(%arg0: i32) -> (i32, i32) {
    %c0_i32 = arith.constant 0 : i32
    %c0_i32_0 = arith.constant 0 : i32
    return %c0_i32, %arg0 : i32, i32
  }
  func.func @transform_1(%arg0: i32) -> (i32, i32) {
    %c0_i32 = arith.constant 0 : i32
    %c0_i32_0 = arith.constant 0 : i32
    %c0_i32_1 = arith.constant 0 : i32
    return %c0_i32, %c0_i32_0 : i32, i32
  }
  func.func @transform_2(%arg0: i32) -> (i32, i32) {
    %c0_i32 = arith.constant 0 : i32
    %c0_i32_0 = arith.constant 0 : i32
    %c0_i32_1 = arith.constant 0 : i32
    return %c0_i32, %c0_i32_0 : i32, i32
  }
  func.func @transform_3(%arg0: i32) -> (i32, i32) {
    %c0_i32 = arith.constant 0 : i32
    %c0_i32_0 = arith.constant 0 : i32
    %c0_i32_1 = arith.constant 0 : i32
    return %c0_i32, %c0_i32_0 : i32, i32
  }
  func.func @transform_4(%arg0: i32) -> (i32, i32) {
    %c0_i32 = arith.constant 0 : i32
    %c0_i32_0 = arith.constant 0 : i32
    %c0_i32_1 = arith.constant 0 : i32
    return %c0_i32, %c0_i32_0 : i32, i32
  }
  func.func @transform_5(%arg0: i32) -> (i32, i32) {
    %c0_i32 = arith.constant 0 : i32
    %c0_i32_0 = arith.constant 0 : i32
    %c0_i32_1 = arith.constant 0 : i32
    return %c0_i32, %c0_i32_0 : i32, i32
  }
  func.func @transform_6(%arg0: i32) -> (i32, i32) {
    %c0_i32 = arith.constant 0 : i32
    %c0_i32_0 = arith.constant 0 : i32
    %c0_i32_1 = arith.constant 0 : i32
    return %c0_i32, %c0_i32_0 : i32, i32
  }
  func.func @transform_7(%arg0: i32) -> (i32, i32, i32) {
    %c0_i32 = arith.constant 0 : i32
    %c0_i32_0 = arith.constant 0 : i32
    %c0_i32_1 = arith.constant 0 : i32
    return %arg0, %c0_i32, %c0_i32_0 : i32, i32, i32
  }
}

</mosaic_0001>

<llo_original>
// kernel: spec_metric_predictor.4
$region0: #{spec_metric_predictor.4}
  #allocation0 [shape = 'u32[]', space=smem, size = 0x4, offset = 0x4, fixed_abs, tag = 'smem constant byte address 0x4 - core index']
  #allocation1 [shape = 'u32[144,128]{1,0:T(1,128)}', space=vmem, size = 0x12000, scoped, tag = 'internal scratch']
  %s0 = inlined_call_operand.vmem [shape: f32[16,512], index: 0, kind: input, shape index: {}]
  %s1 = inlined_call_operand.vmem [shape: f32[512,257], index: 1, kind: input, shape index: {}]
  %s2 = inlined_call_operand.vmem [shape: f32[512,257], index: 2, kind: input, shape index: {}]
  %s3 = inlined_call_operand.vmem [shape: f32[16,257], index: 3, kind: output, shape index: {}]
  %s4 = sld [smem:[#allocation0]]
  $region22: #{spec_metric_predictor.4} parent=0
    _
  %s6 = ssub.s32 1, %s4
  %s7 = scalar_select 0, %s6, %s4
  // Predicated region
  $region2: #{spec_metric_predictor.4} parent=0 // pred_check
    _
  $region3: #{spec_metric_predictor.4} parent=0 // pred_check_branch
    %9 = sbr.rel (0) target = $region5
  $region4: #{spec_metric_predictor.4} parent=0 // pred_region
    _
  $region5: #{spec_metric_predictor.4} parent=0 // pred_fallthru
    _
  // Predicated region
  $region6: #{spec_metric_predictor.4} parent=0 // pred_check
    _
  $region7: #{spec_metric_predictor.4} parent=0 // pred_check_branch
    %11 = sbr.rel (0) target = $region9
  $region8: #{spec_metric_predictor.4} parent=0 // pred_region
    _
  $region9: #{spec_metric_predictor.4} parent=0 // pred_fallthru
    _
  // Predicated region
  $region10: #{spec_metric_predictor.4} parent=0 // pred_check
    _
  $region11: #{spec_metric_predictor.4} parent=0 // pred_check_branch
    %13 = sbr.rel (0) target = $region13
  $region12: #{spec_metric_predictor.4} parent=0 // pred_region
    _
  $region13: #{spec_metric_predictor.4} parent=0 // pred_fallthru
    _
  %v14 = vld [vmem:[%s0] sm:$0xff]
  %v15 = vld [vmem:[%s0 + $0x8] sm:$0xff]
  %v16 = vld [vmem:[%s0 + $0x10] sm:$0xff]
  %v17 = vld [vmem:[%s0 + $0x18] sm:$0xff]
  %v18 = vld [vmem:[%s0 + $0x20] sm:$0xff]
  %v19 = vld [vmem:[%s0 + $0x28] sm:$0xff]
  %v20 = vld [vmem:[%s0 + $0x30] sm:$0xff]
  %v21 = vld [vmem:[%s0 + $0x38] sm:$0xff]
  %v22 = vld [vmem:[%s1] sm:$0xff]
  %v23 = vld [vmem:[%s1 + $0x8] sm:$0xff]
  %v24 = vld [vmem:[%s1 + $0x10] sm:$0xff]
  %v25 = vld [vmem:[%s1 + $0x18] sm:$0xff]
  %v26 = vld [vmem:[%s1 + $0x20] sm:$0xff]
  %v27 = vld [vmem:[%s1 + $0x28] sm:$0xff]
  %v28 = vld [vmem:[%s1 + $0x30] sm:$0xff]
  %v29 = vld [vmem:[%s1 + $0x38] sm:$0xff]
  %v30 = vld [vmem:[%s1 + $0x40] sm:$0xff]
  %v31 = vld [vmem:[%s1 + $0x48] sm:$0xff]
  %v32 = vld [vmem:[%s1 + $0x50] sm:$0xff]
  %v33 = vld [vmem:[%s1 + $0x58] sm:$0xff]
  %v34 = vld [vmem:[%s1 + $0x60] sm:$0xff]
  %v35 = vld [vmem:[%s1 + $0x68] sm:$0xff]
  %v36 = vld [vmem:[%s1 + $0x70] sm:$0xff]
  %v37 = vld [vmem:[%s1 + $0x78] sm:$0xff]
  %v38 = vld [vmem:[%s1 + $0x80] sm:$0xff]
  %v39 = vld [vmem:[%s1 + $0x88] sm:$0xff]
  %v40 = vld [vmem:[%s1 + $0x90] sm:$0xff]
  %v41 = vld [vmem:[%s1 + $0x98] sm:$0xff]
  %v42 = vld [vmem:[%s1 + $0xa0] sm:$0xff]
  %v43 = vld [vmem:[%s1 + $0xa8] sm:$0xff]
  %v44 = vld [vmem:[%s1 + $0xb0] sm:$0xff]
  %v45 = vld [vmem:[%s1 + $0xb8] sm:$0xff]
  %v46 = vld [vmem:[%s1 + $0xc0] sm:$0xff]
  %v47 = vld [vmem:[%s1 + $0xc8] sm:$0xff]
  %v48 = vld [vmem:[%s1 + $0xd0] sm:$0xff]
  %v49 = vld [vmem:[%s1 + $0xd8] sm:$0xff]
  %v50 = vld [vmem:[%s1 + $0xe0] sm:$0xff]
  %v51 = vld [vmem:[%s1 + $0xe8] sm:$0xff]
  %v52 = vld [vmem:[%s1 + $0xf0] sm:$0xff]
  %v53 = vld [vmem:[%s1 + $0xf8] sm:$0xff]
  %v54 = vld [vmem:[%s1 + $0x100] sm:$0xff]
  %v55 = vld [vmem:[%s1 + $0x108] sm:$0xff]
  %v56 = vld [vmem:[%s1 + $0x110] sm:$0xff]
  %v57 = vld [vmem:[%s1 + $0x118] sm:$0xff]
  %v58 = vld [vmem:[%s1 + $0x120] sm:$0xff]
  %v59 = vld [vmem:[%s1 + $0x128] sm:$0xff]
  %v60 = vld [vmem:[%s1 + $0x130] sm:$0xff]
  %v61 = vld [vmem:[%s1 + $0x138] sm:$0xff]
  %v62 = vld [vmem:[%s1 + $0x140] sm:$0xff]
  %v63 = vld [vmem:[%s1 + $0x148] sm:$0xff]
  %v64 = vld [vmem:[%s1 + $0x150] sm:$0xff]
  %v65 = vld [vmem:[%s1 + $0x158] sm:$0xff]
  %v66 = vld [vmem:[%s1 + $0x160] sm:$0xff]
  %v67 = vld [vmem:[%s1 + $0x168] sm:$0xff]
  %v68 = vld [vmem:[%s1 + $0x170] sm:$0xff]
  %v69 = vld [vmem:[%s1 + $0x178] sm:$0xff]
  %v70 = vld [vmem:[%s1 + $0x180] sm:$0xff]
  %v71 = vld [vmem:[%s1 + $0x188] sm:$0xff]
  %v72 = vld [vmem:[%s1 + $0x190] sm:$0xff]
  %v73 = vld [vmem:[%s1 + $0x198] sm:$0xff]
  %v74 = vld [vmem:[%s1 + $0x1a0] sm:$0xff]
  %v75 = vld [vmem:[%s1 + $0x1a8] sm:$0xff]
  %v76 = vld [vmem:[%s1 + $0x1b0] sm:$0xff]
  %v77 = vld [vmem:[%s1 + $0x1b8] sm:$0xff]
  %v78 = vld [vmem:[%s1 + $0x1c0] sm:$0xff]
  %v79 = vld [vmem:[%s1 + $0x1c8] sm:$0xff]
  %v80 = vld [vmem:[%s1 + $0x1d0] sm:$0xff]
  %v81 = vld [vmem:[%s1 + $0x1d8] sm:$0xff]
  %v82 = vld [vmem:[%s1 + $0x1e0] sm:$0xff]
  %v83 = vld [vmem:[%s1 + $0x1e8] sm:$0xff]
  %v84 = vld [vmem:[%s1 + $0x1f0] sm:$0xff]
  %v85 = vld [vmem:[%s1 + $0x1f8] sm:$0xff]
  %v86 = vld [vmem:[%s1 + $0x200] sm:$0xff]
  %v87 = vld [vmem:[%s1 + $0x208] sm:$0xff]
  %v88 = vld [vmem:[%s1 + $0x210] sm:$0xff]
  %v89 = vld [vmem:[%s1 + $0x218] sm:$0xff]
  %v90 = vld [vmem:[%s1 + $0x220] sm:$0xff]
  %v91 = vld [vmem:[%s1 + $0x228] sm:$0xff]
  %v92 = vld [vmem:[%s1 + $0x230] sm:$0xff]
  %v93 = vld [vmem:[%s1 + $0x238] sm:$0xff]
  %v94 = vld [vmem:[%s1 + $0x240] sm:$0xff]
  %v95 = vld [vmem:[%s1 + $0x248] sm:$0xff]
  %v96 = vld [vmem:[%s1 + $0x250] sm:$0xff]
  %v97 = vld [vmem:[%s1 + $0x258] sm:$0xff]
  %v98 = vld [vmem:[%s1 + $0x260] sm:$0xff]
  %v99 = vld [vmem:[%s1 + $0x268] sm:$0xff]
  %v100 = vld [vmem:[%s1 + $0x270] sm:$0xff]
  %v101 = vld [vmem:[%s1 + $0x278] sm:$0xff]
  %v102 = vld [vmem:[%s1 + $0x280] sm:$0xff]
  %v103 = vld [vmem:[%s1 + $0x288] sm:$0xff]
  %v104 = vld [vmem:[%s1 + $0x290] sm:$0xff]
  %v105 = vld [vmem:[%s1 + $0x298] sm:$0xff]
  %v106 = vld [vmem:[%s1 + $0x2a0] sm:$0xff]
  %v107 = vld [vmem:[%s1 + $0x2a8] sm:$0xff]
  %v108 = vld [vmem:[%s1 + $0x2b0] sm:$0xff]
  %v109 = vld [vmem:[%s1 + $0x2b8] sm:$0xff]
  %v110 = vld [vmem:[%s1 + $0x2c0] sm:$0xff]
  %v111 = vld [vmem:[%s1 + $0x2c8] sm:$0xff]
  %v112 = vld [vmem:[%s1 + $0x2d0] sm:$0xff]
  %v113 = vld [vmem:[%s1 + $0x2d8] sm:$0xff]
  %v114 = vld [vmem:[%s1 + $0x2e0] sm:$0xff]
  %v115 = vld [vmem:[%s1 + $0x2e8] sm:$0xff]
  %v116 = vld [vmem:[%s1 + $0x2f0] sm:$0xff]
  %v117 = vld [vmem:[%s1 + $0x2f8] sm:$0xff]
  %v118 = vld [vmem:[%s1 + $0x300] sm:$0xff]
  %v119 = vld [vmem:[%s1 + $0x308] sm:$0xff]
  %v120 = vld [vmem:[%s1 + $0x310] sm:$0xff]
  %v121 = vld [vmem:[%s1 + $0x318] sm:$0xff]
  %v122 = vld [vmem:[%s1 + $0x320] sm:$0xff]
  %v123 = vld [vmem:[%s1 + $0x328] sm:$0xff]
  %v124 = vld [vmem:[%s1 + $0x330] sm:$0xff]
  %v125 = vld [vmem:[%s1 + $0x338] sm:$0xff]
  %v126 = vld [vmem:[%s1 + $0x340] sm:$0xff]
  %v127 = vld [vmem:[%s1 + $0x348] sm:$0xff]
  %v128 = vld [vmem:[%s1 + $0x350] sm:$0xff]
  %v129 = vld [vmem:[%s1 + $0x358] sm:$0xff]
  %v130 = vld [vmem:[%s1 + $0x360] sm:$0xff]
  %v131 = vld [vmem:[%s1 + $0x368] sm:$0xff]
  %v132 = vld [vmem:[%s1 + $0x370] sm:$0xff]
  %v133 = vld [vmem:[%s1 + $0x378] sm:$0xff]
  %v134 = vld [vmem:[%s1 + $0x380] sm:$0xff]
  %v135 = vld [vmem:[%s1 + $0x388] sm:$0xff]
  %v136 = vld [vmem:[%s1 + $0x390] sm:$0xff]
  %v137 = vld [vmem:[%s1 + $0x398] sm:$0xff]
  %v138 = vld [vmem:[%s1 + $0x3a0] sm:$0xff]
  %v139 = vld [vmem:[%s1 + $0x3a8] sm:$0xff]
  %v140 = vld [vmem:[%s1 + $0x3b0] sm:$0xff]
  %v141 = vld [vmem:[%s1 + $0x3b8] sm:$0xff]
  %v142 = vld [vmem:[%s1 + $0x3c0] sm:$0xff]
  %v143 = vld [vmem:[%s1 + $0x3c8] sm:$0xff]
  %v144 = vld [vmem:[%s1 + $0x3d0] sm:$0xff]
  %v145 = vld [vmem:[%s1 + $0x3d8] sm:$0xff]
  %v146 = vld [vmem:[%s1 + $0x3e0] sm:$0xff]
  %v147 = vld [vmem:[%s1 + $0x3e8] sm:$0xff]
  %v148 = vld [vmem:[%s1 + $0x3f0] sm:$0xff]
  %v149 = vld [vmem:[%s1 + $0x3f8] sm:$0xff]
  %v150 = vld [vmem:[%s1 + $0x400] sm:$0xff]
  %v151 = vld [vmem:[%s1 + $0x408] sm:$0xff]
  %v152 = vld [vmem:[%s1 + $0x410] sm:$0xff]
  %v153 = vld [vmem:[%s1 + $0x418] sm:$0xff]
  %v154 = vld [vmem:[%s1 + $0x420] sm:$0xff]
  %v155 = vld [vmem:[%s1 + $0x428] sm:$0xff]
  %v156 = vld [vmem:[%s1 + $0x430] sm:$0xff]
  %v157 = vld [vmem:[%s1 + $0x438] sm:$0xff]
  %v158 = vld [vmem:[%s1 + $0x440] sm:$0xff]
  %v159 = vld [vmem:[%s1 + $0x448] sm:$0xff]
  %v160 = vld [vmem:[%s1 + $0x450] sm:$0xff]
  %v161 = vld [vmem:[%s1 + $0x458] sm:$0xff]
  %v162 = vld [vmem:[%s1 + $0x460] sm:$0xff]
  %v163 = vld [vmem:[%s1 + $0x468] sm:$0xff]
  %v164 = vld [vmem:[%s1 + $0x470] sm:$0xff]
  %v165 = vld [vmem:[%s1 + $0x478] sm:$0xff]
  %v166 = vld [vmem:[%s1 + $0x480] sm:$0xff]
  %v167 = vld [vmem:[%s1 + $0x488] sm:$0xff]
  %v168 = vld [vmem:[%s1 + $0x490] sm:$0xff]
  %v169 = vld [vmem:[%s1 + $0x498] sm:$0xff]
  %v170 = vld [vmem:[%s1 + $0x4a0] sm:$0xff]
  %v171 = vld [vmem:[%s1 + $0x4a8] sm:$0xff]
  %v172 = vld [vmem:[%s1 + $0x4b0] sm:$0xff]
  %v173 = vld [vmem:[%s1 + $0x4b8] sm:$0xff]
  %v174 = vld [vmem:[%s1 + $0x4c0] sm:$0xff]
  %v175 = vld [vmem:[%s1 + $0x4c8] sm:$0xff]
  %v176 = vld [vmem:[%s1 + $0x4d0] sm:$0xff]
  %v177 = vld [vmem:[%s1 + $0x4d8] sm:$0xff]
  %v178 = vld [vmem:[%s1 + $0x4e0] sm:$0xff]
  %v179 = vld [vmem:[%s1 + $0x4e8] sm:$0xff]
  %v180 = vld [vmem:[%s1 + $0x4f0] sm:$0xff]
  %v181 = vld [vmem:[%s1 + $0x4f8] sm:$0xff]
  %v182 = vld [vmem:[%s1 + $0x500] sm:$0xff]
  %v183 = vld [vmem:[%s1 + $0x508] sm:$0xff]
  %v184 = vld [vmem:[%s1 + $0x510] sm:$0xff]
  %v185 = vld [vmem:[%s1 + $0x518] sm:$0xff]
  %v186 = vld [vmem:[%s1 + $0x520] sm:$0xff]
  %v187 = vld [vmem:[%s1 + $0x528] sm:$0xff]
  %v188 = vld [vmem:[%s1 + $0x530] sm:$0xff]
  %v189 = vld [vmem:[%s1 + $0x538] sm:$0xff]
  %v190 = vld [vmem:[%s1 + $0x540] sm:$0xff]
  %v191 = vld [vmem:[%s1 + $0x548] sm:$0xff]
  %v192 = vld [vmem:[%s1 + $0x550] sm:$0xff]
  %v193 = vld [vmem:[%s1 + $0x558] sm:$0xff]
  %v194 = vld [vmem:[%s1 + $0x560] sm:$0xff]
  %v195 = vld [vmem:[%s1 + $0x568] sm:$0xff]
  %v196 = vld [vmem:[%s1 + $0x570] sm:$0xff]
  %v197 = vld [vmem:[%s1 + $0x578] sm:$0xff]
  %v198 = vld [vmem:[%s1 + $0x580] sm:$0xff]
  %v199 = vld [vmem:[%s1 + $0x588] sm:$0xff]
  %v200 = vld [vmem:[%s1 + $0x590] sm:$0xff]
  %v201 = vld [vmem:[%s1 + $0x598] sm:$0xff]
  %v202 = vld [vmem:[%s1 + $0x5a0] sm:$0xff]
  %v203 = vld [vmem:[%s1 + $0x5a8] sm:$0xff]
  %v204 = vld [vmem:[%s1 + $0x5b0] sm:$0xff]
  %v205 = vld [vmem:[%s1 + $0x5b8] sm:$0xff]
  %v206 = vld [vmem:[%s1 + $0x5c0] sm:$0xff]
  %v207 = vld [vmem:[%s1 + $0x5c8] sm:$0xff]
  %v208 = vld [vmem:[%s1 + $0x5d0] sm:$0xff]
  %v209 = vld [vmem:[%s1 + $0x5d8] sm:$0xff]
  %v210 = vld [vmem:[%s1 + $0x5e0] sm:$0xff]
  %v211 = vld [vmem:[%s1 + $0x5e8] sm:$0xff]
  %v212 = vld [vmem:[%s1 + $0x5f0] sm:$0xff]
  %v213 = vld [vmem:[%s1 + $0x5f8] sm:$0xff]
  %214 = vmatprep.subr.mxu0 %v23
  %215 = vmatpush1.msra.mxu0 %v22
  %216 = vmatprep.subr.mxu0 %v26
  %217 = vmatpush1.msra.mxu0 %v25
  %218 = vmatprep.subr.mxu0 %v29
  %219 = vmatpush1.msra.mxu0 %v28
  %220 = vmatprep.subr.mxu0 %v32
  %221 = vmatpush1.msra.mxu0 %v31
  %222 = vmatprep.subr.mxu0 %v35
  %223 = vmatpush1.msra.mxu0 %v34
  %224 = vmatprep.subr.mxu0 %v38
  %225 = vmatpush1.msra.mxu0 %v37
  %226 = vmatprep.subr.mxu0 %v41
  %227 = vmatpush1.msra.mxu0 %v40
  %228 = vmatprep.subr.mxu0 %v44
  %229 = vmatpush1.msra.mxu0 %v43
  %230 = vmatprep.subr.mxu0 %v47
  %231 = vmatpush1.msra.mxu0 %v46
  %232 = vmatprep.subr.mxu0 %v50
  %233 = vmatpush1.msra.mxu0 %v49
  %234 = vmatprep.subr.mxu0 %v53
  %235 = vmatpush1.msra.mxu0 %v52
  %236 = vmatprep.subr.mxu0 %v56
  %237 = vmatpush1.msra.mxu0 %v55
  %238 = vmatprep.subr.mxu0 %v59
  %239 = vmatpush1.msra.mxu0 %v58
  %240 = vmatprep.subr.mxu0 %v62
  %241 = vmatpush1.msra.mxu0 %v61
  %242 = vmatprep.subr.mxu0 %v65
  %243 = vmatpush1.msra.mxu0 %v64
  %244 = vmatprep.subr.mxu0 %v68
  %245 = vmatpush1.msra.mxu0 %v67
  %246 = vmatprep.subr.mxu0 %v71
  %247 = vmatpush1.msra.mxu0 %v70
  %248 = vmatprep.subr.mxu0 %v74
  %249 = vmatpush1.msra.mxu0 %v73
  %250 = vmatprep.subr.mxu0 %v77
  %251 = vmatpush1.msra.mxu0 %v76
  %252 = vmatprep.subr.mxu0 %v80
  %253 = vmatpush1.msra.mxu0 %v79
  %254 = vmatprep.subr.mxu0 %v83
  %255 = vmatpush1.msra.mxu0 %v82
  %256 = vmatprep.subr.mxu0 %v86
  %257 = vmatpush1.msra.mxu0 %v85
  %258 = vmatprep.subr.mxu0 %v89
  %259 = vmatpush1.msra.mxu0 %v88
  %260 = vmatprep.subr.mxu0 %v92
  %261 = vmatpush1.msra.mxu0 %v91
  %262 = vmatprep.subr.mxu0 %v95
  %263 = vmatpush1.msra.mxu0 %v94
  %264 = vmatprep.subr.mxu0 %v98
  %265 = vmatpush1.msra.mxu0 %v97
  %266 = vmatprep.subr.mxu0 %v101
  %267 = vmatpush1.msra.mxu0 %v100
  %268 = vmatprep.subr.mxu0 %v104
  %269 = vmatpush1.msra.mxu0 %v103
  %270 = vmatprep.subr.mxu0 %v107
  %271 = vmatpush1.msra.mxu0 %v106
  %272 = vmatprep.subr.mxu0 %v110
  %273 = vmatpush1.msra.mxu0 %v109
  %274 = vmatprep.subr.mxu0 %v113
  %275 = vmatpush1.msra.mxu0 %v112
  %276 = vmatprep.subr.mxu0 %v116
  %277 = vmatpush1.msra.mxu0 %v115
  %278 = vmatprep.mubr.f32.mxu0 %v15
  %279 = vmatmul.mubr.f32.gmra.mrb[0].mxu0 %v14
  %v280 = vpop.f32.mrb[0].mxu0
  %v281 = vadd.f32 0.0, %v280
  %v282 = vpop.f32.mrb[0].mxu0
  %v283 = vadd.f32 0.0, %v282
  %284 = vmatprep.mubr.f32.mxu0 %v19
  %285 = vmatmul.mubr.f32.gmra.mrb[0].mxu0 %v18
  %v286 = vpop.f32.mrb[0].mxu0
  %v287 = vadd.f32 0.0, %v286
  %v288 = vpop.f32.mrb[0].mxu0
  %v289 = vadd.f32 0.0, %v288
  %290 = vdwg.mxu0
  %291 = vmatprep.subr.mxu0 %v119
  %292 = vmatpush1.msra.mxu0 %v118
  %293 = vmatprep.subr.mxu0 %v122
  %294 = vmatpush1.msra.mxu0 %v121
  %295 = vmatprep.subr.mxu0 %v125
  %296 = vmatpush1.msra.mxu0 %v124
  %297 = vmatprep.subr.mxu0 %v128
  %298 = vmatpush1.msra.mxu0 %v127
  %299 = vmatprep.subr.mxu0 %v131
  %300 = vmatpush1.msra.mxu0 %v130
  %301 = vmatprep.subr.mxu0 %v134
  %302 = vmatpush1.msra.mxu0 %v133
  %303 = vmatprep.subr.mxu0 %v137
  %304 = vmatpush1.msra.mxu0 %v136
  %305 = vmatprep.subr.mxu0 %v140
  %306 = vmatpush1.msra.mxu0 %v139
  %307 = vmatprep.subr.mxu0 %v143
  %308 = vmatpush1.msra.mxu0 %v142
  %309 = vmatprep.subr.mxu0 %v146
  %310 = vmatpush1.msra.mxu0 %v145
  %311 = vmatprep.subr.mxu0 %v149
  %312 = vmatpush1.msra.mxu0 %v148
  %313 = vmatprep.subr.mxu0 %v152
  %314 = vmatpush1.msra.mxu0 %v151
  %315 = vmatprep.subr.mxu0 %v155
  %316 = vmatpush1.msra.mxu0 %v154
  %317 = vmatprep.subr.mxu0 %v158
  %318 = vmatpush1.msra.mxu0 %v157
  %319 = vmatprep.subr.mxu0 %v161
  %320 = vmatpush1.msra.mxu0 %v160
  %321 = vmatprep.subr.mxu0 %v164
  %322 = vmatpush1.msra.mxu0 %v163
  %323 = vmatprep.subr.mxu0 %v167
  %324 = vmatpush1.msra.mxu0 %v166
  %325 = vmatprep.subr.mxu0 %v170
  %326 = vmatpush1.msra.mxu0 %v169
  %327 = vmatprep.subr.mxu0 %v173
  %328 = vmatpush1.msra.mxu0 %v172
  %329 = vmatprep.subr.mxu0 %v176
  %330 = vmatpush1.msra.mxu0 %v175
  %331 = vmatprep.subr.mxu0 %v179
  %332 = vmatpush1.msra.mxu0 %v178
  %333 = vmatprep.subr.mxu0 %v182
  %334 = vmatpush1.msra.mxu0 %v181
  %335 = vmatprep.subr.mxu0 %v185
  %336 = vmatpush1.msra.mxu0 %v184
  %337 = vmatprep.subr.mxu0 %v188
  %338 = vmatpush1.msra.mxu0 %v187
  %339 = vmatprep.subr.mxu0 %v191
  %340 = vmatpush1.msra.mxu0 %v190
  %341 = vmatprep.subr.mxu0 %v194
  %342 = vmatpush1.msra.mxu0 %v193
  %343 = vmatprep.subr.mxu0 %v197
  %344 = vmatpush1.msra.mxu0 %v196
  %345 = vmatprep.subr.mxu0 %v200
  %346 = vmatpush1.msra.mxu0 %v199
  %347 = vmatprep.subr.mxu0 %v203
  %348 = vmatpush1.msra.mxu0 %v202
  %349 = vmatprep.subr.mxu0 %v206
  %350 = vmatpush1.msra.mxu0 %v205
  %351 = vmatprep.subr.mxu0 %v209
  %352 = vmatpush1.msra.mxu0 %v208
  %353 = vmatprep.subr.mxu0 %v212
  %354 = vmatpush1.msra.mxu0 %v211
  %355 = vmatprep.mubr.f32.mxu0 %v17
  %356 = vmatmul.mubr.f32.gmra.mrb[0].mxu0 %v16
  %v357 = vpop.f32.mrb[0].mxu0
  %v358 = vadd.f32 %v281, %v357
  %v359 = vpop.f32.mrb[0].mxu0
  %v360 = vadd.f32 %v283, %v359
  %361 = vmatprep.mubr.f32.mxu0 %v21
  %362 = vmatmul.mubr.f32.gmra.mrb[0].mxu0 %v20
  %v363 = vpop.f32.mrb[0].mxu0
  %v364 = vadd.f32 %v287, %v363
  %v365 = vpop.f32.mrb[0].mxu0
  %v366 = vadd.f32 %v289, %v365
  %367 = vdwg.mxu0
  %368 = vmatprep.subr.mxu0 0.0
  %369 = vmatpush1.msra.mxu0 %v24
  %370 = vmatprep.subr.mxu0 0.0
  %371 = vmatpush1.msra.mxu0 %v27
  %372 = vmatprep.subr.mxu0 0.0
  %373 = vmatpush1.msra.mxu0 %v30
  %374 = vmatprep.subr.mxu0 0.0
  %375 = vmatpush1.msra.mxu0 %v33
  %376 = vmatprep.subr.mxu0 0.0
  %377 = vmatpush1.msra.mxu0 %v36
  %378 = vmatprep.subr.mxu0 0.0
  %379 = vmatpush1.msra.mxu0 %v39
  %380 = vmatprep.subr.mxu0 0.0
  %381 = vmatpush1.msra.mxu0 %v42
  %382 = vmatprep.subr.mxu0 0.0
  %383 = vmatpush1.msra.mxu0 %v45
  %384 = vmatprep.subr.mxu0 0.0
  %385 = vmatpush1.msra.mxu0 %v48
  %386 = vmatprep.subr.mxu0 0.0
  %387 = vmatpush1.msra.mxu0 %v51
  %388 = vmatprep.subr.mxu0 0.0
  %389 = vmatpush1.msra.mxu0 %v54
  %390 = vmatprep.subr.mxu0 0.0
  %391 = vmatpush1.msra.mxu0 %v57
  %392 = vmatprep.subr.mxu0 0.0
  %393 = vmatpush1.msra.mxu0 %v60
  %394 = vmatprep.subr.mxu0 0.0
  %395 = vmatpush1.msra.mxu0 %v63
  %396 = vmatprep.subr.mxu0 0.0
  %397 = vmatpush1.msra.mxu0 %v66
  %398 = vmatprep.subr.mxu0 0.0
  %399 = vmatpush1.msra.mxu0 %v69
  %400 = vmatprep.subr.mxu0 0.0
  %401 = vmatpush1.msra.mxu0 %v72
  %402 = vmatprep.subr.mxu0 0.0
  %403 = vmatpush1.msra.mxu0 %v75
  %404 = vmatprep.subr.mxu0 0.0
  %405 = vmatpush1.msra.mxu0 %v78
  %406 = vmatprep.subr.mxu0 0.0
  %407 = vmatpush1.msra.mxu0 %v81
  %408 = vmatprep.subr.mxu0 0.0
  %409 = vmatpush1.msra.mxu0 %v84
  %410 = vmatprep.subr.mxu0 0.0
  %411 = vmatpush1.msra.mxu0 %v87
  %412 = vmatprep.subr.mxu0 0.0
  %413 = vmatpush1.msra.mxu0 %v90
  %414 = vmatprep.subr.mxu0 0.0
  %415 = vmatpush1.msra.mxu0 %v93
  %416 = vmatprep.subr.mxu0 0.0
  %417 = vmatpush1.msra.mxu0 %v96
  %418 = vmatprep.subr.mxu0 0.0
  %419 = vmatpush1.msra.mxu0 %v99
  %420 = vmatprep.subr.mxu0 0.0
  %421 = vmatpush1.msra.mxu0 %v102
  %422 = vmatprep.subr.mxu0 0.0
  %423 = vmatpush1.msra.mxu0 %v105
  %424 = vmatprep.subr.mxu0 0.0
  %425 = vmatpush1.msra.mxu0 %v108
  %426 = vmatprep.subr.mxu0 0.0
  %427 = vmatpush1.msra.mxu0 %v111
  %428 = vmatprep.subr.mxu0 0.0
  %429 = vmatpush1.msra.mxu0 %v114
  %430 = vmatprep.subr.mxu0 0.0
  %431 = vmatpush1.msra.mxu0 %v117
  %432 = vmatprep.mubr.f32.mxu0 %v15
  %433 = vmatmul.mubr.f32.gmra.mrb[0].mxu0 %v14
  %v434 = vpop.f32.mrb[0].mxu0
  %v435 = vadd.f32 0.0, %v434
  %v436 = vpop.f32.mrb[0].mxu0
  %437 = vmatprep.mubr.f32.mxu0 %v19
  %438 = vmatmul.mubr.f32.gmra.mrb[0].mxu0 %v18
  %v439 = vpop.f32.mrb[0].mxu0
  %v440 = vadd.f32 0.0, %v439
  %v441 = vpop.f32.mrb[0].mxu0
  %442 = vdwg.mxu0
  %443 = vmatprep.subr.mxu0 0.0
  %444 = vmatpush1.msra.mxu0 %v120
  %445 = vmatprep.subr.mxu0 0.0
  %446 = vmatpush1.msra.mxu0 %v123
  %447 = vmatprep.subr.mxu0 0.0
  %448 = vmatpush1.msra.mxu0 %v126
  %449 = vmatprep.subr.mxu0 0.0
  %450 = vmatpush1.msra.mxu0 %v129
  %451 = vmatprep.subr.mxu0 0.0
  %452 = vmatpush1.msra.mxu0 %v132
  %453 = vmatprep.subr.mxu0 0.0
  %454 = vmatpush1.msra.mxu0 %v135
  %455 = vmatprep.subr.mxu0 0.0
  %456 = vmatpush1.msra.mxu0 %v138
  %457 = vmatprep.subr.mxu0 0.0
  %458 = vmatpush1.msra.mxu0 %v141
  %459 = vmatprep.subr.mxu0 0.0
  %460 = vmatpush1.msra.mxu0 %v144
  %461 = vmatprep.subr.mxu0 0.0
  %462 = vmatpush1.msra.mxu0 %v147
  %463 = vmatprep.subr.mxu0 0.0
  %464 = vmatpush1.msra.mxu0 %v150
  %465 = vmatprep.subr.mxu0 0.0
  %466 = vmatpush1.msra.mxu0 %v153
  %467 = vmatprep.subr.mxu0 0.0
  %468 = vmatpush1.msra.mxu0 %v156
  %469 = vmatprep.subr.mxu0 0.0
  %470 = vmatpush1.msra.mxu0 %v159
  %471 = vmatprep.subr.mxu0 0.0
  %472 = vmatpush1.msra.mxu0 %v162
  %473 = vmatprep.subr.mxu0 0.0
  %474 = vmatpush1.msra.mxu0 %v165
  %475 = vmatprep.subr.mxu0 0.0
  %476 = vmatpush1.msra.mxu0 %v168
  %477 = vmatprep.subr.mxu0 0.0
  %478 = vmatpush1.msra.mxu0 %v171
  %479 = vmatprep.subr.mxu0 0.0
  %480 = vmatpush1.msra.mxu0 %v174
  %481 = vmatprep.subr.mxu0 0.0
  %482 = vmatpush1.msra.mxu0 %v177
  %483 = vmatprep.subr.mxu0 0.0
  %484 = vmatpush1.msra.mxu0 %v180
  %485 = vmatprep.subr.mxu0 0.0
  %486 = vmatpush1.msra.mxu0 %v183
  %487 = vmatprep.subr.mxu0 0.0
  %488 = vmatpush1.msra.mxu0 %v186
  %489 = vmatprep.subr.mxu0 0.0
  %490 = vmatpush1.msra.mxu0 %v189
  %491 = vmatprep.subr.mxu0 0.0
  %492 = vmatpush1.msra.mxu0 %v192
  %493 = vmatprep.subr.mxu0 0.0
  %494 = vmatpush1.msra.mxu0 %v195
  %495 = vmatprep.subr.mxu0 0.0
  %496 = vmatpush1.msra.mxu0 %v198
  %497 = vmatprep.subr.mxu0 0.0
  %498 = vmatpush1.msra.mxu0 %v201
  %499 = vmatprep.subr.mxu0 0.0
  %500 = vmatpush1.msra.mxu0 %v204
  %501 = vmatprep.subr.mxu0 0.0
  %502 = vmatpush1.msra.mxu0 %v207
  %503 = vmatprep.subr.mxu0 0.0
  %504 = vmatpush1.msra.mxu0 %v210
  %505 = vmatprep.subr.mxu0 0.0
  %506 = vmatpush1.msra.mxu0 %v213
  %507 = vmatprep.mubr.f32.mxu0 %v17
  %508 = vmatmul.mubr.f32.gmra.mrb[0].mxu0 %v16
  %v509 = vpop.f32.mrb[0].mxu0
  %v510 = vadd.f32 %v435, %v509
  %v511 = vpop.f32.mrb[0].mxu0
  %512 = vmatprep.mubr.f32.mxu0 %v21
  %513 = vmatmul.mubr.f32.gmra.mrb[0].mxu0 %v20
  %v514 = vpop.f32.mrb[0].mxu0
  %v515 = vadd.f32 %v440, %v514
  %v516 = vpop.f32.mrb[0].mxu0
  %517 = vdwg.mxu0
  %v518 = vld [vmem:[%s2] sm:$0xff]
  %v519 = vld [vmem:[%s2 + $0x8] sm:$0xff]
  %v520 = vld [vmem:[%s2 + $0x10] sm:$0xff]
  %v521 = vld [vmem:[%s2 + $0x18] sm:$0xff]
  %v522 = vld [vmem:[%s2 + $0x20] sm:$0xff]
  %v523 = vld [vmem:[%s2 + $0x28] sm:$0xff]
  %v524 = vld [vmem:[%s2 + $0x30] sm:$0xff]
  %v525 = vld [vmem:[%s2 + $0x38] sm:$0xff]
  %v526 = vld [vmem:[%s2 + $0x40] sm:$0xff]
  %v527 = vld [vmem:[%s2 + $0x48] sm:$0xff]
  %v528 = vld [vmem:[%s2 + $0x50] sm:$0xff]
  %v529 = vld [vmem:[%s2 + $0x58] sm:$0xff]
  %v530 = vld [vmem:[%s2 + $0x60] sm:$0xff]
  %v531 = vld [vmem:[%s2 + $0x68] sm:$0xff]
  %v532 = vld [vmem:[%s2 + $0x70] sm:$0xff]
  %v533 = vld [vmem:[%s2 + $0x78] sm:$0xff]
  %v534 = vld [vmem:[%s2 + $0x80] sm:$0xff]
  %v535 = vld [vmem:[%s2 + $0x88] sm:$0xff]
  %v536 = vld [vmem:[%s2 + $0x90] sm:$0xff]
  %v537 = vld [vmem:[%s2 + $0x98] sm:$0xff]
  %v538 = vld [vmem:[%s2 + $0xa0] sm:$0xff]
  %v539 = vld [vmem:[%s2 + $0xa8] sm:$0xff]
  %v540 = vld [vmem:[%s2 + $0xb0] sm:$0xff]
  %v541 = vld [vmem:[%s2 + $0xb8] sm:$0xff]
  %v542 = vld [vmem:[%s2 + $0xc0] sm:$0xff]
  %v543 = vld [vmem:[%s2 + $0xc8] sm:$0xff]
  %v544 = vld [vmem:[%s2 + $0xd0] sm:$0xff]
  %v545 = vld [vmem:[%s2 + $0xd8] sm:$0xff]
  %v546 = vld [vmem:[%s2 + $0xe0] sm:$0xff]
  %v547 = vld [vmem:[%s2 + $0xe8] sm:$0xff]
  %v548 = vld [vmem:[%s2 + $0xf0] sm:$0xff]
  %v549 = vld [vmem:[%s2 + $0xf8] sm:$0xff]
  %v550 = vld [vmem:[%s2 + $0x100] sm:$0xff]
  %v551 = vld [vmem:[%s2 + $0x108] sm:$0xff]
  %v552 = vld [vmem:[%s2 + $0x110] sm:$0xff]
  %v553 = vld [vmem:[%s2 + $0x118] sm:$0xff]
  %v554 = vld [vmem:[%s2 + $0x120] sm:$0xff]
  %v555 = vld [vmem:[%s2 + $0x128] sm:$0xff]
  %v556 = vld [vmem:[%s2 + $0x130] sm:$0xff]
  %v557 = vld [vmem:[%s2 + $0x138] sm:$0xff]
  %v558 = vld [vmem:[%s2 + $0x140] sm:$0xff]
  %v559 = vld [vmem:[%s2 + $0x148] sm:$0xff]
  %v560 = vld [vmem:[%s2 + $0x150] sm:$0xff]
  %v561 = vld [vmem:[%s2 + $0x158] sm:$0xff]
  %v562 = vld [vmem:[%s2 + $0x160] sm:$0xff]
  %v563 = vld [vmem:[%s2 + $0x168] sm:$0xff]
  %v564 = vld [vmem:[%s2 + $0x170] sm:$0xff]
  %v565 = vld [vmem:[%s2 + $0x178] sm:$0xff]
  %v566 = vld [vmem:[%s2 + $0x180] sm:$0xff]
  %v567 = vld [vmem:[%s2 + $0x188] sm:$0xff]
  %v568 = vld [vmem:[%s2 + $0x190] sm:$0xff]
  %v569 = vld [vmem:[%s2 + $0x198] sm:$0xff]
  %v570 = vld [vmem:[%s2 + $0x1a0] sm:$0xff]
  %v571 = vld [vmem:[%s2 + $0x1a8] sm:$0xff]
  %v572 = vld [vmem:[%s2 + $0x1b0] sm:$0xff]
  %v573 = vld [vmem:[%s2 + $0x1b8] sm:$0xff]
  %v574 = vld [vmem:[%s2 + $0x1c0] sm:$0xff]
  %v575 = vld [vmem:[%s2 + $0x1c8] sm:$0xff]
  %v576 = vld [vmem:[%s2 + $0x1d0] sm:$0xff]
  %v577 = vld [vmem:[%s2 + $0x1d8] sm:$0xff]
  %v578 = vld [vmem:[%s2 + $0x1e0] sm:$0xff]
  %v579 = vld [vmem:[%s2 + $0x1e8] sm:$0xff]
  %v580 = vld [vmem:[%s2 + $0x1f0] sm:$0xff]
  %v581 = vld [vmem:[%s2 + $0x1f8] sm:$0xff]
  %v582 = vld [vmem:[%s2 + $0x200] sm:$0xff]
  %v583 = vld [vmem:[%s2 + $0x208] sm:$0xff]
  %v584 = vld [vmem:[%s2 + $0x210] sm:$0xff]
  %v585 = vld [vmem:[%s2 + $0x218] sm:$0xff]
  %v586 = vld [vmem:[%s2 + $0x220] sm:$0xff]
  %v587 = vld [vmem:[%s2 + $0x228] sm:$0xff]
  %v588 = vld [vmem:[%s2 + $0x230] sm:$0xff]
  %v589 = vld [vmem:[%s2 + $0x238] sm:$0xff]
  %v590 = vld [vmem:[%s2 + $0x240] sm:$0xff]
  %v591 = vld [vmem:[%s2 + $0x248] sm:$0xff]
  %v592 = vld [vmem:[%s2 + $0x250] sm:$0xff]
  %v593 = vld [vmem:[%s2 + $0x258] sm:$0xff]
  %v594 = vld [vmem:[%s2 + $0x260] sm:$0xff]
  %v595 = vld [vmem:[%s2 + $0x268] sm:$0xff]
  %v596 = vld [vmem:[%s2 + $0x270] sm:$0xff]
  %v597 = vld [vmem:[%s2 + $0x278] sm:$0xff]
  %v598 = vld [vmem:[%s2 + $0x280] sm:$0xff]
  %v599 = vld [vmem:[%s2 + $0x288] sm:$0xff]
  %v600 = vld [vmem:[%s2 + $0x290] sm:$0xff]
  %v601 = vld [vmem:[%s2 + $0x298] sm:$0xff]
  %v602 = vld [vmem:[%s2 + $0x2a0] sm:$0xff]
  %v603 = vld [vmem:[%s2 + $0x2a8] sm:$0xff]
  %v604 = vld [vmem:[%s2 + $0x2b0] sm:$0xff]
  %v605 = vld [vmem:[%s2 + $0x2b8] sm:$0xff]
  %v606 = vld [vmem:[%s2 + $0x2c0] sm:$0xff]
  %v607 = vld [vmem:[%s2 + $0x2c8] sm:$0xff]
  %v608 = vld [vmem:[%s2 + $0x2d0] sm:$0xff]
  %v609 = vld [vmem:[%s2 + $0x2d8] sm:$0xff]
  %v610 = vld [vmem:[%s2 + $0x2e0] sm:$0xff]
  %v611 = vld [vmem:[%s2 + $0x2e8] sm:$0xff]
  %v612 = vld [vmem:[%s2 + $0x2f0] sm:$0xff]
  %v613 = vld [vmem:[%s2 + $0x2f8] sm:$0xff]
  %v614 = vld [vmem:[%s2 + $0x300] sm:$0xff]
  %v615 = vld [vmem:[%s2 + $0x308] sm:$0xff]
  %v616 = vld [vmem:[%s2 + $0x310] sm:$0xff]
  %v617 = vld [vmem:[%s2 + $0x318] sm:$0xff]
  %v618 = vld [vmem:[%s2 + $0x320] sm:$0xff]
  %v619 = vld [vmem:[%s2 + $0x328] sm:$0xff]
  %v620 = vld [vmem:[%s2 + $0x330] sm:$0xff]
  %v621 = vld [vmem:[%s2 + $0x338] sm:$0xff]
  %v622 = vld [vmem:[%s2 + $0x340] sm:$0xff]
  %v623 = vld [vmem:[%s2 + $0x348] sm:$0xff]
  %v624 = vld [vmem:[%s2 + $0x350] sm:$0xff]
  %v625 = vld [vmem:[%s2 + $0x358] sm:$0xff]
  %v626 = vld [vmem:[%s2 + $0x360] sm:$0xff]
  %v627 = vld [vmem:[%s2 + $0x368] sm:$0xff]
  %v628 = vld [vmem:[%s2 + $0x370] sm:$0xff]
  %v629 = vld [vmem:[%s2 + $0x378] sm:$0xff]
  %v630 = vld [vmem:[%s2 + $0x380] sm:$0xff]
  %v631 = vld [vmem:[%s2 + $0x388] sm:$0xff]
  %v632 = vld [vmem:[%s2 + $0x390] sm:$0xff]
  %v633 = vld [vmem:[%s2 + $0x398] sm:$0xff]
  %v634 = vld [vmem:[%s2 + $0x3a0] sm:$0xff]
  %v635 = vld [vmem:[%s2 + $0x3a8] sm:$0xff]
  %v636 = vld [vmem:[%s2 + $0x3b0] sm:$0xff]
  %v637 = vld [vmem:[%s2 + $0x3b8] sm:$0xff]
  %v638 = vld [vmem:[%s2 + $0x3c0] sm:$0xff]
  %v639 = vld [vmem:[%s2 + $0x3c8] sm:$0xff]
  %v640 = vld [vmem:[%s2 + $0x3d0] sm:$0xff]
  %v641 = vld [vmem:[%s2 + $0x3d8] sm:$0xff]
  %v642 = vld [vmem:[%s2 + $0x3e0] sm:$0xff]
  %v643 = vld [vmem:[%s2 + $0x3e8] sm:$0xff]
  %v644 = vld [vmem:[%s2 + $0x3f0] sm:$0xff]
  %v645 = vld [vmem:[%s2 + $0x3f8] sm:$0xff]
  %v646 = vld [vmem:[%s2 + $0x400] sm:$0xff]
  %v647 = vld [vmem:[%s2 + $0x408] sm:$0xff]
  %v648 = vld [vmem:[%s2 + $0x410] sm:$0xff]
  %v649 = vld [vmem:[%s2 + $0x418] sm:$0xff]
  %v650 = vld [vmem:[%s2 + $0x420] sm:$0xff]
  %v651 = vld [vmem:[%s2 + $0x428] sm:$0xff]
  %v652 = vld [vmem:[%s2 + $0x430] sm:$0xff]
  %v653 = vld [vmem:[%s2 + $0x438] sm:$0xff]
  %v654 = vld [vmem:[%s2 + $0x440] sm:$0xff]
  %v655 = vld [vmem:[%s2 + $0x448] sm:$0xff]
  %v656 = vld [vmem:[%s2 + $0x450] sm:$0xff]
  %v657 = vld [vmem:[%s2 + $0x458] sm:$0xff]
  %v658 = vld [vmem:[%s2 + $0x460] sm:$0xff]
  %v659 = vld [vmem:[%s2 + $0x468] sm:$0xff]
  %v660 = vld [vmem:[%s2 + $0x470] sm:$0xff]
  %v661 = vld [vmem:[%s2 + $0x478] sm:$0xff]
  %v662 = vld [vmem:[%s2 + $0x480] sm:$0xff]
  %v663 = vld [vmem:[%s2 + $0x488] sm:$0xff]
  %v664 = vld [vmem:[%s2 + $0x490] sm:$0xff]
  %v665 = vld [vmem:[%s2 + $0x498] sm:$0xff]
  %v666 = vld [vmem:[%s2 + $0x4a0] sm:$0xff]
  %v667 = vld [vmem:[%s2 + $0x4a8] sm:$0xff]
  %v668 = vld [vmem:[%s2 + $0x4b0] sm:$0xff]
  %v669 = vld [vmem:[%s2 + $0x4b8] sm:$0xff]
  %v670 = vld [vmem:[%s2 + $0x4c0] sm:$0xff]
  %v671 = vld [vmem:[%s2 + $0x4c8] sm:$0xff]
  %v672 = vld [vmem:[%s2 + $0x4d0] sm:$0xff]
  %v673 = vld [vmem:[%s2 + $0x4d8] sm:$0xff]
  %v674 = vld [vmem:[%s2 + $0x4e0] sm:$0xff]
  %v675 = vld [vmem:[%s2 + $0x4e8] sm:$0xff]
  %v676 = vld [vmem:[%s2 + $0x4f0] sm:$0xff]
  %v677 = vld [vmem:[%s2 + $0x4f8] sm:$0xff]
  %v678 = vld [vmem:[%s2 + $0x500] sm:$0xff]
  %v679 = vld [vmem:[%s2 + $0x508] sm:$0xff]
  %v680 = vld [vmem:[%s2 + $0x510] sm:$0xff]
  %v681 = vld [vmem:[%s2 + $0x518] sm:$0xff]
  %v682 = vld [vmem:[%s2 + $0x520] sm:$0xff]
  %v683 = vld [vmem:[%s2 + $0x528] sm:$0xff]
  %v684 = vld [vmem:[%s2 + $0x530] sm:$0xff]
  %v685 = vld [vmem:[%s2 + $0x538] sm:$0xff]
  %v686 = vld [vmem:[%s2 + $0x540] sm:$0xff]
  %v687 = vld [vmem:[%s2 + $0x548] sm:$0xff]
  %v688 = vld [vmem:[%s2 + $0x550] sm:$0xff]
  %v689 = vld [vmem:[%s2 + $0x558] sm:$0xff]
  %v690 = vld [vmem:[%s2 + $0x560] sm:$0xff]
  %v691 = vld [vmem:[%s2 + $0x568] sm:$0xff]
  %v692 = vld [vmem:[%s2 + $0x570] sm:$0xff]
  %v693 = vld [vmem:[%s2 + $0x578] sm:$0xff]
  %v694 = vld [vmem:[%s2 + $0x580] sm:$0xff]
  %v695 = vld [vmem:[%s2 + $0x588] sm:$0xff]
  %v696 = vld [vmem:[%s2 + $0x590] sm:$0xff]
  %v697 = vld [vmem:[%s2 + $0x598] sm:$0xff]
  %v698 = vld [vmem:[%s2 + $0x5a0] sm:$0xff]
  %v699 = vld [vmem:[%s2 + $0x5a8] sm:$0xff]
  %v700 = vld [vmem:[%s2 + $0x5b0] sm:$0xff]
  %v701 = vld [vmem:[%s2 + $0x5b8] sm:$0xff]
  %v702 = vld [vmem:[%s2 + $0x5c0] sm:$0xff]
  %v703 = vld [vmem:[%s2 + $0x5c8] sm:$0xff]
  %v704 = vld [vmem:[%s2 + $0x5d0] sm:$0xff]
  %v705 = vld [vmem:[%s2 + $0x5d8] sm:$0xff]
  %v706 = vld [vmem:[%s2 + $0x5e0] sm:$0xff]
  %v707 = vld [vmem:[%s2 + $0x5e8] sm:$0xff]
  %v708 = vld [vmem:[%s2 + $0x5f0] sm:$0xff]
  %v709 = vld [vmem:[%s2 + $0x5f8] sm:$0xff]
  %710 = vmatprep.subr.mxu0 %v519
  %711 = vmatpush1.msra.mxu0 %v518
  %712 = vmatprep.subr.mxu0 %v522
  %713 = vmatpush1.msra.mxu0 %v521
  %714 = vmatprep.subr.mxu0 %v525
  %715 = vmatpush1.msra.mxu0 %v524
  %716 = vmatprep.subr.mxu0 %v528
  %717 = vmatpush1.msra.mxu0 %v527
  %718 = vmatprep.subr.mxu0 %v531
  %719 = vmatpush1.msra.mxu0 %v530
  %720 = vmatprep.subr.mxu0 %v534
  %721 = vmatpush1.msra.mxu0 %v533
  %722 = vmatprep.subr.mxu0 %v537
  %723 = vmatpush1.msra.mxu0 %v536
  %724 = vmatprep.subr.mxu0 %v540
  %725 = vmatpush1.msra.mxu0 %v539
  %726 = vmatprep.subr.mxu0 %v543
  %727 = vmatpush1.msra.mxu0 %v542
  %728 = vmatprep.subr.mxu0 %v546
  %729 = vmatpush1.msra.mxu0 %v545
  %730 = vmatprep.subr.mxu0 %v549
  %731 = vmatpush1.msra.mxu0 %v548
  %732 = vmatprep.subr.mxu0 %v552
  %733 = vmatpush1.msra.mxu0 %v551
  %734 = vmatprep.subr.mxu0 %v555
  %735 = vmatpush1.msra.mxu0 %v554
  %736 = vmatprep.subr.mxu0 %v558
  %737 = vmatpush1.msra.mxu0 %v557
  %738 = vmatprep.subr.mxu0 %v561
  %739 = vmatpush1.msra.mxu0 %v560
  %740 = vmatprep.subr.mxu0 %v564
  %741 = vmatpush1.msra.mxu0 %v563
  %742 = vmatprep.subr.mxu0 %v567
  %743 = vmatpush1.msra.mxu0 %v566
  %744 = vmatprep.subr.mxu0 %v570
  %745 = vmatpush1.msra.mxu0 %v569
  %746 = vmatprep.subr.mxu0 %v573
  %747 = vmatpush1.msra.mxu0 %v572
  %748 = vmatprep.subr.mxu0 %v576
  %749 = vmatpush1.msra.mxu0 %v575
  %750 = vmatprep.subr.mxu0 %v579
  %751 = vmatpush1.msra.mxu0 %v578
  %752 = vmatprep.subr.mxu0 %v582
  %753 = vmatpush1.msra.mxu0 %v581
  %754 = vmatprep.subr.mxu0 %v585
  %755 = vmatpush1.msra.mxu0 %v584
  %756 = vmatprep.subr.mxu0 %v588
  %757 = vmatpush1.msra.mxu0 %v587
  %758 = vmatprep.subr.mxu0 %v591
  %759 = vmatpush1.msra.mxu0 %v590
  %760 = vmatprep.subr.mxu0 %v594
  %761 = vmatpush1.msra.mxu0 %v593
  %762 = vmatprep.subr.mxu0 %v597
  %763 = vmatpush1.msra.mxu0 %v596
  %764 = vmatprep.subr.mxu0 %v600
  %765 = vmatpush1.msra.mxu0 %v599
  %766 = vmatprep.subr.mxu0 %v603
  %767 = vmatpush1.msra.mxu0 %v602
  %768 = vmatprep.subr.mxu0 %v606
  %769 = vmatpush1.msra.mxu0 %v605
  %770 = vmatprep.subr.mxu0 %v609
  %771 = vmatpush1.msra.mxu0 %v608
  %772 = vmatprep.subr.mxu0 %v612
  %773 = vmatpush1.msra.mxu0 %v611
  %774 = vmatprep.mubr.f32.mxu0 %v15
  %775 = vmatmul.mubr.f32.gmra.mrb[0].mxu0 %v14
  %v776 = vpop.f32.mrb[0].mxu0
  %v777 = vadd.f32 0.0, %v776
  %v778 = vpop.f32.mrb[0].mxu0
  %v779 = vadd.f32 0.0, %v778
  %780 = vmatprep.mubr.f32.mxu0 %v19
  %781 = vmatmul.mubr.f32.gmra.mrb[0].mxu0 %v18
  %v782 = vpop.f32.mrb[0].mxu0
  %v783 = vadd.f32 0.0, %v782
  %v784 = vpop.f32.mrb[0].mxu0
  %v785 = vadd.f32 0.0, %v784
  %786 = vdwg.mxu0
  %787 = vmatprep.subr.mxu0 %v615
  %788 = vmatpush1.msra.mxu0 %v614
  %789 = vmatprep.subr.mxu0 %v618
  %790 = vmatpush1.msra.mxu0 %v617
  %791 = vmatprep.subr.mxu0 %v621
  %792 = vmatpush1.msra.mxu0 %v620
  %793 = vmatprep.subr.mxu0 %v624
  %794 = vmatpush1.msra.mxu0 %v623
  %795 = vmatprep.subr.mxu0 %v627
  %796 = vmatpush1.msra.mxu0 %v626
  %797 = vmatprep.subr.mxu0 %v630
  %798 = vmatpush1.msra.mxu0 %v629
  %799 = vmatprep.subr.mxu0 %v633
  %800 = vmatpush1.msra.mxu0 %v632
  %801 = vmatprep.subr.mxu0 %v636
  %802 = vmatpush1.msra.mxu0 %v635
  %803 = vmatprep.subr.mxu0 %v639
  %804 = vmatpush1.msra.mxu0 %v638
  %805 = vmatprep.subr.mxu0 %v642
  %806 = vmatpush1.msra.mxu0 %v641
  %807 = vmatprep.subr.mxu0 %v645
  %808 = vmatpush1.msra.mxu0 %v644
  %809 = vmatprep.subr.mxu0 %v648
  %810 = vmatpush1.msra.mxu0 %v647
  %811 = vmatprep.subr.mxu0 %v651
  %812 = vmatpush1.msra.mxu0 %v650
  %813 = vmatprep.subr.mxu0 %v654
  %814 = vmatpush1.msra.mxu0 %v653
  %815 = vmatprep.subr.mxu0 %v657
  %816 = vmatpush1.msra.mxu0 %v656
  %817 = vmatprep.subr.mxu0 %v660
  %818 = vmatpush1.msra.mxu0 %v659
  %819 = vmatprep.subr.mxu0 %v663
  %820 = vmatpush1.msra.mxu0 %v662
  %821 = vmatprep.subr.mxu0 %v666
  %822 = vmatpush1.msra.mxu0 %v665
  %823 = vmatprep.subr.mxu0 %v669
  %824 = vmatpush1.msra.mxu0 %v668
  %825 = vmatprep.subr.mxu0 %v672
  %826 = vmatpush1.msra.mxu0 %v671
  %827 = vmatprep.subr.mxu0 %v675
  %828 = vmatpush1.msra.mxu0 %v674
  %829 = vmatprep.subr.mxu0 %v678
  %830 = vmatpush1.msra.mxu0 %v677
  %831 = vmatprep.subr.mxu0 %v681
  %832 = vmatpush1.msra.mxu0 %v680
  %833 = vmatprep.subr.mxu0 %v684
  %834 = vmatpush1.msra.mxu0 %v683
  %835 = vmatprep.subr.mxu0 %v687
  %836 = vmatpush1.msra.mxu0 %v686
  %837 = vmatprep.subr.mxu0 %v690
  %838 = vmatpush1.msra.mxu0 %v689
  %839 = vmatprep.subr.mxu0 %v693
  %840 = vmatpush1.msra.mxu0 %v692
  %841 = vmatprep.subr.mxu0 %v696
  %842 = vmatpush1.msra.mxu0 %v695
  %843 = vmatprep.subr.mxu0 %v699
  %844 = vmatpush1.msra.mxu0 %v698
  %845 = vmatprep.subr.mxu0 %v702
  %846 = vmatpush1.msra.mxu0 %v701
  %847 = vmatprep.subr.mxu0 %v705
  %848 = vmatpush1.msra.mxu0 %v704
  %849 = vmatprep.subr.mxu0 %v708
  %850 = vmatpush1.msra.mxu0 %v707
  %851 = vmatprep.mubr.f32.mxu0 %v17
  %852 = vmatmul.mubr.f32.gmra.mrb[0].mxu0 %v16
  %v853 = vpop.f32.mrb[0].mxu0
  %v854 = vadd.f32 %v777, %v853
  %v855 = vpop.f32.mrb[0].mxu0
  %v856 = vadd.f32 %v779, %v855
  %857 = vmatprep.mubr.f32.mxu0 %v21
  %858 = vmatmul.mubr.f32.gmra.mrb[0].mxu0 %v20
  %v859 = vpop.f32.mrb[0].mxu0
  %v860 = vadd.f32 %v783, %v859
  %v861 = vpop.f32.mrb[0].mxu0
  %v862 = vadd.f32 %v785, %v861
  %863 = vdwg.mxu0
  %864 = vmatprep.subr.mxu0 0.0
  %865 = vmatpush1.msra.mxu0 %v520
  %866 = vmatprep.subr.mxu0 0.0
  %867 = vmatpush1.msra.mxu0 %v523
  %868 = vmatprep.subr.mxu0 0.0
  %869 = vmatpush1.msra.mxu0 %v526
  %870 = vmatprep.subr.mxu0 0.0
  %871 = vmatpush1.msra.mxu0 %v529
  %872 = vmatprep.subr.mxu0 0.0
  %873 = vmatpush1.msra.mxu0 %v532
  %874 = vmatprep.subr.mxu0 0.0
  %875 = vmatpush1.msra.mxu0 %v535
  %876 = vmatprep.subr.mxu0 0.0
  %877 = vmatpush1.msra.mxu0 %v538
  %878 = vmatprep.subr.mxu0 0.0
  %879 = vmatpush1.msra.mxu0 %v541
  %880 = vmatprep.subr.mxu0 0.0
  %881 = vmatpush1.msra.mxu0 %v544
  %882 = vmatprep.subr.mxu0 0.0
  %883 = vmatpush1.msra.mxu0 %v547
  %884 = vmatprep.subr.mxu0 0.0
  %885 = vmatpush1.msra.mxu0 %v550
  %886 = vmatprep.subr.mxu0 0.0
  %887 = vmatpush1.msra.mxu0 %v553
  %888 = vmatprep.subr.mxu0 0.0
  %889 = vmatpush1.msra.mxu0 %v556
  %890 = vmatprep.subr.mxu0 0.0
  %891 = vmatpush1.msra.mxu0 %v559
  %892 = vmatprep.subr.mxu0 0.0
  %893 = vmatpush1.msra.mxu0 %v562
  %894 = vmatprep.subr.mxu0 0.0
  %895 = vmatpush1.msra.mxu0 %v565
  %896 = vmatprep.subr.mxu0 0.0
  %897 = vmatpush1.msra.mxu0 %v568
  %898 = vmatprep.subr.mxu0 0.0
  %899 = vmatpush1.msra.mxu0 %v571
  %900 = vmatprep.subr.mxu0 0.0
  %901 = vmatpush1.msra.mxu0 %v574
  %902 = vmatprep.subr.mxu0 0.0
  %903 = vmatpush1.msra.mxu0 %v577
  %904 = vmatprep.subr.mxu0 0.0
  %905 = vmatpush1.msra.mxu0 %v580
  %906 = vmatprep.subr.mxu0 0.0
  %907 = vmatpush1.msra.mxu0 %v583
  %908 = vmatprep.subr.mxu0 0.0
  %909 = vmatpush1.msra.mxu0 %v586
  %910 = vmatprep.subr.mxu0 0.0
  %911 = vmatpush1.msra.mxu0 %v589
  %912 = vmatprep.subr.mxu0 0.0
  %913 = vmatpush1.msra.mxu0 %v592
  %914 = vmatprep.subr.mxu0 0.0
  %915 = vmatpush1.msra.mxu0 %v595
  %916 = vmatprep.subr.mxu0 0.0
  %917 = vmatpush1.msra.mxu0 %v598
  %918 = vmatprep.subr.mxu0 0.0
  %919 = vmatpush1.msra.mxu0 %v601
  %920 = vmatprep.subr.mxu0 0.0
  %921 = vmatpush1.msra.mxu0 %v604
  %922 = vmatprep.subr.mxu0 0.0
  %923 = vmatpush1.msra.mxu0 %v607
  %924 = vmatprep.subr.mxu0 0.0
  %925 = vmatpush1.msra.mxu0 %v610
  %926 = vmatprep.subr.mxu0 0.0
  %927 = vmatpush1.msra.mxu0 %v613
  %928 = vmatprep.mubr.f32.mxu0 %v15
  %929 = vmatmul.mubr.f32.gmra.mrb[0].mxu0 %v14
  %v930 = vpop.f32.mrb[0].mxu0
  %v931 = vadd.f32 0.0, %v930
  %v932 = vpop.f32.mrb[0].mxu0
  %933 = vmatprep.mubr.f32.mxu0 %v19
  %934 = vmatmul.mubr.f32.gmra.mrb[0].mxu0 %v18
  %v935 = vpop.f32.mrb[0].mxu0
  %v936 = vadd.f32 0.0, %v935
  %v937 = vpop.f32.mrb[0].mxu0
  %938 = vdwg.mxu0
  %939 = vmatprep.subr.mxu0 0.0
  %940 = vmatpush1.msra.mxu0 %v616
  %941 = vmatprep.subr.mxu0 0.0
  %942 = vmatpush1.msra.mxu0 %v619
  %943 = vmatprep.subr.mxu0 0.0
  %944 = vmatpush1.msra.mxu0 %v622
  %945 = vmatprep.subr.mxu0 0.0
  %946 = vmatpush1.msra.mxu0 %v625
  %947 = vmatprep.subr.mxu0 0.0
  %948 = vmatpush1.msra.mxu0 %v628
  %949 = vmatprep.subr.mxu0 0.0
  %950 = vmatpush1.msra.mxu0 %v631
  %951 = vmatprep.subr.mxu0 0.0
  %952 = vmatpush1.msra.mxu0 %v634
  %953 = vmatprep.subr.mxu0 0.0
  %954 = vmatpush1.msra.mxu0 %v637
  %955 = vmatprep.subr.mxu0 0.0
  %956 = vmatpush1.msra.mxu0 %v640
  %957 = vmatprep.subr.mxu0 0.0
  %958 = vmatpush1.msra.mxu0 %v643
  %959 = vmatprep.subr.mxu0 0.0
  %960 = vmatpush1.msra.mxu0 %v646
  %961 = vmatprep.subr.mxu0 0.0
  %962 = vmatpush1.msra.mxu0 %v649
  %963 = vmatprep.subr.mxu0 0.0
  %964 = vmatpush1.msra.mxu0 %v652
  %965 = vmatprep.subr.mxu0 0.0
  %966 = vmatpush1.msra.mxu0 %v655
  %967 = vmatprep.subr.mxu0 0.0
  %968 = vmatpush1.msra.mxu0 %v658
  %969 = vmatprep.subr.mxu0 0.0
  %970 = vmatpush1.msra.mxu0 %v661
  %971 = vmatprep.subr.mxu0 0.0
  %972 = vmatpush1.msra.mxu0 %v664
  %973 = vmatprep.subr.mxu0 0.0
  %974 = vmatpush1.msra.mxu0 %v667
  %975 = vmatprep.subr.mxu0 0.0
  %976 = vmatpush1.msra.mxu0 %v670
  %977 = vmatprep.subr.mxu0 0.0
  %978 = vmatpush1.msra.mxu0 %v673
  %979 = vmatprep.subr.mxu0 0.0
  %980 = vmatpush1.msra.mxu0 %v676
  %981 = vmatprep.subr.mxu0 0.0
  %982 = vmatpush1.msra.mxu0 %v679
  %983 = vmatprep.subr.mxu0 0.0
  %984 = vmatpush1.msra.mxu0 %v682
  %985 = vmatprep.subr.mxu0 0.0
  %986 = vmatpush1.msra.mxu0 %v685
  %987 = vmatprep.subr.mxu0 0.0
  %988 = vmatpush1.msra.mxu0 %v688
  %989 = vmatprep.subr.mxu0 0.0
  %990 = vmatpush1.msra.mxu0 %v691
  %991 = vmatprep.subr.mxu0 0.0
  %992 = vmatpush1.msra.mxu0 %v694
  %993 = vmatprep.subr.mxu0 0.0
  %994 = vmatpush1.msra.mxu0 %v697
  %995 = vmatprep.subr.mxu0 0.0
  %996 = vmatpush1.msra.mxu0 %v700
  %997 = vmatprep.subr.mxu0 0.0
  %998 = vmatpush1.msra.mxu0 %v703
  %999 = vmatprep.subr.mxu0 0.0
  %1000 = vmatpush1.msra.mxu0 %v706
  %1001 = vmatprep.subr.mxu0 0.0
  %1002 = vmatpush1.msra.mxu0 %v709
  %1003 = vmatprep.mubr.f32.mxu0 %v17
  %1004 = vmatmul.mubr.f32.gmra.mrb[0].mxu0 %v16
  %v1005 = vpop.f32.mrb[0].mxu0
  %v1006 = vadd.f32 %v931, %v1005
  %v1007 = vpop.f32.mrb[0].mxu0
  %1008 = vmatprep.mubr.f32.mxu0 %v21
  %1009 = vmatmul.mubr.f32.gmra.mrb[0].mxu0 %v20
  %v1010 = vpop.f32.mrb[0].mxu0
  %v1011 = vadd.f32 %v936, %v1010
  %v1012 = vpop.f32.mrb[0].mxu0
  %1013 = vdwg.mxu0
  %v1014 = vmul.f32 %v358, %v358
  %v1015 = vmul.f32 %v360, %v360
  %v1016 = vmul.f32 %v510, %v510
  %v1017 = vmul.f32 %v364, %v364
  %v1018 = vmul.f32 %v366, %v366
  %v1019 = vmul.f32 %v515, %v515
  %v1020 = vmul.f32 %v854, %v854
  %v1021 = vmul.f32 %v856, %v856
  %v1022 = vmul.f32 %v1006, %v1006
  %v1023 = vmul.f32 %v860, %v860
  %v1024 = vmul.f32 %v862, %v862
  %v1025 = vmul.f32 %v1011, %v1011
  %v1026 = vadd.f32 %v1014, %v1020
  %v1027 = vadd.f32 %v1015, %v1021
  %v1028 = vadd.f32 %v1016, %v1022
  %v1029 = vadd.f32 %v1017, %v1023
  %v1030 = vadd.f32 %v1018, %v1024
  %v1031 = vadd.f32 %v1019, %v1025
  %v1032 = vadd.f32 %v1026, 1e-14
  %v1033 = vadd.f32 %v1027, 1e-14
  %v1034 = vadd.f32 %v1028, 1e-14
  %v1035 = vadd.f32 %v1029, 1e-14
  %v1036 = vadd.f32 %v1030, 1e-14
  %v1037 = vadd.f32 %v1031, 1e-14
  %v1038 = vrsqrt.pop %v1032
  %v1039 = vmul.f32 %v1032, %v1038
  %vm1040 = vcmp.eq.f32.partialorder %v1032, inf
  %v1041 = vsel %vm1040, %v1032, %v1039
  %vm1042 = vcmp.eq.f32.partialorder %v1032, 0.0
  %v1043 = vand.u32 %v1032, 2147483648
  %v1044 = vsel %vm1042, %v1043, %v1041
  %v1045 = vrsqrt.pop %v1033
  %v1046 = vmul.f32 %v1033, %v1045
  %vm1047 = vcmp.eq.f32.partialorder %v1033, inf
  %v1048 = vsel %vm1047, %v1033, %v1046
  %vm1049 = vcmp.eq.f32.partialorder %v1033, 0.0
  %v1050 = vand.u32 %v1033, 2147483648
  %v1051 = vsel %vm1049, %v1050, %v1048
  %v1052 = vrsqrt.pop %v1034
  %v1053 = vmul.f32 %v1034, %v1052
  %vm1054 = vcmp.eq.f32.partialorder %v1034, inf
  %v1055 = vsel %vm1054, %v1034, %v1053
  %vm1056 = vcmp.eq.f32.partialorder %v1034, 0.0
  %v1057 = vand.u32 %v1034, 2147483648
  %v1058 = vsel %vm1056, %v1057, %v1055
  %v1059 = vrsqrt.pop %v1035
  %v1060 = vmul.f32 %v1035, %v1059
  %vm1061 = vcmp.eq.f32.partialorder %v1035, inf
  %v1062 = vsel %vm1061, %v1035, %v1060
  %vm1063 = vcmp.eq.f32.partialorder %v1035, 0.0
  %v1064 = vand.u32 %v1035, 2147483648
  %v1065 = vsel %vm1063, %v1064, %v1062
  %v1066 = vrsqrt.pop %v1036
  %v1067 = vmul.f32 %v1036, %v1066
  %vm1068 = vcmp.eq.f32.partialorder %v1036, inf
  %v1069 = vsel %vm1068, %v1036, %v1067
  %vm1070 = vcmp.eq.f32.partialorder %v1036, 0.0
  %v1071 = vand.u32 %v1036, 2147483648
  %v1072 = vsel %vm1070, %v1071, %v1069
  %v1073 = vrsqrt.pop %v1037
  %v1074 = vmul.f32 %v1037, %v1073
  %vm1075 = vcmp.eq.f32.partialorder %v1037, inf
  %v1076 = vsel %vm1075, %v1037, %v1074
  %vm1077 = vcmp.eq.f32.partialorder %v1037, 0.0
  %v1078 = vand.u32 %v1037, 2147483648
  %v1079 = vsel %vm1077, %v1078, %v1076
  %v1080 = vadd.f32 %v1044, 1.0
  %v1081 = vlog2.pop %v1080
  %v1082 = vmul.f32 %v1081, 0.6931472
  %v1083 = vmul.f32 -0.5, %v1044
  %v1084 = vadd.f32 %v1083, 1.0
  %v1085 = vmul.f32 %v1084, %v1044
  %v1086 = vand.u32 2147483647, %v1044
  %vm1087 = vcmp.lt.f32.partialorder %v1086, 0.0004427343
  %v1088 = vsel %vm1087, %v1085, %v1082
  %v1089 = vadd.f32 %v1051, 1.0
  %v1090 = vlog2.pop %v1089
  %v1091 = vmul.f32 %v1090, 0.6931472
  %v1092 = vmul.f32 -0.5, %v1051
  %v1093 = vadd.f32 %v1092, 1.0
  %v1094 = vmul.f32 %v1093, %v1051
  %v1095 = vand.u32 2147483647, %v1051
  %vm1096 = vcmp.lt.f32.partialorder %v1095, 0.0004427343
  %v1097 = vsel %vm1096, %v1094, %v1091
  %v1098 = vadd.f32 %v1058, 1.0
  %v1099 = vlog2.pop %v1098
  %v1100 = vmul.f32 %v1099, 0.6931472
  %v1101 = vmul.f32 -0.5, %v1058
  %v1102 = vadd.f32 %v1101, 1.0
  %v1103 = vmul.f32 %v1102, %v1058
  %v1104 = vand.u32 2147483647, %v1058
  %vm1105 = vcmp.lt.f32.partialorder %v1104, 0.0004427343
  %v1106 = vsel %vm1105, %v1103, %v1100
  %v1107 = vadd.f32 %v1065, 1.0
  %v1108 = vlog2.pop %v1107
  %v1109 = vmul.f32 %v1108, 0.6931472
  %v1110 = vmul.f32 -0.5, %v1065
  %v1111 = vadd.f32 %v1110, 1.0
  %v1112 = vmul.f32 %v1111, %v1065
  %v1113 = vand.u32 2147483647, %v1065
  %vm1114 = vcmp.lt.f32.partialorder %v1113, 0.0004427343
  %v1115 = vsel %vm1114, %v1112, %v1109
  %v1116 = vadd.f32 %v1072, 1.0
  %v1117 = vlog2.pop %v1116
  %v1118 = vmul.f32 %v1117, 0.6931472
  %v1119 = vmul.f32 -0.5, %v1072
  %v1120 = vadd.f32 %v1119, 1.0
  %v1121 = vmul.f32 %v1120, %v1072
  %v1122 = vand.u32 2147483647, %v1072
  %vm1123 = vcmp.lt.f32.partialorder %v1122, 0.0004427343
  %v1124 = vsel %vm1123, %v1121, %v1118
  %v1125 = vadd.f32 %v1079, 1.0
  %v1126 = vlog2.pop %v1125
  %v1127 = vmul.f32 %v1126, 0.6931472
  %v1128 = vmul.f32 -0.5, %v1079
  %v1129 = vadd.f32 %v1128, 1.0
  %v1130 = vmul.f32 %v1129, %v1079
  %v1131 = vand.u32 2147483647, %v1079
  %vm1132 = vcmp.lt.f32.partialorder %v1131, 0.0004427343
  %v1133 = vsel %vm1132, %v1130, %v1127
  %1134 = vst [vmem:[%s3] sm:$0xff] %v1088
  %1135 = vst [vmem:[%s3 + $0x8] sm:$0xff] %v1097
  %vm1136 = vcmask 7168
  %1137 = vst.msk [vmem:[%s3 + $0x10] sm:$0xff] %vm1136, %v1106
  %1138 = vst [vmem:[%s3 + $0x18] sm:$0xff] %v1115
  %1139 = vst [vmem:[%s3 + $0x20] sm:$0xff] %v1124
  %1140 = vst.msk [vmem:[%s3 + $0x28] sm:$0xff] %vm1136, %v1133
  // Predicated region
  $region14: #{spec_metric_predictor.4} parent=0 // pred_check
    _
  $region15: #{spec_metric_predictor.4} parent=0 // pred_check_branch
    %1142 = sbr.rel (0) target = $region17
  $region16: #{spec_metric_predictor.4} parent=0 // pred_region
    _
  $region17: #{spec_metric_predictor.4} parent=0 // pred_fallthru
    _
  // Predicated region
  $region18: #{spec_metric_predictor.4} parent=0 // pred_check
    _
  $region19: #{spec_metric_predictor.4} parent=0 // pred_check_branch
    %1144 = sbr.rel (0) target = $region21
  $region20: #{spec_metric_predictor.4} parent=0 // pred_region
    _
  $region21: #{spec_metric_predictor.4} parent=0 // pred_fallthru
    _

// kernel: spec_metric_predictor.5
$region0: #{spec_metric_predictor.5}
  #allocation0 [shape = 'u32[]', space=smem, size = 0x4, offset = 0x4, fixed_abs, tag = 'smem constant byte address 0x4 - core index']
  #allocation1 [shape = 'u32[144,128]{1,0:T(1,128)}', space=vmem, size = 0x12000, scoped, tag = 'internal scratch']
  #allocation2 [shape = 'f32[16,1024]{1,0:T(8,128)}', space=vmem, size = 0x10000, scoped, tag = 'scratch operand']
  %s0 = inlined_call_operand.vmem [shape: f32[16,257], index: 0, kind: input, shape index: {}]
  %s1 = inlined_call_operand.vmem [shape: f32[257,1024], index: 1, kind: input, shape index: {}]
  %s2 = inlined_call_operand.vmem [shape: f32[1,1024], index: 2, kind: input, shape index: {}]
  %s3 = inlined_call_operand.vmem [shape: f32[256,512], index: 3, kind: input, shape index: {}]
  %s4 = inlined_call_operand.vmem [shape: f32[16,256], index: 4, kind: output, shape index: {}]
  %s5 = sld [smem:[#allocation0]]
  $region26: #{spec_metric_predictor.5} parent=0
    _
  %s7 = ssub.s32 1, %s5
  %s8 = scalar_select 0, %s7, %s5
  // Predicated region
  $region2: #{spec_metric_predictor.5} parent=0 // pred_check
    _
  $region3: #{spec_metric_predictor.5} parent=0 // pred_check_branch
    %10 = sbr.rel (0) target = $region5
  $region4: #{spec_metric_predictor.5} parent=0 // pred_region
    _
  $region5: #{spec_metric_predictor.5} parent=0 // pred_fallthru
    _
  // Predicated region
  $region6: #{spec_metric_predictor.5} parent=0 // pred_check
    _
  $region7: #{spec_metric_predictor.5} parent=0 // pred_check_branch
    %12 = sbr.rel (0) target = $region9
  $region8: #{spec_metric_predictor.5} parent=0 // pred_region
    _
  $region9: #{spec_metric_predictor.5} parent=0 // pred_fallthru
    _
  // Predicated region
  $region10: #{spec_metric_predictor.5} parent=0 // pred_check
    _
  $region11: #{spec_metric_predictor.5} parent=0 // pred_check_branch
    %14 = sbr.rel (0) target = $region13
  $region12: #{spec_metric_predictor.5} parent=0 // pred_region
    _
  $region13: #{spec_metric_predictor.5} parent=0 // pred_fallthru
    _
  // Predicated region
  $region14: #{spec_metric_predictor.5} parent=0 // pred_check
    _
  $region15: #{spec_metric_predictor.5} parent=0 // pred_check_branch
    %16 = sbr.rel (0) target = $region17
  $region16: #{spec_metric_predictor.5} parent=0 // pred_region
    _
  $region17: #{spec_metric_predictor.5} parent=0 // pred_fallthru
    _
  %v17 = vld [vmem:[%s0] sm:$0xff]
  %v18 = vld [vmem:[%s0 + $0x8] sm:$0xff]
  %v19 = vld [vmem:[%s0 + $0x10] sm:$0xff]
  %v20 = vld [vmem:[%s0 + $0x18] sm:$0xff]
  %v21 = vld [vmem:[%s0 + $0x20] sm:$0xff]
  %v22 = vld [vmem:[%s0 + $0x28] sm:$0xff]
  %v23 = vld [vmem:[%s1] sm:$0xff]
  %v24 = vld [vmem:[%s1 + $0x8] sm:$0xff]
  %v25 = vld [vmem:[%s1 + $0x10] sm:$0xff]
  %v26 = vld [vmem:[%s1 + $0x18] sm:$0xff]
  %v27 = vld [vmem:[%s1 + $0x20] sm:$0xff]
  %v28 = vld [vmem:[%s1 + $0x28] sm:$0xff]
  %v29 = vld [vmem:[%s1 + $0x30] sm:$0xff]
  %v30 = vld [vmem:[%s1 + $0x38] sm:$0xff]
  %v31 = vld [vmem:[%s1 + $0x40] sm:$0xff]
  %v32 = vld [vmem:[%s1 + $0x48] sm:$0xff]
  %v33 = vld [vmem:[%s1 + $0x50] sm:$0xff]
  %v34 = vld [vmem:[%s1 + $0x58] sm:$0xff]
  %v35 = vld [vmem:[%s1 + $0x60] sm:$0xff]
  %v36 = vld [vmem:[%s1 + $0x68] sm:$0xff]
  %v37 = vld [vmem:[%s1 + $0x70] sm:$0xff]
  %v38 = vld [vmem:[%s1 + $0x78] sm:$0xff]
  %v39 = vld [vmem:[%s1 + $0x80] sm:$0xff]
  %v40 = vld [vmem:[%s1 + $0x88] sm:$0xff]
  %v41 = vld [vmem:[%s1 + $0x90] sm:$0xff]
  %v42 = vld [vmem:[%s1 + $0x98] sm:$0xff]
  %v43 = vld [vmem:[%s1 + $0xa0] sm:$0xff]
  %v44 = vld [vmem:[%s1 + $0xa8] sm:$0xff]
  %v45 = vld [vmem:[%s1 + $0xb0] sm:$0xff]
  %v46 = vld [vmem:[%s1 + $0xb8] sm:$0xff]
  %v47 = vld [vmem:[%s1 + $0xc0] sm:$0xff]
  %v48 = vld [vmem:[%s1 + $0xc8] sm:$0xff]
  %v49 = vld [vmem:[%s1 + $0xd0] sm:$0xff]
  %v50 = vld [vmem:[%s1 + $0xd8] sm:$0xff]
  %v51 = vld [vmem:[%s1 + $0xe0] sm:$0xff]
  %v52 = vld [vmem:[%s1 + $0xe8] sm:$0xff]
  %v53 = vld [vmem:[%s1 + $0xf0] sm:$0xff]
  %v54 = vld [vmem:[%s1 + $0xf8] sm:$0xff]
  %v55 = vld [vmem:[%s1 + $0x100] sm:$0xff]
  %v56 = vld [vmem:[%s1 + $0x108] sm:$0xff]
  %v57 = vld [vmem:[%s1 + $0x110] sm:$0xff]
  %v58 = vld [vmem:[%s1 + $0x118] sm:$0xff]
  %v59 = vld [vmem:[%s1 + $0x120] sm:$0xff]
  %v60 = vld [vmem:[%s1 + $0x128] sm:$0xff]
  %v61 = vld [vmem:[%s1 + $0x130] sm:$0xff]
  %v62 = vld [vmem:[%s1 + $0x138] sm:$0xff]
  %v63 = vld [vmem:[%s1 + $0x140] sm:$0xff]
  %v64 = vld [vmem:[%s1 + $0x148] sm:$0xff]
  %v65 = vld [vmem:[%s1 + $0x150] sm:$0xff]
  %v66 = vld [vmem:[%s1 + $0x158] sm:$0xff]
  %v67 = vld [vmem:[%s1 + $0x160] sm:$0xff]
  %v68 = vld [vmem:[%s1 + $0x168] sm:$0xff]
  %v69 = vld [vmem:[%s1 + $0x170] sm:$0xff]
  %v70 = vld [vmem:[%s1 + $0x178] sm:$0xff]
  %v71 = vld [vmem:[%s1 + $0x180] sm:$0xff]
  %v72 = vld [vmem:[%s1 + $0x188] sm:$0xff]
  %v73 = vld [vmem:[%s1 + $0x190] sm:$0xff]
  %v74 = vld [vmem:[%s1 + $0x198] sm:$0xff]
  %v75 = vld [vmem:[%s1 + $0x1a0] sm:$0xff]
  %v76 = vld [vmem:[%s1 + $0x1a8] sm:$0xff]
  %v77 = vld [vmem:[%s1 + $0x1b0] sm:$0xff]
  %v78 = vld [vmem:[%s1 + $0x1b8] sm:$0xff]
  %v79 = vld [vmem:[%s1 + $0x1c0] sm:$0xff]
  %v80 = vld [vmem:[%s1 + $0x1c8] sm:$0xff]
  %v81 = vld [vmem:[%s1 + $0x1d0] sm:$0xff]
  %v82 = vld [vmem:[%s1 + $0x1d8] sm:$0xff]
  %v83 = vld [vmem:[%s1 + $0x1e0] sm:$0xff]
  %v84 = vld [vmem:[%s1 + $0x1e8] sm:$0xff]
  %v85 = vld [vmem:[%s1 + $0x1f0] sm:$0xff]
  %v86 = vld [vmem:[%s1 + $0x1f8] sm:$0xff]
  %v87 = vld [vmem:[%s1 + $0x200] sm:$0xff]
  %v88 = vld [vmem:[%s1 + $0x208] sm:$0xff]
  %v89 = vld [vmem:[%s1 + $0x210] sm:$0xff]
  %v90 = vld [vmem:[%s1 + $0x218] sm:$0xff]
  %v91 = vld [vmem:[%s1 + $0x220] sm:$0xff]
  %v92 = vld [vmem:[%s1 + $0x228] sm:$0xff]
  %v93 = vld [vmem:[%s1 + $0x230] sm:$0xff]
  %v94 = vld [vmem:[%s1 + $0x238] sm:$0xff]
  %v95 = vld [vmem:[%s1 + $0x240] sm:$0xff]
  %v96 = vld [vmem:[%s1 + $0x248] sm:$0xff]
  %v97 = vld [vmem:[%s1 + $0x250] sm:$0xff]
  %v98 = vld [vmem:[%s1 + $0x258] sm:$0xff]
  %v99 = vld [vmem:[%s1 + $0x260] sm:$0xff]
  %v100 = vld [vmem:[%s1 + $0x268] sm:$0xff]
  %v101 = vld [vmem:[%s1 + $0x270] sm:$0xff]
  %v102 = vld [vmem:[%s1 + $0x278] sm:$0xff]
  %v103 = vld [vmem:[%s1 + $0x280] sm:$0xff]
  %v104 = vld [vmem:[%s1 + $0x288] sm:$0xff]
  %v105 = vld [vmem:[%s1 + $0x290] sm:$0xff]
  %v106 = vld [vmem:[%s1 + $0x298] sm:$0xff]
  %v107 = vld [vmem:[%s1 + $0x2a0] sm:$0xff]
  %v108 = vld [vmem:[%s1 + $0x2a8] sm:$0xff]
  %v109 = vld [vmem:[%s1 + $0x2b0] sm:$0xff]
  %v110 = vld [vmem:[%s1 + $0x2b8] sm:$0xff]
  %v111 = vld [vmem:[%s1 + $0x2c0] sm:$0xff]
  %v112 = vld [vmem:[%s1 + $0x2c8] sm:$0xff]
  %v113 = vld [vmem:[%s1 + $0x2d0] sm:$0xff]
  %v114 = vld [vmem:[%s1 + $0x2d8] sm:$0xff]
  %v115 = vld [vmem:[%s1 + $0x2e0] sm:$0xff]
  %v116 = vld [vmem:[%s1 + $0x2e8] sm:$0xff]
  %v117 = vld [vmem:[%s1 + $0x2f0] sm:$0xff]
  %v118 = vld [vmem:[%s1 + $0x2f8] sm:$0xff]
  %v119 = vld [vmem:[%s1 + $0x300] sm:$0xff]
  %v120 = vld [vmem:[%s1 + $0x308] sm:$0xff]
  %v121 = vld [vmem:[%s1 + $0x310] sm:$0xff]
  %v122 = vld [vmem:[%s1 + $0x318] sm:$0xff]
  %v123 = vld [vmem:[%s1 + $0x320] sm:$0xff]
  %v124 = vld [vmem:[%s1 + $0x328] sm:$0xff]
  %v125 = vld [vmem:[%s1 + $0x330] sm:$0xff]
  %v126 = vld [vmem:[%s1 + $0x338] sm:$0xff]
  %v127 = vld [vmem:[%s1 + $0x340] sm:$0xff]
  %v128 = vld [vmem:[%s1 + $0x348] sm:$0xff]
  %v129 = vld [vmem:[%s1 + $0x350] sm:$0xff]
  %v130 = vld [vmem:[%s1 + $0x358] sm:$0xff]
  %v131 = vld [vmem:[%s1 + $0x360] sm:$0xff]
  %v132 = vld [vmem:[%s1 + $0x368] sm:$0xff]
  %v133 = vld [vmem:[%s1 + $0x370] sm:$0xff]
  %v134 = vld [vmem:[%s1 + $0x378] sm:$0xff]
  %v135 = vld [vmem:[%s1 + $0x380] sm:$0xff]
  %v136 = vld [vmem:[%s1 + $0x388] sm:$0xff]
  %v137 = vld [vmem:[%s1 + $0x390] sm:$0xff]
  %v138 = vld [vmem:[%s1 + $0x398] sm:$0xff]
  %v139 = vld [vmem:[%s1 + $0x3a0] sm:$0xff]
  %v140 = vld [vmem:[%s1 + $0x3a8] sm:$0xff]
  %v141 = vld [vmem:[%s1 + $0x3b0] sm:$0xff]
  %v142 = vld [vmem:[%s1 + $0x3b8] sm:$0xff]
  %v143 = vld [vmem:[%s1 + $0x3c0] sm:$0xff]
  %v144 = vld [vmem:[%s1 + $0x3c8] sm:$0xff]
  %v145 = vld [vmem:[%s1 + $0x3d0] sm:$0xff]
  %v146 = vld [vmem:[%s1 + $0x3d8] sm:$0xff]
  %v147 = vld [vmem:[%s1 + $0x3e0] sm:$0xff]
  %v148 = vld [vmem:[%s1 + $0x3e8] sm:$0xff]
  %v149 = vld [vmem:[%s1 + $0x3f0] sm:$0xff]
  %v150 = vld [vmem:[%s1 + $0x3f8] sm:$0xff]
  %v151 = vld [vmem:[%s1 + $0x400] sm:$0xff]
  %v152 = vld [vmem:[%s1 + $0x408] sm:$0xff]
  %v153 = vld [vmem:[%s1 + $0x410] sm:$0xff]
  %v154 = vld [vmem:[%s1 + $0x418] sm:$0xff]
  %v155 = vld [vmem:[%s1 + $0x420] sm:$0xff]
  %v156 = vld [vmem:[%s1 + $0x428] sm:$0xff]
  %v157 = vld [vmem:[%s1 + $0x430] sm:$0xff]
  %v158 = vld [vmem:[%s1 + $0x438] sm:$0xff]
  %v159 = vld [vmem:[%s1 + $0x440] sm:$0xff]
  %v160 = vld [vmem:[%s1 + $0x448] sm:$0xff]
  %v161 = vld [vmem:[%s1 + $0x450] sm:$0xff]
  %v162 = vld [vmem:[%s1 + $0x458] sm:$0xff]
  %v163 = vld [vmem:[%s1 + $0x460] sm:$0xff]
  %v164 = vld [vmem:[%s1 + $0x468] sm:$0xff]
  %v165 = vld [vmem:[%s1 + $0x470] sm:$0xff]
  %v166 = vld [vmem:[%s1 + $0x478] sm:$0xff]
  %v167 = vld [vmem:[%s1 + $0x480] sm:$0xff]
  %v168 = vld [vmem:[%s1 + $0x488] sm:$0xff]
  %v169 = vld [vmem:[%s1 + $0x490] sm:$0xff]
  %v170 = vld [vmem:[%s1 + $0x498] sm:$0xff]
  %v171 = vld [vmem:[%s1 + $0x4a0] sm:$0xff]
  %v172 = vld [vmem:[%s1 + $0x4a8] sm:$0xff]
  %v173 = vld [vmem:[%s1 + $0x4b0] sm:$0xff]
  %v174 = vld [vmem:[%s1 + $0x4b8] sm:$0xff]
  %v175 = vld [vmem:[%s1 + $0x4c0] sm:$0xff]
  %v176 = vld [vmem:[%s1 + $0x4c8] sm:$0xff]
  %v177 = vld [vmem:[%s1 + $0x4d0] sm:$0xff]
  %v178 = vld [vmem:[%s1 + $0x4d8] sm:$0xff]
  %v179 = vld [vmem:[%s1 + $0x4e0] sm:$0xff]
  %v180 = vld [vmem:[%s1 + $0x4e8] sm:$0xff]
  %v181 = vld [vmem:[%s1 + $0x4f0] sm:$0xff]
  %v182 = vld [vmem:[%s1 + $0x4f8] sm:$0xff]
  %v183 = vld [vmem:[%s1 + $0x500] sm:$0xff]
  %v184 = vld [vmem:[%s1 + $0x508] sm:$0xff]
  %v185 = vld [vmem:[%s1 + $0x510] sm:$0xff]
  %v186 = vld [vmem:[%s1 + $0x518] sm:$0xff]
  %v187 = vld [vmem:[%s1 + $0x520] sm:$0xff]
  %v188 = vld [vmem:[%s1 + $0x528] sm:$0xff]
  %v189 = vld [vmem:[%s1 + $0x530] sm:$0xff]
  %v190 = vld [vmem:[%s1 + $0x538] sm:$0xff]
  %v191 = vld [vmem:[%s1 + $0x540] sm:$0xff]
  %v192 = vld [vmem:[%s1 + $0x548] sm:$0xff]
  %v193 = vld [vmem:[%s1 + $0x550] sm:$0xff]
  %v194 = vld [vmem:[%s1 + $0x558] sm:$0xff]
  %v195 = vld [vmem:[%s1 + $0x560] sm:$0xff]
  %v196 = vld [vmem:[%s1 + $0x568] sm:$0xff]
  %v197 = vld [vmem:[%s1 + $0x570] sm:$0xff]
  %v198 = vld [vmem:[%s1 + $0x578] sm:$0xff]
  %v199 = vld [vmem:[%s1 + $0x580] sm:$0xff]
  %v200 = vld [vmem:[%s1 + $0x588] sm:$0xff]
  %v201 = vld [vmem:[%s1 + $0x590] sm:$0xff]
  %v202 = vld [vmem:[%s1 + $0x598] sm:$0xff]
  %v203 = vld [vmem:[%s1 + $0x5a0] sm:$0xff]
  %v204 = vld [vmem:[%s1 + $0x5a8] sm:$0xff]
  %v205 = vld [vmem:[%s1 + $0x5b0] sm:$0xff]
  %v206 = vld [vmem:[%s1 + $0x5b8] sm:$0xff]
  %v207 = vld [vmem:[%s1 + $0x5c0] sm:$0xff]
  %v208 = vld [vmem:[%s1 + $0x5c8] sm:$0xff]
  %v209 = vld [vmem:[%s1 + $0x5d0] sm:$0xff]
  %v210 = vld [vmem:[%s1 + $0x5d8] sm:$0xff]
  %v211 = vld [vmem:[%s1 + $0x5e0] sm:$0xff]
  %v212 = vld [vmem:[%s1 + $0x5e8] sm:$0xff]
  %v213 = vld [vmem:[%s1 + $0x5f0] sm:$0xff]
  %v214 = vld [vmem:[%s1 + $0x5f8] sm:$0xff]
  %v215 = vld [vmem:[%s1 + $0x600] sm:$0xff]
  %v216 = vld [vmem:[%s1 + $0x608] sm:$0xff]
  %v217 = vld [vmem:[%s1 + $0x610] sm:$0xff]
  %v218 = vld [vmem:[%s1 + $0x618] sm:$0xff]
  %v219 = vld [vmem:[%s1 + $0x620] sm:$0xff]
  %v220 = vld [vmem:[%s1 + $0x628] sm:$0xff]
  %v221 = vld [vmem:[%s1 + $0x630] sm:$0xff]
  %v222 = vld [vmem:[%s1 + $0x638] sm:$0xff]
  %v223 = vld [vmem:[%s1 + $0x640] sm:$0xff]
  %v224 = vld [vmem:[%s1 + $0x648] sm:$0xff]
  %v225 = vld [vmem:[%s1 + $0x650] sm:$0xff]
  %v226 = vld [vmem:[%s1 + $0x658] sm:$0xff]
  %v227 = vld [vmem:[%s1 + $0x660] sm:$0xff]
  %v228 = vld [vmem:[%s1 + $0x668] sm:$0xff]
  %v229 = vld [vmem:[%s1 + $0x670] sm:$0xff]
  %v230 = vld [vmem:[%s1 + $0x678] sm:$0xff]
  %v231 = vld [vmem:[%s1 + $0x680] sm:$0xff]
  %v232 = vld [vmem:[%s1 + $0x688] sm:$0xff]
  %v233 = vld [vmem:[%s1 + $0x690] sm:$0xff]
  %v234 = vld [vmem:[%s1 + $0x698] sm:$0xff]
  %v235 = vld [vmem:[%s1 + $0x6a0] sm:$0xff]
  %v236 = vld [vmem:[%s1 + $0x6a8] sm:$0xff]
  %v237 = vld [vmem:[%s1 + $0x6b0] sm:$0xff]
  %v238 = vld [vmem:[%s1 + $0x6b8] sm:$0xff]
  %v239 = vld [vmem:[%s1 + $0x6c0] sm:$0xff]
  %v240 = vld [vmem:[%s1 + $0x6c8] sm:$0xff]
  %v241 = vld [vmem:[%s1 + $0x6d0] sm:$0xff]
  %v242 = vld [vmem:[%s1 + $0x6d8] sm:$0xff]
  %v243 = vld [vmem:[%s1 + $0x6e0] sm:$0xff]
  %v244 = vld [vmem:[%s1 + $0x6e8] sm:$0xff]
  %v245 = vld [vmem:[%s1 + $0x6f0] sm:$0xff]
  %v246 = vld [vmem:[%s1 + $0x6f8] sm:$0xff]
  %v247 = vld [vmem:[%s1 + $0x700] sm:$0xff]
  %v248 = vld [vmem:[%s1 + $0x708] sm:$0xff]
  %v249 = vld [vmem:[%s1 + $0x710] sm:$0xff]
  %v250 = vld [vmem:[%s1 + $0x718] sm:$0xff]
  %v251 = vld [vmem:[%s1 + $0x720] sm:$0xff]
  %v252 = vld [vmem:[%s1 + $0x728] sm:$0xff]
  %v253 = vld [vmem:[%s1 + $0x730] sm:$0xff]
  %v254 = vld [vmem:[%s1 + $0x738] sm:$0xff]
  %v255 = vld [vmem:[%s1 + $0x740] sm:$0xff]
  %v256 = vld [vmem:[%s1 + $0x748] sm:$0xff]
  %v257 = vld [vmem:[%s1 + $0x750] sm:$0xff]
  %v258 = vld [vmem:[%s1 + $0x758] sm:$0xff]
  %v259 = vld [vmem:[%s1 + $0x760] sm:$0xff]
  %v260 = vld [vmem:[%s1 + $0x768] sm:$0xff]
  %v261 = vld [vmem:[%s1 + $0x770] sm:$0xff]
  %v262 = vld [vmem:[%s1 + $0x778] sm:$0xff]
  %v263 = vld [vmem:[%s1 + $0x780] sm:$0xff]
  %v264 = vld [vmem:[%s1 + $0x788] sm:$0xff]
  %v265 = vld [vmem:[%s1 + $0x790] sm:$0xff]
  %v266 = vld [vmem:[%s1 + $0x798] sm:$0xff]
  %v267 = vld [vmem:[%s1 + $0x7a0] sm:$0xff]
  %v268 = vld [vmem:[%s1 + $0x7a8] sm:$0xff]
  %v269 = vld [vmem:[%s1 + $0x7b0] sm:$0xff]
  %v270 = vld [vmem:[%s1 + $0x7b8] sm:$0xff]
  %v271 = vld [vmem:[%s1 + $0x7c0] sm:$0xff]
  %v272 = vld [vmem:[%s1 + $0x7c8] sm:$0xff]
  %v273 = vld [vmem:[%s1 + $0x7d0] sm:$0xff]
  %v274 = vld [vmem:[%s1 + $0x7d8] sm:$0xff]
  %v275 = vld [vmem:[%s1 + $0x7e0] sm:$0xff]
  %v276 = vld [vmem:[%s1 + $0x7e8] sm:$0xff]
  %v277 = vld [vmem:[%s1 + $0x7f0] sm:$0xff]
  %v278 = vld [vmem:[%s1 + $0x7f8] sm:$0xff]
  %v279 = vld [vmem:[%s1 + $0x800] sm:$0x1]
  %v280 = vld [vmem:[%s1 + $0x808] sm:$0x1]
  %v281 = vld [vmem:[%s1 + $0x810] sm:$0x1]
  %v282 = vld [vmem:[%s1 + $0x818] sm:$0x1]
  %v283 = vld [vmem:[%s1 + $0x820] sm:$0x1]
  %v284 = vld [vmem:[%s1 + $0x828] sm:$0x1]
  %v285 = vld [vmem:[%s1 + $0x830] sm:$0x1]
  %v286 = vld [vmem:[%s1 + $0x838] sm:$0x1]
  %v287 = vld [vmem:[%s2] sm:$0xff]
  %v289 = vlaneseq
  %v290 = vshrl.u32 %v289, 7
  %v291 = vsub.s32 0, %v290
  %v292 = vrot.slane %v287, %v291
  %v293 = vlaneseq
  %v294 = vshrl.u32 %v293, 7
  %v295 = vsub.s32 1, %v294
  %v296 = vrot.slane %v287, %v295
  %v297 = vlaneseq
  %v298 = vshrl.u32 %v297, 7
  %v299 = vsub.s32 2, %v298
  %v300 = vrot.slane %v287, %v299
  %v301 = vlaneseq
  %v302 = vshrl.u32 %v301, 7
  %v303 = vsub.s32 3, %v302
  %v304 = vrot.slane %v287, %v303
  %v305 = vlaneseq
  %v306 = vshrl.u32 %v305, 7
  %v307 = vsub.s32 4, %v306
  %v308 = vrot.slane %v287, %v307
  %v309 = vlaneseq
  %v310 = vshrl.u32 %v309, 7
  %v311 = vsub.s32 5, %v310
  %v312 = vrot.slane %v287, %v311
  %v313 = vlaneseq
  %v314 = vshrl.u32 %v313, 7
  %v315 = vsub.s32 6, %v314
  %v316 = vrot.slane %v287, %v315
  %v317 = vlaneseq
  %v318 = vshrl.u32 %v317, 7
  %v319 = vsub.s32 7, %v318
  %v320 = vrot.slane %v287, %v319
  %vm329 = vcmask 7168
  %v331 = vsel %vm329, %v19, 0
  %v334 = vsel %vm329, %v22, 0
  %vm336 = vcmask 1040384
  %v338 = vsel %vm336, %v279, 0
  %v341 = vsel %vm336, %v280, 0
  %v344 = vsel %vm336, %v281, 0
  %v347 = vsel %vm336, %v282, 0
  %v350 = vsel %vm336, %v283, 0
  %v353 = vsel %vm336, %v284, 0
  %v356 = vsel %vm336, %v285, 0
  %v359 = vsel %vm336, %v286, 0
  %361 = vmatprep.subr.mxu0 %v24
  %362 = vmatpush1.msra.mxu0 %v23
  %363 = vmatprep.subr.mxu0 %v32
  %364 = vmatpush1.msra.mxu0 %v31
  %365 = vmatprep.subr.mxu0 %v40
  %366 = vmatpush1.msra.mxu0 %v39
  %367 = vmatprep.subr.mxu0 %v48
  %368 = vmatpush1.msra.mxu0 %v47
  %369 = vmatprep.subr.mxu0 %v56
  %370 = vmatpush1.msra.mxu0 %v55
  %371 = vmatprep.subr.mxu0 %v64
  %372 = vmatpush1.msra.mxu0 %v63
  %373 = vmatprep.subr.mxu0 %v72
  %374 = vmatpush1.msra.mxu0 %v71
  %375 = vmatprep.subr.mxu0 %v80
  %376 = vmatpush1.msra.mxu0 %v79
  %377 = vmatprep.subr.mxu0 %v88
  %378 = vmatpush1.msra.mxu0 %v87
  %379 = vmatprep.subr.mxu0 %v96
  %380 = vmatpush1.msra.mxu0 %v95
  %381 = vmatprep.subr.mxu0 %v104
  %382 = vmatpush1.msra.mxu0 %v103
  %383 = vmatprep.subr.mxu0 %v112
  %384 = vmatpush1.msra.mxu0 %v111
  %385 = vmatprep.subr.mxu0 %v120
  %386 = vmatpush1.msra.mxu0 %v119
  %387 = vmatprep.subr.mxu0 %v128
  %388 = vmatpush1.msra.mxu0 %v127
  %389 = vmatprep.subr.mxu0 %v136
  %390 = vmatpush1.msra.mxu0 %v135
  %391 = vmatprep.subr.mxu0 %v144
  %392 = vmatpush1.msra.mxu0 %v143
  %393 = vmatprep.subr.mxu0 %v152
  %394 = vmatpush1.msra.mxu0 %v151
  %395 = vmatprep.subr.mxu0 %v160
  %396 = vmatpush1.msra.mxu0 %v159
  %397 = vmatprep.subr.mxu0 %v168
  %398 = vmatpush1.msra.mxu0 %v167
  %399 = vmatprep.subr.mxu0 %v176
  %400 = vmatpush1.msra.mxu0 %v175
  %401 = vmatprep.subr.mxu0 %v184
  %402 = vmatpush1.msra.mxu0 %v183
  %403 = vmatprep.subr.mxu0 %v192
  %404 = vmatpush1.msra.mxu0 %v191
  %405 = vmatprep.subr.mxu0 %v200
  %406 = vmatpush1.msra.mxu0 %v199
  %407 = vmatprep.subr.mxu0 %v208
  %408 = vmatpush1.msra.mxu0 %v207
  %409 = vmatprep.subr.mxu0 %v216
  %410 = vmatpush1.msra.mxu0 %v215
  %411 = vmatprep.subr.mxu0 %v224
  %412 = vmatpush1.msra.mxu0 %v223
  %413 = vmatprep.subr.mxu0 %v232
  %414 = vmatpush1.msra.mxu0 %v231
  %415 = vmatprep.subr.mxu0 %v240
  %416 = vmatpush1.msra.mxu0 %v239
  %417 = vmatprep.subr.mxu0 %v248
  %418 = vmatpush1.msra.mxu0 %v247
  %419 = vmatprep.subr.mxu0 %v256
  %420 = vmatpush1.msra.mxu0 %v255
  %421 = vmatprep.subr.mxu0 %v264
  %422 = vmatpush1.msra.mxu0 %v263
  %423 = vmatprep.subr.mxu0 %v272
  %424 = vmatpush1.msra.mxu0 %v271
  %425 = vmatprep.mubr.f32.mxu0 %v18
  %426 = vmatmul.mubr.f32.gmra.mrb[0].mxu0 %v17
  %v427 = vpop.f32.mrb[0].mxu0
  %v428 = vadd.f32 %v292, %v427
  %v429 = vpop.f32.mrb[0].mxu0
  %v430 = vadd.f32 %v296, %v429
  %431 = vmatprep.mubr.f32.mxu0 %v21
  %432 = vmatmul.mubr.f32.gmra.mrb[0].mxu0 %v20
  %v433 = vpop.f32.mrb[0].mxu0
  %v434 = vadd.f32 %v292, %v433
  %v435 = vpop.f32.mrb[0].mxu0
  %v436 = vadd.f32 %v296, %v435
  %437 = vdwg.mxu0
  %438 = vmatprep.subr.mxu0 %v341
  %439 = vmatpush1.msra.mxu0 %v338
  %440 = vmatprep.subr.mxu0 0.0
  %441 = vmatpush1.msra.mxu0 0.0
  %442 = vmatprep.subr.mxu0 0.0
  %443 = vmatpush1.msra.mxu0 0.0
  %444 = vmatprep.subr.mxu0 0.0
  %445 = vmatpush1.msra.mxu0 0.0
  %446 = vmatprep.subr.mxu0 0.0
  %447 = vmatpush1.msra.mxu0 0.0
  %448 = vmatprep.subr.mxu0 0.0
  %449 = vmatpush1.msra.mxu0 0.0
  %450 = vmatprep.subr.mxu0 0.0
  %451 = vmatpush1.msra.mxu0 0.0
  %452 = vmatprep.subr.mxu0 0.0
  %453 = vmatpush1.msra.mxu0 0.0
  %454 = vmatprep.subr.mxu0 0.0
  %455 = vmatpush1.msra.mxu0 0.0
  %456 = vmatprep.subr.mxu0 0.0
  %457 = vmatpush1.msra.mxu0 0.0
  %458 = vmatprep.subr.mxu0 0.0
  %459 = vmatpush1.msra.mxu0 0.0
  %460 = vmatprep.subr.mxu0 0.0
  %461 = vmatpush1.msra.mxu0 0.0
  %462 = vmatprep.subr.mxu0 0.0
  %463 = vmatpush1.msra.mxu0 0.0
  %464 = vmatprep.subr.mxu0 0.0
  %465 = vmatpush1.msra.mxu0 0.0
  %466 = vmatprep.subr.mxu0 0.0
  %467 = vmatpush1.msra.mxu0 0.0
  %468 = vmatprep.subr.mxu0 0.0
  %469 = vmatpush1.msra.mxu0 0.0
  %470 = vmatprep.subr.mxu0 0.0
  %471 = vmatpush1.msra.mxu0 0.0
  %472 = vmatprep.subr.mxu0 0.0
  %473 = vmatpush1.msra.mxu0 0.0
  %474 = vmatprep.subr.mxu0 0.0
  %475 = vmatpush1.msra.mxu0 0.0
  %476 = vmatprep.subr.mxu0 0.0
  %477 = vmatpush1.msra.mxu0 0.0
  %478 = vmatprep.subr.mxu0 0.0
  %479 = vmatpush1.msra.mxu0 0.0
  %480 = vmatprep.subr.mxu0 0.0
  %481 = vmatpush1.msra.mxu0 0.0
  %482 = vmatprep.subr.mxu0 0.0
  %483 = vmatpush1.msra.mxu0 0.0
  %484 = vmatprep.subr.mxu0 0.0
  %485 = vmatpush1.msra.mxu0 0.0
  %486 = vmatprep.subr.mxu0 0.0
  %487 = vmatpush1.msra.mxu0 0.0
  %488 = vmatprep.subr.mxu0 0.0
  %489 = vmatpush1.msra.mxu0 0.0
  %490 = vmatprep.subr.mxu0 0.0
  %491 = vmatpush1.msra.mxu0 0.0
  %492 = vmatprep.subr.mxu0 0.0
  %493 = vmatpush1.msra.mxu0 0.0
  %494 = vmatprep.subr.mxu0 0.0
  %495 = vmatpush1.msra.mxu0 0.0
  %496 = vmatprep.subr.mxu0 0.0
  %497 = vmatpush1.msra.mxu0 0.0
  %498 = vmatprep.subr.mxu0 0.0
  %499 = vmatpush1.msra.mxu0 0.0
  %500 = vmatprep.subr.mxu0 0.0
  %501 = vmatpush1.msra.mxu0 0.0
  %502 = vmatprep.mubr.f32.mxu0 0.0
  %503 = vmatmul.mubr.f32.gmra.mrb[0].mxu0 %v331
  %v504 = vpop.f32.mrb[0].mxu0
  %v505 = vadd.f32 %v428, %v504
  %v506 = vpop.f32.mrb[0].mxu0
  %v507 = vadd.f32 %v430, %v506
  %508 = vmatprep.mubr.f32.mxu0 0.0
  %509 = vmatmul.mubr.f32.gmra.mrb[0].mxu0 %v334
  %v510 = vpop.f32.mrb[0].mxu0
  %v511 = vadd.f32 %v434, %v510
  %v512 = vpop.f32.mrb[0].mxu0
  %v513 = vadd.f32 %v436, %v512
  %514 = vdwg.mxu0
  %515 = vmatprep.subr.mxu0 %v26
  %516 = vmatpush1.msra.mxu0 %v25
  %517 = vmatprep.subr.mxu0 %v34
  %518 = vmatpush1.msra.mxu0 %v33
  %519 = vmatprep.subr.mxu0 %v42
  %520 = vmatpush1.msra.mxu0 %v41
  %521 = vmatprep.subr.mxu0 %v50
  %522 = vmatpush1.msra.mxu0 %v49
  %523 = vmatprep.subr.mxu0 %v58
  %524 = vmatpush1.msra.mxu0 %v57
  %525 = vmatprep.subr.mxu0 %v66
  %526 = vmatpush1.msra.mxu0 %v65
  %527 = vmatprep.subr.mxu0 %v74
  %528 = vmatpush1.msra.mxu0 %v73
  %529 = vmatprep.subr.mxu0 %v82
  %530 = vmatpush1.msra.mxu0 %v81
  %531 = vmatprep.subr.mxu0 %v90
  %532 = vmatpush1.msra.mxu0 %v89
  %533 = vmatprep.subr.mxu0 %v98
  %534 = vmatpush1.msra.mxu0 %v97
  %535 = vmatprep.subr.mxu0 %v106
  %536 = vmatpush1.msra.mxu0 %v105
  %537 = vmatprep.subr.mxu0 %v114
  %538 = vmatpush1.msra.mxu0 %v113
  %539 = vmatprep.subr.mxu0 %v122
  %540 = vmatpush1.msra.mxu0 %v121
  %541 = vmatprep.subr.mxu0 %v130
  %542 = vmatpush1.msra.mxu0 %v129
  %543 = vmatprep.subr.mxu0 %v138
  %544 = vmatpush1.msra.mxu0 %v137
  %545 = vmatprep.subr.mxu0 %v146
  %546 = vmatpush1.msra.mxu0 %v145
  %547 = vmatprep.subr.mxu0 %v154
  %548 = vmatpush1.msra.mxu0 %v153
  %549 = vmatprep.subr.mxu0 %v162
  %550 = vmatpush1.msra.mxu0 %v161
  %551 = vmatprep.subr.mxu0 %v170
  %552 = vmatpush1.msra.mxu0 %v169
  %553 = vmatprep.subr.mxu0 %v178
  %554 = vmatpush1.msra.mxu0 %v177
  %555 = vmatprep.subr.mxu0 %v186
  %556 = vmatpush1.msra.mxu0 %v185
  %557 = vmatprep.subr.mxu0 %v194
  %558 = vmatpush1.msra.mxu0 %v193
  %559 = vmatprep.subr.mxu0 %v202
  %560 = vmatpush1.msra.mxu0 %v201
  %561 = vmatprep.subr.mxu0 %v210
  %562 = vmatpush1.msra.mxu0 %v209
  %563 = vmatprep.subr.mxu0 %v218
  %564 = vmatpush1.msra.mxu0 %v217
  %565 = vmatprep.subr.mxu0 %v226
  %566 = vmatpush1.msra.mxu0 %v225
  %567 = vmatprep.subr.mxu0 %v234
  %568 = vmatpush1.msra.mxu0 %v233
  %569 = vmatprep.subr.mxu0 %v242
  %570 = vmatpush1.msra.mxu0 %v241
  %571 = vmatprep.subr.mxu0 %v250
  %572 = vmatpush1.msra.mxu0 %v249
  %573 = vmatprep.subr.mxu0 %v258
  %574 = vmatpush1.msra.mxu0 %v257
  %575 = vmatprep.subr.mxu0 %v266
  %576 = vmatpush1.msra.mxu0 %v265
  %577 = vmatprep.subr.mxu0 %v274
  %578 = vmatpush1.msra.mxu0 %v273
  %579 = vmatprep.mubr.f32.mxu0 %v18
  %580 = vmatmul.mubr.f32.gmra.mrb[0].mxu0 %v17
  %v581 = vpop.f32.mrb[0].mxu0
  %v582 = vadd.f32 %v300, %v581
  %v583 = vpop.f32.mrb[0].mxu0
  %v584 = vadd.f32 %v304, %v583
  %585 = vmatprep.mubr.f32.mxu0 %v21
  %586 = vmatmul.mubr.f32.gmra.mrb[0].mxu0 %v20
  %v587 = vpop.f32.mrb[0].mxu0
  %v588 = vadd.f32 %v300, %v587
  %v589 = vpop.f32.mrb[0].mxu0
  %v590 = vadd.f32 %v304, %v589
  %591 = vdwg.mxu0
  %592 = vmatprep.subr.mxu0 %v347
  %593 = vmatpush1.msra.mxu0 %v344
  %594 = vmatprep.subr.mxu0 0.0
  %595 = vmatpush1.msra.mxu0 0.0
  %596 = vmatprep.subr.mxu0 0.0
  %597 = vmatpush1.msra.mxu0 0.0
  %598 = vmatprep.subr.mxu0 0.0
  %599 = vmatpush1.msra.mxu0 0.0
  %600 = vmatprep.subr.mxu0 0.0
  %601 = vmatpush1.msra.mxu0 0.0
  %602 = vmatprep.subr.mxu0 0.0
  %603 = vmatpush1.msra.mxu0 0.0
  %604 = vmatprep.subr.mxu0 0.0
  %605 = vmatpush1.msra.mxu0 0.0
  %606 = vmatprep.subr.mxu0 0.0
  %607 = vmatpush1.msra.mxu0 0.0
  %608 = vmatprep.subr.mxu0 0.0
  %609 = vmatpush1.msra.mxu0 0.0
  %610 = vmatprep.subr.mxu0 0.0
  %611 = vmatpush1.msra.mxu0 0.0
  %612 = vmatprep.subr.mxu0 0.0
  %613 = vmatpush1.msra.mxu0 0.0
  %614 = vmatprep.subr.mxu0 0.0
  %615 = vmatpush1.msra.mxu0 0.0
  %616 = vmatprep.subr.mxu0 0.0
  %617 = vmatpush1.msra.mxu0 0.0
  %618 = vmatprep.subr.mxu0 0.0
  %619 = vmatpush1.msra.mxu0 0.0
  %620 = vmatprep.subr.mxu0 0.0
  %621 = vmatpush1.msra.mxu0 0.0
  %622 = vmatprep.subr.mxu0 0.0
  %623 = vmatpush1.msra.mxu0 0.0
  %624 = vmatprep.subr.mxu0 0.0
  %625 = vmatpush1.msra.mxu0 0.0
  %626 = vmatprep.subr.mxu0 0.0
  %627 = vmatpush1.msra.mxu0 0.0
  %628 = vmatprep.subr.mxu0 0.0
  %629 = vmatpush1.msra.mxu0 0.0
  %630 = vmatprep.subr.mxu0 0.0
  %631 = vmatpush1.msra.mxu0 0.0
  %632 = vmatprep.subr.mxu0 0.0
  %633 = vmatpush1.msra.mxu0 0.0
  %634 = vmatprep.subr.mxu0 0.0
  %635 = vmatpush1.msra.mxu0 0.0
  %636 = vmatprep.subr.mxu0 0.0
  %637 = vmatpush1.msra.mxu0 0.0
  %638 = vmatprep.subr.mxu0 0.0
  %639 = vmatpush1.msra.mxu0 0.0
  %640 = vmatprep.subr.mxu0 0.0
  %641 = vmatpush1.msra.mxu0 0.0
  %642 = vmatprep.subr.mxu0 0.0
  %643 = vmatpush1.msra.mxu0 0.0
  %644 = vmatprep.subr.mxu0 0.0
  %645 = vmatpush1.msra.mxu0 0.0
  %646 = vmatprep.subr.mxu0 0.0
  %647 = vmatpush1.msra.mxu0 0.0
  %648 = vmatprep.subr.mxu0 0.0
  %649 = vmatpush1.msra.mxu0 0.0
  %650 = vmatprep.subr.mxu0 0.0
  %651 = vmatpush1.msra.mxu0 0.0
  %652 = vmatprep.subr.mxu0 0.0
  %653 = vmatpush1.msra.mxu0 0.0
  %654 = vmatprep.subr.mxu0 0.0
  %655 = vmatpush1.msra.mxu0 0.0
  %656 = vmatprep.mubr.f32.mxu0 0.0
  %657 = vmatmul.mubr.f32.gmra.mrb[0].mxu0 %v331
  %v658 = vpop.f32.mrb[0].mxu0
  %v659 = vadd.f32 %v582, %v658
  %v660 = vpop.f32.mrb[0].mxu0
  %v661 = vadd.f32 %v584, %v660
  %662 = vmatprep.mubr.f32.mxu0 0.0
  %663 = vmatmul.mubr.f32.gmra.mrb[0].mxu0 %v334
  %v664 = vpop.f32.mrb[0].mxu0
  %v665 = vadd.f32 %v588, %v664
  %v666 = vpop.f32.mrb[0].mxu0
  %v667 = vadd.f32 %v590, %v666
  %668 = vdwg.mxu0
  %669 = vmatprep.subr.mxu0 %v28
  %670 = vmatpush1.msra.mxu0 %v27
  %671 = vmatprep.subr.mxu0 %v36
  %672 = vmatpush1.msra.mxu0 %v35
  %673 = vmatprep.subr.mxu0 %v44
  %674 = vmatpush1.msra.mxu0 %v43
  %675 = vmatprep.subr.mxu0 %v52
  %676 = vmatpush1.msra.mxu0 %v51
  %677 = vmatprep.subr.mxu0 %v60
  %678 = vmatpush1.msra.mxu0 %v59
  %679 = vmatprep.subr.mxu0 %v68
  %680 = vmatpush1.msra.mxu0 %v67
  %681 = vmatprep.subr.mxu0 %v76
  %682 = vmatpush1.msra.mxu0 %v75
  %683 = vmatprep.subr.mxu0 %v84
  %684 = vmatpush1.msra.mxu0 %v83
  %685 = vmatprep.subr.mxu0 %v92
  %686 = vmatpush1.msra.mxu0 %v91
  %687 = vmatprep.subr.mxu0 %v100
  %688 = vmatpush1.msra.mxu0 %v99
  %689 = vmatprep.subr.mxu0 %v108
  %690 = vmatpush1.msra.mxu0 %v107
  %691 = vmatprep.subr.mxu0 %v116
  %692 = vmatpush1.msra.mxu0 %v115
  %693 = vmatprep.subr.mxu0 %v124
  %694 = vmatpush1.msra.mxu0 %v123
  %695 = vmatprep.subr.mxu0 %v132
  %696 = vmatpush1.msra.mxu0 %v131
  %697 = vmatprep.subr.mxu0 %v140
  %698 = vmatpush1.msra.mxu0 %v139
  %699 = vmatprep.subr.mxu0 %v148
  %700 = vmatpush1.msra.mxu0 %v147
  %701 = vmatprep.subr.mxu0 %v156
  %702 = vmatpush1.msra.mxu0 %v155
  %703 = vmatprep.subr.mxu0 %v164
  %704 = vmatpush1.msra.mxu0 %v163
  %705 = vmatprep.subr.mxu0 %v172
  %706 = vmatpush1.msra.mxu0 %v171
  %707 = vmatprep.subr.mxu0 %v180
  %708 = vmatpush1.msra.mxu0 %v179
  %709 = vmatprep.subr.mxu0 %v188
  %710 = vmatpush1.msra.mxu0 %v187
  %711 = vmatprep.subr.mxu0 %v196
  %712 = vmatpush1.msra.mxu0 %v195
  %713 = vmatprep.subr.mxu0 %v204
  %714 = vmatpush1.msra.mxu0 %v203
  %715 = vmatprep.subr.mxu0 %v212
  %716 = vmatpush1.msra.mxu0 %v211
  %717 = vmatprep.subr.mxu0 %v220
  %718 = vmatpush1.msra.mxu0 %v219
  %719 = vmatprep.subr.mxu0 %v228
  %720 = vmatpush1.msra.mxu0 %v227
  %721 = vmatprep.subr.mxu0 %v236
  %722 = vmatpush1.msra.mxu0 %v235
  %723 = vmatprep.subr.mxu0 %v244
  %724 = vmatpush1.msra.mxu0 %v243
  %725 = vmatprep.subr.mxu0 %v252
  %726 = vmatpush1.msra.mxu0 %v251
  %727 = vmatprep.subr.mxu0 %v260
  %728 = vmatpush1.msra.mxu0 %v259
  %729 = vmatprep.subr.mxu0 %v268
  %730 = vmatpush1.msra.mxu0 %v267
  %731 = vmatprep.subr.mxu0 %v276
  %732 = vmatpush1.msra.mxu0 %v275
  %733 = vmatprep.mubr.f32.mxu0 %v18
  %734 = vmatmul.mubr.f32.gmra.mrb[0].mxu0 %v17
  %v735 = vpop.f32.mrb[0].mxu0
  %v736 = vadd.f32 %v308, %v735
  %v737 = vpop.f32.mrb[0].mxu0
  %v738 = vadd.f32 %v312, %v737
  %739 = vmatprep.mubr.f32.mxu0 %v21
  %740 = vmatmul.mubr.f32.gmra.mrb[0].mxu0 %v20
  %v741 = vpop.f32.mrb[0].mxu0
  %v742 = vadd.f32 %v308, %v741
  %v743 = vpop.f32.mrb[0].mxu0
  %v744 = vadd.f32 %v312, %v743
  %745 = vdwg.mxu0
  %746 = vmatprep.subr.mxu0 %v353
  %747 = vmatpush1.msra.mxu0 %v350
  %748 = vmatprep.subr.mxu0 0.0
  %749 = vmatpush1.msra.mxu0 0.0
  %750 = vmatprep.subr.mxu0 0.0
  %751 = vmatpush1.msra.mxu0 0.0
  %752 = vmatprep.subr.mxu0 0.0
  %753 = vmatpush1.msra.mxu0 0.0
  %754 = vmatprep.subr.mxu0 0.0
  %755 = vmatpush1.msra.mxu0 0.0
  %756 = vmatprep.subr.mxu0 0.0
  %757 = vmatpush1.msra.mxu0 0.0
  %758 = vmatprep.subr.mxu0 0.0
  %759 = vmatpush1.msra.mxu0 0.0
  %760 = vmatprep.subr.mxu0 0.0
  %761 = vmatpush1.msra.mxu0 0.0
  %762 = vmatprep.subr.mxu0 0.0
  %763 = vmatpush1.msra.mxu0 0.0
  %764 = vmatprep.subr.mxu0 0.0
  %765 = vmatpush1.msra.mxu0 0.0
  %766 = vmatprep.subr.mxu0 0.0
  %767 = vmatpush1.msra.mxu0 0.0
  %768 = vmatprep.subr.mxu0 0.0
  %769 = vmatpush1.msra.mxu0 0.0
  %770 = vmatprep.subr.mxu0 0.0
  %771 = vmatpush1.msra.mxu0 0.0
  %772 = vmatprep.subr.mxu0 0.0
  %773 = vmatpush1.msra.mxu0 0.0
  %774 = vmatprep.subr.mxu0 0.0
  %775 = vmatpush1.msra.mxu0 0.0
  %776 = vmatprep.subr.mxu0 0.0
  %777 = vmatpush1.msra.mxu0 0.0
  %778 = vmatprep.subr.mxu0 0.0
  %779 = vmatpush1.msra.mxu0 0.0
  %780 = vmatprep.subr.mxu0 0.0
  %781 = vmatpush1.msra.mxu0 0.0
  %782 = vmatprep.subr.mxu0 0.0
  %783 = vmatpush1.msra.mxu0 0.0
  %784 = vmatprep.subr.mxu0 0.0
  %785 = vmatpush1.msra.mxu0 0.0
  %786 = vmatprep.subr.mxu0 0.0
  %787 = vmatpush1.msra.mxu0 0.0
  %788 = vmatprep.subr.mxu0 0.0
  %789 = vmatpush1.msra.mxu0 0.0
  %790 = vmatprep.subr.mxu0 0.0
  %791 = vmatpush1.msra.mxu0 0.0
  %792 = vmatprep.subr.mxu0 0.0
  %793 = vmatpush1.msra.mxu0 0.0
  %794 = vmatprep.subr.mxu0 0.0
  %795 = vmatpush1.msra.mxu0 0.0
  %796 = vmatprep.subr.mxu0 0.0
  %797 = vmatpush1.msra.mxu0 0.0
  %798 = vmatprep.subr.mxu0 0.0
  %799 = vmatpush1.msra.mxu0 0.0
  %800 = vmatprep.subr.mxu0 0.0
  %801 = vmatpush1.msra.mxu0 0.0
  %802 = vmatprep.subr.mxu0 0.0
  %803 = vmatpush1.msra.mxu0 0.0
  %804 = vmatprep.subr.mxu0 0.0
  %805 = vmatpush1.msra.mxu0 0.0
  %806 = vmatprep.subr.mxu0 0.0
  %807 = vmatpush1.msra.mxu0 0.0
  %808 = vmatprep.subr.mxu0 0.0
  %809 = vmatpush1.msra.mxu0 0.0
  %810 = vmatprep.mubr.f32.mxu0 0.0
  %811 = vmatmul.mubr.f32.gmra.mrb[0].mxu0 %v331
  %v812 = vpop.f32.mrb[0].mxu0
  %v813 = vadd.f32 %v736, %v812
  %v814 = vpop.f32.mrb[0].mxu0
  %v815 = vadd.f32 %v738, %v814
  %816 = vmatprep.mubr.f32.mxu0 0.0
  %817 = vmatmul.mubr.f32.gmra.mrb[0].mxu0 %v334
  %v818 = vpop.f32.mrb[0].mxu0
  %v819 = vadd.f32 %v742, %v818
  %v820 = vpop.f32.mrb[0].mxu0
  %v821 = vadd.f32 %v744, %v820
  %822 = vdwg.mxu0
  %823 = vmatprep.subr.mxu0 %v30
  %824 = vmatpush1.msra.mxu0 %v29
  %825 = vmatprep.subr.mxu0 %v38
  %826 = vmatpush1.msra.mxu0 %v37
  %827 = vmatprep.subr.mxu0 %v46
  %828 = vmatpush1.msra.mxu0 %v45
  %829 = vmatprep.subr.mxu0 %v54
  %830 = vmatpush1.msra.mxu0 %v53
  %831 = vmatprep.subr.mxu0 %v62
  %832 = vmatpush1.msra.mxu0 %v61
  %833 = vmatprep.subr.mxu0 %v70
  %834 = vmatpush1.msra.mxu0 %v69
  %835 = vmatprep.subr.mxu0 %v78
  %836 = vmatpush1.msra.mxu0 %v77
  %837 = vmatprep.subr.mxu0 %v86
  %838 = vmatpush1.msra.mxu0 %v85
  %839 = vmatprep.subr.mxu0 %v94
  %840 = vmatpush1.msra.mxu0 %v93
  %841 = vmatprep.subr.mxu0 %v102
  %842 = vmatpush1.msra.mxu0 %v101
  %843 = vmatprep.subr.mxu0 %v110
  %844 = vmatpush1.msra.mxu0 %v109
  %845 = vmatprep.subr.mxu0 %v118
  %846 = vmatpush1.msra.mxu0 %v117
  %847 = vmatprep.subr.mxu0 %v126
  %848 = vmatpush1.msra.mxu0 %v125
  %849 = vmatprep.subr.mxu0 %v134
  %850 = vmatpush1.msra.mxu0 %v133
  %851 = vmatprep.subr.mxu0 %v142
  %852 = vmatpush1.msra.mxu0 %v141
  %853 = vmatprep.subr.mxu0 %v150
  %854 = vmatpush1.msra.mxu0 %v149
  %855 = vmatprep.subr.mxu0 %v158
  %856 = vmatpush1.msra.mxu0 %v157
  %857 = vmatprep.subr.mxu0 %v166
  %858 = vmatpush1.msra.mxu0 %v165
  %859 = vmatprep.subr.mxu0 %v174
  %860 = vmatpush1.msra.mxu0 %v173
  %861 = vmatprep.subr.mxu0 %v182
  %862 = vmatpush1.msra.mxu0 %v181
  %863 = vmatprep.subr.mxu0 %v190
  %864 = vmatpush1.msra.mxu0 %v189
  %865 = vmatprep.subr.mxu0 %v198
  %866 = vmatpush1.msra.mxu0 %v197
  %867 = vmatprep.subr.mxu0 %v206
  %868 = vmatpush1.msra.mxu0 %v205
  %869 = vmatprep.subr.mxu0 %v214
  %870 = vmatpush1.msra.mxu0 %v213
  %871 = vmatprep.subr.mxu0 %v222
  %872 = vmatpush1.msra.mxu0 %v221
  %873 = vmatprep.subr.mxu0 %v230
  %874 = vmatpush1.msra.mxu0 %v229
  %875 = vmatprep.subr.mxu0 %v238
  %876 = vmatpush1.msra.mxu0 %v237
  %877 = vmatprep.subr.mxu0 %v246
  %878 = vmatpush1.msra.mxu0 %v245
  %879 = vmatprep.subr.mxu0 %v254
  %880 = vmatpush1.msra.mxu0 %v253
  %881 = vmatprep.subr.mxu0 %v262
  %882 = vmatpush1.msra.mxu0 %v261
  %883 = vmatprep.subr.mxu0 %v270
  %884 = vmatpush1.msra.mxu0 %v269
  %885 = vmatprep.subr.mxu0 %v278
  %886 = vmatpush1.msra.mxu0 %v277
  %887 = vmatprep.mubr.f32.mxu0 %v18
  %888 = vmatmul.mubr.f32.gmra.mrb[0].mxu0 %v17
  %v889 = vpop.f32.mrb[0].mxu0
  %v890 = vadd.f32 %v316, %v889
  %v891 = vpop.f32.mrb[0].mxu0
  %v892 = vadd.f32 %v320, %v891
  %893 = vmatprep.mubr.f32.mxu0 %v21
  %894 = vmatmul.mubr.f32.gmra.mrb[0].mxu0 %v20
  %v895 = vpop.f32.mrb[0].mxu0
  %v896 = vadd.f32 %v316, %v895
  %v897 = vpop.f32.mrb[0].mxu0
  %v898 = vadd.f32 %v320, %v897
  %899 = vdwg.mxu0
  %900 = vmatprep.subr.mxu0 %v359
  %901 = vmatpush1.msra.mxu0 %v356
  %902 = vmatprep.subr.mxu0 0.0
  %903 = vmatpush1.msra.mxu0 0.0
  %904 = vmatprep.subr.mxu0 0.0
  %905 = vmatpush1.msra.mxu0 0.0
  %906 = vmatprep.subr.mxu0 0.0
  %907 = vmatpush1.msra.mxu0 0.0
  %908 = vmatprep.subr.mxu0 0.0
  %909 = vmatpush1.msra.mxu0 0.0
  %910 = vmatprep.subr.mxu0 0.0
  %911 = vmatpush1.msra.mxu0 0.0
  %912 = vmatprep.subr.mxu0 0.0
  %913 = vmatpush1.msra.mxu0 0.0
  %914 = vmatprep.subr.mxu0 0.0
  %915 = vmatpush1.msra.mxu0 0.0
  %916 = vmatprep.subr.mxu0 0.0
  %917 = vmatpush1.msra.mxu0 0.0
  %918 = vmatprep.subr.mxu0 0.0
  %919 = vmatpush1.msra.mxu0 0.0
  %920 = vmatprep.subr.mxu0 0.0
  %921 = vmatpush1.msra.mxu0 0.0
  %922 = vmatprep.subr.mxu0 0.0
  %923 = vmatpush1.msra.mxu0 0.0
  %924 = vmatprep.subr.mxu0 0.0
  %925 = vmatpush1.msra.mxu0 0.0
  %926 = vmatprep.subr.mxu0 0.0
  %927 = vmatpush1.msra.mxu0 0.0
  %928 = vmatprep.subr.mxu0 0.0
  %929 = vmatpush1.msra.mxu0 0.0
  %930 = vmatprep.subr.mxu0 0.0
  %931 = vmatpush1.msra.mxu0 0.0
  %932 = vmatprep.subr.mxu0 0.0
  %933 = vmatpush1.msra.mxu0 0.0
  %934 = vmatprep.subr.mxu0 0.0
  %935 = vmatpush1.msra.mxu0 0.0
  %936 = vmatprep.subr.mxu0 0.0
  %937 = vmatpush1.msra.mxu0 0.0
  %938 = vmatprep.subr.mxu0 0.0
  %939 = vmatpush1.msra.mxu0 0.0
  %940 = vmatprep.subr.mxu0 0.0
  %941 = vmatpush1.msra.mxu0 0.0
  %942 = vmatprep.subr.mxu0 0.0
  %943 = vmatpush1.msra.mxu0 0.0
  %944 = vmatprep.subr.mxu0 0.0
  %945 = vmatpush1.msra.mxu0 0.0
  %946 = vmatprep.subr.mxu0 0.0
  %947 = vmatpush1.msra.mxu0 0.0
  %948 = vmatprep.subr.mxu0 0.0
  %949 = vmatpush1.msra.mxu0 0.0
  %950 = vmatprep.subr.mxu0 0.0
  %951 = vmatpush1.msra.mxu0 0.0
  %952 = vmatprep.subr.mxu0 0.0
  %953 = vmatpush1.msra.mxu0 0.0
  %954 = vmatprep.subr.mxu0 0.0
  %955 = vmatpush1.msra.mxu0 0.0
  %956 = vmatprep.subr.mxu0 0.0
  %957 = vmatpush1.msra.mxu0 0.0
  %958 = vmatprep.subr.mxu0 0.0
  %959 = vmatpush1.msra.mxu0 0.0
  %960 = vmatprep.subr.mxu0 0.0
  %961 = vmatpush1.msra.mxu0 0.0
  %962 = vmatprep.subr.mxu0 0.0
  %963 = vmatpush1.msra.mxu0 0.0
  %964 = vmatprep.mubr.f32.mxu0 0.0
  %965 = vmatmul.mubr.f32.gmra.mrb[0].mxu0 %v331
  %v966 = vpop.f32.mrb[0].mxu0
  %v967 = vadd.f32 %v890, %v966
  %v968 = vpop.f32.mrb[0].mxu0
  %v969 = vadd.f32 %v892, %v968
  %970 = vmatprep.mubr.f32.mxu0 0.0
  %971 = vmatmul.mubr.f32.gmra.mrb[0].mxu0 %v334
  %v972 = vpop.f32.mrb[0].mxu0
  %v973 = vadd.f32 %v896, %v972
  %v974 = vpop.f32.mrb[0].mxu0
  %v975 = vadd.f32 %v898, %v974
  %976 = vdwg.mxu0
  %977 = vst [vmem:[#allocation2] sm:$0xff] %v505
  %978 = vst [vmem:[#allocation2 + $0x8] sm:$0xff] %v507
  %979 = vst [vmem:[#allocation2 + $0x10] sm:$0xff] %v659
  %980 = vst [vmem:[#allocation2 + $0x18] sm:$0xff] %v661
  %981 = vst [vmem:[#allocation2 + $0x20] sm:$0xff] %v813
  %982 = vst [vmem:[#allocation2 + $0x28] sm:$0xff] %v815
  %983 = vst [vmem:[#allocation2 + $0x30] sm:$0xff] %v967
  %984 = vst [vmem:[#allocation2 + $0x38] sm:$0xff] %v969
  %985 = vst [vmem:[#allocation2 + $0x40] sm:$0xff] %v511
  %986 = vst [vmem:[#allocation2 + $0x48] sm:$0xff] %v513
  %987 = vst [vmem:[#allocation2 + $0x50] sm:$0xff] %v665
  %988 = vst [vmem:[#allocation2 + $0x58] sm:$0xff] %v667
  %989 = vst [vmem:[#allocation2 + $0x60] sm:$0xff] %v819
  %990 = vst [vmem:[#allocation2 + $0x68] sm:$0xff] %v821
  %991 = vst [vmem:[#allocation2 + $0x70] sm:$0xff] %v973
  %992 = vst [vmem:[#allocation2 + $0x78] sm:$0xff] %v975
  %v993 = vld [vmem:[%s3] sm:$0xff]
  %v994 = vld [vmem:[%s3 + $0x8] sm:$0xff]
  %v995 = vld [vmem:[%s3 + $0x10] sm:$0xff]
  %v996 = vld [vmem:[%s3 + $0x18] sm:$0xff]
  %v997 = vld [vmem:[%s3 + $0x20] sm:$0xff]
  %v998 = vld [vmem:[%s3 + $0x28] sm:$0xff]
  %v999 = vld [vmem:[%s3 + $0x30] sm:$0xff]
  %v1000 = vld [vmem:[%s3 + $0x38] sm:$0xff]
  %v1001 = vld [vmem:[%s3 + $0x40] sm:$0xff]
  %v1002 = vld [vmem:[%s3 + $0x48] sm:$0xff]
  %v1003 = vld [vmem:[%s3 + $0x50] sm:$0xff]
  %v1004 = vld [vmem:[%s3 + $0x58] sm:$0xff]
  %v1005 = vld [vmem:[%s3 + $0x60] sm:$0xff]
  %v1006 = vld [vmem:[%s3 + $0x68] sm:$0xff]
  %v1007 = vld [vmem:[%s3 + $0x70] sm:$0xff]
  %v1008 = vld [vmem:[%s3 + $0x78] sm:$0xff]
  %v1009 = vld [vmem:[%s3 + $0x80] sm:$0xff]
  %v1010 = vld [vmem:[%s3 + $0x88] sm:$0xff]
  %v1011 = vld [vmem:[%s3 + $0x90] sm:$0xff]
  %v1012 = vld [vmem:[%s3 + $0x98] sm:$0xff]
  %v1013 = vld [vmem:[%s3 + $0xa0] sm:$0xff]
  %v1014 = vld [vmem:[%s3 + $0xa8] sm:$0xff]
  %v1015 = vld [vmem:[%s3 + $0xb0] sm:$0xff]
  %v1016 = vld [vmem:[%s3 + $0xb8] sm:$0xff]
  %v1017 = vld [vmem:[%s3 + $0xc0] sm:$0xff]
  %v1018 = vld [vmem:[%s3 + $0xc8] sm:$0xff]
  %v1019 = vld [vmem:[%s3 + $0xd0] sm:$0xff]
  %v1020 = vld [vmem:[%s3 + $0xd8] sm:$0xff]
  %v1021 = vld [vmem:[%s3 + $0xe0] sm:$0xff]
  %v1022 = vld [vmem:[%s3 + $0xe8] sm:$0xff]
  %v1023 = vld [vmem:[%s3 + $0xf0] sm:$0xff]
  %v1024 = vld [vmem:[%s3 + $0xf8] sm:$0xff]
  %v1025 = vld [vmem:[%s3 + $0x100] sm:$0xff]
  %v1026 = vld [vmem:[%s3 + $0x108] sm:$0xff]
  %v1027 = vld [vmem:[%s3 + $0x110] sm:$0xff]
  %v1028 = vld [vmem:[%s3 + $0x118] sm:$0xff]
  %v1029 = vld [vmem:[%s3 + $0x120] sm:$0xff]
  %v1030 = vld [vmem:[%s3 + $0x128] sm:$0xff]
  %v1031 = vld [vmem:[%s3 + $0x130] sm:$0xff]
  %v1032 = vld [vmem:[%s3 + $0x138] sm:$0xff]
  %v1033 = vld [vmem:[%s3 + $0x140] sm:$0xff]
  %v1034 = vld [vmem:[%s3 + $0x148] sm:$0xff]
  %v1035 = vld [vmem:[%s3 + $0x150] sm:$0xff]
  %v1036 = vld [vmem:[%s3 + $0x158] sm:$0xff]
  %v1037 = vld [vmem:[%s3 + $0x160] sm:$0xff]
  %v1038 = vld [vmem:[%s3 + $0x168] sm:$0xff]
  %v1039 = vld [vmem:[%s3 + $0x170] sm:$0xff]
  %v1040 = vld [vmem:[%s3 + $0x178] sm:$0xff]
  %v1041 = vld [vmem:[%s3 + $0x180] sm:$0xff]
  %v1042 = vld [vmem:[%s3 + $0x188] sm:$0xff]
  %v1043 = vld [vmem:[%s3 + $0x190] sm:$0xff]
  %v1044 = vld [vmem:[%s3 + $0x198] sm:$0xff]
  %v1045 = vld [vmem:[%s3 + $0x1a0] sm:$0xff]
  %v1046 = vld [vmem:[%s3 + $0x1a8] sm:$0xff]
  %v1047 = vld [vmem:[%s3 + $0x1b0] sm:$0xff]
  %v1048 = vld [vmem:[%s3 + $0x1b8] sm:$0xff]
  %v1049 = vld [vmem:[%s3 + $0x1c0] sm:$0xff]
  %v1050 = vld [vmem:[%s3 + $0x1c8] sm:$0xff]
  %v1051 = vld [vmem:[%s3 + $0x1d0] sm:$0xff]
  %v1052 = vld [vmem:[%s3 + $0x1d8] sm:$0xff]
  %v1053 = vld [vmem:[%s3 + $0x1e0] sm:$0xff]
  %v1054 = vld [vmem:[%s3 + $0x1e8] sm:$0xff]
  %v1055 = vld [vmem:[%s3 + $0x1f0] sm:$0xff]
  %v1056 = vld [vmem:[%s3 + $0x1f8] sm:$0xff]
  %v1057 = vld [vmem:[%s3 + $0x200] sm:$0xff]
  %v1058 = vld [vmem:[%s3 + $0x208] sm:$0xff]
  %v1059 = vld [vmem:[%s3 + $0x210] sm:$0xff]
  %v1060 = vld [vmem:[%s3 + $0x218] sm:$0xff]
  %v1061 = vld [vmem:[%s3 + $0x220] sm:$0xff]
  %v1062 = vld [vmem:[%s3 + $0x228] sm:$0xff]
  %v1063 = vld [vmem:[%s3 + $0x230] sm:$0xff]
  %v1064 = vld [vmem:[%s3 + $0x238] sm:$0xff]
  %v1065 = vld [vmem:[%s3 + $0x240] sm:$0xff]
  %v1066 = vld [vmem:[%s3 + $0x248] sm:$0xff]
  %v1067 = vld [vmem:[%s3 + $0x250] sm:$0xff]
  %v1068 = vld [vmem:[%s3 + $0x258] sm:$0xff]
  %v1069 = vld [vmem:[%s3 + $0x260] sm:$0xff]
  %v1070 = vld [vmem:[%s3 + $0x268] sm:$0xff]
  %v1071 = vld [vmem:[%s3 + $0x270] sm:$0xff]
  %v1072 = vld [vmem:[%s3 + $0x278] sm:$0xff]
  %v1073 = vld [vmem:[%s3 + $0x280] sm:$0xff]
  %v1074 = vld [vmem:[%s3 + $0x288] sm:$0xff]
  %v1075 = vld [vmem:[%s3 + $0x290] sm:$0xff]
  %v1076 = vld [vmem:[%s3 + $0x298] sm:$0xff]
  %v1077 = vld [vmem:[%s3 + $0x2a0] sm:$0xff]
  %v1078 = vld [vmem:[%s3 + $0x2a8] sm:$0xff]
  %v1079 = vld [vmem:[%s3 + $0x2b0] sm:$0xff]
  %v1080 = vld [vmem:[%s3 + $0x2b8] sm:$0xff]
  %v1081 = vld [vmem:[%s3 + $0x2c0] sm:$0xff]
  %v1082 = vld [vmem:[%s3 + $0x2c8] sm:$0xff]
  %v1083 = vld [vmem:[%s3 + $0x2d0] sm:$0xff]
  %v1084 = vld [vmem:[%s3 + $0x2d8] sm:$0xff]
  %v1085 = vld [vmem:[%s3 + $0x2e0] sm:$0xff]
  %v1086 = vld [vmem:[%s3 + $0x2e8] sm:$0xff]
  %v1087 = vld [vmem:[%s3 + $0x2f0] sm:$0xff]
  %v1088 = vld [vmem:[%s3 + $0x2f8] sm:$0xff]
  %v1089 = vld [vmem:[%s3 + $0x300] sm:$0xff]
  %v1090 = vld [vmem:[%s3 + $0x308] sm:$0xff]
  %v1091 = vld [vmem:[%s3 + $0x310] sm:$0xff]
  %v1092 = vld [vmem:[%s3 + $0x318] sm:$0xff]
  %v1093 = vld [vmem:[%s3 + $0x320] sm:$0xff]
  %v1094 = vld [vmem:[%s3 + $0x328] sm:$0xff]
  %v1095 = vld [vmem:[%s3 + $0x330] sm:$0xff]
  %v1096 = vld [vmem:[%s3 + $0x338] sm:$0xff]
  %v1097 = vld [vmem:[%s3 + $0x340] sm:$0xff]
  %v1098 = vld [vmem:[%s3 + $0x348] sm:$0xff]
  %v1099 = vld [vmem:[%s3 + $0x350] sm:$0xff]
  %v1100 = vld [vmem:[%s3 + $0x358] sm:$0xff]
  %v1101 = vld [vmem:[%s3 + $0x360] sm:$0xff]
  %v1102 = vld [vmem:[%s3 + $0x368] sm:$0xff]
  %v1103 = vld [vmem:[%s3 + $0x370] sm:$0xff]
  %v1104 = vld [vmem:[%s3 + $0x378] sm:$0xff]
  %v1105 = vld [vmem:[%s3 + $0x380] sm:$0xff]
  %v1106 = vld [vmem:[%s3 + $0x388] sm:$0xff]
  %v1107 = vld [vmem:[%s3 + $0x390] sm:$0xff]
  %v1108 = vld [vmem:[%s3 + $0x398] sm:$0xff]
  %v1109 = vld [vmem:[%s3 + $0x3a0] sm:$0xff]
  %v1110 = vld [vmem:[%s3 + $0x3a8] sm:$0xff]
  %v1111 = vld [vmem:[%s3 + $0x3b0] sm:$0xff]
  %v1112 = vld [vmem:[%s3 + $0x3b8] sm:$0xff]
  %v1113 = vld [vmem:[%s3 + $0x3c0] sm:$0xff]
  %v1114 = vld [vmem:[%s3 + $0x3c8] sm:$0xff]
  %v1115 = vld [vmem:[%s3 + $0x3d0] sm:$0xff]
  %v1116 = vld [vmem:[%s3 + $0x3d8] sm:$0xff]
  %v1117 = vld [vmem:[%s3 + $0x3e0] sm:$0xff]
  %v1118 = vld [vmem:[%s3 + $0x3e8] sm:$0xff]
  %v1119 = vld [vmem:[%s3 + $0x3f0] sm:$0xff]
  %v1120 = vld [vmem:[%s3 + $0x3f8] sm:$0xff]
  %v1121 = vlaneseq
  %v1122 = vshrl.u32 %v1121, 7
  %vm1123 = vcmp.lt.s32.totalorder %v1122, 2
  %v1124 = vsel %vm1123, 1, 0
  %v1125 = vcvt.s32.f32 %v1124
  %v1126 = vsub.f32 1.0, %v1125
  %v1127 = vld [vmem:[#allocation2] sm:$0x3]
  %v1128 = vld [vmem:[#allocation2 + $0x8] sm:$0x3]
  %v1129 = vld [vmem:[#allocation2 + $0x10] sm:$0x3]
  %v1130 = vld [vmem:[#allocation2 + $0x18] sm:$0x3]
  %v1131 = vld [vmem:[#allocation2 + $0x60] sm:$0xc0]
  %v1132 = vld [vmem:[#allocation2 + $0x68] sm:$0xc0]
  %v1133 = vld [vmem:[#allocation2 + $0x70] sm:$0xc0]
  %v1134 = vld [vmem:[#allocation2 + $0x78] sm:$0xc0]
  %v1139 = vrot.slane %v1131, 4
  %v1140 = vrot.slane %v1132, 4
  %v1141 = vrot.slane %v1133, 4
  %v1142 = vrot.slane %v1134, 4
  %vm1147 = vcmask 1041408
  %v1148 = vsel %vm1147, %v1127, %v1139
  %v1149 = vsel %vm1147, %v1128, %v1140
  %v1150 = vsel %vm1147, %v1129, %v1141
  %v1151 = vsel %vm1147, %v1130, %v1142
  %1152 = vmatprep.subr.mxu0 %v994
  %1153 = vmatpush1.msra.mxu0 %v993
  %1154 = vmatprep.subr.mxu0 %v998
  %1155 = vmatpush1.msra.mxu0 %v997
  %1156 = vmatprep.subr.mxu0 %v1002
  %1157 = vmatpush1.msra.mxu0 %v1001
  %1158 = vmatprep.subr.mxu0 %v1006
  %1159 = vmatpush1.msra.mxu0 %v1005
  %1160 = vmatprep.subr.mxu0 %v1010
  %1161 = vmatpush1.msra.mxu0 %v1009
  %1162 = vmatprep.subr.mxu0 %v1014
  %1163 = vmatpush1.msra.mxu0 %v1013
  %1164 = vmatprep.subr.mxu0 %v1018
  %1165 = vmatpush1.msra.mxu0 %v1017
  %1166 = vmatprep.subr.mxu0 %v1022
  %1167 = vmatpush1.msra.mxu0 %v1021
  %1168 = vmatprep.subr.mxu0 %v1026
  %1169 = vmatpush1.msra.mxu0 %v1025
  %1170 = vmatprep.subr.mxu0 %v1030
  %1171 = vmatpush1.msra.mxu0 %v1029
  %1172 = vmatprep.subr.mxu0 %v1034
  %1173 = vmatpush1.msra.mxu0 %v1033
  %1174 = vmatprep.subr.mxu0 %v1038
  %1175 = vmatpush1.msra.mxu0 %v1037
  %1176 = vmatprep.subr.mxu0 %v1042
  %1177 = vmatpush1.msra.mxu0 %v1041
  %1178 = vmatprep.subr.mxu0 %v1046
  %1179 = vmatpush1.msra.mxu0 %v1045
  %1180 = vmatprep.subr.mxu0 %v1050
  %1181 = vmatpush1.msra.mxu0 %v1049
  %1182 = vmatprep.subr.mxu0 %v1054
  %1183 = vmatpush1.msra.mxu0 %v1053
  %1184 = vmatprep.subr.mxu0 %v1058
  %1185 = vmatpush1.msra.mxu0 %v1057
  %1186 = vmatprep.subr.mxu0 %v1062
  %1187 = vmatpush1.msra.mxu0 %v1061
  %1188 = vmatprep.subr.mxu0 %v1066
  %1189 = vmatpush1.msra.mxu0 %v1065
  %1190 = vmatprep.subr.mxu0 %v1070
  %1191 = vmatpush1.msra.mxu0 %v1069
  %1192 = vmatprep.subr.mxu0 %v1074
  %1193 = vmatpush1.msra.mxu0 %v1073
  %1194 = vmatprep.subr.mxu0 %v1078
  %1195 = vmatpush1.msra.mxu0 %v1077
  %1196 = vmatprep.subr.mxu0 %v1082
  %1197 = vmatpush1.msra.mxu0 %v1081
  %1198 = vmatprep.subr.mxu0 %v1086
  %1199 = vmatpush1.msra.mxu0 %v1085
  %1200 = vmatprep.subr.mxu0 %v1090
  %1201 = vmatpush1.msra.mxu0 %v1089
  %1202 = vmatprep.subr.mxu0 %v1094
  %1203 = vmatpush1.msra.mxu0 %v1093
  %1204 = vmatprep.subr.mxu0 %v1098
  %1205 = vmatpush1.msra.mxu0 %v1097
  %1206 = vmatprep.subr.mxu0 %v1102
  %1207 = vmatpush1.msra.mxu0 %v1101
  %1208 = vmatprep.subr.mxu0 %v1106
  %1209 = vmatpush1.msra.mxu0 %v1105
  %1210 = vmatprep.subr.mxu0 %v1110
  %1211 = vmatpush1.msra.mxu0 %v1109
  %1212 = vmatprep.subr.mxu0 %v1114
  %1213 = vmatpush1.msra.mxu0 %v1113
  %1214 = vmatprep.subr.mxu0 %v1118
  %1215 = vmatpush1.msra.mxu0 %v1117
  %1216 = vmatprep.mubr.f32.mxu0 0.0
  %1217 = vmatmul.mubr.f32.gmra.mrb[0].mxu0 0.0
  %v1218 = vpop.f32.mrb[0].mxu0
  %v1219 = vadd.f32 0.0, %v1218
  %v1220 = vpop.f32.mrb[0].mxu0
  %v1221 = vadd.f32 0.0, %v1220
  %1222 = vdwg.mxu0
  %1223 = vmatprep.subr.mxu0 %v996
  %1224 = vmatpush1.msra.mxu0 %v995
  %1225 = vmatprep.subr.mxu0 %v1000
  %1226 = vmatpush1.msra.mxu0 %v999
  %1227 = vmatprep.subr.mxu0 %v1004
  %1228 = vmatpush1.msra.mxu0 %v1003
  %1229 = vmatprep.subr.mxu0 %v1008
  %1230 = vmatpush1.msra.mxu0 %v1007
  %1231 = vmatprep.subr.mxu0 %v1012
  %1232 = vmatpush1.msra.mxu0 %v1011
  %1233 = vmatprep.subr.mxu0 %v1016
  %1234 = vmatpush1.msra.mxu0 %v1015
  %1235 = vmatprep.subr.mxu0 %v1020
  %1236 = vmatpush1.msra.mxu0 %v1019
  %1237 = vmatprep.subr.mxu0 %v1024
  %1238 = vmatpush1.msra.mxu0 %v1023
  %1239 = vmatprep.subr.mxu0 %v1028
  %1240 = vmatpush1.msra.mxu0 %v1027
  %1241 = vmatprep.subr.mxu0 %v1032
  %1242 = vmatpush1.msra.mxu0 %v1031
  %1243 = vmatprep.subr.mxu0 %v1036
  %1244 = vmatpush1.msra.mxu0 %v1035
  %1245 = vmatprep.subr.mxu0 %v1040
  %1246 = vmatpush1.msra.mxu0 %v1039
  %1247 = vmatprep.subr.mxu0 %v1044
  %1248 = vmatpush1.msra.mxu0 %v1043
  %1249 = vmatprep.subr.mxu0 %v1048
  %1250 = vmatpush1.msra.mxu0 %v1047
  %1251 = vmatprep.subr.mxu0 %v1052
  %1252 = vmatpush1.msra.mxu0 %v1051
  %1253 = vmatprep.subr.mxu0 %v1056
  %1254 = vmatpush1.msra.mxu0 %v1055
  %1255 = vmatprep.subr.mxu0 %v1060
  %1256 = vmatpush1.msra.mxu0 %v1059
  %1257 = vmatprep.subr.mxu0 %v1064
  %1258 = vmatpush1.msra.mxu0 %v1063
  %1259 = vmatprep.subr.mxu0 %v1068
  %1260 = vmatpush1.msra.mxu0 %v1067
  %1261 = vmatprep.subr.mxu0 %v1072
  %1262 = vmatpush1.msra.mxu0 %v1071
  %1263 = vmatprep.subr.mxu0 %v1076
  %1264 = vmatpush1.msra.mxu0 %v1075
  %1265 = vmatprep.subr.mxu0 %v1080
  %1266 = vmatpush1.msra.mxu0 %v1079
  %1267 = vmatprep.subr.mxu0 %v1084
  %1268 = vmatpush1.msra.mxu0 %v1083
  %1269 = vmatprep.subr.mxu0 %v1088
  %1270 = vmatpush1.msra.mxu0 %v1087
  %1271 = vmatprep.subr.mxu0 %v1092
  %1272 = vmatpush1.msra.mxu0 %v1091
  %1273 = vmatprep.subr.mxu0 %v1096
  %1274 = vmatpush1.msra.mxu0 %v1095
  %1275 = vmatprep.subr.mxu0 %v1100
  %1276 = vmatpush1.msra.mxu0 %v1099
  %1277 = vmatprep.subr.mxu0 %v1104
  %1278 = vmatpush1.msra.mxu0 %v1103
  %1279 = vmatprep.subr.mxu0 %v1108
  %1280 = vmatpush1.msra.mxu0 %v1107
  %1281 = vmatprep.subr.mxu0 %v1112
  %1282 = vmatpush1.msra.mxu0 %v1111
  %1283 = vmatprep.subr.mxu0 %v1116
  %1284 = vmatpush1.msra.mxu0 %v1115
  %1285 = vmatprep.subr.mxu0 %v1120
  %1286 = vmatpush1.msra.mxu0 %v1119
  %1287 = vmatprep.mubr.f32.mxu0 0.0
  %1288 = vmatmul.mubr.f32.gmra.mrb[0].mxu0 0.0
  %v1289 = vpop.f32.mrb[0].mxu0
  %v1290 = vadd.f32 0.0, %v1289
  %v1291 = vpop.f32.mrb[0].mxu0
  %v1292 = vadd.f32 0.0, %v1291
  %1293 = vdwg.mxu0
  %v1294 = vadd.f32 %v1148, %v1219
  %v1295 = vadd.f32 %v1149, %v1221
  %v1296 = vadd.f32 %v1150, %v1290
  %v1297 = vadd.f32 %v1151, %v1292
  %v1298 = vxor.u32 %v1294, 2147483648
  %v1299 = vmul.f32 %v1298, 1.442695
  %v1300 = vpow.pop %v1299
  %v1301 = vadd.f32 %v1300, 1.0
  %v1302 = vrcp.pop %v1301
  %v1303 = vmul.f32 1.0, %v1302
  %v1304 = vxor.u32 %v1295, 2147483648
  %v1305 = vmul.f32 %v1304, 1.442695
  %v1306 = vpow.pop %v1305
  %v1307 = vadd.f32 %v1306, 1.0
  %v1308 = vrcp.pop %v1307
  %v1309 = vmul.f32 1.0, %v1308
  %v1310 = vtanh.pop %v1296
  %v1311 = vxor.u32 %v1297, 2147483648
  %v1312 = vmul.f32 %v1311, 1.442695
  %v1313 = vpow.pop %v1312
  %v1314 = vadd.f32 %v1313, 1.0
  %v1315 = vrcp.pop %v1314
  %v1316 = vmul.f32 1.0, %v1315
  %v1317 = vmul.f32 %v1309, 0.0
  %v1318 = vmul.f32 %v1303, %v1310
  %v1319 = vadd.f32 %v1317, %v1318
  %v1320 = vtanh.pop %v1319
  %v1321 = vmul.f32 %v1316, %v1320
  %1322 = vst [vmem:[%s4] sm:$0x3] %v1321
  %v1324 = vrot.slane %v1321, 4
  %1326 = vst [vmem:[%s4 + $0x18] sm:$0xc0] %v1324
  %v1327 = vmul.f32 %v1321, %v1125
  %v1328 = vmul.f32 %v1321, %v1126
  %v1329 = vld [vmem:[#allocation2] sm:$0xc]
  %v1330 = vld [vmem:[#allocation2 + $0x8] sm:$0xc]
  %v1331 = vld [vmem:[#allocation2 + $0x10] sm:$0xc]
  %v1332 = vld [vmem:[#allocation2 + $0x18] sm:$0xc]
  %v1333 = vld [vmem:[#allocation2 + $0x60] sm:$0x30]
  %v1334 = vld [vmem:[#allocation2 + $0x68] sm:$0x30]
  %v1335 = vld [vmem:[#allocation2 + $0x70] sm:$0x30]
  %v1336 = vld [vmem:[#allocation2 + $0x78] sm:$0x30]
  %v1341 = vrot.slane %v1329, 2
  %v1342 = vrot.slane %v1330, 2
  %v1343 = vrot.slane %v1331, 2
  %v1344 = vrot.slane %v1332, 2
  %v1353 = vrot.slane %v1333, 2
  %v1354 = vrot.slane %v1334, 2
  %v1355 = vrot.slane %v1335, 2
  %v1356 = vrot.slane %v1336, 2
  %v1361 = vsel %vm1147, %v1341, %v1353
  %v1362 = vsel %vm1147, %v1342, %v1354
  %v1363 = vsel %vm1147, %v1343, %v1355
  %v1364 = vsel %vm1147, %v1344, %v1356
  %1365 = vmatprep.subr.mxu0 %v994
  %1366 = vmatpush1.msra.mxu0 %v993
  %1367 = vmatprep.subr.mxu0 %v998
  %1368 = vmatpush1.msra.mxu0 %v997
  %1369 = vmatprep.subr.mxu0 %v1002
  %1370 = vmatpush1.msra.mxu0 %v1001
  %1371 = vmatprep.subr.mxu0 %v1006
  %1372 = vmatpush1.msra.mxu0 %v1005
  %1373 = vmatprep.subr.mxu0 %v1010
  %1374 = vmatpush1.msra.mxu0 %v1009
  %1375 = vmatprep.subr.mxu0 %v1014
  %1376 = vmatpush1.msra.mxu0 %v1013
  %1377 = vmatprep.subr.mxu0 %v1018
  %1378 = vmatpush1.msra.mxu0 %v1017
  %1379 = vmatprep.subr.mxu0 %v1022
  %1380 = vmatpush1.msra.mxu0 %v1021
  %1381 = vmatprep.subr.mxu0 %v1026
  %1382 = vmatpush1.msra.mxu0 %v1025
  %1383 = vmatprep.subr.mxu0 %v1030
  %1384 = vmatpush1.msra.mxu0 %v1029
  %1385 = vmatprep.subr.mxu0 %v1034
  %1386 = vmatpush1.msra.mxu0 %v1033
  %1387 = vmatprep.subr.mxu0 %v1038
  %1388 = vmatpush1.msra.mxu0 %v1037
  %1389 = vmatprep.subr.mxu0 %v1042
  %1390 = vmatpush1.msra.mxu0 %v1041
  %1391 = vmatprep.subr.mxu0 %v1046
  %1392 = vmatpush1.msra.mxu0 %v1045
  %1393 = vmatprep.subr.mxu0 %v1050
  %1394 = vmatpush1.msra.mxu0 %v1049
  %1395 = vmatprep.subr.mxu0 %v1054
  %1396 = vmatpush1.msra.mxu0 %v1053
  %1397 = vmatprep.subr.mxu0 %v1058
  %1398 = vmatpush1.msra.mxu0 %v1057
  %1399 = vmatprep.subr.mxu0 %v1062
  %1400 = vmatpush1.msra.mxu0 %v1061
  %1401 = vmatprep.subr.mxu0 %v1066
  %1402 = vmatpush1.msra.mxu0 %v1065
  %1403 = vmatprep.subr.mxu0 %v1070
  %1404 = vmatpush1.msra.mxu0 %v1069
  %1405 = vmatprep.subr.mxu0 %v1074
  %1406 = vmatpush1.msra.mxu0 %v1073
  %1407 = vmatprep.subr.mxu0 %v1078
  %1408 = vmatpush1.msra.mxu0 %v1077
  %1409 = vmatprep.subr.mxu0 %v1082
  %1410 = vmatpush1.msra.mxu0 %v1081
  %1411 = vmatprep.subr.mxu0 %v1086
  %1412 = vmatpush1.msra.mxu0 %v1085
  %1413 = vmatprep.subr.mxu0 %v1090
  %1414 = vmatpush1.msra.mxu0 %v1089
  %1415 = vmatprep.subr.mxu0 %v1094
  %1416 = vmatpush1.msra.mxu0 %v1093
  %1417 = vmatprep.subr.mxu0 %v1098
  %1418 = vmatpush1.msra.mxu0 %v1097
  %1419 = vmatprep.subr.mxu0 %v1102
  %1420 = vmatpush1.msra.mxu0 %v1101
  %1421 = vmatprep.subr.mxu0 %v1106
  %1422 = vmatpush1.msra.mxu0 %v1105
  %1423 = vmatprep.subr.mxu0 %v1110
  %1424 = vmatpush1.msra.mxu0 %v1109
  %1425 = vmatprep.subr.mxu0 %v1114
  %1426 = vmatpush1.msra.mxu0 %v1113
  %1427 = vmatprep.subr.mxu0 %v1118
  %1428 = vmatpush1.msra.mxu0 %v1117
  %1429 = vmatprep.mubr.f32.mxu0 %v1328
  %1430 = vmatmul.mubr.f32.gmra.mrb[0].mxu0 %v1327
  %v1431 = vpop.f32.mrb[0].mxu0
  %v1432 = vadd.f32 0.0, %v1431
  %v1433 = vpop.f32.mrb[0].mxu0
  %v1434 = vadd.f32 0.0, %v1433
  %1435 = vdwg.mxu0
  %1436 = vmatprep.subr.mxu0 %v996
  %1437 = vmatpush1.msra.mxu0 %v995
  %1438 = vmatprep.subr.mxu0 %v1000
  %1439 = vmatpush1.msra.mxu0 %v999
  %1440 = vmatprep.subr.mxu0 %v1004
  %1441 = vmatpush1.msra.mxu0 %v1003
  %1442 = vmatprep.subr.mxu0 %v1008
  %1443 = vmatpush1.msra.mxu0 %v1007
  %1444 = vmatprep.subr.mxu0 %v1012
  %1445 = vmatpush1.msra.mxu0 %v1011
  %1446 = vmatprep.subr.mxu0 %v1016
  %1447 = vmatpush1.msra.mxu0 %v1015
  %1448 = vmatprep.subr.mxu0 %v1020
  %1449 = vmatpush1.msra.mxu0 %v1019
  %1450 = vmatprep.subr.mxu0 %v1024
  %1451 = vmatpush1.msra.mxu0 %v1023
  %1452 = vmatprep.subr.mxu0 %v1028
  %1453 = vmatpush1.msra.mxu0 %v1027
  %1454 = vmatprep.subr.mxu0 %v1032
  %1455 = vmatpush1.msra.mxu0 %v1031
  %1456 = vmatprep.subr.mxu0 %v1036
  %1457 = vmatpush1.msra.mxu0 %v1035
  %1458 = vmatprep.subr.mxu0 %v1040
  %1459 = vmatpush1.msra.mxu0 %v1039
  %1460 = vmatprep.subr.mxu0 %v1044
  %1461 = vmatpush1.msra.mxu0 %v1043
  %1462 = vmatprep.subr.mxu0 %v1048
  %1463 = vmatpush1.msra.mxu0 %v1047
  %1464 = vmatprep.subr.mxu0 %v1052
  %1465 = vmatpush1.msra.mxu0 %v1051
  %1466 = vmatprep.subr.mxu0 %v1056
  %1467 = vmatpush1.msra.mxu0 %v1055
  %1468 = vmatprep.subr.mxu0 %v1060
  %1469 = vmatpush1.msra.mxu0 %v1059
  %1470 = vmatprep.subr.mxu0 %v1064
  %1471 = vmatpush1.msra.mxu0 %v1063
  %1472 = vmatprep.subr.mxu0 %v1068
  %1473 = vmatpush1.msra.mxu0 %v1067
  %1474 = vmatprep.subr.mxu0 %v1072
  %1475 = vmatpush1.msra.mxu0 %v1071
  %1476 = vmatprep.subr.mxu0 %v1076
  %1477 = vmatpush1.msra.mxu0 %v1075
  %1478 = vmatprep.subr.mxu0 %v1080
  %1479 = vmatpush1.msra.mxu0 %v1079
  %1480 = vmatprep.subr.mxu0 %v1084
  %1481 = vmatpush1.msra.mxu0 %v1083
  %1482 = vmatprep.subr.mxu0 %v1088
  %1483 = vmatpush1.msra.mxu0 %v1087
  %1484 = vmatprep.subr.mxu0 %v1092
  %1485 = vmatpush1.msra.mxu0 %v1091
  %1486 = vmatprep.subr.mxu0 %v1096
  %1487 = vmatpush1.msra.mxu0 %v1095
  %1488 = vmatprep.subr.mxu0 %v1100
  %1489 = vmatpush1.msra.mxu0 %v1099
  %1490 = vmatprep.subr.mxu0 %v1104
  %1491 = vmatpush1.msra.mxu0 %v1103
  %1492 = vmatprep.subr.mxu0 %v1108
  %1493 = vmatpush1.msra.mxu0 %v1107
  %1494 = vmatprep.subr.mxu0 %v1112
  %1495 = vmatpush1.msra.mxu0 %v1111
  %1496 = vmatprep.subr.mxu0 %v1116
  %1497 = vmatpush1.msra.mxu0 %v1115
  %1498 = vmatprep.subr.mxu0 %v1120
  %1499 = vmatpush1.msra.mxu0 %v1119
  %1500 = vmatprep.mubr.f32.mxu0 %v1328
  %1501 = vmatmul.mubr.f32.gmra.mrb[0].mxu0 %v1327
  %v1502 = vpop.f32.mrb[0].mxu0
  %v1503 = vadd.f32 0.0, %v1502
  %v1504 = vpop.f32.mrb[0].mxu0
  %v1505 = vadd.f32 0.0, %v1504
  %1506 = vdwg.mxu0
  %v1507 = vadd.f32 %v1361, %v1432
  %v1508 = vadd.f32 %v1362, %v1434
  %v1509 = vadd.f32 %v1363, %v1503
  %v1510 = vadd.f32 %v1364, %v1505
  %v1511 = vxor.u32 %v1507, 2147483648
  %v1512 = vmul.f32 %v1511, 1.442695
  %v1513 = vpow.pop %v1512
  %v1514 = vadd.f32 %v1513, 1.0
  %v1515 = vrcp.pop %v1514
  %v1516 = vmul.f32 1.0, %v1515
  %v1517 = vxor.u32 %v1508, 2147483648
  %v1518 = vmul.f32 %v1517, 1.442695
  %v1519 = vpow.pop %v1518
  %v1520 = vadd.f32 %v1519, 1.0
  %v1521 = vrcp.pop %v1520
  %v1522 = vmul.f32 1.0, %v1521
  %v1523 = vtanh.pop %v1509
  %v1524 = vxor.u32 %v1510, 2147483648
  %v1525 = vmul.f32 %v1524, 1.442695
  %v1526 = vpow.pop %v1525
  %v1527 = vadd.f32 %v1526, 1.0
  %v1528 = vrcp.pop %v1527
  %v1529 = vmul.f32 1.0, %v1528
  %v1530 = vmul.f32 %v1522, %v1319
  %v1531 = vmul.f32 %v1516, %v1523
  %v1532 = vadd.f32 %v1530, %v1531
  %v1533 = vtanh.pop %v1532
  %v1534 = vmul.f32 %v1529, %v1533
  %v1536 = vrot.slane %v1534, 6
  %1538 = vst [vmem:[%s4] sm:$0xc] %v1536
  %1539 = vst [vmem:[%s4 + $0x18] sm:$0x30] %v1536
  %v1540 = vmul.f32 %v1534, %v1125
  %v1541 = vmul.f32 %v1534, %v1126
  %v1542 = vld [vmem:[#allocation2] sm:$0x30]
  %v1543 = vld [vmem:[#allocation2 + $0x8] sm:$0x30]
  %v1544 = vld [vmem:[#allocation2 + $0x10] sm:$0x30]
  %v1545 = vld [vmem:[#allocation2 + $0x18] sm:$0x30]
  %v1546 = vld [vmem:[#allocation2 + $0x60] sm:$0xc]
  %v1547 = vld [vmem:[#allocation2 + $0x68] sm:$0xc]
  %v1548 = vld [vmem:[#allocation2 + $0x70] sm:$0xc]
  %v1549 = vld [vmem:[#allocation2 + $0x78] sm:$0xc]
  %v1554 = vrot.slane %v1542, 4
  %v1555 = vrot.slane %v1543, 4
  %v1556 = vrot.slane %v1544, 4
  %v1557 = vrot.slane %v1545, 4
  %v1562 = vsel %vm1147, %v1554, %v1546
  %v1563 = vsel %vm1147, %v1555, %v1547
  %v1564 = vsel %vm1147, %v1556, %v1548
  %v1565 = vsel %vm1147, %v1557, %v1549
  %1566 = vmatprep.subr.mxu0 %v994
  %1567 = vmatpush1.msra.mxu0 %v993
  %1568 = vmatprep.subr.mxu0 %v998
  %1569 = vmatpush1.msra.mxu0 %v997
  %1570 = vmatprep.subr.mxu0 %v1002
  %1571 = vmatpush1.msra.mxu0 %v1001
  %1572 = vmatprep.subr.mxu0 %v1006
  %1573 = vmatpush1.msra.mxu0 %v1005
  %1574 = vmatprep.subr.mxu0 %v1010
  %1575 = vmatpush1.msra.mxu0 %v1009
  %1576 = vmatprep.subr.mxu0 %v1014
  %1577 = vmatpush1.msra.mxu0 %v1013
  %1578 = vmatprep.subr.mxu0 %v1018
  %1579 = vmatpush1.msra.mxu0 %v1017
  %1580 = vmatprep.subr.mxu0 %v1022
  %1581 = vmatpush1.msra.mxu0 %v1021
  %1582 = vmatprep.subr.mxu0 %v1026
  %1583 = vmatpush1.msra.mxu0 %v1025
  %1584 = vmatprep.subr.mxu0 %v1030
  %1585 = vmatpush1.msra.mxu0 %v1029
  %1586 = vmatprep.subr.mxu0 %v1034
  %1587 = vmatpush1.msra.mxu0 %v1033
  %1588 = vmatprep.subr.mxu0 %v1038
  %1589 = vmatpush1.msra.mxu0 %v1037
  %1590 = vmatprep.subr.mxu0 %v1042
  %1591 = vmatpush1.msra.mxu0 %v1041
  %1592 = vmatprep.subr.mxu0 %v1046
  %1593 = vmatpush1.msra.mxu0 %v1045
  %1594 = vmatprep.subr.mxu0 %v1050
  %1595 = vmatpush1.msra.mxu0 %v1049
  %1596 = vmatprep.subr.mxu0 %v1054
  %1597 = vmatpush1.msra.mxu0 %v1053
  %1598 = vmatprep.subr.mxu0 %v1058
  %1599 = vmatpush1.msra.mxu0 %v1057
  %1600 = vmatprep.subr.mxu0 %v1062
  %1601 = vmatpush1.msra.mxu0 %v1061
  %1602 = vmatprep.subr.mxu0 %v1066
  %1603 = vmatpush1.msra.mxu0 %v1065
  %1604 = vmatprep.subr.mxu0 %v1070
  %1605 = vmatpush1.msra.mxu0 %v1069
  %1606 = vmatprep.subr.mxu0 %v1074
  %1607 = vmatpush1.msra.mxu0 %v1073
  %1608 = vmatprep.subr.mxu0 %v1078
  %1609 = vmatpush1.msra.mxu0 %v1077
  %1610 = vmatprep.subr.mxu0 %v1082
  %1611 = vmatpush1.msra.mxu0 %v1081
  %1612 = vmatprep.subr.mxu0 %v1086
  %1613 = vmatpush1.msra.mxu0 %v1085
  %1614 = vmatprep.subr.mxu0 %v1090
  %1615 = vmatpush1.msra.mxu0 %v1089
  %1616 = vmatprep.subr.mxu0 %v1094
  %1617 = vmatpush1.msra.mxu0 %v1093
  %1618 = vmatprep.subr.mxu0 %v1098
  %1619 = vmatpush1.msra.mxu0 %v1097
  %1620 = vmatprep.subr.mxu0 %v1102
  %1621 = vmatpush1.msra.mxu0 %v1101
  %1622 = vmatprep.subr.mxu0 %v1106
  %1623 = vmatpush1.msra.mxu0 %v1105
  %1624 = vmatprep.subr.mxu0 %v1110
  %1625 = vmatpush1.msra.mxu0 %v1109
  %1626 = vmatprep.subr.mxu0 %v1114
  %1627 = vmatpush1.msra.mxu0 %v1113
  %1628 = vmatprep.subr.mxu0 %v1118
  %1629 = vmatpush1.msra.mxu0 %v1117
  %1630 = vmatprep.mubr.f32.mxu0 %v1541
  %1631 = vmatmul.mubr.f32.gmra.mrb[0].mxu0 %v1540
  %v1632 = vpop.f32.mrb[0].mxu0
  %v1633 = vadd.f32 0.0, %v1632
  %v1634 = vpop.f32.mrb[0].mxu0
  %v1635 = vadd.f32 0.0, %v1634
  %1636 = vdwg.mxu0
  %1637 = vmatprep.subr.mxu0 %v996
  %1638 = vmatpush1.msra.mxu0 %v995
  %1639 = vmatprep.subr.mxu0 %v1000
  %1640 = vmatpush1.msra.mxu0 %v999
  %1641 = vmatprep.subr.mxu0 %v1004
  %1642 = vmatpush1.msra.mxu0 %v1003
  %1643 = vmatprep.subr.mxu0 %v1008
  %1644 = vmatpush1.msra.mxu0 %v1007
  %1645 = vmatprep.subr.mxu0 %v1012
  %1646 = vmatpush1.msra.mxu0 %v1011
  %1647 = vmatprep.subr.mxu0 %v1016
  %1648 = vmatpush1.msra.mxu0 %v1015
  %1649 = vmatprep.subr.mxu0 %v1020
  %1650 = vmatpush1.msra.mxu0 %v1019
  %1651 = vmatprep.subr.mxu0 %v1024
  %1652 = vmatpush1.msra.mxu0 %v1023
  %1653 = vmatprep.subr.mxu0 %v1028
  %1654 = vmatpush1.msra.mxu0 %v1027
  %1655 = vmatprep.subr.mxu0 %v1032
  %1656 = vmatpush1.msra.mxu0 %v1031
  %1657 = vmatprep.subr.mxu0 %v1036
  %1658 = vmatpush1.msra.mxu0 %v1035
  %1659 = vmatprep.subr.mxu0 %v1040
  %1660 = vmatpush1.msra.mxu0 %v1039
  %1661 = vmatprep.subr.mxu0 %v1044
  %1662 = vmatpush1.msra.mxu0 %v1043
  %1663 = vmatprep.subr.mxu0 %v1048
  %1664 = vmatpush1.msra.mxu0 %v1047
  %1665 = vmatprep.subr.mxu0 %v1052
  %1666 = vmatpush1.msra.mxu0 %v1051
  %1667 = vmatprep.subr.mxu0 %v1056
  %1668 = vmatpush1.msra.mxu0 %v1055
  %1669 = vmatprep.subr.mxu0 %v1060
  %1670 = vmatpush1.msra.mxu0 %v1059
  %1671 = vmatprep.subr.mxu0 %v1064
  %1672 = vmatpush1.msra.mxu0 %v1063
  %1673 = vmatprep.subr.mxu0 %v1068
  %1674 = vmatpush1.msra.mxu0 %v1067
  %1675 = vmatprep.subr.mxu0 %v1072
  %1676 = vmatpush1.msra.mxu0 %v1071
  %1677 = vmatprep.subr.mxu0 %v1076
  %1678 = vmatpush1.msra.mxu0 %v1075
  %1679 = vmatprep.subr.mxu0 %v1080
  %1680 = vmatpush1.msra.mxu0 %v1079
  %1681 = vmatprep.subr.mxu0 %v1084
  %1682 = vmatpush1.msra.mxu0 %v1083
  %1683 = vmatprep.subr.mxu0 %v1088
  %1684 = vmatpush1.msra.mxu0 %v1087
  %1685 = vmatprep.subr.mxu0 %v1092
  %1686 = vmatpush1.msra.mxu0 %v1091
  %1687 = vmatprep.subr.mxu0 %v1096
  %1688 = vmatpush1.msra.mxu0 %v1095
  %1689 = vmatprep.subr.mxu0 %v1100
  %1690 = vmatpush1.msra.mxu0 %v1099
  %1691 = vmatprep.subr.mxu0 %v1104
  %1692 = vmatpush1.msra.mxu0 %v1103
  %1693 = vmatprep.subr.mxu0 %v1108
  %1694 = vmatpush1.msra.mxu0 %v1107
  %1695 = vmatprep.subr.mxu0 %v1112
  %1696 = vmatpush1.msra.mxu0 %v1111
  %1697 = vmatprep.subr.mxu0 %v1116
  %1698 = vmatpush1.msra.mxu0 %v1115
  %1699 = vmatprep.subr.mxu0 %v1120
  %1700 = vmatpush1.msra.mxu0 %v1119
  %1701 = vmatprep.mubr.f32.mxu0 %v1541
  %1702 = vmatmul.mubr.f32.gmra.mrb[0].mxu0 %v1540
  %v1703 = vpop.f32.mrb[0].mxu0
  %v1704 = vadd.f32 0.0, %v1703
  %v1705 = vpop.f32.mrb[0].mxu0
  %v1706 = vadd.f32 0.0, %v1705
  %1707 = vdwg.mxu0
  %v1708 = vadd.f32 %v1562, %v1633
  %v1709 = vadd.f32 %v1563, %v1635
  %v1710 = vadd.f32 %v1564, %v1704
  %v1711 = vadd.f32 %v1565, %v1706
  %v1712 = vxor.u32 %v1708, 2147483648
  %v1713 = vmul.f32 %v1712, 1.442695
  %v1714 = vpow.pop %v1713
  %v1715 = vadd.f32 %v1714, 1.0
  %v1716 = vrcp.pop %v1715
  %v1717 = vmul.f32 1.0, %v1716
  %v1718 = vxor.u32 %v1709, 2147483648
  %v1719 = vmul.f32 %v1718, 1.442695
  %v1720 = vpow.pop %v1719
  %v1721 = vadd.f32 %v1720, 1.0
  %v1722 = vrcp.pop %v1721
  %v1723 = vmul.f32 1.0, %v1722
  %v1724 = vtanh.pop %v1710
  %v1725 = vxor.u32 %v1711, 2147483648
  %v1726 = vmul.f32 %v1725, 1.442695
  %v1727 = vpow.pop %v1726
  %v1728 = vadd.f32 %v1727, 1.0
  %v1729 = vrcp.pop %v1728
  %v1730 = vmul.f32 1.0, %v1729
  %v1731 = vmul.f32 %v1723, %v1532
  %v1732 = vmul.f32 %v1717, %v1724
  %v1733 = vadd.f32 %v1731, %v1732
  %v1734 = vtanh.pop %v1733
  %v1735 = vmul.f32 %v1730, %v1734
  %v1737 = vrot.slane %v1735, 4
  %1739 = vst [vmem:[%s4] sm:$0x30] %v1737
  %1740 = vst [vmem:[%s4 + $0x18] sm:$0xc] %v1735
  %v1741 = vmul.f32 %v1735, %v1125
  %v1742 = vmul.f32 %v1735, %v1126
  %v1743 = vld [vmem:[#allocation2] sm:$0xc0]
  %v1744 = vld [vmem:[#allocation2 + $0x8] sm:$0xc0]
  %v1745 = vld [vmem:[#allocation2 + $0x10] sm:$0xc0]
  %v1746 = vld [vmem:[#allocation2 + $0x18] sm:$0xc0]
  %v1747 = vld [vmem:[#allocation2 + $0x60] sm:$0x3]
  %v1748 = vld [vmem:[#allocation2 + $0x68] sm:$0x3]
  %v1749 = vld [vmem:[#allocation2 + $0x70] sm:$0x3]
  %v1750 = vld [vmem:[#allocation2 + $0x78] sm:$0x3]
  %v1755 = vrot.slane %v1743, 6
  %v1756 = vrot.slane %v1744, 6
  %v1757 = vrot.slane %v1745, 6
  %v1758 = vrot.slane %v1746, 6
  %v1767 = vrot.slane %v1747, 6
  %v1768 = vrot.slane %v1748, 6
  %v1769 = vrot.slane %v1749, 6
  %v1770 = vrot.slane %v1750, 6
  %v1775 = vsel %vm1147, %v1755, %v1767
  %v1776 = vsel %vm1147, %v1756, %v1768
  %v1777 = vsel %vm1147, %v1757, %v1769
  %v1778 = vsel %vm1147, %v1758, %v1770
  %1779 = vmatprep.subr.mxu0 %v994
  %1780 = vmatpush1.msra.mxu0 %v993
  %1781 = vmatprep.subr.mxu0 %v998
  %1782 = vmatpush1.msra.mxu0 %v997
  %1783 = vmatprep.subr.mxu0 %v1002
  %1784 = vmatpush1.msra.mxu0 %v1001
  %1785 = vmatprep.subr.mxu0 %v1006
  %1786 = vmatpush1.msra.mxu0 %v1005
  %1787 = vmatprep.subr.mxu0 %v1010
  %1788 = vmatpush1.msra.mxu0 %v1009
  %1789 = vmatprep.subr.mxu0 %v1014
  %1790 = vmatpush1.msra.mxu0 %v1013
  %1791 = vmatprep.subr.mxu0 %v1018
  %1792 = vmatpush1.msra.mxu0 %v1017
  %1793 = vmatprep.subr.mxu0 %v1022
  %1794 = vmatpush1.msra.mxu0 %v1021
  %1795 = vmatprep.subr.mxu0 %v1026
  %1796 = vmatpush1.msra.mxu0 %v1025
  %1797 = vmatprep.subr.mxu0 %v1030
  %1798 = vmatpush1.msra.mxu0 %v1029
  %1799 = vmatprep.subr.mxu0 %v1034
  %1800 = vmatpush1.msra.mxu0 %v1033
  %1801 = vmatprep.subr.mxu0 %v1038
  %1802 = vmatpush1.msra.mxu0 %v1037
  %1803 = vmatprep.subr.mxu0 %v1042
  %1804 = vmatpush1.msra.mxu0 %v1041
  %1805 = vmatprep.subr.mxu0 %v1046
  %1806 = vmatpush1.msra.mxu0 %v1045
  %1807 = vmatprep.subr.mxu0 %v1050
  %1808 = vmatpush1.msra.mxu0 %v1049
  %1809 = vmatprep.subr.mxu0 %v1054
  %1810 = vmatpush1.msra.mxu0 %v1053
  %1811 = vmatprep.subr.mxu0 %v1058
  %1812 = vmatpush1.msra.mxu0 %v1057
  %1813 = vmatprep.subr.mxu0 %v1062
  %1814 = vmatpush1.msra.mxu0 %v1061
  %1815 = vmatprep.subr.mxu0 %v1066
  %1816 = vmatpush1.msra.mxu0 %v1065
  %1817 = vmatprep.subr.mxu0 %v1070
  %1818 = vmatpush1.msra.mxu0 %v1069
  %1819 = vmatprep.subr.mxu0 %v1074
  %1820 = vmatpush1.msra.mxu0 %v1073
  %1821 = vmatprep.subr.mxu0 %v1078
  %1822 = vmatpush1.msra.mxu0 %v1077
  %1823 = vmatprep.subr.mxu0 %v1082
  %1824 = vmatpush1.msra.mxu0 %v1081
  %1825 = vmatprep.subr.mxu0 %v1086
  %1826 = vmatpush1.msra.mxu0 %v1085
  %1827 = vmatprep.subr.mxu0 %v1090
  %1828 = vmatpush1.msra.mxu0 %v1089
  %1829 = vmatprep.subr.mxu0 %v1094
  %1830 = vmatpush1.msra.mxu0 %v1093
  %1831 = vmatprep.subr.mxu0 %v1098
  %1832 = vmatpush1.msra.mxu0 %v1097
  %1833 = vmatprep.subr.mxu0 %v1102
  %1834 = vmatpush1.msra.mxu0 %v1101
  %1835 = vmatprep.subr.mxu0 %v1106
  %1836 = vmatpush1.msra.mxu0 %v1105
  %1837 = vmatprep.subr.mxu0 %v1110
  %1838 = vmatpush1.msra.mxu0 %v1109
  %1839 = vmatprep.subr.mxu0 %v1114
  %1840 = vmatpush1.msra.mxu0 %v1113
  %1841 = vmatprep.subr.mxu0 %v1118
  %1842 = vmatpush1.msra.mxu0 %v1117
  %1843 = vmatprep.mubr.f32.mxu0 %v1742
  %1844 = vmatmul.mubr.f32.gmra.mrb[0].mxu0 %v1741
  %v1845 = vpop.f32.mrb[0].mxu0
  %v1846 = vadd.f32 0.0, %v1845
  %v1847 = vpop.f32.mrb[0].mxu0
  %v1848 = vadd.f32 0.0, %v1847
  %1849 = vdwg.mxu0
  %1850 = vmatprep.subr.mxu0 %v996
  %1851 = vmatpush1.msra.mxu0 %v995
  %1852 = vmatprep.subr.mxu0 %v1000
  %1853 = vmatpush1.msra.mxu0 %v999
  %1854 = vmatprep.subr.mxu0 %v1004
  %1855 = vmatpush1.msra.mxu0 %v1003
  %1856 = vmatprep.subr.mxu0 %v1008
  %1857 = vmatpush1.msra.mxu0 %v1007
  %1858 = vmatprep.subr.mxu0 %v1012
  %1859 = vmatpush1.msra.mxu0 %v1011
  %1860 = vmatprep.subr.mxu0 %v1016
  %1861 = vmatpush1.msra.mxu0 %v1015
  %1862 = vmatprep.subr.mxu0 %v1020
  %1863 = vmatpush1.msra.mxu0 %v1019
  %1864 = vmatprep.subr.mxu0 %v1024
  %1865 = vmatpush1.msra.mxu0 %v1023
  %1866 = vmatprep.subr.mxu0 %v1028
  %1867 = vmatpush1.msra.mxu0 %v1027
  %1868 = vmatprep.subr.mxu0 %v1032
  %1869 = vmatpush1.msra.mxu0 %v1031
  %1870 = vmatprep.subr.mxu0 %v1036
  %1871 = vmatpush1.msra.mxu0 %v1035
  %1872 = vmatprep.subr.mxu0 %v1040
  %1873 = vmatpush1.msra.mxu0 %v1039
  %1874 = vmatprep.subr.mxu0 %v1044
  %1875 = vmatpush1.msra.mxu0 %v1043
  %1876 = vmatprep.subr.mxu0 %v1048
  %1877 = vmatpush1.msra.mxu0 %v1047
  %1878 = vmatprep.subr.mxu0 %v1052
  %1879 = vmatpush1.msra.mxu0 %v1051
  %1880 = vmatprep.subr.mxu0 %v1056
  %1881 = vmatpush1.msra.mxu0 %v1055
  %1882 = vmatprep.subr.mxu0 %v1060
  %1883 = vmatpush1.msra.mxu0 %v1059
  %1884 = vmatprep.subr.mxu0 %v1064
  %1885 = vmatpush1.msra.mxu0 %v1063
  %1886 = vmatprep.subr.mxu0 %v1068
  %1887 = vmatpush1.msra.mxu0 %v1067
  %1888 = vmatprep.subr.mxu0 %v1072
  %1889 = vmatpush1.msra.mxu0 %v1071
  %1890 = vmatprep.subr.mxu0 %v1076
  %1891 = vmatpush1.msra.mxu0 %v1075
  %1892 = vmatprep.subr.mxu0 %v1080
  %1893 = vmatpush1.msra.mxu0 %v1079
  %1894 = vmatprep.subr.mxu0 %v1084
  %1895 = vmatpush1.msra.mxu0 %v1083
  %1896 = vmatprep.subr.mxu0 %v1088
  %1897 = vmatpush1.msra.mxu0 %v1087
  %1898 = vmatprep.subr.mxu0 %v1092
  %1899 = vmatpush1.msra.mxu0 %v1091
  %1900 = vmatprep.subr.mxu0 %v1096
  %1901 = vmatpush1.msra.mxu0 %v1095
  %1902 = vmatprep.subr.mxu0 %v1100
  %1903 = vmatpush1.msra.mxu0 %v1099
  %1904 = vmatprep.subr.mxu0 %v1104
  %1905 = vmatpush1.msra.mxu0 %v1103
  %1906 = vmatprep.subr.mxu0 %v1108
  %1907 = vmatpush1.msra.mxu0 %v1107
  %1908 = vmatprep.subr.mxu0 %v1112
  %1909 = vmatpush1.msra.mxu0 %v1111
  %1910 = vmatprep.subr.mxu0 %v1116
  %1911 = vmatpush1.msra.mxu0 %v1115
  %1912 = vmatprep.subr.mxu0 %v1120
  %1913 = vmatpush1.msra.mxu0 %v1119
  %1914 = vmatprep.mubr.f32.mxu0 %v1742
  %1915 = vmatmul.mubr.f32.gmra.mrb[0].mxu0 %v1741
  %v1916 = vpop.f32.mrb[0].mxu0
  %v1917 = vadd.f32 0.0, %v1916
  %v1918 = vpop.f32.mrb[0].mxu0
  %v1919 = vadd.f32 0.0, %v1918
  %1920 = vdwg.mxu0
  %v1921 = vadd.f32 %v1775, %v1846
  %v1922 = vadd.f32 %v1776, %v1848
  %v1923 = vadd.f32 %v1777, %v1917
  %v1924 = vadd.f32 %v1778, %v1919
  %v1925 = vxor.u32 %v1921, 2147483648
  %v1926 = vmul.f32 %v1925, 1.442695
  %v1927 = vpow.pop %v1926
  %v1928 = vadd.f32 %v1927, 1.0
  %v1929 = vrcp.pop %v1928
  %v1930 = vmul.f32 1.0, %v1929
  %v1931 = vxor.u32 %v1922, 2147483648
  %v1932 = vmul.f32 %v1931, 1.442695
  %v1933 = vpow.pop %v1932
  %v1934 = vadd.f32 %v1933, 1.0
  %v1935 = vrcp.pop %v1934
  %v1936 = vmul.f32 1.0, %v1935
  %v1937 = vtanh.pop %v1923
  %v1938 = vxor.u32 %v1924, 2147483648
  %v1939 = vmul.f32 %v1938, 1.442695
  %v1940 = vpow.pop %v1939
  %v1941 = vadd.f32 %v1940, 1.0
  %v1942 = vrcp.pop %v1941
  %v1943 = vmul.f32 1.0, %v1942
  %v1944 = vmul.f32 %v1936, %v1733
  %v1945 = vmul.f32 %v1930, %v1937
  %v1946 = vadd.f32 %v1944, %v1945
  %v1947 = vtanh.pop %v1946
  %v1948 = vmul.f32 %v1943, %v1947
  %v1950 = vrot.slane %v1948, 2
  %1952 = vst [vmem:[%s4] sm:$0xc0] %v1950
  %1953 = vst [vmem:[%s4 + $0x18] sm:$0x3] %v1950
  %v1954 = vmul.f32 %v1948, %v1125
  %v1955 = vmul.f32 %v1948, %v1126
  %v1956 = vld [vmem:[#allocation2 + $0x40] sm:$0x3]
  %v1957 = vld [vmem:[#allocation2 + $0x48] sm:$0x3]
  %v1958 = vld [vmem:[#allocation2 + $0x50] sm:$0x3]
  %v1959 = vld [vmem:[#allocation2 + $0x58] sm:$0x3]
  %v1960 = vld [vmem:[#allocation2 + $0x20] sm:$0xc0]
  %v1961 = vld [vmem:[#allocation2 + $0x28] sm:$0xc0]
  %v1962 = vld [vmem:[#allocation2 + $0x30] sm:$0xc0]
  %v1963 = vld [vmem:[#allocation2 + $0x38] sm:$0xc0]
  %v1968 = vrot.slane %v1960, 4
  %v1969 = vrot.slane %v1961, 4
  %v1970 = vrot.slane %v1962, 4
  %v1971 = vrot.slane %v1963, 4
  %v1976 = vsel %vm1147, %v1956, %v1968
  %v1977 = vsel %vm1147, %v1957, %v1969
  %v1978 = vsel %vm1147, %v1958, %v1970
  %v1979 = vsel %vm1147, %v1959, %v1971
  %1980 = vmatprep.subr.mxu0 %v994
  %1981 = vmatpush1.msra.mxu0 %v993
  %1982 = vmatprep.subr.mxu0 %v998
  %1983 = vmatpush1.msra.mxu0 %v997
  %1984 = vmatprep.subr.mxu0 %v1002
  %1985 = vmatpush1.msra.mxu0 %v1001
  %1986 = vmatprep.subr.mxu0 %v1006
  %1987 = vmatpush1.msra.mxu0 %v1005
  %1988 = vmatprep.subr.mxu0 %v1010
  %1989 = vmatpush1.msra.mxu0 %v1009
  %1990 = vmatprep.subr.mxu0 %v1014
  %1991 = vmatpush1.msra.mxu0 %v1013
  %1992 = vmatprep.subr.mxu0 %v1018
  %1993 = vmatpush1.msra.mxu0 %v1017
  %1994 = vmatprep.subr.mxu0 %v1022
  %1995 = vmatpush1.msra.mxu0 %v1021
  %1996 = vmatprep.subr.mxu0 %v1026
  %1997 = vmatpush1.msra.mxu0 %v1025
  %1998 = vmatprep.subr.mxu0 %v1030
  %1999 = vmatpush1.msra.mxu0 %v1029
  %2000 = vmatprep.subr.mxu0 %v1034
  %2001 = vmatpush1.msra.mxu0 %v1033
  %2002 = vmatprep.subr.mxu0 %v1038
  %2003 = vmatpush1.msra.mxu0 %v1037
  %2004 = vmatprep.subr.mxu0 %v1042
  %2005 = vmatpush1.msra.mxu0 %v1041
  %2006 = vmatprep.subr.mxu0 %v1046
  %2007 = vmatpush1.msra.mxu0 %v1045
  %2008 = vmatprep.subr.mxu0 %v1050
  %2009 = vmatpush1.msra.mxu0 %v1049
  %2010 = vmatprep.subr.mxu0 %v1054
  %2011 = vmatpush1.msra.mxu0 %v1053
  %2012 = vmatprep.subr.mxu0 %v1058
  %2013 = vmatpush1.msra.mxu0 %v1057
  %2014 = vmatprep.subr.mxu0 %v1062
  %2015 = vmatpush1.msra.mxu0 %v1061
  %2016 = vmatprep.subr.mxu0 %v1066
  %2017 = vmatpush1.msra.mxu0 %v1065
  %2018 = vmatprep.subr.mxu0 %v1070
  %2019 = vmatpush1.msra.mxu0 %v1069
  %2020 = vmatprep.subr.mxu0 %v1074
  %2021 = vmatpush1.msra.mxu0 %v1073
  %2022 = vmatprep.subr.mxu0 %v1078
  %2023 = vmatpush1.msra.mxu0 %v1077
  %2024 = vmatprep.subr.mxu0 %v1082
  %2025 = vmatpush1.msra.mxu0 %v1081
  %2026 = vmatprep.subr.mxu0 %v1086
  %2027 = vmatpush1.msra.mxu0 %v1085
  %2028 = vmatprep.subr.mxu0 %v1090
  %2029 = vmatpush1.msra.mxu0 %v1089
  %2030 = vmatprep.subr.mxu0 %v1094
  %2031 = vmatpush1.msra.mxu0 %v1093
  %2032 = vmatprep.subr.mxu0 %v1098
  %2033 = vmatpush1.msra.mxu0 %v1097
  %2034 = vmatprep.subr.mxu0 %v1102
  %2035 = vmatpush1.msra.mxu0 %v1101
  %2036 = vmatprep.subr.mxu0 %v1106
  %2037 = vmatpush1.msra.mxu0 %v1105
  %2038 = vmatprep.subr.mxu0 %v1110
  %2039 = vmatpush1.msra.mxu0 %v1109
  %2040 = vmatprep.subr.mxu0 %v1114
  %2041 = vmatpush1.msra.mxu0 %v1113
  %2042 = vmatprep.subr.mxu0 %v1118
  %2043 = vmatpush1.msra.mxu0 %v1117
  %2044 = vmatprep.mubr.f32.mxu0 %v1955
  %2045 = vmatmul.mubr.f32.gmra.mrb[0].mxu0 %v1954
  %v2046 = vpop.f32.mrb[0].mxu0
  %v2047 = vadd.f32 0.0, %v2046
  %v2048 = vpop.f32.mrb[0].mxu0
  %v2049 = vadd.f32 0.0, %v2048
  %2050 = vdwg.mxu0
  %2051 = vmatprep.subr.mxu0 %v996
  %2052 = vmatpush1.msra.mxu0 %v995
  %2053 = vmatprep.subr.mxu0 %v1000
  %2054 = vmatpush1.msra.mxu0 %v999
  %2055 = vmatprep.subr.mxu0 %v1004
  %2056 = vmatpush1.msra.mxu0 %v1003
  %2057 = vmatprep.subr.mxu0 %v1008
  %2058 = vmatpush1.msra.mxu0 %v1007
  %2059 = vmatprep.subr.mxu0 %v1012
  %2060 = vmatpush1.msra.mxu0 %v1011
  %2061 = vmatprep.subr.mxu0 %v1016
  %2062 = vmatpush1.msra.mxu0 %v1015
  %2063 = vmatprep.subr.mxu0 %v1020
  %2064 = vmatpush1.msra.mxu0 %v1019
  %2065 = vmatprep.subr.mxu0 %v1024
  %2066 = vmatpush1.msra.mxu0 %v1023
  %2067 = vmatprep.subr.mxu0 %v1028
  %2068 = vmatpush1.msra.mxu0 %v1027
  %2069 = vmatprep.subr.mxu0 %v1032
  %2070 = vmatpush1.msra.mxu0 %v1031
  %2071 = vmatprep.subr.mxu0 %v1036
  %2072 = vmatpush1.msra.mxu0 %v1035
  %2073 = vmatprep.subr.mxu0 %v1040
  %2074 = vmatpush1.msra.mxu0 %v1039
  %2075 = vmatprep.subr.mxu0 %v1044
  %2076 = vmatpush1.msra.mxu0 %v1043
  %2077 = vmatprep.subr.mxu0 %v1048
  %2078 = vmatpush1.msra.mxu0 %v1047
  %2079 = vmatprep.subr.mxu0 %v1052
  %2080 = vmatpush1.msra.mxu0 %v1051
  %2081 = vmatprep.subr.mxu0 %v1056
  %2082 = vmatpush1.msra.mxu0 %v1055
  %2083 = vmatprep.subr.mxu0 %v1060
  %2084 = vmatpush1.msra.mxu0 %v1059
  %2085 = vmatprep.subr.mxu0 %v1064
  %2086 = vmatpush1.msra.mxu0 %v1063
  %2087 = vmatprep.subr.mxu0 %v1068
  %2088 = vmatpush1.msra.mxu0 %v1067
  %2089 = vmatprep.subr.mxu0 %v1072
  %2090 = vmatpush1.msra.mxu0 %v1071
  %2091 = vmatprep.subr.mxu0 %v1076
  %2092 = vmatpush1.msra.mxu0 %v1075
  %2093 = vmatprep.subr.mxu0 %v1080
  %2094 = vmatpush1.msra.mxu0 %v1079
  %2095 = vmatprep.subr.mxu0 %v1084
  %2096 = vmatpush1.msra.mxu0 %v1083
  %2097 = vmatprep.subr.mxu0 %v1088
  %2098 = vmatpush1.msra.mxu0 %v1087
  %2099 = vmatprep.subr.mxu0 %v1092
  %2100 = vmatpush1.msra.mxu0 %v1091
  %2101 = vmatprep.subr.mxu0 %v1096
  %2102 = vmatpush1.msra.mxu0 %v1095
  %2103 = vmatprep.subr.mxu0 %v1100
  %2104 = vmatpush1.msra.mxu0 %v1099
  %2105 = vmatprep.subr.mxu0 %v1104
  %2106 = vmatpush1.msra.mxu0 %v1103
  %2107 = vmatprep.subr.mxu0 %v1108
  %2108 = vmatpush1.msra.mxu0 %v1107
  %2109 = vmatprep.subr.mxu0 %v1112
  %2110 = vmatpush1.msra.mxu0 %v1111
  %2111 = vmatprep.subr.mxu0 %v1116
  %2112 = vmatpush1.msra.mxu0 %v1115
  %2113 = vmatprep.subr.mxu0 %v1120
  %2114 = vmatpush1.msra.mxu0 %v1119
  %2115 = vmatprep.mubr.f32.mxu0 %v1955
  %2116 = vmatmul.mubr.f32.gmra.mrb[0].mxu0 %v1954
  %v2117 = vpop.f32.mrb[0].mxu0
  %v2118 = vadd.f32 0.0, %v2117
  %v2119 = vpop.f32.mrb[0].mxu0
  %v2120 = vadd.f32 0.0, %v2119
  %2121 = vdwg.mxu0
  %v2122 = vadd.f32 %v1976, %v2047
  %v2123 = vadd.f32 %v1977, %v2049
  %v2124 = vadd.f32 %v1978, %v2118
  %v2125 = vadd.f32 %v1979, %v2120
  %v2126 = vxor.u32 %v2122, 2147483648
  %v2127 = vmul.f32 %v2126, 1.442695
  %v2128 = vpow.pop %v2127
  %v2129 = vadd.f32 %v2128, 1.0
  %v2130 = vrcp.pop %v2129
  %v2131 = vmul.f32 1.0, %v2130
  %v2132 = vxor.u32 %v2123, 2147483648
  %v2133 = vmul.f32 %v2132, 1.442695
  %v2134 = vpow.pop %v2133
  %v2135 = vadd.f32 %v2134, 1.0
  %v2136 = vrcp.pop %v2135
  %v2137 = vmul.f32 1.0, %v2136
  %v2138 = vtanh.pop %v2124
  %v2139 = vxor.u32 %v2125, 2147483648
  %v2140 = vmul.f32 %v2139, 1.442695
  %v2141 = vpow.pop %v2140
  %v2142 = vadd.f32 %v2141, 1.0
  %v2143 = vrcp.pop %v2142
  %v2144 = vmul.f32 1.0, %v2143
  %v2145 = vmul.f32 %v2137, %v1946
  %v2146 = vmul.f32 %v2131, %v2138
  %v2147 = vadd.f32 %v2145, %v2146
  %v2148 = vtanh.pop %v2147
  %v2149 = vmul.f32 %v2144, %v2148
  %2150 = vst [vmem:[%s4 + $0x10] sm:$0x3] %v2149
  %v2152 = vrot.slane %v2149, 4
  %2154 = vst [vmem:[%s4 + $0x8] sm:$0xc0] %v2152
  %v2155 = vmul.f32 %v2149, %v1125
  %v2156 = vmul.f32 %v2149, %v1126
  %v2157 = vld [vmem:[#allocation2 + $0x40] sm:$0xc]
  %v2158 = vld [vmem:[#allocation2 + $0x48] sm:$0xc]
  %v2159 = vld [vmem:[#allocation2 + $0x50] sm:$0xc]
  %v2160 = vld [vmem:[#allocation2 + $0x58] sm:$0xc]
  %v2161 = vld [vmem:[#allocation2 + $0x20] sm:$0x30]
  %v2162 = vld [vmem:[#allocation2 + $0x28] sm:$0x30]
  %v2163 = vld [vmem:[#allocation2 + $0x30] sm:$0x30]
  %v2164 = vld [vmem:[#allocation2 + $0x38] sm:$0x30]
  %v2169 = vrot.slane %v2157, 2
  %v2170 = vrot.slane %v2158, 2
  %v2171 = vrot.slane %v2159, 2
  %v2172 = vrot.slane %v2160, 2
  %v2181 = vrot.slane %v2161, 2
  %v2182 = vrot.slane %v2162, 2
  %v2183 = vrot.slane %v2163, 2
  %v2184 = vrot.slane %v2164, 2
  %v2189 = vsel %vm1147, %v2169, %v2181
  %v2190 = vsel %vm1147, %v2170, %v2182
  %v2191 = vsel %vm1147, %v2171, %v2183
  %v2192 = vsel %vm1147, %v2172, %v2184
  %2193 = vmatprep.subr.mxu0 %v994
  %2194 = vmatpush1.msra.mxu0 %v993
  %2195 = vmatprep.subr.mxu0 %v998
  %2196 = vmatpush1.msra.mxu0 %v997
  %2197 = vmatprep.subr.mxu0 %v1002
  %2198 = vmatpush1.msra.mxu0 %v1001
  %2199 = vmatprep.subr.mxu0 %v1006
  %2200 = vmatpush1.msra.mxu0 %v1005
  %2201 = vmatprep.subr.mxu0 %v1010
  %2202 = vmatpush1.msra.mxu0 %v1009
  %2203 = vmatprep.subr.mxu0 %v1014
  %2204 = vmatpush1.msra.mxu0 %v1013
  %2205 = vmatprep.subr.mxu0 %v1018
  %2206 = vmatpush1.msra.mxu0 %v1017
  %2207 = vmatprep.subr.mxu0 %v1022
  %2208 = vmatpush1.msra.mxu0 %v1021
  %2209 = vmatprep.subr.mxu0 %v1026
  %2210 = vmatpush1.msra.mxu0 %v1025
  %2211 = vmatprep.subr.mxu0 %v1030
  %2212 = vmatpush1.msra.mxu0 %v1029
  %2213 = vmatprep.subr.mxu0 %v1034
  %2214 = vmatpush1.msra.mxu0 %v1033
  %2215 = vmatprep.subr.mxu0 %v1038
  %2216 = vmatpush1.msra.mxu0 %v1037
  %2217 = vmatprep.subr.mxu0 %v1042
  %2218 = vmatpush1.msra.mxu0 %v1041
  %2219 = vmatprep.subr.mxu0 %v1046
  %2220 = vmatpush1.msra.mxu0 %v1045
  %2221 = vmatprep.subr.mxu0 %v1050
  %2222 = vmatpush1.msra.mxu0 %v1049
  %2223 = vmatprep.subr.mxu0 %v1054
  %2224 = vmatpush1.msra.mxu0 %v1053
  %2225 = vmatprep.subr.mxu0 %v1058
  %2226 = vmatpush1.msra.mxu0 %v1057
  %2227 = vmatprep.subr.mxu0 %v1062
  %2228 = vmatpush1.msra.mxu0 %v1061
  %2229 = vmatprep.subr.mxu0 %v1066
  %2230 = vmatpush1.msra.mxu0 %v1065
  %2231 = vmatprep.subr.mxu0 %v1070
  %2232 = vmatpush1.msra.mxu0 %v1069
  %2233 = vmatprep.subr.mxu0 %v1074
  %2234 = vmatpush1.msra.mxu0 %v1073
  %2235 = vmatprep.subr.mxu0 %v1078
  %2236 = vmatpush1.msra.mxu0 %v1077
  %2237 = vmatprep.subr.mxu0 %v1082
  %2238 = vmatpush1.msra.mxu0 %v1081
  %2239 = vmatprep.subr.mxu0 %v1086
  %2240 = vmatpush1.msra.mxu0 %v1085
  %2241 = vmatprep.subr.mxu0 %v1090
  %2242 = vmatpush1.msra.mxu0 %v1089
  %2243 = vmatprep.subr.mxu0 %v1094
  %2244 = vmatpush1.msra.mxu0 %v1093
  %2245 = vmatprep.subr.mxu0 %v1098
  %2246 = vmatpush1.msra.mxu0 %v1097
  %2247 = vmatprep.subr.mxu0 %v1102
  %2248 = vmatpush1.msra.mxu0 %v1101
  %2249 = vmatprep.subr.mxu0 %v1106
  %2250 = vmatpush1.msra.mxu0 %v1105
  %2251 = vmatprep.subr.mxu0 %v1110
  %2252 = vmatpush1.msra.mxu0 %v1109
  %2253 = vmatprep.subr.mxu0 %v1114
  %2254 = vmatpush1.msra.mxu0 %v1113
  %2255 = vmatprep.subr.mxu0 %v1118
  %2256 = vmatpush1.msra.mxu0 %v1117
  %2257 = vmatprep.mubr.f32.mxu0 %v2156
  %2258 = vmatmul.mubr.f32.gmra.mrb[0].mxu0 %v2155
  %v2259 = vpop.f32.mrb[0].mxu0
  %v2260 = vadd.f32 0.0, %v2259
  %v2261 = vpop.f32.mrb[0].mxu0
  %v2262 = vadd.f32 0.0, %v2261
  %2263 = vdwg.mxu0
  %2264 = vmatprep.subr.mxu0 %v996
  %2265 = vmatpush1.msra.mxu0 %v995
  %2266 = vmatprep.subr.mxu0 %v1000
  %2267 = vmatpush1.msra.mxu0 %v999
  %2268 = vmatprep.subr.mxu0 %v1004
  %2269 = vmatpush1.msra.mxu0 %v1003
  %2270 = vmatprep.subr.mxu0 %v1008
  %2271 = vmatpush1.msra.mxu0 %v1007
  %2272 = vmatprep.subr.mxu0 %v1012
  %2273 = vmatpush1.msra.mxu0 %v1011
  %2274 = vmatprep.subr.mxu0 %v1016
  %2275 = vmatpush1.msra.mxu0 %v1015
  %2276 = vmatprep.subr.mxu0 %v1020
  %2277 = vmatpush1.msra.mxu0 %v1019
  %2278 = vmatprep.subr.mxu0 %v1024
  %2279 = vmatpush1.msra.mxu0 %v1023
  %2280 = vmatprep.subr.mxu0 %v1028
  %2281 = vmatpush1.msra.mxu0 %v1027
  %2282 = vmatprep.subr.mxu0 %v1032
  %2283 = vmatpush1.msra.mxu0 %v1031
  %2284 = vmatprep.subr.mxu0 %v1036
  %2285 = vmatpush1.msra.mxu0 %v1035
  %2286 = vmatprep.subr.mxu0 %v1040
  %2287 = vmatpush1.msra.mxu0 %v1039
  %2288 = vmatprep.subr.mxu0 %v1044
  %2289 = vmatpush1.msra.mxu0 %v1043
  %2290 = vmatprep.subr.mxu0 %v1048
  %2291 = vmatpush1.msra.mxu0 %v1047
  %2292 = vmatprep.subr.mxu0 %v1052
  %2293 = vmatpush1.msra.mxu0 %v1051
  %2294 = vmatprep.subr.mxu0 %v1056
  %2295 = vmatpush1.msra.mxu0 %v1055
  %2296 = vmatprep.subr.mxu0 %v1060
  %2297 = vmatpush1.msra.mxu0 %v1059
  %2298 = vmatprep.subr.mxu0 %v1064
  %2299 = vmatpush1.msra.mxu0 %v1063
  %2300 = vmatprep.subr.mxu0 %v1068
  %2301 = vmatpush1.msra.mxu0 %v1067
  %2302 = vmatprep.subr.mxu0 %v1072
  %2303 = vmatpush1.msra.mxu0 %v1071
  %2304 = vmatprep.subr.mxu0 %v1076
  %2305 = vmatpush1.msra.mxu0 %v1075
  %2306 = vmatprep.subr.mxu0 %v1080
  %2307 = vmatpush1.msra.mxu0 %v1079
  %2308 = vmatprep.subr.mxu0 %v1084
  %2309 = vmatpush1.msra.mxu0 %v1083
  %2310 = vmatprep.subr.mxu0 %v1088
  %2311 = vmatpush1.msra.mxu0 %v1087
  %2312 = vmatprep.subr.mxu0 %v1092
  %2313 = vmatpush1.msra.mxu0 %v1091
  %2314 = vmatprep.subr.mxu0 %v1096
  %2315 = vmatpush1.msra.mxu0 %v1095
  %2316 = vmatprep.subr.mxu0 %v1100
  %2317 = vmatpush1.msra.mxu0 %v1099
  %2318 = vmatprep.subr.mxu0 %v1104
  %2319 = vmatpush1.msra.mxu0 %v1103
  %2320 = vmatprep.subr.mxu0 %v1108
  %2321 = vmatpush1.msra.mxu0 %v1107
  %2322 = vmatprep.subr.mxu0 %v1112
  %2323 = vmatpush1.msra.mxu0 %v1111
  %2324 = vmatprep.subr.mxu0 %v1116
  %2325 = vmatpush1.msra.mxu0 %v1115
  %2326 = vmatprep.subr.mxu0 %v1120
  %2327 = vmatpush1.msra.mxu0 %v1119
  %2328 = vmatprep.mubr.f32.mxu0 %v2156
  %2329 = vmatmul.mubr.f32.gmra.mrb[0].mxu0 %v2155
  %v2330 = vpop.f32.mrb[0].mxu0
  %v2331 = vadd.f32 0.0, %v2330
  %v2332 = vpop.f32.mrb[0].mxu0
  %v2333 = vadd.f32 0.0, %v2332
  %2334 = vdwg.mxu0
  %v2335 = vadd.f32 %v2189, %v2260
  %v2336 = vadd.f32 %v2190, %v2262
  %v2337 = vadd.f32 %v2191, %v2331
  %v2338 = vadd.f32 %v2192, %v2333
  %v2339 = vxor.u32 %v2335, 2147483648
  %v2340 = vmul.f32 %v2339, 1.442695
  %v2341 = vpow.pop %v2340
  %v2342 = vadd.f32 %v2341, 1.0
  %v2343 = vrcp.pop %v2342
  %v2344 = vmul.f32 1.0, %v2343
  %v2345 = vxor.u32 %v2336, 2147483648
  %v2346 = vmul.f32 %v2345, 1.442695
  %v2347 = vpow.pop %v2346
  %v2348 = vadd.f32 %v2347, 1.0
  %v2349 = vrcp.pop %v2348
  %v2350 = vmul.f32 1.0, %v2349
  %v2351 = vtanh.pop %v2337
  %v2352 = vxor.u32 %v2338, 2147483648
  %v2353 = vmul.f32 %v2352, 1.442695
  %v2354 = vpow.pop %v2353
  %v2355 = vadd.f32 %v2354, 1.0
  %v2356 = vrcp.pop %v2355
  %v2357 = vmul.f32 1.0, %v2356
  %v2358 = vmul.f32 %v2350, %v2147
  %v2359 = vmul.f32 %v2344, %v2351
  %v2360 = vadd.f32 %v2358, %v2359
  %v2361 = vtanh.pop %v2360
  %v2362 = vmul.f32 %v2357, %v2361
  %v2364 = vrot.slane %v2362, 6
  %2366 = vst [vmem:[%s4 + $0x10] sm:$0xc] %v2364
  %2367 = vst [vmem:[%s4 + $0x8] sm:$0x30] %v2364
  %v2368 = vmul.f32 %v2362, %v1125
  %v2369 = vmul.f32 %v2362, %v1126
  %v2370 = vld [vmem:[#allocation2 + $0x40] sm:$0x30]
  %v2371 = vld [vmem:[#allocation2 + $0x48] sm:$0x30]
  %v2372 = vld [vmem:[#allocation2 + $0x50] sm:$0x30]
  %v2373 = vld [vmem:[#allocation2 + $0x58] sm:$0x30]
  %v2374 = vld [vmem:[#allocation2 + $0x20] sm:$0xc]
  %v2375 = vld [vmem:[#allocation2 + $0x28] sm:$0xc]
  %v2376 = vld [vmem:[#allocation2 + $0x30] sm:$0xc]
  %v2377 = vld [vmem:[#allocation2 + $0x38] sm:$0xc]
  %v2382 = vrot.slane %v2370, 4
  %v2383 = vrot.slane %v2371, 4
  %v2384 = vrot.slane %v2372, 4
  %v2385 = vrot.slane %v2373, 4
  %v2390 = vsel %vm1147, %v2382, %v2374
  %v2391 = vsel %vm1147, %v2383, %v2375
  %v2392 = vsel %vm1147, %v2384, %v2376
  %v2393 = vsel %vm1147, %v2385, %v2377
  %2394 = vmatprep.subr.mxu0 %v994
  %2395 = vmatpush1.msra.mxu0 %v993
  %2396 = vmatprep.subr.mxu0 %v998
  %2397 = vmatpush1.msra.mxu0 %v997
  %2398 = vmatprep.subr.mxu0 %v1002
  %2399 = vmatpush1.msra.mxu0 %v1001
  %2400 = vmatprep.subr.mxu0 %v1006
  %2401 = vmatpush1.msra.mxu0 %v1005
  %2402 = vmatprep.subr.mxu0 %v1010
  %2403 = vmatpush1.msra.mxu0 %v1009
  %2404 = vmatprep.subr.mxu0 %v1014
  %2405 = vmatpush1.msra.mxu0 %v1013
  %2406 = vmatprep.subr.mxu0 %v1018
  %2407 = vmatpush1.msra.mxu0 %v1017
  %2408 = vmatprep.subr.mxu0 %v1022
  %2409 = vmatpush1.msra.mxu0 %v1021
  %2410 = vmatprep.subr.mxu0 %v1026
  %2411 = vmatpush1.msra.mxu0 %v1025
  %2412 = vmatprep.subr.mxu0 %v1030
  %2413 = vmatpush1.msra.mxu0 %v1029
  %2414 = vmatprep.subr.mxu0 %v1034
  %2415 = vmatpush1.msra.mxu0 %v1033
  %2416 = vmatprep.subr.mxu0 %v1038
  %2417 = vmatpush1.msra.mxu0 %v1037
  %2418 = vmatprep.subr.mxu0 %v1042
  %2419 = vmatpush1.msra.mxu0 %v1041
  %2420 = vmatprep.subr.mxu0 %v1046
  %2421 = vmatpush1.msra.mxu0 %v1045
  %2422 = vmatprep.subr.mxu0 %v1050
  %2423 = vmatpush1.msra.mxu0 %v1049
  %2424 = vmatprep.subr.mxu0 %v1054
  %2425 = vmatpush1.msra.mxu0 %v1053
  %2426 = vmatprep.subr.mxu0 %v1058
  %2427 = vmatpush1.msra.mxu0 %v1057
  %2428 = vmatprep.subr.mxu0 %v1062
  %2429 = vmatpush1.msra.mxu0 %v1061
  %2430 = vmatprep.subr.mxu0 %v1066
  %2431 = vmatpush1.msra.mxu0 %v1065
  %2432 = vmatprep.subr.mxu0 %v1070
  %2433 = vmatpush1.msra.mxu0 %v1069
  %2434 = vmatprep.subr.mxu0 %v1074
  %2435 = vmatpush1.msra.mxu0 %v1073
  %2436 = vmatprep.subr.mxu0 %v1078
  %2437 = vmatpush1.msra.mxu0 %v1077
  %2438 = vmatprep.subr.mxu0 %v1082
  %2439 = vmatpush1.msra.mxu0 %v1081
  %2440 = vmatprep.subr.mxu0 %v1086
  %2441 = vmatpush1.msra.mxu0 %v1085
  %2442 = vmatprep.subr.mxu0 %v1090
  %2443 = vmatpush1.msra.mxu0 %v1089
  %2444 = vmatprep.subr.mxu0 %v1094
  %2445 = vmatpush1.msra.mxu0 %v1093
  %2446 = vmatprep.subr.mxu0 %v1098
  %2447 = vmatpush1.msra.mxu0 %v1097
  %2448 = vmatprep.subr.mxu0 %v1102
  %2449 = vmatpush1.msra.mxu0 %v1101
  %2450 = vmatprep.subr.mxu0 %v1106
  %2451 = vmatpush1.msra.mxu0 %v1105
  %2452 = vmatprep.subr.mxu0 %v1110
  %2453 = vmatpush1.msra.mxu0 %v1109
  %2454 = vmatprep.subr.mxu0 %v1114
  %2455 = vmatpush1.msra.mxu0 %v1113
  %2456 = vmatprep.subr.mxu0 %v1118
  %2457 = vmatpush1.msra.mxu0 %v1117
  %2458 = vmatprep.mubr.f32.mxu0 %v2369
  %2459 = vmatmul.mubr.f32.gmra.mrb[0].mxu0 %v2368
  %v2460 = vpop.f32.mrb[0].mxu0
  %v2461 = vadd.f32 0.0, %v2460
  %v2462 = vpop.f32.mrb[0].mxu0
  %v2463 = vadd.f32 0.0, %v2462
  %2464 = vdwg.mxu0
  %2465 = vmatprep.subr.mxu0 %v996
  %2466 = vmatpush1.msra.mxu0 %v995
  %2467 = vmatprep.subr.mxu0 %v1000
  %2468 = vmatpush1.msra.mxu0 %v999
  %2469 = vmatprep.subr.mxu0 %v1004
  %2470 = vmatpush1.msra.mxu0 %v1003
  %2471 = vmatprep.subr.mxu0 %v1008
  %2472 = vmatpush1.msra.mxu0 %v1007
  %2473 = vmatprep.subr.mxu0 %v1012
  %2474 = vmatpush1.msra.mxu0 %v1011
  %2475 = vmatprep.subr.mxu0 %v1016
  %2476 = vmatpush1.msra.mxu0 %v1015
  %2477 = vmatprep.subr.mxu0 %v1020
  %2478 = vmatpush1.msra.mxu0 %v1019
  %2479 = vmatprep.subr.mxu0 %v1024
  %2480 = vmatpush1.msra.mxu0 %v1023
  %2481 = vmatprep.subr.mxu0 %v1028
  %2482 = vmatpush1.msra.mxu0 %v1027
  %2483 = vmatprep.subr.mxu0 %v1032
  %2484 = vmatpush1.msra.mxu0 %v1031
  %2485 = vmatprep.subr.mxu0 %v1036
  %2486 = vmatpush1.msra.mxu0 %v1035
  %2487 = vmatprep.subr.mxu0 %v1040
  %2488 = vmatpush1.msra.mxu0 %v1039
  %2489 = vmatprep.subr.mxu0 %v1044
  %2490 = vmatpush1.msra.mxu0 %v1043
  %2491 = vmatprep.subr.mxu0 %v1048
  %2492 = vmatpush1.msra.mxu0 %v1047
  %2493 = vmatprep.subr.mxu0 %v1052
  %2494 = vmatpush1.msra.mxu0 %v1051
  %2495 = vmatprep.subr.mxu0 %v1056
  %2496 = vmatpush1.msra.mxu0 %v1055
  %2497 = vmatprep.subr.mxu0 %v1060
  %2498 = vmatpush1.msra.mxu0 %v1059
  %2499 = vmatprep.subr.mxu0 %v1064
  %2500 = vmatpush1.msra.mxu0 %v1063
  %2501 = vmatprep.subr.mxu0 %v1068
  %2502 = vmatpush1.msra.mxu0 %v1067
  %2503 = vmatprep.subr.mxu0 %v1072
  %2504 = vmatpush1.msra.mxu0 %v1071
  %2505 = vmatprep.subr.mxu0 %v1076
  %2506 = vmatpush1.msra.mxu0 %v1075
  %2507 = vmatprep.subr.mxu0 %v1080
  %2508 = vmatpush1.msra.mxu0 %v1079
  %2509 = vmatprep.subr.mxu0 %v1084
  %2510 = vmatpush1.msra.mxu0 %v1083
  %2511 = vmatprep.subr.mxu0 %v1088
  %2512 = vmatpush1.msra.mxu0 %v1087
  %2513 = vmatprep.subr.mxu0 %v1092
  %2514 = vmatpush1.msra.mxu0 %v1091
  %2515 = vmatprep.subr.mxu0 %v1096
  %2516 = vmatpush1.msra.mxu0 %v1095
  %2517 = vmatprep.subr.mxu0 %v1100
  %2518 = vmatpush1.msra.mxu0 %v1099
  %2519 = vmatprep.subr.mxu0 %v1104
  %2520 = vmatpush1.msra.mxu0 %v1103
  %2521 = vmatprep.subr.mxu0 %v1108
  %2522 = vmatpush1.msra.mxu0 %v1107
  %2523 = vmatprep.subr.mxu0 %v1112
  %2524 = vmatpush1.msra.mxu0 %v1111
  %2525 = vmatprep.subr.mxu0 %v1116
  %2526 = vmatpush1.msra.mxu0 %v1115
  %2527 = vmatprep.subr.mxu0 %v1120
  %2528 = vmatpush1.msra.mxu0 %v1119
  %2529 = vmatprep.mubr.f32.mxu0 %v2369
  %2530 = vmatmul.mubr.f32.gmra.mrb[0].mxu0 %v2368
  %v2531 = vpop.f32.mrb[0].mxu0
  %v2532 = vadd.f32 0.0, %v2531
  %v2533 = vpop.f32.mrb[0].mxu0
  %v2534 = vadd.f32 0.0, %v2533
  %2535 = vdwg.mxu0
  %v2536 = vadd.f32 %v2390, %v2461
  %v2537 = vadd.f32 %v2391, %v2463
  %v2538 = vadd.f32 %v2392, %v2532
  %v2539 = vadd.f32 %v2393, %v2534
  %v2540 = vxor.u32 %v2536, 2147483648
  %v2541 = vmul.f32 %v2540, 1.442695
  %v2542 = vpow.pop %v2541
  %v2543 = vadd.f32 %v2542, 1.0
  %v2544 = vrcp.pop %v2543
  %v2545 = vmul.f32 1.0, %v2544
  %v2546 = vxor.u32 %v2537, 2147483648
  %v2547 = vmul.f32 %v2546, 1.442695
  %v2548 = vpow.pop %v2547
  %v2549 = vadd.f32 %v2548, 1.0
  %v2550 = vrcp.pop %v2549
  %v2551 = vmul.f32 1.0, %v2550
  %v2552 = vtanh.pop %v2538
  %v2553 = vxor.u32 %v2539, 2147483648
  %v2554 = vmul.f32 %v2553, 1.442695
  %v2555 = vpow.pop %v2554
  %v2556 = vadd.f32 %v2555, 1.0
  %v2557 = vrcp.pop %v2556
  %v2558 = vmul.f32 1.0, %v2557
  %v2559 = vmul.f32 %v2551, %v2360
  %v2560 = vmul.f32 %v2545, %v2552
  %v2561 = vadd.f32 %v2559, %v2560
  %v2562 = vtanh.pop %v2561
  %v2563 = vmul.f32 %v2558, %v2562
  %v2565 = vrot.slane %v2563, 4
  %2567 = vst [vmem:[%s4 + $0x10] sm:$0x30] %v2565
  %2568 = vst [vmem:[%s4 + $0x8] sm:$0xc] %v2563
  %v2569 = vmul.f32 %v2563, %v1125
  %v2570 = vmul.f32 %v2563, %v1126
  %v2571 = vld [vmem:[#allocation2 + $0x40] sm:$0xc0]
  %v2572 = vld [vmem:[#allocation2 + $0x48] sm:$0xc0]
  %v2573 = vld [vmem:[#allocation2 + $0x50] sm:$0xc0]
  %v2574 = vld [vmem:[#allocation2 + $0x58] sm:$0xc0]
  %v2575 = vld [vmem:[#allocation2 + $0x20] sm:$0x3]
  %v2576 = vld [vmem:[#allocation2 + $0x28] sm:$0x3]
  %v2577 = vld [vmem:[#allocation2 + $0x30] sm:$0x3]
  %v2578 = vld [vmem:[#allocation2 + $0x38] sm:$0x3]
  %v2583 = vrot.slane %v2571, 6
  %v2584 = vrot.slane %v2572, 6
  %v2585 = vrot.slane %v2573, 6
  %v2586 = vrot.slane %v2574, 6
  %v2595 = vrot.slane %v2575, 6
  %v2596 = vrot.slane %v2576, 6
  %v2597 = vrot.slane %v2577, 6
  %v2598 = vrot.slane %v2578, 6
  %v2603 = vsel %vm1147, %v2583, %v2595
  %v2604 = vsel %vm1147, %v2584, %v2596
  %v2605 = vsel %vm1147, %v2585, %v2597
  %v2606 = vsel %vm1147, %v2586, %v2598
  %2607 = vmatprep.subr.mxu0 %v994
  %2608 = vmatpush1.msra.mxu0 %v993
  %2609 = vmatprep.subr.mxu0 %v998
  %2610 = vmatpush1.msra.mxu0 %v997
  %2611 = vmatprep.subr.mxu0 %v1002
  %2612 = vmatpush1.msra.mxu0 %v1001
  %2613 = vmatprep.subr.mxu0 %v1006
  %2614 = vmatpush1.msra.mxu0 %v1005
  %2615 = vmatprep.subr.mxu0 %v1010
  %2616 = vmatpush1.msra.mxu0 %v1009
  %2617 = vmatprep.subr.mxu0 %v1014
  %2618 = vmatpush1.msra.mxu0 %v1013
  %2619 = vmatprep.subr.mxu0 %v1018
  %2620 = vmatpush1.msra.mxu0 %v1017
  %2621 = vmatprep.subr.mxu0 %v1022
  %2622 = vmatpush1.msra.mxu0 %v1021
  %2623 = vmatprep.subr.mxu0 %v1026
  %2624 = vmatpush1.msra.mxu0 %v1025
  %2625 = vmatprep.subr.mxu0 %v1030
  %2626 = vmatpush1.msra.mxu0 %v1029
  %2627 = vmatprep.subr.mxu0 %v1034
  %2628 = vmatpush1.msra.mxu0 %v1033
  %2629 = vmatprep.subr.mxu0 %v1038
  %2630 = vmatpush1.msra.mxu0 %v1037
  %2631 = vmatprep.subr.mxu0 %v1042
  %2632 = vmatpush1.msra.mxu0 %v1041
  %2633 = vmatprep.subr.mxu0 %v1046
  %2634 = vmatpush1.msra.mxu0 %v1045
  %2635 = vmatprep.subr.mxu0 %v1050
  %2636 = vmatpush1.msra.mxu0 %v1049
  %2637 = vmatprep.subr.mxu0 %v1054
  %2638 = vmatpush1.msra.mxu0 %v1053
  %2639 = vmatprep.subr.mxu0 %v1058
  %2640 = vmatpush1.msra.mxu0 %v1057
  %2641 = vmatprep.subr.mxu0 %v1062
  %2642 = vmatpush1.msra.mxu0 %v1061
  %2643 = vmatprep.subr.mxu0 %v1066
  %2644 = vmatpush1.msra.mxu0 %v1065
  %2645 = vmatprep.subr.mxu0 %v1070
  %2646 = vmatpush1.msra.mxu0 %v1069
  %2647 = vmatprep.subr.mxu0 %v1074
  %2648 = vmatpush1.msra.mxu0 %v1073
  %2649 = vmatprep.subr.mxu0 %v1078
  %2650 = vmatpush1.msra.mxu0 %v1077
  %2651 = vmatprep.subr.mxu0 %v1082
  %2652 = vmatpush1.msra.mxu0 %v1081
  %2653 = vmatprep.subr.mxu0 %v1086
  %2654 = vmatpush1.msra.mxu0 %v1085
  %2655 = vmatprep.subr.mxu0 %v1090
  %2656 = vmatpush1.msra.mxu0 %v1089
  %2657 = vmatprep.subr.mxu0 %v1094
  %2658 = vmatpush1.msra.mxu0 %v1093
  %2659 = vmatprep.subr.mxu0 %v1098
  %2660 = vmatpush1.msra.mxu0 %v1097
  %2661 = vmatprep.subr.mxu0 %v1102
  %2662 = vmatpush1.msra.mxu0 %v1101
  %2663 = vmatprep.subr.mxu0 %v1106
  %2664 = vmatpush1.msra.mxu0 %v1105
  %2665 = vmatprep.subr.mxu0 %v1110
  %2666 = vmatpush1.msra.mxu0 %v1109
  %2667 = vmatprep.subr.mxu0 %v1114
  %2668 = vmatpush1.msra.mxu0 %v1113
  %2669 = vmatprep.subr.mxu0 %v1118
  %2670 = vmatpush1.msra.mxu0 %v1117
  %2671 = vmatprep.mubr.f32.mxu0 %v2570
  %2672 = vmatmul.mubr.f32.gmra.mrb[0].mxu0 %v2569
  %v2673 = vpop.f32.mrb[0].mxu0
  %v2674 = vadd.f32 0.0, %v2673
  %v2675 = vpop.f32.mrb[0].mxu0
  %v2676 = vadd.f32 0.0, %v2675
  %2677 = vdwg.mxu0
  %2678 = vmatprep.subr.mxu0 %v996
  %2679 = vmatpush1.msra.mxu0 %v995
  %2680 = vmatprep.subr.mxu0 %v1000
  %2681 = vmatpush1.msra.mxu0 %v999
  %2682 = vmatprep.subr.mxu0 %v1004
  %2683 = vmatpush1.msra.mxu0 %v1003
  %2684 = vmatprep.subr.mxu0 %v1008
  %2685 = vmatpush1.msra.mxu0 %v1007
  %2686 = vmatprep.subr.mxu0 %v1012
  %2687 = vmatpush1.msra.mxu0 %v1011
  %2688 = vmatprep.subr.mxu0 %v1016
  %2689 = vmatpush1.msra.mxu0 %v1015
  %2690 = vmatprep.subr.mxu0 %v1020
  %2691 = vmatpush1.msra.mxu0 %v1019
  %2692 = vmatprep.subr.mxu0 %v1024
  %2693 = vmatpush1.msra.mxu0 %v1023
  %2694 = vmatprep.subr.mxu0 %v1028
  %2695 = vmatpush1.msra.mxu0 %v1027
  %2696 = vmatprep.subr.mxu0 %v1032
  %2697 = vmatpush1.msra.mxu0 %v1031
  %2698 = vmatprep.subr.mxu0 %v1036
  %2699 = vmatpush1.msra.mxu0 %v1035
  %2700 = vmatprep.subr.mxu0 %v1040
  %2701 = vmatpush1.msra.mxu0 %v1039
  %2702 = vmatprep.subr.mxu0 %v1044
  %2703 = vmatpush1.msra.mxu0 %v1043
  %2704 = vmatprep.subr.mxu0 %v1048
  %2705 = vmatpush1.msra.mxu0 %v1047
  %2706 = vmatprep.subr.mxu0 %v1052
  %2707 = vmatpush1.msra.mxu0 %v1051
  %2708 = vmatprep.subr.mxu0 %v1056
  %2709 = vmatpush1.msra.mxu0 %v1055
  %2710 = vmatprep.subr.mxu0 %v1060
  %2711 = vmatpush1.msra.mxu0 %v1059
  %2712 = vmatprep.subr.mxu0 %v1064
  %2713 = vmatpush1.msra.mxu0 %v1063
  %2714 = vmatprep.subr.mxu0 %v1068
  %2715 = vmatpush1.msra.mxu0 %v1067
  %2716 = vmatprep.subr.mxu0 %v1072
  %2717 = vmatpush1.msra.mxu0 %v1071
  %2718 = vmatprep.subr.mxu0 %v1076
  %2719 = vmatpush1.msra.mxu0 %v1075
  %2720 = vmatprep.subr.mxu0 %v1080
  %2721 = vmatpush1.msra.mxu0 %v1079
  %2722 = vmatprep.subr.mxu0 %v1084
  %2723 = vmatpush1.msra.mxu0 %v1083
  %2724 = vmatprep.subr.mxu0 %v1088
  %2725 = vmatpush1.msra.mxu0 %v1087
  %2726 = vmatprep.subr.mxu0 %v1092
  %2727 = vmatpush1.msra.mxu0 %v1091
  %2728 = vmatprep.subr.mxu0 %v1096
  %2729 = vmatpush1.msra.mxu0 %v1095
  %2730 = vmatprep.subr.mxu0 %v1100
  %2731 = vmatpush1.msra.mxu0 %v1099
  %2732 = vmatprep.subr.mxu0 %v1104
  %2733 = vmatpush1.msra.mxu0 %v1103
  %2734 = vmatprep.subr.mxu0 %v1108
  %2735 = vmatpush1.msra.mxu0 %v1107
  %2736 = vmatprep.subr.mxu0 %v1112
  %2737 = vmatpush1.msra.mxu0 %v1111
  %2738 = vmatprep.subr.mxu0 %v1116
  %2739 = vmatpush1.msra.mxu0 %v1115
  %2740 = vmatprep.subr.mxu0 %v1120
  %2741 = vmatpush1.msra.mxu0 %v1119
  %2742 = vmatprep.mubr.f32.mxu0 %v2570
  %2743 = vmatmul.mubr.f32.gmra.mrb[0].mxu0 %v2569
  %v2744 = vpop.f32.mrb[0].mxu0
  %v2745 = vadd.f32 0.0, %v2744
  %v2746 = vpop.f32.mrb[0].mxu0
  %v2747 = vadd.f32 0.0, %v2746
  %2748 = vdwg.mxu0
  %v2749 = vadd.f32 %v2603, %v2674
  %v2750 = vadd.f32 %v2604, %v2676
  %v2751 = vadd.f32 %v2605, %v2745
  %v2752 = vadd.f32 %v2606, %v2747
  %v2753 = vxor.u32 %v2749, 2147483648
  %v2754 = vmul.f32 %v2753, 1.442695
  %v2755 = vpow.pop %v2754
  %v2756 = vadd.f32 %v2755, 1.0
  %v2757 = vrcp.pop %v2756
  %v2758 = vmul.f32 1.0, %v2757
  %v2759 = vxor.u32 %v2750, 2147483648
  %v2760 = vmul.f32 %v2759, 1.442695
  %v2761 = vpow.pop %v2760
  %v2762 = vadd.f32 %v2761, 1.0
  %v2763 = vrcp.pop %v2762
  %v2764 = vmul.f32 1.0, %v2763
  %v2765 = vtanh.pop %v2751
  %v2766 = vxor.u32 %v2752, 2147483648
  %v2767 = vmul.f32 %v2766, 1.442695
  %v2768 = vpow.pop %v2767
  %v2769 = vadd.f32 %v2768, 1.0
  %v2770 = vrcp.pop %v2769
  %v2771 = vmul.f32 1.0, %v2770
  %v2772 = vmul.f32 %v2764, %v2561
  %v2773 = vmul.f32 %v2758, %v2765
  %v2774 = vadd.f32 %v2772, %v2773
  %v2775 = vtanh.pop %v2774
  %v2776 = vmul.f32 %v2771, %v2775
  %v2778 = vrot.slane %v2776, 2
  %2780 = vst [vmem:[%s4 + $0x10] sm:$0xc0] %v2778
  %2781 = vst [vmem:[%s4 + $0x8] sm:$0x3] %v2778
  // Predicated region
  $region18: #{spec_metric_predictor.5} parent=0 // pred_check
    _
  $region19: #{spec_metric_predictor.5} parent=0 // pred_check_branch
    %2783 = sbr.rel (0) target = $region21
  $region20: #{spec_metric_predictor.5} parent=0 // pred_region
    _
  $region21: #{spec_metric_predictor.5} parent=0 // pred_fallthru
    _
  // Predicated region
  $region22: #{spec_metric_predictor.5} parent=0 // pred_check
    _
  $region23: #{spec_metric_predictor.5} parent=0 // pred_check_branch
    %2785 = sbr.rel (0) target = $region25
  $region24: #{spec_metric_predictor.5} parent=0 // pred_region
    _
  $region25: #{spec_metric_predictor.5} parent=0 // pred_fallthru
    _

// kernel: spec_metric_predictor.7
$region0: #{spec_metric_predictor.7}
  #allocation0 [shape = 'u32[]', space=smem, size = 0x4, offset = 0x4, fixed_abs, tag = 'smem constant byte address 0x4 - core index']
  #allocation1 [shape = 'u32[144,128]{1,0:T(1,128)}', space=vmem, size = 0x12000, scoped, tag = 'internal scratch']
  #allocation2 [shape = 'f32[1,1]{1,0:T(1,128)S(1)}', space=vmem, size = 0x200, scoped, tag = 'scoped memory for spec_metric_predictor.7']
  #allocation3 [shape = 'f32[1,1]{1,0:T(1,128)S(1)}', space=vmem, size = 0x200, scoped, tag = 'scoped memory for spec_metric_predictor.7']
  %s0 = inlined_call_operand.vmem [shape: f32[8,512], index: 0, kind: input, shape index: {}]
  %s1 = inlined_call_operand.vmem [shape: f32[256,512], index: 1, kind: input, shape index: {}]
  %s2 = inlined_call_operand.vmem [shape: f32[1,512], index: 2, kind: input, shape index: {}]
  %s3 = inlined_call_operand.vmem [shape: f32[512,1], index: 3, kind: input, shape index: {}]
  %s4 = inlined_call_operand.<no memory space> [shape: f32[1,1], index: 4, kind: input, shape index: {}]
  %s5 = inlined_call_operand.vmem [shape: f32[256,1], index: 5, kind: input, shape index: {}]
  %s6 = inlined_call_operand.<no memory space> [shape: f32[1,1], index: 6, kind: input, shape index: {}]
  %s7 = inlined_call_operand.vmem [shape: f32[2,1,1], index: 7, kind: output, shape index: {}]
  %s8 = sld [smem:[#allocation0]]
  $region61: #{spec_metric_predictor.7} parent=0
    _
  %s10 = ssub.s32 1, %s8
  %s11 = scalar_select 0, %s10, %s8
  %v12 = vstv %s4
  %13 = vst [vmem:[#allocation2] sm:$0x1] %v12
  %v14 = vstv %s6
  %15 = vst [vmem:[#allocation3] sm:$0x1] %v14
  loop: start=0, step=1, limit=4
  $region2: #{spec_metric_predictor.7} parent=0 // loop_pre_header
    _
  $region3: #{spec_metric_predictor.7} parent=0 // loop_header
    %s17 = sphi 0, %s21
    %p18 = scmp.ge.s32.totalorder %s17, 4
    %s27 = sphi 0, %s29
    %s30 = sphi 0, %s27
    %s31 = sphi 0, %s30
    %s47 = sphi 0, %s31
    %s51 = sphi 0, %s51
    %s53 = sphi 0, %s51
    %s54 = sphi 0, %s53
    %s68 = sphi 0, %s54
    %s72 = sphi 0, %s72
    %s74 = sphi 0, %s72
    %s75 = sphi 0, %s74
    %s89 = sphi 0, %s75
    %s93 = sphi 0, %s93
    %s95 = sphi 0, %s93
    %s96 = sphi 0, %s95
    %s110 = sphi 0, %s96
    %s114 = sphi 0, %s114
    %s116 = sphi 0, %s114
    %s117 = sphi 0, %s116
    %s131 = sphi 0, %s117
    %s135 = sphi 0, %s135
    %s137 = sphi 0, %s135
    %s138 = sphi 0, %s137
    %s152 = sphi 0, %s138
    %s156 = sphi 0, %s156
    %s158 = sphi 0, %s156
    %s159 = sphi 0, %s158
    %s173 = sphi 0, %s159
    %s179 = sphi 0, %s181
    %s182 = sphi 0, %s179
    %s183 = sphi 0, %s182
    %s199 = sphi 0, %s183
  $region4: #{spec_metric_predictor.7} parent=0 // loop_header_branch
    %20 = sbr.rel (%p18) target = $region8
  $region5: #{spec_metric_predictor.7} parent=0 // loop_body
    %s22 = ssub.s32 %s17, 1
    %s23 = ssub.s32 %s17, 2
    %s24 = sadd.s32 %s17, 1
    %s25 = ssub.s32 %s17, %s24
    %p26 = scmp.eq.s32.totalorder %s25, 0
    %s28 = sadd.s32 %s27, 1
    %s29 = scalar_select %p26, %s27, %s28
    %p32 = pneg %p26
    %p33 = scmp.eq.s32.totalorder %s17, 1
    %p34 = por %p32, %p33
    %p35 = scmp.ne.s32.totalorder %s27, %s30
    %p36 = scmp.eq.s32.totalorder %s17, 0
    %p37 = por %p35, %p36
    %p38 = scmp.ne.s32.totalorder %s27, %s30
    %p39 = scmp.eq.s32.totalorder %s22, 1
    %p40 = por %p38, %p39
    %p41 = scmp.ne.s32.totalorder %s30, %s31
    %p42 = scmp.eq.s32.totalorder %s22, 0
    %p43 = por %p41, %p42
    %p44 = scmp.ne.s32.totalorder %s30, %s31
    %p45 = scmp.eq.s32.totalorder %s23, 1
    %p46 = por %p44, %p45
    %p48 = scmp.ne.s32.totalorder %s31, %s47
    %p49 = scmp.eq.s32.totalorder %s23, 0
    %p50 = por %p48, %p49
    %s52 = sadd.s32 %s51, 1
    %p55 = scmp.eq.s32.totalorder %s17, 1
    %p56 = scmp.ne.s32.totalorder %s51, %s53
    %p57 = scmp.eq.s32.totalorder %s17, 0
    %p58 = por %p56, %p57
    %p59 = scmp.ne.s32.totalorder %s51, %s53
    %p60 = scmp.eq.s32.totalorder %s22, 1
    %p61 = por %p59, %p60
    %p62 = scmp.ne.s32.totalorder %s53, %s54
    %p63 = scmp.eq.s32.totalorder %s22, 0
    %p64 = por %p62, %p63
    %p65 = scmp.ne.s32.totalorder %s53, %s54
    %p66 = scmp.eq.s32.totalorder %s23, 1
    %p67 = por %p65, %p66
    %p69 = scmp.ne.s32.totalorder %s54, %s68
    %p70 = scmp.eq.s32.totalorder %s23, 0
    %p71 = por %p69, %p70
    %s73 = sadd.s32 %s72, 1
    %p76 = scmp.eq.s32.totalorder %s17, 1
    %p77 = scmp.ne.s32.totalorder %s72, %s74
    %p78 = scmp.eq.s32.totalorder %s17, 0
    %p79 = por %p77, %p78
    %p80 = scmp.ne.s32.totalorder %s72, %s74
    %p81 = scmp.eq.s32.totalorder %s22, 1
    %p82 = por %p80, %p81
    %p83 = scmp.ne.s32.totalorder %s74, %s75
    %p84 = scmp.eq.s32.totalorder %s22, 0
    %p85 = por %p83, %p84
    %p86 = scmp.ne.s32.totalorder %s74, %s75
    %p87 = scmp.eq.s32.totalorder %s23, 1
    %p88 = por %p86, %p87
    %p90 = scmp.ne.s32.totalorder %s75, %s89
    %p91 = scmp.eq.s32.totalorder %s23, 0
    %p92 = por %p90, %p91
    %s94 = sadd.s32 %s93, 1
    %p97 = scmp.eq.s32.totalorder %s17, 1
    %p98 = scmp.ne.s32.totalorder %s93, %s95
    %p99 = scmp.eq.s32.totalorder %s17, 0
    %p100 = por %p98, %p99
    %p101 = scmp.ne.s32.totalorder %s93, %s95
    %p102 = scmp.eq.s32.totalorder %s22, 1
    %p103 = por %p101, %p102
    %p104 = scmp.ne.s32.totalorder %s95, %s96
    %p105 = scmp.eq.s32.totalorder %s22, 0
    %p106 = por %p104, %p105
    %p107 = scmp.ne.s32.totalorder %s95, %s96
    %p108 = scmp.eq.s32.totalorder %s23, 1
    %p109 = por %p107, %p108
    %p111 = scmp.ne.s32.totalorder %s96, %s110
    %p112 = scmp.eq.s32.totalorder %s23, 0
    %p113 = por %p111, %p112
    %s115 = sadd.s32 %s114, 1
    %p118 = scmp.eq.s32.totalorder %s17, 1
    %p119 = scmp.ne.s32.totalorder %s114, %s116
    %p120 = scmp.eq.s32.totalorder %s17, 0
    %p121 = por %p119, %p120
    %p122 = scmp.ne.s32.totalorder %s114, %s116
    %p123 = scmp.eq.s32.totalorder %s22, 1
    %p124 = por %p122, %p123
    %p125 = scmp.ne.s32.totalorder %s116, %s117
    %p126 = scmp.eq.s32.totalorder %s22, 0
    %p127 = por %p125, %p126
    %p128 = scmp.ne.s32.totalorder %s116, %s117
    %p129 = scmp.eq.s32.totalorder %s23, 1
    %p130 = por %p128, %p129
    %p132 = scmp.ne.s32.totalorder %s117, %s131
    %p133 = scmp.eq.s32.totalorder %s23, 0
    %p134 = por %p132, %p133
    %s136 = sadd.s32 %s135, 1
    %p139 = scmp.eq.s32.totalorder %s17, 1
    %p140 = scmp.ne.s32.totalorder %s135, %s137
    %p141 = scmp.eq.s32.totalorder %s17, 0
    %p142 = por %p140, %p141
    %p143 = scmp.ne.s32.totalorder %s135, %s137
    %p144 = scmp.eq.s32.totalorder %s22, 1
    %p145 = por %p143, %p144
    %p146 = scmp.ne.s32.totalorder %s137, %s138
    %p147 = scmp.eq.s32.totalorder %s22, 0
    %p148 = por %p146, %p147
    %p149 = scmp.ne.s32.totalorder %s137, %s138
    %p150 = scmp.eq.s32.totalorder %s23, 1
    %p151 = por %p149, %p150
    %p153 = scmp.ne.s32.totalorder %s138, %s152
    %p154 = scmp.eq.s32.totalorder %s23, 0
    %p155 = por %p153, %p154
    %s157 = sadd.s32 %s156, 1
    %p160 = scmp.eq.s32.totalorder %s17, 1
    %p161 = scmp.ne.s32.totalorder %s156, %s158
    %p162 = scmp.eq.s32.totalorder %s17, 0
    %p163 = por %p161, %p162
    %p164 = scmp.ne.s32.totalorder %s156, %s158
    %p165 = scmp.eq.s32.totalorder %s22, 1
    %p166 = por %p164, %p165
    %p167 = scmp.ne.s32.totalorder %s158, %s159
    %p168 = scmp.eq.s32.totalorder %s22, 0
    %p169 = por %p167, %p168
    %p170 = scmp.ne.s32.totalorder %s158, %s159
    %p171 = scmp.eq.s32.totalorder %s23, 1
    %p172 = por %p170, %p171
    %p174 = scmp.ne.s32.totalorder %s159, %s173
    %p175 = scmp.eq.s32.totalorder %s23, 0
    %p176 = por %p174, %p175
    %s177 = ssub.s32 %s17, %s24
    %p178 = scmp.eq.s32.totalorder %s177, 0
    %s180 = sadd.s32 %s179, 1
    %s181 = scalar_select %p178, %s179, %s180
    %p184 = pneg %p178
    %p185 = scmp.eq.s32.totalorder %s17, 1
    %p186 = por %p184, %p185
    %p187 = scmp.ne.s32.totalorder %s179, %s182
    %p188 = scmp.eq.s32.totalorder %s17, 0
    %p189 = por %p187, %p188
    %p190 = scmp.ne.s32.totalorder %s179, %s182
    %p191 = scmp.eq.s32.totalorder %s22, 1
    %p192 = por %p190, %p191
    %p193 = scmp.ne.s32.totalorder %s182, %s183
    %p194 = scmp.eq.s32.totalorder %s22, 0
    %p195 = por %p193, %p194
    %p196 = scmp.ne.s32.totalorder %s182, %s183
    %p197 = scmp.eq.s32.totalorder %s23, 1
    %p198 = por %p196, %p197
    %p200 = scmp.ne.s32.totalorder %s183, %s199
    %p201 = scmp.eq.s32.totalorder %s23, 0
    %p202 = por %p200, %p201
    %p203 = scmp.le.s32.totalorder 1, %s17
    %p204 = scmp.lt.s32.totalorder %s17, 3
    %p205 = pnand %p203, %p204
    %p206 = pneg %p205
    // Predicated region
    $region9: #{spec_metric_predictor.7} parent=5 // pred_check
      _
    $region10: #{spec_metric_predictor.7} parent=5 // pred_check_branch
      %208 = sbr.rel (%p205) target = $region12
    $region11: #{spec_metric_predictor.7} parent=5 // pred_region
      %s209 = ssub.s32 %s17, 1
      // Predicated region
      $region13: #{spec_metric_predictor.7} parent=11 // pred_check
        %p210 = pneg %p64
      $region14: #{spec_metric_predictor.7} parent=11 // pred_check_branch
        %212 = sbr.rel (%p210) target = $region16
      $region15: #{spec_metric_predictor.7} parent=11 // pred_region
        _
      $region16: #{spec_metric_predictor.7} parent=11 // pred_fallthru
        _
      // Predicated region
      $region17: #{spec_metric_predictor.7} parent=11 // pred_check
        %p213 = pneg %p85
      $region18: #{spec_metric_predictor.7} parent=11 // pred_check_branch
        %215 = sbr.rel (%p213) target = $region20
      $region19: #{spec_metric_predictor.7} parent=11 // pred_region
        _
      $region20: #{spec_metric_predictor.7} parent=11 // pred_fallthru
        _
      // Predicated region
      $region21: #{spec_metric_predictor.7} parent=11 // pred_check
        %p216 = pneg %p106
      $region22: #{spec_metric_predictor.7} parent=11 // pred_check_branch
        %218 = sbr.rel (%p216) target = $region24
      $region23: #{spec_metric_predictor.7} parent=11 // pred_region
        _
      $region24: #{spec_metric_predictor.7} parent=11 // pred_fallthru
        _
      // Predicated region
      $region25: #{spec_metric_predictor.7} parent=11 // pred_check
        %p219 = pneg %p127
      $region26: #{spec_metric_predictor.7} parent=11 // pred_check_branch
        %221 = sbr.rel (%p219) target = $region28
      $region27: #{spec_metric_predictor.7} parent=11 // pred_region
        _
      $region28: #{spec_metric_predictor.7} parent=11 // pred_fallthru
        _
      // Predicated region
      $region29: #{spec_metric_predictor.7} parent=11 // pred_check
        %p222 = pneg %p148
      $region30: #{spec_metric_predictor.7} parent=11 // pred_check_branch
        %224 = sbr.rel (%p222) target = $region32
      $region31: #{spec_metric_predictor.7} parent=11 // pred_region
        _
      $region32: #{spec_metric_predictor.7} parent=11 // pred_fallthru
        _
      // Predicated region
      $region33: #{spec_metric_predictor.7} parent=11 // pred_check
        %p225 = pneg %p169
      $region34: #{spec_metric_predictor.7} parent=11 // pred_check_branch
        %227 = sbr.rel (%p225) target = $region36
      $region35: #{spec_metric_predictor.7} parent=11 // pred_region
        _
      $region36: #{spec_metric_predictor.7} parent=11 // pred_fallthru
        _
    $region12: #{spec_metric_predictor.7} parent=5 // pred_fallthru
      _
    %p228 = scmp.lt.s32.totalorder %s17, 2
    // Predicated region
    $region37: #{spec_metric_predictor.7} parent=5 // pred_check
      %p229 = pneg %p228
    $region38: #{spec_metric_predictor.7} parent=5 // pred_check_branch
      %231 = sbr.rel (%p229) target = $region40
    $region39: #{spec_metric_predictor.7} parent=5 // pred_region
      // Predicated region
      $region41: #{spec_metric_predictor.7} parent=39 // pred_check
        %p232 = pneg %p37
      $region42: #{spec_metric_predictor.7} parent=39 // pred_check_branch
        %234 = sbr.rel (%p232) target = $region44
      $region43: #{spec_metric_predictor.7} parent=39 // pred_region
        %s235 = smul.u32 2, %s17
        %p236 = scmp.lt.s32.totalorder %s235, 3
        %s237 = scalar_select %p236, %s235, 3
        %s238 = smul.addr %s237, 8
        %s239 = scalar_lea.vmem %s0, %s238
        %s240 = smul.u32 2, %s17
      $region44: #{spec_metric_predictor.7} parent=39 // pred_fallthru
        _
    $region40: #{spec_metric_predictor.7} parent=5 // pred_fallthru
      _
    %p241 = scmp.le.s32.totalorder 1, %s17
    %p242 = scmp.lt.s32.totalorder %s17, 3
    %p243 = pnand %p241, %p242
    %p244 = pneg %p243
    // Predicated region
    $region45: #{spec_metric_predictor.7} parent=5 // pred_check
      _
    $region46: #{spec_metric_predictor.7} parent=5 // pred_check_branch
      %246 = sbr.rel (%p243) target = $region48
    $region47: #{spec_metric_predictor.7} parent=5 // pred_region
      %s247 = ssub.s32 %s17, 1
      %s248 = smul.u32 2, %s22
      %p249 = scmp.lt.s32.totalorder %s248, 3
      %s250 = scalar_select %p249, %s248, 3
      %s251 = smul.addr %s250, 8
      %s252 = scalar_lea.vmem %s0, %s251
      %p253 = pneg %p43
      %p254 = pneg %p40
      %p255 = pneg %p64
      %p256 = pneg %p61
      %p257 = pneg %p85
      %p258 = pneg %p82
      %p259 = pneg %p106
      %p260 = pneg %p103
      %p261 = pneg %p127
      %p262 = pneg %p124
      %p263 = pneg %p148
      %p264 = pneg %p145
      %p265 = pneg %p169
      %p266 = pneg %p166
      %p267 = pneg %p195
      %p268 = pneg %p192
      %p269 = scmp.lt.s32.totalorder %s22, 1
      %s270 = scalar_select %p269, %s22, 1
      %s271 = scalar_lea.vmem %s7, %s270
      %s272 = smul.u32 2, %s22
      %p273 = scmp.lt.s32.totalorder %s272, 3
      %s274 = scalar_select %p273, %s272, 3
      %s275 = smul.addr %s274, 8
      %s276 = scalar_lea.vmem %s0, %s275
      %s277 = smul.u32 2, %s22
      %p278 = scmp.lt.s32.totalorder %s22, 1
      %s279 = scalar_select %p278, %s22, 1
      %s280 = scalar_lea.vmem %s7, %s279
      %v281 = vld [vmem:[%s276] sm:$0xff]
      %v282 = vld [vmem:[%s276 + $0x8] sm:$0xff]
      %v283 = vld [vmem:[%s1] sm:$0xff]
      %v284 = vld [vmem:[%s1 + $0x8] sm:$0xff]
      %v285 = vld [vmem:[%s1 + $0x10] sm:$0xff]
      %v286 = vld [vmem:[%s1 + $0x18] sm:$0xff]
      %v287 = vld [vmem:[%s1 + $0x20] sm:$0xff]
      %v288 = vld [vmem:[%s1 + $0x28] sm:$0xff]
      %v289 = vld [vmem:[%s1 + $0x30] sm:$0xff]
      %v290 = vld [vmem:[%s1 + $0x38] sm:$0xff]
      %v291 = vld [vmem:[%s1 + $0x40] sm:$0xff]
      %v292 = vld [vmem:[%s1 + $0x48] sm:$0xff]
      %v293 = vld [vmem:[%s1 + $0x50] sm:$0xff]
      %v294 = vld [vmem:[%s1 + $0x58] sm:$0xff]
      %v295 = vld [vmem:[%s1 + $0x60] sm:$0xff]
      %v296 = vld [vmem:[%s1 + $0x68] sm:$0xff]
      %v297 = vld [vmem:[%s1 + $0x70] sm:$0xff]
      %v298 = vld [vmem:[%s1 + $0x78] sm:$0xff]
      %v299 = vld [vmem:[%s1 + $0x80] sm:$0xff]
      %v300 = vld [vmem:[%s1 + $0x88] sm:$0xff]
      %v301 = vld [vmem:[%s1 + $0x90] sm:$0xff]
      %v302 = vld [vmem:[%s1 + $0x98] sm:$0xff]
      %v303 = vld [vmem:[%s1 + $0xa0] sm:$0xff]
      %v304 = vld [vmem:[%s1 + $0xa8] sm:$0xff]
      %v305 = vld [vmem:[%s1 + $0xb0] sm:$0xff]
      %v306 = vld [vmem:[%s1 + $0xb8] sm:$0xff]
      %v307 = vld [vmem:[%s1 + $0xc0] sm:$0xff]
      %v308 = vld [vmem:[%s1 + $0xc8] sm:$0xff]
      %v309 = vld [vmem:[%s1 + $0xd0] sm:$0xff]
      %v310 = vld [vmem:[%s1 + $0xd8] sm:$0xff]
      %v311 = vld [vmem:[%s1 + $0xe0] sm:$0xff]
      %v312 = vld [vmem:[%s1 + $0xe8] sm:$0xff]
      %v313 = vld [vmem:[%s1 + $0xf0] sm:$0xff]
      %v314 = vld [vmem:[%s1 + $0xf8] sm:$0xff]
      %v315 = vld [vmem:[%s1 + $0x100] sm:$0xff]
      %v316 = vld [vmem:[%s1 + $0x108] sm:$0xff]
      %v317 = vld [vmem:[%s1 + $0x110] sm:$0xff]
      %v318 = vld [vmem:[%s1 + $0x118] sm:$0xff]
      %v319 = vld [vmem:[%s1 + $0x120] sm:$0xff]
      %v320 = vld [vmem:[%s1 + $0x128] sm:$0xff]
      %v321 = vld [vmem:[%s1 + $0x130] sm:$0xff]
      %v322 = vld [vmem:[%s1 + $0x138] sm:$0xff]
      %v323 = vld [vmem:[%s1 + $0x140] sm:$0xff]
      %v324 = vld [vmem:[%s1 + $0x148] sm:$0xff]
      %v325 = vld [vmem:[%s1 + $0x150] sm:$0xff]
      %v326 = vld [vmem:[%s1 + $0x158] sm:$0xff]
      %v327 = vld [vmem:[%s1 + $0x160] sm:$0xff]
      %v328 = vld [vmem:[%s1 + $0x168] sm:$0xff]
      %v329 = vld [vmem:[%s1 + $0x170] sm:$0xff]
      %v330 = vld [vmem:[%s1 + $0x178] sm:$0xff]
      %v331 = vld [vmem:[%s1 + $0x180] sm:$0xff]
      %v332 = vld [vmem:[%s1 + $0x188] sm:$0xff]
      %v333 = vld [vmem:[%s1 + $0x190] sm:$0xff]
      %v334 = vld [vmem:[%s1 + $0x198] sm:$0xff]
      %v335 = vld [vmem:[%s1 + $0x1a0] sm:$0xff]
      %v336 = vld [vmem:[%s1 + $0x1a8] sm:$0xff]
      %v337 = vld [vmem:[%s1 + $0x1b0] sm:$0xff]
      %v338 = vld [vmem:[%s1 + $0x1b8] sm:$0xff]
      %v339 = vld [vmem:[%s1 + $0x1c0] sm:$0xff]
      %v340 = vld [vmem:[%s1 + $0x1c8] sm:$0xff]
      %v341 = vld [vmem:[%s1 + $0x1d0] sm:$0xff]
      %v342 = vld [vmem:[%s1 + $0x1d8] sm:$0xff]
      %v343 = vld [vmem:[%s1 + $0x1e0] sm:$0xff]
      %v344 = vld [vmem:[%s1 + $0x1e8] sm:$0xff]
      %v345 = vld [vmem:[%s1 + $0x1f0] sm:$0xff]
      %v346 = vld [vmem:[%s1 + $0x1f8] sm:$0xff]
      %v347 = vld [vmem:[%s1 + $0x200] sm:$0xff]
      %v348 = vld [vmem:[%s1 + $0x208] sm:$0xff]
      %v349 = vld [vmem:[%s1 + $0x210] sm:$0xff]
      %v350 = vld [vmem:[%s1 + $0x218] sm:$0xff]
      %v351 = vld [vmem:[%s1 + $0x220] sm:$0xff]
      %v352 = vld [vmem:[%s1 + $0x228] sm:$0xff]
      %v353 = vld [vmem:[%s1 + $0x230] sm:$0xff]
      %v354 = vld [vmem:[%s1 + $0x238] sm:$0xff]
      %v355 = vld [vmem:[%s1 + $0x240] sm:$0xff]
      %v356 = vld [vmem:[%s1 + $0x248] sm:$0xff]
      %v357 = vld [vmem:[%s1 + $0x250] sm:$0xff]
      %v358 = vld [vmem:[%s1 + $0x258] sm:$0xff]
      %v359 = vld [vmem:[%s1 + $0x260] sm:$0xff]
      %v360 = vld [vmem:[%s1 + $0x268] sm:$0xff]
      %v361 = vld [vmem:[%s1 + $0x270] sm:$0xff]
      %v362 = vld [vmem:[%s1 + $0x278] sm:$0xff]
      %v363 = vld [vmem:[%s1 + $0x280] sm:$0xff]
      %v364 = vld [vmem:[%s1 + $0x288] sm:$0xff]
      %v365 = vld [vmem:[%s1 + $0x290] sm:$0xff]
      %v366 = vld [vmem:[%s1 + $0x298] sm:$0xff]
      %v367 = vld [vmem:[%s1 + $0x2a0] sm:$0xff]
      %v368 = vld [vmem:[%s1 + $0x2a8] sm:$0xff]
      %v369 = vld [vmem:[%s1 + $0x2b0] sm:$0xff]
      %v370 = vld [vmem:[%s1 + $0x2b8] sm:$0xff]
      %v371 = vld [vmem:[%s1 + $0x2c0] sm:$0xff]
      %v372 = vld [vmem:[%s1 + $0x2c8] sm:$0xff]
      %v373 = vld [vmem:[%s1 + $0x2d0] sm:$0xff]
      %v374 = vld [vmem:[%s1 + $0x2d8] sm:$0xff]
      %v375 = vld [vmem:[%s1 + $0x2e0] sm:$0xff]
      %v376 = vld [vmem:[%s1 + $0x2e8] sm:$0xff]
      %v377 = vld [vmem:[%s1 + $0x2f0] sm:$0xff]
      %v378 = vld [vmem:[%s1 + $0x2f8] sm:$0xff]
      %v379 = vld [vmem:[%s1 + $0x300] sm:$0xff]
      %v380 = vld [vmem:[%s1 + $0x308] sm:$0xff]
      %v381 = vld [vmem:[%s1 + $0x310] sm:$0xff]
      %v382 = vld [vmem:[%s1 + $0x318] sm:$0xff]
      %v383 = vld [vmem:[%s1 + $0x320] sm:$0xff]
      %v384 = vld [vmem:[%s1 + $0x328] sm:$0xff]
      %v385 = vld [vmem:[%s1 + $0x330] sm:$0xff]
      %v386 = vld [vmem:[%s1 + $0x338] sm:$0xff]
      %v387 = vld [vmem:[%s1 + $0x340] sm:$0xff]
      %v388 = vld [vmem:[%s1 + $0x348] sm:$0xff]
      %v389 = vld [vmem:[%s1 + $0x350] sm:$0xff]
      %v390 = vld [vmem:[%s1 + $0x358] sm:$0xff]
      %v391 = vld [vmem:[%s1 + $0x360] sm:$0xff]
      %v392 = vld [vmem:[%s1 + $0x368] sm:$0xff]
      %v393 = vld [vmem:[%s1 + $0x370] sm:$0xff]
      %v394 = vld [vmem:[%s1 + $0x378] sm:$0xff]
      %v395 = vld [vmem:[%s1 + $0x380] sm:$0xff]
      %v396 = vld [vmem:[%s1 + $0x388] sm:$0xff]
      %v397 = vld [vmem:[%s1 + $0x390] sm:$0xff]
      %v398 = vld [vmem:[%s1 + $0x398] sm:$0xff]
      %v399 = vld [vmem:[%s1 + $0x3a0] sm:$0xff]
      %v400 = vld [vmem:[%s1 + $0x3a8] sm:$0xff]
      %v401 = vld [vmem:[%s1 + $0x3b0] sm:$0xff]
      %v402 = vld [vmem:[%s1 + $0x3b8] sm:$0xff]
      %v403 = vld [vmem:[%s1 + $0x3c0] sm:$0xff]
      %v404 = vld [vmem:[%s1 + $0x3c8] sm:$0xff]
      %v405 = vld [vmem:[%s1 + $0x3d0] sm:$0xff]
      %v406 = vld [vmem:[%s1 + $0x3d8] sm:$0xff]
      %v407 = vld [vmem:[%s1 + $0x3e0] sm:$0xff]
      %v408 = vld [vmem:[%s1 + $0x3e8] sm:$0xff]
      %v409 = vld [vmem:[%s1 + $0x3f0] sm:$0xff]
      %v410 = vld [vmem:[%s1 + $0x3f8] sm:$0xff]
      %v411 = vld [vmem:[%s2] sm:$0xf]
      %v413 = vlaneseq
      %v414 = vshrl.u32 %v413, 7
      %v415 = vsub.s32 0, %v414
      %v416 = vrot.slane %v411, %v415
      %v417 = vlaneseq
      %v418 = vshrl.u32 %v417, 7
      %v419 = vsub.s32 1, %v418
      %v420 = vrot.slane %v411, %v419
      %v421 = vlaneseq
      %v422 = vshrl.u32 %v421, 7
      %v423 = vsub.s32 2, %v422
      %v424 = vrot.slane %v411, %v423
      %v425 = vlaneseq
      %v426 = vshrl.u32 %v425, 7
      %v427 = vsub.s32 3, %v426
      %v428 = vrot.slane %v411, %v427
      %433 = vmatprep.subr.mxu0 %v284
      %434 = vmatpush1.msra.mxu0 %v283
      %435 = vmatprep.subr.mxu0 %v288
      %436 = vmatpush1.msra.mxu0 %v287
      %437 = vmatprep.subr.mxu0 %v292
      %438 = vmatpush1.msra.mxu0 %v291
      %439 = vmatprep.subr.mxu0 %v296
      %440 = vmatpush1.msra.mxu0 %v295
      %441 = vmatprep.subr.mxu0 %v300
      %442 = vmatpush1.msra.mxu0 %v299
      %443 = vmatprep.subr.mxu0 %v304
      %444 = vmatpush1.msra.mxu0 %v303
      %445 = vmatprep.subr.mxu0 %v308
      %446 = vmatpush1.msra.mxu0 %v307
      %447 = vmatprep.subr.mxu0 %v312
      %448 = vmatpush1.msra.mxu0 %v311
      %449 = vmatprep.subr.mxu0 %v316
      %450 = vmatpush1.msra.mxu0 %v315
      %451 = vmatprep.subr.mxu0 %v320
      %452 = vmatpush1.msra.mxu0 %v319
      %453 = vmatprep.subr.mxu0 %v324
      %454 = vmatpush1.msra.mxu0 %v323
      %455 = vmatprep.subr.mxu0 %v328
      %456 = vmatpush1.msra.mxu0 %v327
      %457 = vmatprep.subr.mxu0 %v332
      %458 = vmatpush1.msra.mxu0 %v331
      %459 = vmatprep.subr.mxu0 %v336
      %460 = vmatpush1.msra.mxu0 %v335
      %461 = vmatprep.subr.mxu0 %v340
      %462 = vmatpush1.msra.mxu0 %v339
      %463 = vmatprep.subr.mxu0 %v344
      %464 = vmatpush1.msra.mxu0 %v343
      %465 = vmatprep.subr.mxu0 %v348
      %466 = vmatpush1.msra.mxu0 %v347
      %467 = vmatprep.subr.mxu0 %v352
      %468 = vmatpush1.msra.mxu0 %v351
      %469 = vmatprep.subr.mxu0 %v356
      %470 = vmatpush1.msra.mxu0 %v355
      %471 = vmatprep.subr.mxu0 %v360
      %472 = vmatpush1.msra.mxu0 %v359
      %473 = vmatprep.subr.mxu0 %v364
      %474 = vmatpush1.msra.mxu0 %v363
      %475 = vmatprep.subr.mxu0 %v368
      %476 = vmatpush1.msra.mxu0 %v367
      %477 = vmatprep.subr.mxu0 %v372
      %478 = vmatpush1.msra.mxu0 %v371
      %479 = vmatprep.subr.mxu0 %v376
      %480 = vmatpush1.msra.mxu0 %v375
      %481 = vmatprep.subr.mxu0 %v380
      %482 = vmatpush1.msra.mxu0 %v379
      %483 = vmatprep.subr.mxu0 %v384
      %484 = vmatpush1.msra.mxu0 %v383
      %485 = vmatprep.subr.mxu0 %v388
      %486 = vmatpush1.msra.mxu0 %v387
      %487 = vmatprep.subr.mxu0 %v392
      %488 = vmatpush1.msra.mxu0 %v391
      %489 = vmatprep.subr.mxu0 %v396
      %490 = vmatpush1.msra.mxu0 %v395
      %491 = vmatprep.subr.mxu0 %v400
      %492 = vmatpush1.msra.mxu0 %v399
      %493 = vmatprep.subr.mxu0 %v404
      %494 = vmatpush1.msra.mxu0 %v403
      %495 = vmatprep.subr.mxu0 %v408
      %496 = vmatpush1.msra.mxu0 %v407
      %497 = vmatprep.mubr.f32.mxu0 %v282
      %498 = vmatmul.mubr.f32.gmra.mrb[0].mxu0 %v281
      %v499 = vpop.f32.mrb[0].mxu0
      %v500 = vadd.f32 %v416, %v499
      %v501 = vpop.f32.mrb[0].mxu0
      %v502 = vadd.f32 %v420, %v501
      %503 = vdwg.mxu0
      %504 = vmatprep.subr.mxu0 %v286
      %505 = vmatpush1.msra.mxu0 %v285
      %506 = vmatprep.subr.mxu0 %v290
      %507 = vmatpush1.msra.mxu0 %v289
      %508 = vmatprep.subr.mxu0 %v294
      %509 = vmatpush1.msra.mxu0 %v293
      %510 = vmatprep.subr.mxu0 %v298
      %511 = vmatpush1.msra.mxu0 %v297
      %512 = vmatprep.subr.mxu0 %v302
      %513 = vmatpush1.msra.mxu0 %v301
      %514 = vmatprep.subr.mxu0 %v306
      %515 = vmatpush1.msra.mxu0 %v305
      %516 = vmatprep.subr.mxu0 %v310
      %517 = vmatpush1.msra.mxu0 %v309
      %518 = vmatprep.subr.mxu0 %v314
      %519 = vmatpush1.msra.mxu0 %v313
      %520 = vmatprep.subr.mxu0 %v318
      %521 = vmatpush1.msra.mxu0 %v317
      %522 = vmatprep.subr.mxu0 %v322
      %523 = vmatpush1.msra.mxu0 %v321
      %524 = vmatprep.subr.mxu0 %v326
      %525 = vmatpush1.msra.mxu0 %v325
      %526 = vmatprep.subr.mxu0 %v330
      %527 = vmatpush1.msra.mxu0 %v329
      %528 = vmatprep.subr.mxu0 %v334
      %529 = vmatpush1.msra.mxu0 %v333
      %530 = vmatprep.subr.mxu0 %v338
      %531 = vmatpush1.msra.mxu0 %v337
      %532 = vmatprep.subr.mxu0 %v342
      %533 = vmatpush1.msra.mxu0 %v341
      %534 = vmatprep.subr.mxu0 %v346
      %535 = vmatpush1.msra.mxu0 %v345
      %536 = vmatprep.subr.mxu0 %v350
      %537 = vmatpush1.msra.mxu0 %v349
      %538 = vmatprep.subr.mxu0 %v354
      %539 = vmatpush1.msra.mxu0 %v353
      %540 = vmatprep.subr.mxu0 %v358
      %541 = vmatpush1.msra.mxu0 %v357
      %542 = vmatprep.subr.mxu0 %v362
      %543 = vmatpush1.msra.mxu0 %v361
      %544 = vmatprep.subr.mxu0 %v366
      %545 = vmatpush1.msra.mxu0 %v365
      %546 = vmatprep.subr.mxu0 %v370
      %547 = vmatpush1.msra.mxu0 %v369
      %548 = vmatprep.subr.mxu0 %v374
      %549 = vmatpush1.msra.mxu0 %v373
      %550 = vmatprep.subr.mxu0 %v378
      %551 = vmatpush1.msra.mxu0 %v377
      %552 = vmatprep.subr.mxu0 %v382
      %553 = vmatpush1.msra.mxu0 %v381
      %554 = vmatprep.subr.mxu0 %v386
      %555 = vmatpush1.msra.mxu0 %v385
      %556 = vmatprep.subr.mxu0 %v390
      %557 = vmatpush1.msra.mxu0 %v389
      %558 = vmatprep.subr.mxu0 %v394
      %559 = vmatpush1.msra.mxu0 %v393
      %560 = vmatprep.subr.mxu0 %v398
      %561 = vmatpush1.msra.mxu0 %v397
      %562 = vmatprep.subr.mxu0 %v402
      %563 = vmatpush1.msra.mxu0 %v401
      %564 = vmatprep.subr.mxu0 %v406
      %565 = vmatpush1.msra.mxu0 %v405
      %566 = vmatprep.subr.mxu0 %v410
      %567 = vmatpush1.msra.mxu0 %v409
      %568 = vmatprep.mubr.f32.mxu0 %v282
      %569 = vmatmul.mubr.f32.gmra.mrb[0].mxu0 %v281
      %v570 = vpop.f32.mrb[0].mxu0
      %v571 = vadd.f32 %v424, %v570
      %v572 = vpop.f32.mrb[0].mxu0
      %v573 = vadd.f32 %v428, %v572
      %574 = vdwg.mxu0
      %v575 = vmax.f32 %v500, 0.0
      %v576 = vmax.f32 %v502, 0.0
      %v577 = vmax.f32 %v571, 0.0
      %v578 = vmax.f32 %v573, 0.0
      %v579 = vld [vmem:[%s3] sm:$0xff]
      %v580 = vld [vmem:[%s3 + $0x8] sm:$0xff]
      %v581 = vld [vmem:[%s3 + $0x10] sm:$0xff]
      %v582 = vld [vmem:[%s3 + $0x18] sm:$0xff]
      %v583 = vld [vmem:[%s3 + $0x20] sm:$0xff]
      %v584 = vld [vmem:[%s3 + $0x28] sm:$0xff]
      %v585 = vld [vmem:[%s3 + $0x30] sm:$0xff]
      %v586 = vld [vmem:[%s3 + $0x38] sm:$0xff]
      %v587 = vld [vmem:[%s3 + $0x40] sm:$0xff]
      %v588 = vld [vmem:[%s3 + $0x48] sm:$0xff]
      %v589 = vld [vmem:[%s3 + $0x50] sm:$0xff]
      %v590 = vld [vmem:[%s3 + $0x58] sm:$0xff]
      %v591 = vld [vmem:[%s3 + $0x60] sm:$0xff]
      %v592 = vld [vmem:[%s3 + $0x68] sm:$0xff]
      %v593 = vld [vmem:[%s3 + $0x70] sm:$0xff]
      %v594 = vld [vmem:[%s3 + $0x78] sm:$0xff]
      %v595 = vld [vmem:[%s3 + $0x80] sm:$0xff]
      %v596 = vld [vmem:[%s3 + $0x88] sm:$0xff]
      %v597 = vld [vmem:[%s3 + $0x90] sm:$0xff]
      %v598 = vld [vmem:[%s3 + $0x98] sm:$0xff]
      %v599 = vld [vmem:[%s3 + $0xa0] sm:$0xff]
      %v600 = vld [vmem:[%s3 + $0xa8] sm:$0xff]
      %v601 = vld [vmem:[%s3 + $0xb0] sm:$0xff]
      %v602 = vld [vmem:[%s3 + $0xb8] sm:$0xff]
      %v603 = vld [vmem:[%s3 + $0xc0] sm:$0xff]
      %v604 = vld [vmem:[%s3 + $0xc8] sm:$0xff]
      %v605 = vld [vmem:[%s3 + $0xd0] sm:$0xff]
      %v606 = vld [vmem:[%s3 + $0xd8] sm:$0xff]
      %v607 = vld [vmem:[%s3 + $0xe0] sm:$0xff]
      %v608 = vld [vmem:[%s3 + $0xe8] sm:$0xff]
      %v609 = vld [vmem:[%s3 + $0xf0] sm:$0xff]
      %v610 = vld [vmem:[%s3 + $0xf8] sm:$0xff]
      %v611 = vld [vmem:[%s3 + $0x100] sm:$0xff]
      %v612 = vld [vmem:[%s3 + $0x108] sm:$0xff]
      %v613 = vld [vmem:[%s3 + $0x110] sm:$0xff]
      %v614 = vld [vmem:[%s3 + $0x118] sm:$0xff]
      %v615 = vld [vmem:[%s3 + $0x120] sm:$0xff]
      %v616 = vld [vmem:[%s3 + $0x128] sm:$0xff]
      %v617 = vld [vmem:[%s3 + $0x130] sm:$0xff]
      %v618 = vld [vmem:[%s3 + $0x138] sm:$0xff]
      %v619 = vld [vmem:[%s3 + $0x140] sm:$0xff]
      %v620 = vld [vmem:[%s3 + $0x148] sm:$0xff]
      %v621 = vld [vmem:[%s3 + $0x150] sm:$0xff]
      %v622 = vld [vmem:[%s3 + $0x158] sm:$0xff]
      %v623 = vld [vmem:[%s3 + $0x160] sm:$0xff]
      %v624 = vld [vmem:[%s3 + $0x168] sm:$0xff]
      %v625 = vld [vmem:[%s3 + $0x170] sm:$0xff]
      %v626 = vld [vmem:[%s3 + $0x178] sm:$0xff]
      %v627 = vld [vmem:[%s3 + $0x180] sm:$0xff]
      %v628 = vld [vmem:[%s3 + $0x188] sm:$0xff]
      %v629 = vld [vmem:[%s3 + $0x190] sm:$0xff]
      %v630 = vld [vmem:[%s3 + $0x198] sm:$0xff]
      %v631 = vld [vmem:[%s3 + $0x1a0] sm:$0xff]
      %v632 = vld [vmem:[%s3 + $0x1a8] sm:$0xff]
      %v633 = vld [vmem:[%s3 + $0x1b0] sm:$0xff]
      %v634 = vld [vmem:[%s3 + $0x1b8] sm:$0xff]
      %v635 = vld [vmem:[%s3 + $0x1c0] sm:$0xff]
      %v636 = vld [vmem:[%s3 + $0x1c8] sm:$0xff]
      %v637 = vld [vmem:[%s3 + $0x1d0] sm:$0xff]
      %v638 = vld [vmem:[%s3 + $0x1d8] sm:$0xff]
      %v639 = vld [vmem:[%s3 + $0x1e0] sm:$0xff]
      %v640 = vld [vmem:[%s3 + $0x1e8] sm:$0xff]
      %v641 = vld [vmem:[%s3 + $0x1f0] sm:$0xff]
      %v642 = vld [vmem:[%s3 + $0x1f8] sm:$0xff]
      %v643 = vld [vmem:[#allocation2] sm:$0x1]
      %v645 = vlaneseq
      %v646 = vshrl.u32 %v645, 7
      %v647 = vsub.s32 0, %v646
      %v648 = vrot.slane %v643, %v647
      %650 = vmatprep.subr.mxu0 0.0
      %651 = vmatpush1.msra.mxu0 %v579
      %652 = vmatprep.subr.mxu0 0.0
      %653 = vmatpush1.msra.mxu0 %v580
      %654 = vmatprep.subr.mxu0 0.0
      %655 = vmatpush1.msra.mxu0 %v581
      %656 = vmatprep.subr.mxu0 0.0
      %657 = vmatpush1.msra.mxu0 %v582
      %658 = vmatprep.subr.mxu0 0.0
      %659 = vmatpush1.msra.mxu0 %v583
      %660 = vmatprep.subr.mxu0 0.0
      %661 = vmatpush1.msra.mxu0 %v584
      %662 = vmatprep.subr.mxu0 0.0
      %663 = vmatpush1.msra.mxu0 %v585
      %664 = vmatprep.subr.mxu0 0.0
      %665 = vmatpush1.msra.mxu0 %v586
      %666 = vmatprep.subr.mxu0 0.0
      %667 = vmatpush1.msra.mxu0 %v587
      %668 = vmatprep.subr.mxu0 0.0
      %669 = vmatpush1.msra.mxu0 %v588
      %670 = vmatprep.subr.mxu0 0.0
      %671 = vmatpush1.msra.mxu0 %v589
      %672 = vmatprep.subr.mxu0 0.0
      %673 = vmatpush1.msra.mxu0 %v590
      %674 = vmatprep.subr.mxu0 0.0
      %675 = vmatpush1.msra.mxu0 %v591
      %676 = vmatprep.subr.mxu0 0.0
      %677 = vmatpush1.msra.mxu0 %v592
      %678 = vmatprep.subr.mxu0 0.0
      %679 = vmatpush1.msra.mxu0 %v593
      %680 = vmatprep.subr.mxu0 0.0
      %681 = vmatpush1.msra.mxu0 %v594
      %682 = vmatprep.subr.mxu0 0.0
      %683 = vmatpush1.msra.mxu0 %v595
      %684 = vmatprep.subr.mxu0 0.0
      %685 = vmatpush1.msra.mxu0 %v596
      %686 = vmatprep.subr.mxu0 0.0
      %687 = vmatpush1.msra.mxu0 %v597
      %688 = vmatprep.subr.mxu0 0.0
      %689 = vmatpush1.msra.mxu0 %v598
      %690 = vmatprep.subr.mxu0 0.0
      %691 = vmatpush1.msra.mxu0 %v599
      %692 = vmatprep.subr.mxu0 0.0
      %693 = vmatpush1.msra.mxu0 %v600
      %694 = vmatprep.subr.mxu0 0.0
      %695 = vmatpush1.msra.mxu0 %v601
      %696 = vmatprep.subr.mxu0 0.0
      %697 = vmatpush1.msra.mxu0 %v602
      %698 = vmatprep.subr.mxu0 0.0
      %699 = vmatpush1.msra.mxu0 %v603
      %700 = vmatprep.subr.mxu0 0.0
      %701 = vmatpush1.msra.mxu0 %v604
      %702 = vmatprep.subr.mxu0 0.0
      %703 = vmatpush1.msra.mxu0 %v605
      %704 = vmatprep.subr.mxu0 0.0
      %705 = vmatpush1.msra.mxu0 %v606
      %706 = vmatprep.subr.mxu0 0.0
      %707 = vmatpush1.msra.mxu0 %v607
      %708 = vmatprep.subr.mxu0 0.0
      %709 = vmatpush1.msra.mxu0 %v608
      %710 = vmatprep.subr.mxu0 0.0
      %711 = vmatpush1.msra.mxu0 %v609
      %712 = vmatprep.subr.mxu0 0.0
      %713 = vmatpush1.msra.mxu0 %v610
      %714 = vmatprep.mubr.f32.mxu0 %v576
      %715 = vmatmul.mubr.f32.gmra.mrb[0].mxu0 %v575
      %v716 = vpop.f32.mrb[0].mxu0
      %v717 = vadd.f32 %v648, %v716
      %v718 = vpop.f32.mrb[0].mxu0
      %719 = vdwg.mxu0
      %720 = vmatprep.subr.mxu0 0.0
      %721 = vmatpush1.msra.mxu0 %v611
      %722 = vmatprep.subr.mxu0 0.0
      %723 = vmatpush1.msra.mxu0 %v612
      %724 = vmatprep.subr.mxu0 0.0
      %725 = vmatpush1.msra.mxu0 %v613
      %726 = vmatprep.subr.mxu0 0.0
      %727 = vmatpush1.msra.mxu0 %v614
      %728 = vmatprep.subr.mxu0 0.0
      %729 = vmatpush1.msra.mxu0 %v615
      %730 = vmatprep.subr.mxu0 0.0
      %731 = vmatpush1.msra.mxu0 %v616
      %732 = vmatprep.subr.mxu0 0.0
      %733 = vmatpush1.msra.mxu0 %v617
      %734 = vmatprep.subr.mxu0 0.0
      %735 = vmatpush1.msra.mxu0 %v618
      %736 = vmatprep.subr.mxu0 0.0
      %737 = vmatpush1.msra.mxu0 %v619
      %738 = vmatprep.subr.mxu0 0.0
      %739 = vmatpush1.msra.mxu0 %v620
      %740 = vmatprep.subr.mxu0 0.0
      %741 = vmatpush1.msra.mxu0 %v621
      %742 = vmatprep.subr.mxu0 0.0
      %743 = vmatpush1.msra.mxu0 %v622
      %744 = vmatprep.subr.mxu0 0.0
      %745 = vmatpush1.msra.mxu0 %v623
      %746 = vmatprep.subr.mxu0 0.0
      %747 = vmatpush1.msra.mxu0 %v624
      %748 = vmatprep.subr.mxu0 0.0
      %749 = vmatpush1.msra.mxu0 %v625
      %750 = vmatprep.subr.mxu0 0.0
      %751 = vmatpush1.msra.mxu0 %v626
      %752 = vmatprep.subr.mxu0 0.0
      %753 = vmatpush1.msra.mxu0 %v627
      %754 = vmatprep.subr.mxu0 0.0
      %755 = vmatpush1.msra.mxu0 %v628
      %756 = vmatprep.subr.mxu0 0.0
      %757 = vmatpush1.msra.mxu0 %v629
      %758 = vmatprep.subr.mxu0 0.0
      %759 = vmatpush1.msra.mxu0 %v630
      %760 = vmatprep.subr.mxu0 0.0
      %761 = vmatpush1.msra.mxu0 %v631
      %762 = vmatprep.subr.mxu0 0.0
      %763 = vmatpush1.msra.mxu0 %v632
      %764 = vmatprep.subr.mxu0 0.0
      %765 = vmatpush1.msra.mxu0 %v633
      %766 = vmatprep.subr.mxu0 0.0
      %767 = vmatpush1.msra.mxu0 %v634
      %768 = vmatprep.subr.mxu0 0.0
      %769 = vmatpush1.msra.mxu0 %v635
      %770 = vmatprep.subr.mxu0 0.0
      %771 = vmatpush1.msra.mxu0 %v636
      %772 = vmatprep.subr.mxu0 0.0
      %773 = vmatpush1.msra.mxu0 %v637
      %774 = vmatprep.subr.mxu0 0.0
      %775 = vmatpush1.msra.mxu0 %v638
      %776 = vmatprep.subr.mxu0 0.0
      %777 = vmatpush1.msra.mxu0 %v639
      %778 = vmatprep.subr.mxu0 0.0
      %779 = vmatpush1.msra.mxu0 %v640
      %780 = vmatprep.subr.mxu0 0.0
      %781 = vmatpush1.msra.mxu0 %v641
      %782 = vmatprep.subr.mxu0 0.0
      %783 = vmatpush1.msra.mxu0 %v642
      %784 = vmatprep.mubr.f32.mxu0 %v578
      %785 = vmatmul.mubr.f32.gmra.mrb[0].mxu0 %v577
      %v786 = vpop.f32.mrb[0].mxu0
      %v787 = vadd.f32 %v717, %v786
      %v788 = vpop.f32.mrb[0].mxu0
      %789 = vdwg.mxu0
      %vm790 = vcmask 7168
      %v791 = vsel %vm790, %v787, -inf
      %v792 = vrot.slane %v791, 4
      %v793 = vmax.f32 %v791, %v792
      %v794 = vrot.slane %v793, 2
      %v795 = vmax.f32 %v793, %v794
      %v796 = vrot.slane %v795, 1
      %v797 = vmax.f32 %v795, %v796
      %v798 = vsub.f32 %v787, %v797
      %v799 = vmul.f32 %v798, 1.442695
      %v800 = vpow.pop %v799
      %v801 = vsel %vm790, %v800, 0.0
      %v802 = vrot.slane %v801, 4
      %v803 = vadd.f32 %v801, %v802
      %v804 = vrot.slane %v803, 2
      %v805 = vadd.f32 %v803, %v804
      %v806 = vrot.slane %v805, 1
      %v807 = vadd.f32 %v805, %v806
      %v808 = vrcp.pop %v807
      %v809 = vmul.f32 %v800, %v808
      %811 = vset.pattern.permute.xlu0 0
      %812 = vperm.xlu0 %811, %v809
      %v813 = vpop.permute.xlu0 %812
      %v815 = vmul.f32 %v813, %v281
      %v816 = vmul.f32 %v813, %v282
      %v817 = vrot.slane %v815, 4
      %v818 = vadd.f32 %v815, %v817
      %v819 = vrot.slane %v818, 2
      %v820 = vadd.f32 %v818, %v819
      %v821 = vrot.slane %v820, 1
      %v822 = vadd.f32 %v820, %v821
      %v823 = vrot.slane %v816, 4
      %v824 = vadd.f32 %v816, %v823
      %v825 = vrot.slane %v824, 2
      %v826 = vadd.f32 %v824, %v825
      %v827 = vrot.slane %v826, 1
      %v828 = vadd.f32 %v826, %v827
      %v829 = vld [vmem:[%s5] sm:$0xff]
      %v830 = vld [vmem:[%s5 + $0x8] sm:$0xff]
      %v831 = vld [vmem:[%s5 + $0x10] sm:$0xff]
      %v832 = vld [vmem:[%s5 + $0x18] sm:$0xff]
      %v833 = vld [vmem:[%s5 + $0x20] sm:$0xff]
      %v834 = vld [vmem:[%s5 + $0x28] sm:$0xff]
      %v835 = vld [vmem:[%s5 + $0x30] sm:$0xff]
      %v836 = vld [vmem:[%s5 + $0x38] sm:$0xff]
      %v837 = vld [vmem:[%s5 + $0x40] sm:$0xff]
      %v838 = vld [vmem:[%s5 + $0x48] sm:$0xff]
      %v839 = vld [vmem:[%s5 + $0x50] sm:$0xff]
      %v840 = vld [vmem:[%s5 + $0x58] sm:$0xff]
      %v841 = vld [vmem:[%s5 + $0x60] sm:$0xff]
      %v842 = vld [vmem:[%s5 + $0x68] sm:$0xff]
      %v843 = vld [vmem:[%s5 + $0x70] sm:$0xff]
      %v844 = vld [vmem:[%s5 + $0x78] sm:$0xff]
      %v845 = vld [vmem:[%s5 + $0x80] sm:$0xff]
      %v846 = vld [vmem:[%s5 + $0x88] sm:$0xff]
      %v847 = vld [vmem:[%s5 + $0x90] sm:$0xff]
      %v848 = vld [vmem:[%s5 + $0x98] sm:$0xff]
      %v849 = vld [vmem:[%s5 + $0xa0] sm:$0xff]
      %v850 = vld [vmem:[%s5 + $0xa8] sm:$0xff]
      %v851 = vld [vmem:[%s5 + $0xb0] sm:$0xff]
      %v852 = vld [vmem:[%s5 + $0xb8] sm:$0xff]
      %v853 = vld [vmem:[%s5 + $0xc0] sm:$0xff]
      %v854 = vld [vmem:[%s5 + $0xc8] sm:$0xff]
      %v855 = vld [vmem:[%s5 + $0xd0] sm:$0xff]
      %v856 = vld [vmem:[%s5 + $0xd8] sm:$0xff]
      %v857 = vld [vmem:[%s5 + $0xe0] sm:$0xff]
      %v858 = vld [vmem:[%s5 + $0xe8] sm:$0xff]
      %v859 = vld [vmem:[%s5 + $0xf0] sm:$0xff]
      %v860 = vld [vmem:[%s5 + $0xf8] sm:$0xff]
      %v861 = vld [vmem:[#allocation3] sm:$0x1]
      %862 = vmatprep.subr.mxu0 0.0
      %863 = vmatpush1.msra.mxu0 %v829
      %864 = vmatprep.subr.mxu0 0.0
      %865 = vmatpush1.msra.mxu0 %v830
      %866 = vmatprep.subr.mxu0 0.0
      %867 = vmatpush1.msra.mxu0 %v831
      %868 = vmatprep.subr.mxu0 0.0
      %869 = vmatpush1.msra.mxu0 %v832
      %870 = vmatprep.subr.mxu0 0.0
      %871 = vmatpush1.msra.mxu0 %v833
      %872 = vmatprep.subr.mxu0 0.0
      %873 = vmatpush1.msra.mxu0 %v834
      %874 = vmatprep.subr.mxu0 0.0
      %875 = vmatpush1.msra.mxu0 %v835
      %876 = vmatprep.subr.mxu0 0.0
      %877 = vmatpush1.msra.mxu0 %v836
      %878 = vmatprep.subr.mxu0 0.0
      %879 = vmatpush1.msra.mxu0 %v837
      %880 = vmatprep.subr.mxu0 0.0
      %881 = vmatpush1.msra.mxu0 %v838
      %882 = vmatprep.subr.mxu0 0.0
      %883 = vmatpush1.msra.mxu0 %v839
      %884 = vmatprep.subr.mxu0 0.0
      %885 = vmatpush1.msra.mxu0 %v840
      %886 = vmatprep.subr.mxu0 0.0
      %887 = vmatpush1.msra.mxu0 %v841
      %888 = vmatprep.subr.mxu0 0.0
      %889 = vmatpush1.msra.mxu0 %v842
      %890 = vmatprep.subr.mxu0 0.0
      %891 = vmatpush1.msra.mxu0 %v843
      %892 = vmatprep.subr.mxu0 0.0
      %893 = vmatpush1.msra.mxu0 %v844
      %894 = vmatprep.subr.mxu0 0.0
      %895 = vmatpush1.msra.mxu0 %v845
      %896 = vmatprep.subr.mxu0 0.0
      %897 = vmatpush1.msra.mxu0 %v846
      %898 = vmatprep.subr.mxu0 0.0
      %899 = vmatpush1.msra.mxu0 %v847
      %900 = vmatprep.subr.mxu0 0.0
      %901 = vmatpush1.msra.mxu0 %v848
      %902 = vmatprep.subr.mxu0 0.0
      %903 = vmatpush1.msra.mxu0 %v849
      %904 = vmatprep.subr.mxu0 0.0
      %905 = vmatpush1.msra.mxu0 %v850
      %906 = vmatprep.subr.mxu0 0.0
      %907 = vmatpush1.msra.mxu0 %v851
      %908 = vmatprep.subr.mxu0 0.0
      %909 = vmatpush1.msra.mxu0 %v852
      %910 = vmatprep.subr.mxu0 0.0
      %911 = vmatpush1.msra.mxu0 %v853
      %912 = vmatprep.subr.mxu0 0.0
      %913 = vmatpush1.msra.mxu0 %v854
      %914 = vmatprep.subr.mxu0 0.0
      %915 = vmatpush1.msra.mxu0 %v855
      %916 = vmatprep.subr.mxu0 0.0
      %917 = vmatpush1.msra.mxu0 %v856
      %918 = vmatprep.subr.mxu0 0.0
      %919 = vmatpush1.msra.mxu0 %v857
      %920 = vmatprep.subr.mxu0 0.0
      %921 = vmatpush1.msra.mxu0 %v858
      %922 = vmatprep.subr.mxu0 0.0
      %923 = vmatpush1.msra.mxu0 %v859
      %924 = vmatprep.subr.mxu0 0.0
      %925 = vmatpush1.msra.mxu0 %v860
      %926 = vmatprep.mubr.f32.mxu0 %v828
      %927 = vmatmul.mubr.f32.gmra.mrb[0].mxu0 %v822
      %v928 = vpop.f32.mrb[0].mxu0
      %v929 = vadd.f32 %v861, %v928
      %v930 = vpop.f32.mrb[0].mxu0
      %931 = vdwg.mxu0
      %v932 = vxor.u32 %v929, 2147483648
      %v933 = vmul.f32 %v932, 1.442695
      %v934 = vpow.pop %v933
      %v935 = vadd.f32 %v934, 1.0
      %v936 = vrcp.pop %v935
      %v937 = vmul.f32 1.0, %v936
      %vm938 = vcmask 0
      %939 = vst.msk [vmem:[%s280] sm:$0x1] %vm938, %v937
      %p940 = scmp.lt.s32.totalorder %s22, 1
      %s941 = scalar_select %p940, %s22, 1
      %s942 = scalar_lea.vmem %s7, %s941
      // Predicated region
      $region49: #{spec_metric_predictor.7} parent=47 // pred_check
        %p943 = pneg %p192
      $region50: #{spec_metric_predictor.7} parent=47 // pred_check_branch
        %945 = sbr.rel (%p943) target = $region52
      $region51: #{spec_metric_predictor.7} parent=47 // pred_region
        _
      $region52: #{spec_metric_predictor.7} parent=47 // pred_fallthru
        _
    $region48: #{spec_metric_predictor.7} parent=5 // pred_fallthru
      _
    %p946 = scmp.le.s32.totalorder 2, %s17
    // Predicated region
    $region53: #{spec_metric_predictor.7} parent=5 // pred_check
      %p947 = pneg %p946
    $region54: #{spec_metric_predictor.7} parent=5 // pred_check_branch
      %949 = sbr.rel (%p947) target = $region56
    $region55: #{spec_metric_predictor.7} parent=5 // pred_region
      %s950 = ssub.s32 %s17, 2
      // Predicated region
      $region57: #{spec_metric_predictor.7} parent=55 // pred_check
        %p951 = pneg %p198
      $region58: #{spec_metric_predictor.7} parent=55 // pred_check_branch
        %953 = sbr.rel (%p951) target = $region60
      $region59: #{spec_metric_predictor.7} parent=55 // pred_region
        %p954 = scmp.lt.s32.totalorder %s23, 1
        %s955 = scalar_select %p954, %s23, 1
        %s956 = scalar_lea.vmem %s7, %s955
      $region60: #{spec_metric_predictor.7} parent=55 // pred_fallthru
        _
    $region56: #{spec_metric_predictor.7} parent=5 // pred_fallthru
      _
  $region6: #{spec_metric_predictor.7} parent=0 // loop_footer
    %s21 = sadd.s32 1, %s17
  $region7: #{spec_metric_predictor.7} parent=0 // loop_footer_branch
    %16 = sbr.rel target = $region3
  $region8: #{spec_metric_predictor.7} parent=0 // loop_exit
    _

// kernel: spec_metric_predictor.6
$region0: #{spec_metric_predictor.6}
  #allocation0 [shape = 'u32[]', space=smem, size = 0x4, offset = 0x4, fixed_abs, tag = 'smem constant byte address 0x4 - core index']
  #allocation1 [shape = 'u32[144,128]{1,0:T(1,128)}', space=vmem, size = 0x12000, scoped, tag = 'internal scratch']
  #allocation2 [shape = 'f32[16,1024]{1,0:T(8,128)}', space=vmem, size = 0x10000, scoped, tag = 'scratch operand']
  %s0 = inlined_call_operand.vmem [shape: f32[16,256], index: 0, kind: input, shape index: {}]
  %s1 = inlined_call_operand.vmem [shape: f32[256,1024], index: 1, kind: input, shape index: {}]
  %s2 = inlined_call_operand.vmem [shape: f32[1,1024], index: 2, kind: input, shape index: {}]
  %s3 = inlined_call_operand.vmem [shape: f32[256,512], index: 3, kind: input, shape index: {}]
  %s4 = inlined_call_operand.vmem [shape: f32[16,256], index: 4, kind: output, shape index: {}]
  %s5 = sld [smem:[#allocation0]]
  $region26: #{spec_metric_predictor.6} parent=0
    _
  %s7 = ssub.s32 1, %s5
  %s8 = scalar_select 0, %s7, %s5
  // Predicated region
  $region2: #{spec_metric_predictor.6} parent=0 // pred_check
    _
  $region3: #{spec_metric_predictor.6} parent=0 // pred_check_branch
    %10 = sbr.rel (0) target = $region5
  $region4: #{spec_metric_predictor.6} parent=0 // pred_region
    _
  $region5: #{spec_metric_predictor.6} parent=0 // pred_fallthru
    _
  // Predicated region
  $region6: #{spec_metric_predictor.6} parent=0 // pred_check
    _
  $region7: #{spec_metric_predictor.6} parent=0 // pred_check_branch
    %12 = sbr.rel (0) target = $region9
  $region8: #{spec_metric_predictor.6} parent=0 // pred_region
    _
  $region9: #{spec_metric_predictor.6} parent=0 // pred_fallthru
    _
  // Predicated region
  $region10: #{spec_metric_predictor.6} parent=0 // pred_check
    _
  $region11: #{spec_metric_predictor.6} parent=0 // pred_check_branch
    %14 = sbr.rel (0) target = $region13
  $region12: #{spec_metric_predictor.6} parent=0 // pred_region
    _
  $region13: #{spec_metric_predictor.6} parent=0 // pred_fallthru
    _
  // Predicated region
  $region14: #{spec_metric_predictor.6} parent=0 // pred_check
    _
  $region15: #{spec_metric_predictor.6} parent=0 // pred_check_branch
    %16 = sbr.rel (0) target = $region17
  $region16: #{spec_metric_predictor.6} parent=0 // pred_region
    _
  $region17: #{spec_metric_predictor.6} parent=0 // pred_fallthru
    _
  %v17 = vld [vmem:[%s0] sm:$0xff]
  %v18 = vld [vmem:[%s0 + $0x8] sm:$0xff]
  %v19 = vld [vmem:[%s0 + $0x10] sm:$0xff]
  %v20 = vld [vmem:[%s0 + $0x18] sm:$0xff]
  %v21 = vld [vmem:[%s1] sm:$0xff]
  %v22 = vld [vmem:[%s1 + $0x8] sm:$0xff]
  %v23 = vld [vmem:[%s1 + $0x10] sm:$0xff]
  %v24 = vld [vmem:[%s1 + $0x18] sm:$0xff]
  %v25 = vld [vmem:[%s1 + $0x20] sm:$0xff]
  %v26 = vld [vmem:[%s1 + $0x28] sm:$0xff]
  %v27 = vld [vmem:[%s1 + $0x30] sm:$0xff]
  %v28 = vld [vmem:[%s1 + $0x38] sm:$0xff]
  %v29 = vld [vmem:[%s1 + $0x40] sm:$0xff]
  %v30 = vld [vmem:[%s1 + $0x48] sm:$0xff]
  %v31 = vld [vmem:[%s1 + $0x50] sm:$0xff]
  %v32 = vld [vmem:[%s1 + $0x58] sm:$0xff]
  %v33 = vld [vmem:[%s1 + $0x60] sm:$0xff]
  %v34 = vld [vmem:[%s1 + $0x68] sm:$0xff]
  %v35 = vld [vmem:[%s1 + $0x70] sm:$0xff]
  %v36 = vld [vmem:[%s1 + $0x78] sm:$0xff]
  %v37 = vld [vmem:[%s1 + $0x80] sm:$0xff]
  %v38 = vld [vmem:[%s1 + $0x88] sm:$0xff]
  %v39 = vld [vmem:[%s1 + $0x90] sm:$0xff]
  %v40 = vld [vmem:[%s1 + $0x98] sm:$0xff]
  %v41 = vld [vmem:[%s1 + $0xa0] sm:$0xff]
  %v42 = vld [vmem:[%s1 + $0xa8] sm:$0xff]
  %v43 = vld [vmem:[%s1 + $0xb0] sm:$0xff]
  %v44 = vld [vmem:[%s1 + $0xb8] sm:$0xff]
  %v45 = vld [vmem:[%s1 + $0xc0] sm:$0xff]
  %v46 = vld [vmem:[%s1 + $0xc8] sm:$0xff]
  %v47 = vld [vmem:[%s1 + $0xd0] sm:$0xff]
  %v48 = vld [vmem:[%s1 + $0xd8] sm:$0xff]
  %v49 = vld [vmem:[%s1 + $0xe0] sm:$0xff]
  %v50 = vld [vmem:[%s1 + $0xe8] sm:$0xff]
  %v51 = vld [vmem:[%s1 + $0xf0] sm:$0xff]
  %v52 = vld [vmem:[%s1 + $0xf8] sm:$0xff]
  %v53 = vld [vmem:[%s1 + $0x100] sm:$0xff]
  %v54 = vld [vmem:[%s1 + $0x108] sm:$0xff]
  %v55 = vld [vmem:[%s1 + $0x110] sm:$0xff]
  %v56 = vld [vmem:[%s1 + $0x118] sm:$0xff]
  %v57 = vld [vmem:[%s1 + $0x120] sm:$0xff]
  %v58 = vld [vmem:[%s1 + $0x128] sm:$0xff]
  %v59 = vld [vmem:[%s1 + $0x130] sm:$0xff]
  %v60 = vld [vmem:[%s1 + $0x138] sm:$0xff]
  %v61 = vld [vmem:[%s1 + $0x140] sm:$0xff]
  %v62 = vld [vmem:[%s1 + $0x148] sm:$0xff]
  %v63 = vld [vmem:[%s1 + $0x150] sm:$0xff]
  %v64 = vld [vmem:[%s1 + $0x158] sm:$0xff]
  %v65 = vld [vmem:[%s1 + $0x160] sm:$0xff]
  %v66 = vld [vmem:[%s1 + $0x168] sm:$0xff]
  %v67 = vld [vmem:[%s1 + $0x170] sm:$0xff]
  %v68 = vld [vmem:[%s1 + $0x178] sm:$0xff]
  %v69 = vld [vmem:[%s1 + $0x180] sm:$0xff]
  %v70 = vld [vmem:[%s1 + $0x188] sm:$0xff]
  %v71 = vld [vmem:[%s1 + $0x190] sm:$0xff]
  %v72 = vld [vmem:[%s1 + $0x198] sm:$0xff]
  %v73 = vld [vmem:[%s1 + $0x1a0] sm:$0xff]
  %v74 = vld [vmem:[%s1 + $0x1a8] sm:$0xff]
  %v75 = vld [vmem:[%s1 + $0x1b0] sm:$0xff]
  %v76 = vld [vmem:[%s1 + $0x1b8] sm:$0xff]
  %v77 = vld [vmem:[%s1 + $0x1c0] sm:$0xff]
  %v78 = vld [vmem:[%s1 + $0x1c8] sm:$0xff]
  %v79 = vld [vmem:[%s1 + $0x1d0] sm:$0xff]
  %v80 = vld [vmem:[%s1 + $0x1d8] sm:$0xff]
  %v81 = vld [vmem:[%s1 + $0x1e0] sm:$0xff]
  %v82 = vld [vmem:[%s1 + $0x1e8] sm:$0xff]
  %v83 = vld [vmem:[%s1 + $0x1f0] sm:$0xff]
  %v84 = vld [vmem:[%s1 + $0x1f8] sm:$0xff]
  %v85 = vld [vmem:[%s1 + $0x200] sm:$0xff]
  %v86 = vld [vmem:[%s1 + $0x208] sm:$0xff]
  %v87 = vld [vmem:[%s1 + $0x210] sm:$0xff]
  %v88 = vld [vmem:[%s1 + $0x218] sm:$0xff]
  %v89 = vld [vmem:[%s1 + $0x220] sm:$0xff]
  %v90 = vld [vmem:[%s1 + $0x228] sm:$0xff]
  %v91 = vld [vmem:[%s1 + $0x230] sm:$0xff]
  %v92 = vld [vmem:[%s1 + $0x238] sm:$0xff]
  %v93 = vld [vmem:[%s1 + $0x240] sm:$0xff]
  %v94 = vld [vmem:[%s1 + $0x248] sm:$0xff]
  %v95 = vld [vmem:[%s1 + $0x250] sm:$0xff]
  %v96 = vld [vmem:[%s1 + $0x258] sm:$0xff]
  %v97 = vld [vmem:[%s1 + $0x260] sm:$0xff]
  %v98 = vld [vmem:[%s1 + $0x268] sm:$0xff]
  %v99 = vld [vmem:[%s1 + $0x270] sm:$0xff]
  %v100 = vld [vmem:[%s1 + $0x278] sm:$0xff]
  %v101 = vld [vmem:[%s1 + $0x280] sm:$0xff]
  %v102 = vld [vmem:[%s1 + $0x288] sm:$0xff]
  %v103 = vld [vmem:[%s1 + $0x290] sm:$0xff]
  %v104 = vld [vmem:[%s1 + $0x298] sm:$0xff]
  %v105 = vld [vmem:[%s1 + $0x2a0] sm:$0xff]
  %v106 = vld [vmem:[%s1 + $0x2a8] sm:$0xff]
  %v107 = vld [vmem:[%s1 + $0x2b0] sm:$0xff]
  %v108 = vld [vmem:[%s1 + $0x2b8] sm:$0xff]
  %v109 = vld [vmem:[%s1 + $0x2c0] sm:$0xff]
  %v110 = vld [vmem:[%s1 + $0x2c8] sm:$0xff]
  %v111 = vld [vmem:[%s1 + $0x2d0] sm:$0xff]
  %v112 = vld [vmem:[%s1 + $0x2d8] sm:$0xff]
  %v113 = vld [vmem:[%s1 + $0x2e0] sm:$0xff]
  %v114 = vld [vmem:[%s1 + $0x2e8] sm:$0xff]
  %v115 = vld [vmem:[%s1 + $0x2f0] sm:$0xff]
  %v116 = vld [vmem:[%s1 + $0x2f8] sm:$0xff]
  %v117 = vld [vmem:[%s1 + $0x300] sm:$0xff]
  %v118 = vld [vmem:[%s1 + $0x308] sm:$0xff]
  %v119 = vld [vmem:[%s1 + $0x310] sm:$0xff]
  %v120 = vld [vmem:[%s1 + $0x318] sm:$0xff]
  %v121 = vld [vmem:[%s1 + $0x320] sm:$0xff]
  %v122 = vld [vmem:[%s1 + $0x328] sm:$0xff]
  %v123 = vld [vmem:[%s1 + $0x330] sm:$0xff]
  %v124 = vld [vmem:[%s1 + $0x338] sm:$0xff]
  %v125 = vld [vmem:[%s1 + $0x340] sm:$0xff]
  %v126 = vld [vmem:[%s1 + $0x348] sm:$0xff]
  %v127 = vld [vmem:[%s1 + $0x350] sm:$0xff]
  %v128 = vld [vmem:[%s1 + $0x358] sm:$0xff]
  %v129 = vld [vmem:[%s1 + $0x360] sm:$0xff]
  %v130 = vld [vmem:[%s1 + $0x368] sm:$0xff]
  %v131 = vld [vmem:[%s1 + $0x370] sm:$0xff]
  %v132 = vld [vmem:[%s1 + $0x378] sm:$0xff]
  %v133 = vld [vmem:[%s1 + $0x380] sm:$0xff]
  %v134 = vld [vmem:[%s1 + $0x388] sm:$0xff]
  %v135 = vld [vmem:[%s1 + $0x390] sm:$0xff]
  %v136 = vld [vmem:[%s1 + $0x398] sm:$0xff]
  %v137 = vld [vmem:[%s1 + $0x3a0] sm:$0xff]
  %v138 = vld [vmem:[%s1 + $0x3a8] sm:$0xff]
  %v139 = vld [vmem:[%s1 + $0x3b0] sm:$0xff]
  %v140 = vld [vmem:[%s1 + $0x3b8] sm:$0xff]
  %v141 = vld [vmem:[%s1 + $0x3c0] sm:$0xff]
  %v142 = vld [vmem:[%s1 + $0x3c8] sm:$0xff]
  %v143 = vld [vmem:[%s1 + $0x3d0] sm:$0xff]
  %v144 = vld [vmem:[%s1 + $0x3d8] sm:$0xff]
  %v145 = vld [vmem:[%s1 + $0x3e0] sm:$0xff]
  %v146 = vld [vmem:[%s1 + $0x3e8] sm:$0xff]
  %v147 = vld [vmem:[%s1 + $0x3f0] sm:$0xff]
  %v148 = vld [vmem:[%s1 + $0x3f8] sm:$0xff]
  %v149 = vld [vmem:[%s1 + $0x400] sm:$0xff]
  %v150 = vld [vmem:[%s1 + $0x408] sm:$0xff]
  %v151 = vld [vmem:[%s1 + $0x410] sm:$0xff]
  %v152 = vld [vmem:[%s1 + $0x418] sm:$0xff]
  %v153 = vld [vmem:[%s1 + $0x420] sm:$0xff]
  %v154 = vld [vmem:[%s1 + $0x428] sm:$0xff]
  %v155 = vld [vmem:[%s1 + $0x430] sm:$0xff]
  %v156 = vld [vmem:[%s1 + $0x438] sm:$0xff]
  %v157 = vld [vmem:[%s1 + $0x440] sm:$0xff]
  %v158 = vld [vmem:[%s1 + $0x448] sm:$0xff]
  %v159 = vld [vmem:[%s1 + $0x450] sm:$0xff]
  %v160 = vld [vmem:[%s1 + $0x458] sm:$0xff]
  %v161 = vld [vmem:[%s1 + $0x460] sm:$0xff]
  %v162 = vld [vmem:[%s1 + $0x468] sm:$0xff]
  %v163 = vld [vmem:[%s1 + $0x470] sm:$0xff]
  %v164 = vld [vmem:[%s1 + $0x478] sm:$0xff]
  %v165 = vld [vmem:[%s1 + $0x480] sm:$0xff]
  %v166 = vld [vmem:[%s1 + $0x488] sm:$0xff]
  %v167 = vld [vmem:[%s1 + $0x490] sm:$0xff]
  %v168 = vld [vmem:[%s1 + $0x498] sm:$0xff]
  %v169 = vld [vmem:[%s1 + $0x4a0] sm:$0xff]
  %v170 = vld [vmem:[%s1 + $0x4a8] sm:$0xff]
  %v171 = vld [vmem:[%s1 + $0x4b0] sm:$0xff]
  %v172 = vld [vmem:[%s1 + $0x4b8] sm:$0xff]
  %v173 = vld [vmem:[%s1 + $0x4c0] sm:$0xff]
  %v174 = vld [vmem:[%s1 + $0x4c8] sm:$0xff]
  %v175 = vld [vmem:[%s1 + $0x4d0] sm:$0xff]
  %v176 = vld [vmem:[%s1 + $0x4d8] sm:$0xff]
  %v177 = vld [vmem:[%s1 + $0x4e0] sm:$0xff]
  %v178 = vld [vmem:[%s1 + $0x4e8] sm:$0xff]
  %v179 = vld [vmem:[%s1 + $0x4f0] sm:$0xff]
  %v180 = vld [vmem:[%s1 + $0x4f8] sm:$0xff]
  %v181 = vld [vmem:[%s1 + $0x500] sm:$0xff]
  %v182 = vld [vmem:[%s1 + $0x508] sm:$0xff]
  %v183 = vld [vmem:[%s1 + $0x510] sm:$0xff]
  %v184 = vld [vmem:[%s1 + $0x518] sm:$0xff]
  %v185 = vld [vmem:[%s1 + $0x520] sm:$0xff]
  %v186 = vld [vmem:[%s1 + $0x528] sm:$0xff]
  %v187 = vld [vmem:[%s1 + $0x530] sm:$0xff]
  %v188 = vld [vmem:[%s1 + $0x538] sm:$0xff]
  %v189 = vld [vmem:[%s1 + $0x540] sm:$0xff]
  %v190 = vld [vmem:[%s1 + $0x548] sm:$0xff]
  %v191 = vld [vmem:[%s1 + $0x550] sm:$0xff]
  %v192 = vld [vmem:[%s1 + $0x558] sm:$0xff]
  %v193 = vld [vmem:[%s1 + $0x560] sm:$0xff]
  %v194 = vld [vmem:[%s1 + $0x568] sm:$0xff]
  %v195 = vld [vmem:[%s1 + $0x570] sm:$0xff]
  %v196 = vld [vmem:[%s1 + $0x578] sm:$0xff]
  %v197 = vld [vmem:[%s1 + $0x580] sm:$0xff]
  %v198 = vld [vmem:[%s1 + $0x588] sm:$0xff]
  %v199 = vld [vmem:[%s1 + $0x590] sm:$0xff]
  %v200 = vld [vmem:[%s1 + $0x598] sm:$0xff]
  %v201 = vld [vmem:[%s1 + $0x5a0] sm:$0xff]
  %v202 = vld [vmem:[%s1 + $0x5a8] sm:$0xff]
  %v203 = vld [vmem:[%s1 + $0x5b0] sm:$0xff]
  %v204 = vld [vmem:[%s1 + $0x5b8] sm:$0xff]
  %v205 = vld [vmem:[%s1 + $0x5c0] sm:$0xff]
  %v206 = vld [vmem:[%s1 + $0x5c8] sm:$0xff]
  %v207 = vld [vmem:[%s1 + $0x5d0] sm:$0xff]
  %v208 = vld [vmem:[%s1 + $0x5d8] sm:$0xff]
  %v209 = vld [vmem:[%s1 + $0x5e0] sm:$0xff]
  %v210 = vld [vmem:[%s1 + $0x5e8] sm:$0xff]
  %v211 = vld [vmem:[%s1 + $0x5f0] sm:$0xff]
  %v212 = vld [vmem:[%s1 + $0x5f8] sm:$0xff]
  %v213 = vld [vmem:[%s1 + $0x600] sm:$0xff]
  %v214 = vld [vmem:[%s1 + $0x608] sm:$0xff]
  %v215 = vld [vmem:[%s1 + $0x610] sm:$0xff]
  %v216 = vld [vmem:[%s1 + $0x618] sm:$0xff]
  %v217 = vld [vmem:[%s1 + $0x620] sm:$0xff]
  %v218 = vld [vmem:[%s1 + $0x628] sm:$0xff]
  %v219 = vld [vmem:[%s1 + $0x630] sm:$0xff]
  %v220 = vld [vmem:[%s1 + $0x638] sm:$0xff]
  %v221 = vld [vmem:[%s1 + $0x640] sm:$0xff]
  %v222 = vld [vmem:[%s1 + $0x648] sm:$0xff]
  %v223 = vld [vmem:[%s1 + $0x650] sm:$0xff]
  %v224 = vld [vmem:[%s1 + $0x658] sm:$0xff]
  %v225 = vld [vmem:[%s1 + $0x660] sm:$0xff]
  %v226 = vld [vmem:[%s1 + $0x668] sm:$0xff]
  %v227 = vld [vmem:[%s1 + $0x670] sm:$0xff]
  %v228 = vld [vmem:[%s1 + $0x678] sm:$0xff]
  %v229 = vld [vmem:[%s1 + $0x680] sm:$0xff]
  %v230 = vld [vmem:[%s1 + $0x688] sm:$0xff]
  %v231 = vld [vmem:[%s1 + $0x690] sm:$0xff]
  %v232 = vld [vmem:[%s1 + $0x698] sm:$0xff]
  %v233 = vld [vmem:[%s1 + $0x6a0] sm:$0xff]
  %v234 = vld [vmem:[%s1 + $0x6a8] sm:$0xff]
  %v235 = vld [vmem:[%s1 + $0x6b0] sm:$0xff]
  %v236 = vld [vmem:[%s1 + $0x6b8] sm:$0xff]
  %v237 = vld [vmem:[%s1 + $0x6c0] sm:$0xff]
  %v238 = vld [vmem:[%s1 + $0x6c8] sm:$0xff]
  %v239 = vld [vmem:[%s1 + $0x6d0] sm:$0xff]
  %v240 = vld [vmem:[%s1 + $0x6d8] sm:$0xff]
  %v241 = vld [vmem:[%s1 + $0x6e0] sm:$0xff]
  %v242 = vld [vmem:[%s1 + $0x6e8] sm:$0xff]
  %v243 = vld [vmem:[%s1 + $0x6f0] sm:$0xff]
  %v244 = vld [vmem:[%s1 + $0x6f8] sm:$0xff]
  %v245 = vld [vmem:[%s1 + $0x700] sm:$0xff]
  %v246 = vld [vmem:[%s1 + $0x708] sm:$0xff]
  %v247 = vld [vmem:[%s1 + $0x710] sm:$0xff]
  %v248 = vld [vmem:[%s1 + $0x718] sm:$0xff]
  %v249 = vld [vmem:[%s1 + $0x720] sm:$0xff]
  %v250 = vld [vmem:[%s1 + $0x728] sm:$0xff]
  %v251 = vld [vmem:[%s1 + $0x730] sm:$0xff]
  %v252 = vld [vmem:[%s1 + $0x738] sm:$0xff]
  %v253 = vld [vmem:[%s1 + $0x740] sm:$0xff]
  %v254 = vld [vmem:[%s1 + $0x748] sm:$0xff]
  %v255 = vld [vmem:[%s1 + $0x750] sm:$0xff]
  %v256 = vld [vmem:[%s1 + $0x758] sm:$0xff]
  %v257 = vld [vmem:[%s1 + $0x760] sm:$0xff]
  %v258 = vld [vmem:[%s1 + $0x768] sm:$0xff]
  %v259 = vld [vmem:[%s1 + $0x770] sm:$0xff]
  %v260 = vld [vmem:[%s1 + $0x778] sm:$0xff]
  %v261 = vld [vmem:[%s1 + $0x780] sm:$0xff]
  %v262 = vld [vmem:[%s1 + $0x788] sm:$0xff]
  %v263 = vld [vmem:[%s1 + $0x790] sm:$0xff]
  %v264 = vld [vmem:[%s1 + $0x798] sm:$0xff]
  %v265 = vld [vmem:[%s1 + $0x7a0] sm:$0xff]
  %v266 = vld [vmem:[%s1 + $0x7a8] sm:$0xff]
  %v267 = vld [vmem:[%s1 + $0x7b0] sm:$0xff]
  %v268 = vld [vmem:[%s1 + $0x7b8] sm:$0xff]
  %v269 = vld [vmem:[%s1 + $0x7c0] sm:$0xff]
  %v270 = vld [vmem:[%s1 + $0x7c8] sm:$0xff]
  %v271 = vld [vmem:[%s1 + $0x7d0] sm:$0xff]
  %v272 = vld [vmem:[%s1 + $0x7d8] sm:$0xff]
  %v273 = vld [vmem:[%s1 + $0x7e0] sm:$0xff]
  %v274 = vld [vmem:[%s1 + $0x7e8] sm:$0xff]
  %v275 = vld [vmem:[%s1 + $0x7f0] sm:$0xff]
  %v276 = vld [vmem:[%s1 + $0x7f8] sm:$0xff]
  %v277 = vld [vmem:[%s2] sm:$0xff]
  %v279 = vlaneseq
  %v280 = vshrl.u32 %v279, 7
  %v281 = vsub.s32 0, %v280
  %v282 = vrot.slane %v277, %v281
  %v283 = vlaneseq
  %v284 = vshrl.u32 %v283, 7
  %v285 = vsub.s32 1, %v284
  %v286 = vrot.slane %v277, %v285
  %v287 = vlaneseq
  %v288 = vshrl.u32 %v287, 7
  %v289 = vsub.s32 2, %v288
  %v290 = vrot.slane %v277, %v289
  %v291 = vlaneseq
  %v292 = vshrl.u32 %v291, 7
  %v293 = vsub.s32 3, %v292
  %v294 = vrot.slane %v277, %v293
  %v295 = vlaneseq
  %v296 = vshrl.u32 %v295, 7
  %v297 = vsub.s32 4, %v296
  %v298 = vrot.slane %v277, %v297
  %v299 = vlaneseq
  %v300 = vshrl.u32 %v299, 7
  %v301 = vsub.s32 5, %v300
  %v302 = vrot.slane %v277, %v301
  %v303 = vlaneseq
  %v304 = vshrl.u32 %v303, 7
  %v305 = vsub.s32 6, %v304
  %v306 = vrot.slane %v277, %v305
  %v307 = vlaneseq
  %v308 = vshrl.u32 %v307, 7
  %v309 = vsub.s32 7, %v308
  %v310 = vrot.slane %v277, %v309
  %319 = vmatprep.subr.mxu0 %v22
  %320 = vmatpush1.msra.mxu0 %v21
  %321 = vmatprep.subr.mxu0 %v30
  %322 = vmatpush1.msra.mxu0 %v29
  %323 = vmatprep.subr.mxu0 %v38
  %324 = vmatpush1.msra.mxu0 %v37
  %325 = vmatprep.subr.mxu0 %v46
  %326 = vmatpush1.msra.mxu0 %v45
  %327 = vmatprep.subr.mxu0 %v54
  %328 = vmatpush1.msra.mxu0 %v53
  %329 = vmatprep.subr.mxu0 %v62
  %330 = vmatpush1.msra.mxu0 %v61
  %331 = vmatprep.subr.mxu0 %v70
  %332 = vmatpush1.msra.mxu0 %v69
  %333 = vmatprep.subr.mxu0 %v78
  %334 = vmatpush1.msra.mxu0 %v77
  %335 = vmatprep.subr.mxu0 %v86
  %336 = vmatpush1.msra.mxu0 %v85
  %337 = vmatprep.subr.mxu0 %v94
  %338 = vmatpush1.msra.mxu0 %v93
  %339 = vmatprep.subr.mxu0 %v102
  %340 = vmatpush1.msra.mxu0 %v101
  %341 = vmatprep.subr.mxu0 %v110
  %342 = vmatpush1.msra.mxu0 %v109
  %343 = vmatprep.subr.mxu0 %v118
  %344 = vmatpush1.msra.mxu0 %v117
  %345 = vmatprep.subr.mxu0 %v126
  %346 = vmatpush1.msra.mxu0 %v125
  %347 = vmatprep.subr.mxu0 %v134
  %348 = vmatpush1.msra.mxu0 %v133
  %349 = vmatprep.subr.mxu0 %v142
  %350 = vmatpush1.msra.mxu0 %v141
  %351 = vmatprep.subr.mxu0 %v150
  %352 = vmatpush1.msra.mxu0 %v149
  %353 = vmatprep.subr.mxu0 %v158
  %354 = vmatpush1.msra.mxu0 %v157
  %355 = vmatprep.subr.mxu0 %v166
  %356 = vmatpush1.msra.mxu0 %v165
  %357 = vmatprep.subr.mxu0 %v174
  %358 = vmatpush1.msra.mxu0 %v173
  %359 = vmatprep.subr.mxu0 %v182
  %360 = vmatpush1.msra.mxu0 %v181
  %361 = vmatprep.subr.mxu0 %v190
  %362 = vmatpush1.msra.mxu0 %v189
  %363 = vmatprep.subr.mxu0 %v198
  %364 = vmatpush1.msra.mxu0 %v197
  %365 = vmatprep.subr.mxu0 %v206
  %366 = vmatpush1.msra.mxu0 %v205
  %367 = vmatprep.subr.mxu0 %v214
  %368 = vmatpush1.msra.mxu0 %v213
  %369 = vmatprep.subr.mxu0 %v222
  %370 = vmatpush1.msra.mxu0 %v221
  %371 = vmatprep.subr.mxu0 %v230
  %372 = vmatpush1.msra.mxu0 %v229
  %373 = vmatprep.subr.mxu0 %v238
  %374 = vmatpush1.msra.mxu0 %v237
  %375 = vmatprep.subr.mxu0 %v246
  %376 = vmatpush1.msra.mxu0 %v245
  %377 = vmatprep.subr.mxu0 %v254
  %378 = vmatpush1.msra.mxu0 %v253
  %379 = vmatprep.subr.mxu0 %v262
  %380 = vmatpush1.msra.mxu0 %v261
  %381 = vmatprep.subr.mxu0 %v270
  %382 = vmatpush1.msra.mxu0 %v269
  %383 = vmatprep.mubr.f32.mxu0 %v18
  %384 = vmatmul.mubr.f32.gmra.mrb[0].mxu0 %v17
  %v385 = vpop.f32.mrb[0].mxu0
  %v386 = vadd.f32 %v282, %v385
  %v387 = vpop.f32.mrb[0].mxu0
  %v388 = vadd.f32 %v286, %v387
  %389 = vmatprep.mubr.f32.mxu0 %v20
  %390 = vmatmul.mubr.f32.gmra.mrb[0].mxu0 %v19
  %v391 = vpop.f32.mrb[0].mxu0
  %v392 = vadd.f32 %v282, %v391
  %v393 = vpop.f32.mrb[0].mxu0
  %v394 = vadd.f32 %v286, %v393
  %395 = vdwg.mxu0
  %396 = vmatprep.subr.mxu0 %v24
  %397 = vmatpush1.msra.mxu0 %v23
  %398 = vmatprep.subr.mxu0 %v32
  %399 = vmatpush1.msra.mxu0 %v31
  %400 = vmatprep.subr.mxu0 %v40
  %401 = vmatpush1.msra.mxu0 %v39
  %402 = vmatprep.subr.mxu0 %v48
  %403 = vmatpush1.msra.mxu0 %v47
  %404 = vmatprep.subr.mxu0 %v56
  %405 = vmatpush1.msra.mxu0 %v55
  %406 = vmatprep.subr.mxu0 %v64
  %407 = vmatpush1.msra.mxu0 %v63
  %408 = vmatprep.subr.mxu0 %v72
  %409 = vmatpush1.msra.mxu0 %v71
  %410 = vmatprep.subr.mxu0 %v80
  %411 = vmatpush1.msra.mxu0 %v79
  %412 = vmatprep.subr.mxu0 %v88
  %413 = vmatpush1.msra.mxu0 %v87
  %414 = vmatprep.subr.mxu0 %v96
  %415 = vmatpush1.msra.mxu0 %v95
  %416 = vmatprep.subr.mxu0 %v104
  %417 = vmatpush1.msra.mxu0 %v103
  %418 = vmatprep.subr.mxu0 %v112
  %419 = vmatpush1.msra.mxu0 %v111
  %420 = vmatprep.subr.mxu0 %v120
  %421 = vmatpush1.msra.mxu0 %v119
  %422 = vmatprep.subr.mxu0 %v128
  %423 = vmatpush1.msra.mxu0 %v127
  %424 = vmatprep.subr.mxu0 %v136
  %425 = vmatpush1.msra.mxu0 %v135
  %426 = vmatprep.subr.mxu0 %v144
  %427 = vmatpush1.msra.mxu0 %v143
  %428 = vmatprep.subr.mxu0 %v152
  %429 = vmatpush1.msra.mxu0 %v151
  %430 = vmatprep.subr.mxu0 %v160
  %431 = vmatpush1.msra.mxu0 %v159
  %432 = vmatprep.subr.mxu0 %v168
  %433 = vmatpush1.msra.mxu0 %v167
  %434 = vmatprep.subr.mxu0 %v176
  %435 = vmatpush1.msra.mxu0 %v175
  %436 = vmatprep.subr.mxu0 %v184
  %437 = vmatpush1.msra.mxu0 %v183
  %438 = vmatprep.subr.mxu0 %v192
  %439 = vmatpush1.msra.mxu0 %v191
  %440 = vmatprep.subr.mxu0 %v200
  %441 = vmatpush1.msra.mxu0 %v199
  %442 = vmatprep.subr.mxu0 %v208
  %443 = vmatpush1.msra.mxu0 %v207
  %444 = vmatprep.subr.mxu0 %v216
  %445 = vmatpush1.msra.mxu0 %v215
  %446 = vmatprep.subr.mxu0 %v224
  %447 = vmatpush1.msra.mxu0 %v223
  %448 = vmatprep.subr.mxu0 %v232
  %449 = vmatpush1.msra.mxu0 %v231
  %450 = vmatprep.subr.mxu0 %v240
  %451 = vmatpush1.msra.mxu0 %v239
  %452 = vmatprep.subr.mxu0 %v248
  %453 = vmatpush1.msra.mxu0 %v247
  %454 = vmatprep.subr.mxu0 %v256
  %455 = vmatpush1.msra.mxu0 %v255
  %456 = vmatprep.subr.mxu0 %v264
  %457 = vmatpush1.msra.mxu0 %v263
  %458 = vmatprep.subr.mxu0 %v272
  %459 = vmatpush1.msra.mxu0 %v271
  %460 = vmatprep.mubr.f32.mxu0 %v18
  %461 = vmatmul.mubr.f32.gmra.mrb[0].mxu0 %v17
  %v462 = vpop.f32.mrb[0].mxu0
  %v463 = vadd.f32 %v290, %v462
  %v464 = vpop.f32.mrb[0].mxu0
  %v465 = vadd.f32 %v294, %v464
  %466 = vmatprep.mubr.f32.mxu0 %v20
  %467 = vmatmul.mubr.f32.gmra.mrb[0].mxu0 %v19
  %v468 = vpop.f32.mrb[0].mxu0
  %v469 = vadd.f32 %v290, %v468
  %v470 = vpop.f32.mrb[0].mxu0
  %v471 = vadd.f32 %v294, %v470
  %472 = vdwg.mxu0
  %473 = vmatprep.subr.mxu0 %v26
  %474 = vmatpush1.msra.mxu0 %v25
  %475 = vmatprep.subr.mxu0 %v34
  %476 = vmatpush1.msra.mxu0 %v33
  %477 = vmatprep.subr.mxu0 %v42
  %478 = vmatpush1.msra.mxu0 %v41
  %479 = vmatprep.subr.mxu0 %v50
  %480 = vmatpush1.msra.mxu0 %v49
  %481 = vmatprep.subr.mxu0 %v58
  %482 = vmatpush1.msra.mxu0 %v57
  %483 = vmatprep.subr.mxu0 %v66
  %484 = vmatpush1.msra.mxu0 %v65
  %485 = vmatprep.subr.mxu0 %v74
  %486 = vmatpush1.msra.mxu0 %v73
  %487 = vmatprep.subr.mxu0 %v82
  %488 = vmatpush1.msra.mxu0 %v81
  %489 = vmatprep.subr.mxu0 %v90
  %490 = vmatpush1.msra.mxu0 %v89
  %491 = vmatprep.subr.mxu0 %v98
  %492 = vmatpush1.msra.mxu0 %v97
  %493 = vmatprep.subr.mxu0 %v106
  %494 = vmatpush1.msra.mxu0 %v105
  %495 = vmatprep.subr.mxu0 %v114
  %496 = vmatpush1.msra.mxu0 %v113
  %497 = vmatprep.subr.mxu0 %v122
  %498 = vmatpush1.msra.mxu0 %v121
  %499 = vmatprep.subr.mxu0 %v130
  %500 = vmatpush1.msra.mxu0 %v129
  %501 = vmatprep.subr.mxu0 %v138
  %502 = vmatpush1.msra.mxu0 %v137
  %503 = vmatprep.subr.mxu0 %v146
  %504 = vmatpush1.msra.mxu0 %v145
  %505 = vmatprep.subr.mxu0 %v154
  %506 = vmatpush1.msra.mxu0 %v153
  %507 = vmatprep.subr.mxu0 %v162
  %508 = vmatpush1.msra.mxu0 %v161
  %509 = vmatprep.subr.mxu0 %v170
  %510 = vmatpush1.msra.mxu0 %v169
  %511 = vmatprep.subr.mxu0 %v178
  %512 = vmatpush1.msra.mxu0 %v177
  %513 = vmatprep.subr.mxu0 %v186
  %514 = vmatpush1.msra.mxu0 %v185
  %515 = vmatprep.subr.mxu0 %v194
  %516 = vmatpush1.msra.mxu0 %v193
  %517 = vmatprep.subr.mxu0 %v202
  %518 = vmatpush1.msra.mxu0 %v201
  %519 = vmatprep.subr.mxu0 %v210
  %520 = vmatpush1.msra.mxu0 %v209
  %521 = vmatprep.subr.mxu0 %v218
  %522 = vmatpush1.msra.mxu0 %v217
  %523 = vmatprep.subr.mxu0 %v226
  %524 = vmatpush1.msra.mxu0 %v225
  %525 = vmatprep.subr.mxu0 %v234
  %526 = vmatpush1.msra.mxu0 %v233
  %527 = vmatprep.subr.mxu0 %v242
  %528 = vmatpush1.msra.mxu0 %v241
  %529 = vmatprep.subr.mxu0 %v250
  %530 = vmatpush1.msra.mxu0 %v249
  %531 = vmatprep.subr.mxu0 %v258
  %532 = vmatpush1.msra.mxu0 %v257
  %533 = vmatprep.subr.mxu0 %v266
  %534 = vmatpush1.msra.mxu0 %v265
  %535 = vmatprep.subr.mxu0 %v274
  %536 = vmatpush1.msra.mxu0 %v273
  %537 = vmatprep.mubr.f32.mxu0 %v18
  %538 = vmatmul.mubr.f32.gmra.mrb[0].mxu0 %v17
  %v539 = vpop.f32.mrb[0].mxu0
  %v540 = vadd.f32 %v298, %v539
  %v541 = vpop.f32.mrb[0].mxu0
  %v542 = vadd.f32 %v302, %v541
  %543 = vmatprep.mubr.f32.mxu0 %v20
  %544 = vmatmul.mubr.f32.gmra.mrb[0].mxu0 %v19
  %v545 = vpop.f32.mrb[0].mxu0
  %v546 = vadd.f32 %v298, %v545
  %v547 = vpop.f32.mrb[0].mxu0
  %v548 = vadd.f32 %v302, %v547
  %549 = vdwg.mxu0
  %550 = vmatprep.subr.mxu0 %v28
  %551 = vmatpush1.msra.mxu0 %v27
  %552 = vmatprep.subr.mxu0 %v36
  %553 = vmatpush1.msra.mxu0 %v35
  %554 = vmatprep.subr.mxu0 %v44
  %555 = vmatpush1.msra.mxu0 %v43
  %556 = vmatprep.subr.mxu0 %v52
  %557 = vmatpush1.msra.mxu0 %v51
  %558 = vmatprep.subr.mxu0 %v60
  %559 = vmatpush1.msra.mxu0 %v59
  %560 = vmatprep.subr.mxu0 %v68
  %561 = vmatpush1.msra.mxu0 %v67
  %562 = vmatprep.subr.mxu0 %v76
  %563 = vmatpush1.msra.mxu0 %v75
  %564 = vmatprep.subr.mxu0 %v84
  %565 = vmatpush1.msra.mxu0 %v83
  %566 = vmatprep.subr.mxu0 %v92
  %567 = vmatpush1.msra.mxu0 %v91
  %568 = vmatprep.subr.mxu0 %v100
  %569 = vmatpush1.msra.mxu0 %v99
  %570 = vmatprep.subr.mxu0 %v108
  %571 = vmatpush1.msra.mxu0 %v107
  %572 = vmatprep.subr.mxu0 %v116
  %573 = vmatpush1.msra.mxu0 %v115
  %574 = vmatprep.subr.mxu0 %v124
  %575 = vmatpush1.msra.mxu0 %v123
  %576 = vmatprep.subr.mxu0 %v132
  %577 = vmatpush1.msra.mxu0 %v131
  %578 = vmatprep.subr.mxu0 %v140
  %579 = vmatpush1.msra.mxu0 %v139
  %580 = vmatprep.subr.mxu0 %v148
  %581 = vmatpush1.msra.mxu0 %v147
  %582 = vmatprep.subr.mxu0 %v156
  %583 = vmatpush1.msra.mxu0 %v155
  %584 = vmatprep.subr.mxu0 %v164
  %585 = vmatpush1.msra.mxu0 %v163
  %586 = vmatprep.subr.mxu0 %v172
  %587 = vmatpush1.msra.mxu0 %v171
  %588 = vmatprep.subr.mxu0 %v180
  %589 = vmatpush1.msra.mxu0 %v179
  %590 = vmatprep.subr.mxu0 %v188
  %591 = vmatpush1.msra.mxu0 %v187
  %592 = vmatprep.subr.mxu0 %v196
  %593 = vmatpush1.msra.mxu0 %v195
  %594 = vmatprep.subr.mxu0 %v204
  %595 = vmatpush1.msra.mxu0 %v203
  %596 = vmatprep.subr.mxu0 %v212
  %597 = vmatpush1.msra.mxu0 %v211
  %598 = vmatprep.subr.mxu0 %v220
  %599 = vmatpush1.msra.mxu0 %v219
  %600 = vmatprep.subr.mxu0 %v228
  %601 = vmatpush1.msra.mxu0 %v227
  %602 = vmatprep.subr.mxu0 %v236
  %603 = vmatpush1.msra.mxu0 %v235
  %604 = vmatprep.subr.mxu0 %v244
  %605 = vmatpush1.msra.mxu0 %v243
  %606 = vmatprep.subr.mxu0 %v252
  %607 = vmatpush1.msra.mxu0 %v251
  %608 = vmatprep.subr.mxu0 %v260
  %609 = vmatpush1.msra.mxu0 %v259
  %610 = vmatprep.subr.mxu0 %v268
  %611 = vmatpush1.msra.mxu0 %v267
  %612 = vmatprep.subr.mxu0 %v276
  %613 = vmatpush1.msra.mxu0 %v275
  %614 = vmatprep.mubr.f32.mxu0 %v18
  %615 = vmatmul.mubr.f32.gmra.mrb[0].mxu0 %v17
  %v616 = vpop.f32.mrb[0].mxu0
  %v617 = vadd.f32 %v306, %v616
  %v618 = vpop.f32.mrb[0].mxu0
  %v619 = vadd.f32 %v310, %v618
  %620 = vmatprep.mubr.f32.mxu0 %v20
  %621 = vmatmul.mubr.f32.gmra.mrb[0].mxu0 %v19
  %v622 = vpop.f32.mrb[0].mxu0
  %v623 = vadd.f32 %v306, %v622
  %v624 = vpop.f32.mrb[0].mxu0
  %v625 = vadd.f32 %v310, %v624
  %626 = vdwg.mxu0
  %627 = vst [vmem:[#allocation2] sm:$0xff] %v386
  %628 = vst [vmem:[#allocation2 + $0x8] sm:$0xff] %v388
  %629 = vst [vmem:[#allocation2 + $0x10] sm:$0xff] %v463
  %630 = vst [vmem:[#allocation2 + $0x18] sm:$0xff] %v465
  %631 = vst [vmem:[#allocation2 + $0x20] sm:$0xff] %v540
  %632 = vst [vmem:[#allocation2 + $0x28] sm:$0xff] %v542
  %633 = vst [vmem:[#allocation2 + $0x30] sm:$0xff] %v617
  %634 = vst [vmem:[#allocation2 + $0x38] sm:$0xff] %v619
  %635 = vst [vmem:[#allocation2 + $0x40] sm:$0xff] %v392
  %636 = vst [vmem:[#allocation2 + $0x48] sm:$0xff] %v394
  %637 = vst [vmem:[#allocation2 + $0x50] sm:$0xff] %v469
  %638 = vst [vmem:[#allocation2 + $0x58] sm:$0xff] %v471
  %639 = vst [vmem:[#allocation2 + $0x60] sm:$0xff] %v546
  %640 = vst [vmem:[#allocation2 + $0x68] sm:$0xff] %v548
  %641 = vst [vmem:[#allocation2 + $0x70] sm:$0xff] %v623
  %642 = vst [vmem:[#allocation2 + $0x78] sm:$0xff] %v625
  %v643 = vld [vmem:[%s3] sm:$0xff]
  %v644 = vld [vmem:[%s3 + $0x8] sm:$0xff]
  %v645 = vld [vmem:[%s3 + $0x10] sm:$0xff]
  %v646 = vld [vmem:[%s3 + $0x18] sm:$0xff]
  %v647 = vld [vmem:[%s3 + $0x20] sm:$0xff]
  %v648 = vld [vmem:[%s3 + $0x28] sm:$0xff]
  %v649 = vld [vmem:[%s3 + $0x30] sm:$0xff]
  %v650 = vld [vmem:[%s3 + $0x38] sm:$0xff]
  %v651 = vld [vmem:[%s3 + $0x40] sm:$0xff]
  %v652 = vld [vmem:[%s3 + $0x48] sm:$0xff]
  %v653 = vld [vmem:[%s3 + $0x50] sm:$0xff]
  %v654 = vld [vmem:[%s3 + $0x58] sm:$0xff]
  %v655 = vld [vmem:[%s3 + $0x60] sm:$0xff]
  %v656 = vld [vmem:[%s3 + $0x68] sm:$0xff]
  %v657 = vld [vmem:[%s3 + $0x70] sm:$0xff]
  %v658 = vld [vmem:[%s3 + $0x78] sm:$0xff]
  %v659 = vld [vmem:[%s3 + $0x80] sm:$0xff]
  %v660 = vld [vmem:[%s3 + $0x88] sm:$0xff]
  %v661 = vld [vmem:[%s3 + $0x90] sm:$0xff]
  %v662 = vld [vmem:[%s3 + $0x98] sm:$0xff]
  %v663 = vld [vmem:[%s3 + $0xa0] sm:$0xff]
  %v664 = vld [vmem:[%s3 + $0xa8] sm:$0xff]
  %v665 = vld [vmem:[%s3 + $0xb0] sm:$0xff]
  %v666 = vld [vmem:[%s3 + $0xb8] sm:$0xff]
  %v667 = vld [vmem:[%s3 + $0xc0] sm:$0xff]
  %v668 = vld [vmem:[%s3 + $0xc8] sm:$0xff]
  %v669 = vld [vmem:[%s3 + $0xd0] sm:$0xff]
  %v670 = vld [vmem:[%s3 + $0xd8] sm:$0xff]
  %v671 = vld [vmem:[%s3 + $0xe0] sm:$0xff]
  %v672 = vld [vmem:[%s3 + $0xe8] sm:$0xff]
  %v673 = vld [vmem:[%s3 + $0xf0] sm:$0xff]
  %v674 = vld [vmem:[%s3 + $0xf8] sm:$0xff]
  %v675 = vld [vmem:[%s3 + $0x100] sm:$0xff]
  %v676 = vld [vmem:[%s3 + $0x108] sm:$0xff]
  %v677 = vld [vmem:[%s3 + $0x110] sm:$0xff]
  %v678 = vld [vmem:[%s3 + $0x118] sm:$0xff]
  %v679 = vld [vmem:[%s3 + $0x120] sm:$0xff]
  %v680 = vld [vmem:[%s3 + $0x128] sm:$0xff]
  %v681 = vld [vmem:[%s3 + $0x130] sm:$0xff]
  %v682 = vld [vmem:[%s3 + $0x138] sm:$0xff]
  %v683 = vld [vmem:[%s3 + $0x140] sm:$0xff]
  %v684 = vld [vmem:[%s3 + $0x148] sm:$0xff]
  %v685 = vld [vmem:[%s3 + $0x150] sm:$0xff]
  %v686 = vld [vmem:[%s3 + $0x158] sm:$0xff]
  %v687 = vld [vmem:[%s3 + $0x160] sm:$0xff]
  %v688 = vld [vmem:[%s3 + $0x168] sm:$0xff]
  %v689 = vld [vmem:[%s3 + $0x170] sm:$0xff]
  %v690 = vld [vmem:[%s3 + $0x178] sm:$0xff]
  %v691 = vld [vmem:[%s3 + $0x180] sm:$0xff]
  %v692 = vld [vmem:[%s3 + $0x188] sm:$0xff]
  %v693 = vld [vmem:[%s3 + $0x190] sm:$0xff]
  %v694 = vld [vmem:[%s3 + $0x198] sm:$0xff]
  %v695 = vld [vmem:[%s3 + $0x1a0] sm:$0xff]
  %v696 = vld [vmem:[%s3 + $0x1a8] sm:$0xff]
  %v697 = vld [vmem:[%s3 + $0x1b0] sm:$0xff]
  %v698 = vld [vmem:[%s3 + $0x1b8] sm:$0xff]
  %v699 = vld [vmem:[%s3 + $0x1c0] sm:$0xff]
  %v700 = vld [vmem:[%s3 + $0x1c8] sm:$0xff]
  %v701 = vld [vmem:[%s3 + $0x1d0] sm:$0xff]
  %v702 = vld [vmem:[%s3 + $0x1d8] sm:$0xff]
  %v703 = vld [vmem:[%s3 + $0x1e0] sm:$0xff]
  %v704 = vld [vmem:[%s3 + $0x1e8] sm:$0xff]
  %v705 = vld [vmem:[%s3 + $0x1f0] sm:$0xff]
  %v706 = vld [vmem:[%s3 + $0x1f8] sm:$0xff]
  %v707 = vld [vmem:[%s3 + $0x200] sm:$0xff]
  %v708 = vld [vmem:[%s3 + $0x208] sm:$0xff]
  %v709 = vld [vmem:[%s3 + $0x210] sm:$0xff]
  %v710 = vld [vmem:[%s3 + $0x218] sm:$0xff]
  %v711 = vld [vmem:[%s3 + $0x220] sm:$0xff]
  %v712 = vld [vmem:[%s3 + $0x228] sm:$0xff]
  %v713 = vld [vmem:[%s3 + $0x230] sm:$0xff]
  %v714 = vld [vmem:[%s3 + $0x238] sm:$0xff]
  %v715 = vld [vmem:[%s3 + $0x240] sm:$0xff]
  %v716 = vld [vmem:[%s3 + $0x248] sm:$0xff]
  %v717 = vld [vmem:[%s3 + $0x250] sm:$0xff]
  %v718 = vld [vmem:[%s3 + $0x258] sm:$0xff]
  %v719 = vld [vmem:[%s3 + $0x260] sm:$0xff]
  %v720 = vld [vmem:[%s3 + $0x268] sm:$0xff]
  %v721 = vld [vmem:[%s3 + $0x270] sm:$0xff]
  %v722 = vld [vmem:[%s3 + $0x278] sm:$0xff]
  %v723 = vld [vmem:[%s3 + $0x280] sm:$0xff]
  %v724 = vld [vmem:[%s3 + $0x288] sm:$0xff]
  %v725 = vld [vmem:[%s3 + $0x290] sm:$0xff]
  %v726 = vld [vmem:[%s3 + $0x298] sm:$0xff]
  %v727 = vld [vmem:[%s3 + $0x2a0] sm:$0xff]
  %v728 = vld [vmem:[%s3 + $0x2a8] sm:$0xff]
  %v729 = vld [vmem:[%s3 + $0x2b0] sm:$0xff]
  %v730 = vld [vmem:[%s3 + $0x2b8] sm:$0xff]
  %v731 = vld [vmem:[%s3 + $0x2c0] sm:$0xff]
  %v732 = vld [vmem:[%s3 + $0x2c8] sm:$0xff]
  %v733 = vld [vmem:[%s3 + $0x2d0] sm:$0xff]
  %v734 = vld [vmem:[%s3 + $0x2d8] sm:$0xff]
  %v735 = vld [vmem:[%s3 + $0x2e0] sm:$0xff]
  %v736 = vld [vmem:[%s3 + $0x2e8] sm:$0xff]
  %v737 = vld [vmem:[%s3 + $0x2f0] sm:$0xff]
  %v738 = vld [vmem:[%s3 + $0x2f8] sm:$0xff]
  %v739 = vld [vmem:[%s3 + $0x300] sm:$0xff]
  %v740 = vld [vmem:[%s3 + $0x308] sm:$0xff]
  %v741 = vld [vmem:[%s3 + $0x310] sm:$0xff]
  %v742 = vld [vmem:[%s3 + $0x318] sm:$0xff]
  %v743 = vld [vmem:[%s3 + $0x320] sm:$0xff]
  %v744 = vld [vmem:[%s3 + $0x328] sm:$0xff]
  %v745 = vld [vmem:[%s3 + $0x330] sm:$0xff]
  %v746 = vld [vmem:[%s3 + $0x338] sm:$0xff]
  %v747 = vld [vmem:[%s3 + $0x340] sm:$0xff]
  %v748 = vld [vmem:[%s3 + $0x348] sm:$0xff]
  %v749 = vld [vmem:[%s3 + $0x350] sm:$0xff]
  %v750 = vld [vmem:[%s3 + $0x358] sm:$0xff]
  %v751 = vld [vmem:[%s3 + $0x360] sm:$0xff]
  %v752 = vld [vmem:[%s3 + $0x368] sm:$0xff]
  %v753 = vld [vmem:[%s3 + $0x370] sm:$0xff]
  %v754 = vld [vmem:[%s3 + $0x378] sm:$0xff]
  %v755 = vld [vmem:[%s3 + $0x380] sm:$0xff]
  %v756 = vld [vmem:[%s3 + $0x388] sm:$0xff]
  %v757 = vld [vmem:[%s3 + $0x390] sm:$0xff]
  %v758 = vld [vmem:[%s3 + $0x398] sm:$0xff]
  %v759 = vld [vmem:[%s3 + $0x3a0] sm:$0xff]
  %v760 = vld [vmem:[%s3 + $0x3a8] sm:$0xff]
  %v761 = vld [vmem:[%s3 + $0x3b0] sm:$0xff]
  %v762 = vld [vmem:[%s3 + $0x3b8] sm:$0xff]
  %v763 = vld [vmem:[%s3 + $0x3c0] sm:$0xff]
  %v764 = vld [vmem:[%s3 + $0x3c8] sm:$0xff]
  %v765 = vld [vmem:[%s3 + $0x3d0] sm:$0xff]
  %v766 = vld [vmem:[%s3 + $0x3d8] sm:$0xff]
  %v767 = vld [vmem:[%s3 + $0x3e0] sm:$0xff]
  %v768 = vld [vmem:[%s3 + $0x3e8] sm:$0xff]
  %v769 = vld [vmem:[%s3 + $0x3f0] sm:$0xff]
  %v770 = vld [vmem:[%s3 + $0x3f8] sm:$0xff]
  %v771 = vlaneseq
  %v772 = vshrl.u32 %v771, 7
  %vm773 = vcmp.lt.s32.totalorder %v772, 2
  %v774 = vsel %vm773, 1, 0
  %v775 = vcvt.s32.f32 %v774
  %v776 = vsub.f32 1.0, %v775
  %v777 = vld [vmem:[#allocation2] sm:$0x3]
  %v778 = vld [vmem:[#allocation2 + $0x8] sm:$0x3]
  %v779 = vld [vmem:[#allocation2 + $0x10] sm:$0x3]
  %v780 = vld [vmem:[#allocation2 + $0x18] sm:$0x3]
  %v781 = vld [vmem:[#allocation2 + $0x60] sm:$0xc0]
  %v782 = vld [vmem:[#allocation2 + $0x68] sm:$0xc0]
  %v783 = vld [vmem:[#allocation2 + $0x70] sm:$0xc0]
  %v784 = vld [vmem:[#allocation2 + $0x78] sm:$0xc0]
  %v789 = vrot.slane %v781, 4
  %v790 = vrot.slane %v782, 4
  %v791 = vrot.slane %v783, 4
  %v792 = vrot.slane %v784, 4
  %vm797 = vcmask 1041408
  %v798 = vsel %vm797, %v777, %v789
  %v799 = vsel %vm797, %v778, %v790
  %v800 = vsel %vm797, %v779, %v791
  %v801 = vsel %vm797, %v780, %v792
  %802 = vmatprep.subr.mxu0 %v644
  %803 = vmatpush1.msra.mxu0 %v643
  %804 = vmatprep.subr.mxu0 %v648
  %805 = vmatpush1.msra.mxu0 %v647
  %806 = vmatprep.subr.mxu0 %v652
  %807 = vmatpush1.msra.mxu0 %v651
  %808 = vmatprep.subr.mxu0 %v656
  %809 = vmatpush1.msra.mxu0 %v655
  %810 = vmatprep.subr.mxu0 %v660
  %811 = vmatpush1.msra.mxu0 %v659
  %812 = vmatprep.subr.mxu0 %v664
  %813 = vmatpush1.msra.mxu0 %v663
  %814 = vmatprep.subr.mxu0 %v668
  %815 = vmatpush1.msra.mxu0 %v667
  %816 = vmatprep.subr.mxu0 %v672
  %817 = vmatpush1.msra.mxu0 %v671
  %818 = vmatprep.subr.mxu0 %v676
  %819 = vmatpush1.msra.mxu0 %v675
  %820 = vmatprep.subr.mxu0 %v680
  %821 = vmatpush1.msra.mxu0 %v679
  %822 = vmatprep.subr.mxu0 %v684
  %823 = vmatpush1.msra.mxu0 %v683
  %824 = vmatprep.subr.mxu0 %v688
  %825 = vmatpush1.msra.mxu0 %v687
  %826 = vmatprep.subr.mxu0 %v692
  %827 = vmatpush1.msra.mxu0 %v691
  %828 = vmatprep.subr.mxu0 %v696
  %829 = vmatpush1.msra.mxu0 %v695
  %830 = vmatprep.subr.mxu0 %v700
  %831 = vmatpush1.msra.mxu0 %v699
  %832 = vmatprep.subr.mxu0 %v704
  %833 = vmatpush1.msra.mxu0 %v703
  %834 = vmatprep.subr.mxu0 %v708
  %835 = vmatpush1.msra.mxu0 %v707
  %836 = vmatprep.subr.mxu0 %v712
  %837 = vmatpush1.msra.mxu0 %v711
  %838 = vmatprep.subr.mxu0 %v716
  %839 = vmatpush1.msra.mxu0 %v715
  %840 = vmatprep.subr.mxu0 %v720
  %841 = vmatpush1.msra.mxu0 %v719
  %842 = vmatprep.subr.mxu0 %v724
  %843 = vmatpush1.msra.mxu0 %v723
  %844 = vmatprep.subr.mxu0 %v728
  %845 = vmatpush1.msra.mxu0 %v727
  %846 = vmatprep.subr.mxu0 %v732
  %847 = vmatpush1.msra.mxu0 %v731
  %848 = vmatprep.subr.mxu0 %v736
  %849 = vmatpush1.msra.mxu0 %v735
  %850 = vmatprep.subr.mxu0 %v740
  %851 = vmatpush1.msra.mxu0 %v739
  %852 = vmatprep.subr.mxu0 %v744
  %853 = vmatpush1.msra.mxu0 %v743
  %854 = vmatprep.subr.mxu0 %v748
  %855 = vmatpush1.msra.mxu0 %v747
  %856 = vmatprep.subr.mxu0 %v752
  %857 = vmatpush1.msra.mxu0 %v751
  %858 = vmatprep.subr.mxu0 %v756
  %859 = vmatpush1.msra.mxu0 %v755
  %860 = vmatprep.subr.mxu0 %v760
  %861 = vmatpush1.msra.mxu0 %v759
  %862 = vmatprep.subr.mxu0 %v764
  %863 = vmatpush1.msra.mxu0 %v763
  %864 = vmatprep.subr.mxu0 %v768
  %865 = vmatpush1.msra.mxu0 %v767
  %866 = vmatprep.mubr.f32.mxu0 0.0
  %867 = vmatmul.mubr.f32.gmra.mrb[0].mxu0 0.0
  %v868 = vpop.f32.mrb[0].mxu0
  %v869 = vadd.f32 0.0, %v868
  %v870 = vpop.f32.mrb[0].mxu0
  %v871 = vadd.f32 0.0, %v870
  %872 = vdwg.mxu0
  %873 = vmatprep.subr.mxu0 %v646
  %874 = vmatpush1.msra.mxu0 %v645
  %875 = vmatprep.subr.mxu0 %v650
  %876 = vmatpush1.msra.mxu0 %v649
  %877 = vmatprep.subr.mxu0 %v654
  %878 = vmatpush1.msra.mxu0 %v653
  %879 = vmatprep.subr.mxu0 %v658
  %880 = vmatpush1.msra.mxu0 %v657
  %881 = vmatprep.subr.mxu0 %v662
  %882 = vmatpush1.msra.mxu0 %v661
  %883 = vmatprep.subr.mxu0 %v666
  %884 = vmatpush1.msra.mxu0 %v665
  %885 = vmatprep.subr.mxu0 %v670
  %886 = vmatpush1.msra.mxu0 %v669
  %887 = vmatprep.subr.mxu0 %v674
  %888 = vmatpush1.msra.mxu0 %v673
  %889 = vmatprep.subr.mxu0 %v678
  %890 = vmatpush1.msra.mxu0 %v677
  %891 = vmatprep.subr.mxu0 %v682
  %892 = vmatpush1.msra.mxu0 %v681
  %893 = vmatprep.subr.mxu0 %v686
  %894 = vmatpush1.msra.mxu0 %v685
  %895 = vmatprep.subr.mxu0 %v690
  %896 = vmatpush1.msra.mxu0 %v689
  %897 = vmatprep.subr.mxu0 %v694
  %898 = vmatpush1.msra.mxu0 %v693
  %899 = vmatprep.subr.mxu0 %v698
  %900 = vmatpush1.msra.mxu0 %v697
  %901 = vmatprep.subr.mxu0 %v702
  %902 = vmatpush1.msra.mxu0 %v701
  %903 = vmatprep.subr.mxu0 %v706
  %904 = vmatpush1.msra.mxu0 %v705
  %905 = vmatprep.subr.mxu0 %v710
  %906 = vmatpush1.msra.mxu0 %v709
  %907 = vmatprep.subr.mxu0 %v714
  %908 = vmatpush1.msra.mxu0 %v713
  %909 = vmatprep.subr.mxu0 %v718
  %910 = vmatpush1.msra.mxu0 %v717
  %911 = vmatprep.subr.mxu0 %v722
  %912 = vmatpush1.msra.mxu0 %v721
  %913 = vmatprep.subr.mxu0 %v726
  %914 = vmatpush1.msra.mxu0 %v725
  %915 = vmatprep.subr.mxu0 %v730
  %916 = vmatpush1.msra.mxu0 %v729
  %917 = vmatprep.subr.mxu0 %v734
  %918 = vmatpush1.msra.mxu0 %v733
  %919 = vmatprep.subr.mxu0 %v738
  %920 = vmatpush1.msra.mxu0 %v737
  %921 = vmatprep.subr.mxu0 %v742
  %922 = vmatpush1.msra.mxu0 %v741
  %923 = vmatprep.subr.mxu0 %v746
  %924 = vmatpush1.msra.mxu0 %v745
  %925 = vmatprep.subr.mxu0 %v750
  %926 = vmatpush1.msra.mxu0 %v749
  %927 = vmatprep.subr.mxu0 %v754
  %928 = vmatpush1.msra.mxu0 %v753
  %929 = vmatprep.subr.mxu0 %v758
  %930 = vmatpush1.msra.mxu0 %v757
  %931 = vmatprep.subr.mxu0 %v762
  %932 = vmatpush1.msra.mxu0 %v761
  %933 = vmatprep.subr.mxu0 %v766
  %934 = vmatpush1.msra.mxu0 %v765
  %935 = vmatprep.subr.mxu0 %v770
  %936 = vmatpush1.msra.mxu0 %v769
  %937 = vmatprep.mubr.f32.mxu0 0.0
  %938 = vmatmul.mubr.f32.gmra.mrb[0].mxu0 0.0
  %v939 = vpop.f32.mrb[0].mxu0
  %v940 = vadd.f32 0.0, %v939
  %v941 = vpop.f32.mrb[0].mxu0
  %v942 = vadd.f32 0.0, %v941
  %943 = vdwg.mxu0
  %v944 = vadd.f32 %v798, %v869
  %v945 = vadd.f32 %v799, %v871
  %v946 = vadd.f32 %v800, %v940
  %v947 = vadd.f32 %v801, %v942
  %v948 = vxor.u32 %v944, 2147483648
  %v949 = vmul.f32 %v948, 1.442695
  %v950 = vpow.pop %v949
  %v951 = vadd.f32 %v950, 1.0
  %v952 = vrcp.pop %v951
  %v953 = vmul.f32 1.0, %v952
  %v954 = vxor.u32 %v945, 2147483648
  %v955 = vmul.f32 %v954, 1.442695
  %v956 = vpow.pop %v955
  %v957 = vadd.f32 %v956, 1.0
  %v958 = vrcp.pop %v957
  %v959 = vmul.f32 1.0, %v958
  %v960 = vtanh.pop %v946
  %v961 = vxor.u32 %v947, 2147483648
  %v962 = vmul.f32 %v961, 1.442695
  %v963 = vpow.pop %v962
  %v964 = vadd.f32 %v963, 1.0
  %v965 = vrcp.pop %v964
  %v966 = vmul.f32 1.0, %v965
  %v967 = vmul.f32 %v959, 0.0
  %v968 = vmul.f32 %v953, %v960
  %v969 = vadd.f32 %v967, %v968
  %v970 = vtanh.pop %v969
  %v971 = vmul.f32 %v966, %v970
  %972 = vst [vmem:[%s4] sm:$0x3] %v971
  %v974 = vrot.slane %v971, 4
  %976 = vst [vmem:[%s4 + $0x18] sm:$0xc0] %v974
  %v977 = vmul.f32 %v971, %v775
  %v978 = vmul.f32 %v971, %v776
  %v979 = vld [vmem:[#allocation2] sm:$0xc]
  %v980 = vld [vmem:[#allocation2 + $0x8] sm:$0xc]
  %v981 = vld [vmem:[#allocation2 + $0x10] sm:$0xc]
  %v982 = vld [vmem:[#allocation2 + $0x18] sm:$0xc]
  %v983 = vld [vmem:[#allocation2 + $0x60] sm:$0x30]
  %v984 = vld [vmem:[#allocation2 + $0x68] sm:$0x30]
  %v985 = vld [vmem:[#allocation2 + $0x70] sm:$0x30]
  %v986 = vld [vmem:[#allocation2 + $0x78] sm:$0x30]
  %v991 = vrot.slane %v979, 2
  %v992 = vrot.slane %v980, 2
  %v993 = vrot.slane %v981, 2
  %v994 = vrot.slane %v982, 2
  %v1003 = vrot.slane %v983, 2
  %v1004 = vrot.slane %v984, 2
  %v1005 = vrot.slane %v985, 2
  %v1006 = vrot.slane %v986, 2
  %v1011 = vsel %vm797, %v991, %v1003
  %v1012 = vsel %vm797, %v992, %v1004
  %v1013 = vsel %vm797, %v993, %v1005
  %v1014 = vsel %vm797, %v994, %v1006
  %1015 = vmatprep.subr.mxu0 %v644
  %1016 = vmatpush1.msra.mxu0 %v643
  %1017 = vmatprep.subr.mxu0 %v648
  %1018 = vmatpush1.msra.mxu0 %v647
  %1019 = vmatprep.subr.mxu0 %v652
  %1020 = vmatpush1.msra.mxu0 %v651
  %1021 = vmatprep.subr.mxu0 %v656
  %1022 = vmatpush1.msra.mxu0 %v655
  %1023 = vmatprep.subr.mxu0 %v660
  %1024 = vmatpush1.msra.mxu0 %v659
  %1025 = vmatprep.subr.mxu0 %v664
  %1026 = vmatpush1.msra.mxu0 %v663
  %1027 = vmatprep.subr.mxu0 %v668
  %1028 = vmatpush1.msra.mxu0 %v667
  %1029 = vmatprep.subr.mxu0 %v672
  %1030 = vmatpush1.msra.mxu0 %v671
  %1031 = vmatprep.subr.mxu0 %v676
  %1032 = vmatpush1.msra.mxu0 %v675
  %1033 = vmatprep.subr.mxu0 %v680
  %1034 = vmatpush1.msra.mxu0 %v679
  %1035 = vmatprep.subr.mxu0 %v684
  %1036 = vmatpush1.msra.mxu0 %v683
  %1037 = vmatprep.subr.mxu0 %v688
  %1038 = vmatpush1.msra.mxu0 %v687
  %1039 = vmatprep.subr.mxu0 %v692
  %1040 = vmatpush1.msra.mxu0 %v691
  %1041 = vmatprep.subr.mxu0 %v696
  %1042 = vmatpush1.msra.mxu0 %v695
  %1043 = vmatprep.subr.mxu0 %v700
  %1044 = vmatpush1.msra.mxu0 %v699
  %1045 = vmatprep.subr.mxu0 %v704
  %1046 = vmatpush1.msra.mxu0 %v703
  %1047 = vmatprep.subr.mxu0 %v708
  %1048 = vmatpush1.msra.mxu0 %v707
  %1049 = vmatprep.subr.mxu0 %v712
  %1050 = vmatpush1.msra.mxu0 %v711
  %1051 = vmatprep.subr.mxu0 %v716
  %1052 = vmatpush1.msra.mxu0 %v715
  %1053 = vmatprep.subr.mxu0 %v720
  %1054 = vmatpush1.msra.mxu0 %v719
  %1055 = vmatprep.subr.mxu0 %v724
  %1056 = vmatpush1.msra.mxu0 %v723
  %1057 = vmatprep.subr.mxu0 %v728
  %1058 = vmatpush1.msra.mxu0 %v727
  %1059 = vmatprep.subr.mxu0 %v732
  %1060 = vmatpush1.msra.mxu0 %v731
  %1061 = vmatprep.subr.mxu0 %v736
  %1062 = vmatpush1.msra.mxu0 %v735
  %1063 = vmatprep.subr.mxu0 %v740
  %1064 = vmatpush1.msra.mxu0 %v739
  %1065 = vmatprep.subr.mxu0 %v744
  %1066 = vmatpush1.msra.mxu0 %v743
  %1067 = vmatprep.subr.mxu0 %v748
  %1068 = vmatpush1.msra.mxu0 %v747
  %1069 = vmatprep.subr.mxu0 %v752
  %1070 = vmatpush1.msra.mxu0 %v751
  %1071 = vmatprep.subr.mxu0 %v756
  %1072 = vmatpush1.msra.mxu0 %v755
  %1073 = vmatprep.subr.mxu0 %v760
  %1074 = vmatpush1.msra.mxu0 %v759
  %1075 = vmatprep.subr.mxu0 %v764
  %1076 = vmatpush1.msra.mxu0 %v763
  %1077 = vmatprep.subr.mxu0 %v768
  %1078 = vmatpush1.msra.mxu0 %v767
  %1079 = vmatprep.mubr.f32.mxu0 %v978
  %1080 = vmatmul.mubr.f32.gmra.mrb[0].mxu0 %v977
  %v1081 = vpop.f32.mrb[0].mxu0
  %v1082 = vadd.f32 0.0, %v1081
  %v1083 = vpop.f32.mrb[0].mxu0
  %v1084 = vadd.f32 0.0, %v1083
  %1085 = vdwg.mxu0
  %1086 = vmatprep.subr.mxu0 %v646
  %1087 = vmatpush1.msra.mxu0 %v645
  %1088 = vmatprep.subr.mxu0 %v650
  %1089 = vmatpush1.msra.mxu0 %v649
  %1090 = vmatprep.subr.mxu0 %v654
  %1091 = vmatpush1.msra.mxu0 %v653
  %1092 = vmatprep.subr.mxu0 %v658
  %1093 = vmatpush1.msra.mxu0 %v657
  %1094 = vmatprep.subr.mxu0 %v662
  %1095 = vmatpush1.msra.mxu0 %v661
  %1096 = vmatprep.subr.mxu0 %v666
  %1097 = vmatpush1.msra.mxu0 %v665
  %1098 = vmatprep.subr.mxu0 %v670
  %1099 = vmatpush1.msra.mxu0 %v669
  %1100 = vmatprep.subr.mxu0 %v674
  %1101 = vmatpush1.msra.mxu0 %v673
  %1102 = vmatprep.subr.mxu0 %v678
  %1103 = vmatpush1.msra.mxu0 %v677
  %1104 = vmatprep.subr.mxu0 %v682
  %1105 = vmatpush1.msra.mxu0 %v681
  %1106 = vmatprep.subr.mxu0 %v686
  %1107 = vmatpush1.msra.mxu0 %v685
  %1108 = vmatprep.subr.mxu0 %v690
  %1109 = vmatpush1.msra.mxu0 %v689
  %1110 = vmatprep.subr.mxu0 %v694
  %1111 = vmatpush1.msra.mxu0 %v693
  %1112 = vmatprep.subr.mxu0 %v698
  %1113 = vmatpush1.msra.mxu0 %v697
  %1114 = vmatprep.subr.mxu0 %v702
  %1115 = vmatpush1.msra.mxu0 %v701
  %1116 = vmatprep.subr.mxu0 %v706
  %1117 = vmatpush1.msra.mxu0 %v705
  %1118 = vmatprep.subr.mxu0 %v710
  %1119 = vmatpush1.msra.mxu0 %v709
  %1120 = vmatprep.subr.mxu0 %v714
  %1121 = vmatpush1.msra.mxu0 %v713
  %1122 = vmatprep.subr.mxu0 %v718
  %1123 = vmatpush1.msra.mxu0 %v717
  %1124 = vmatprep.subr.mxu0 %v722
  %1125 = vmatpush1.msra.mxu0 %v721
  %1126 = vmatprep.subr.mxu0 %v726
  %1127 = vmatpush1.msra.mxu0 %v725
  %1128 = vmatprep.subr.mxu0 %v730
  %1129 = vmatpush1.msra.mxu0 %v729
  %1130 = vmatprep.subr.mxu0 %v734
  %1131 = vmatpush1.msra.mxu0 %v733
  %1132 = vmatprep.subr.mxu0 %v738
  %1133 = vmatpush1.msra.mxu0 %v737
  %1134 = vmatprep.subr.mxu0 %v742
  %1135 = vmatpush1.msra.mxu0 %v741
  %1136 = vmatprep.subr.mxu0 %v746
  %1137 = vmatpush1.msra.mxu0 %v745
  %1138 = vmatprep.subr.mxu0 %v750
  %1139 = vmatpush1.msra.mxu0 %v749
  %1140 = vmatprep.subr.mxu0 %v754
  %1141 = vmatpush1.msra.mxu0 %v753
  %1142 = vmatprep.subr.mxu0 %v758
  %1143 = vmatpush1.msra.mxu0 %v757
  %1144 = vmatprep.subr.mxu0 %v762
  %1145 = vmatpush1.msra.mxu0 %v761
  %1146 = vmatprep.subr.mxu0 %v766
  %1147 = vmatpush1.msra.mxu0 %v765
  %1148 = vmatprep.subr.mxu0 %v770
  %1149 = vmatpush1.msra.mxu0 %v769
  %1150 = vmatprep.mubr.f32.mxu0 %v978
  %1151 = vmatmul.mubr.f32.gmra.mrb[0].mxu0 %v977
  %v1152 = vpop.f32.mrb[0].mxu0
  %v1153 = vadd.f32 0.0, %v1152
  %v1154 = vpop.f32.mrb[0].mxu0
  %v1155 = vadd.f32 0.0, %v1154
  %1156 = vdwg.mxu0
  %v1157 = vadd.f32 %v1011, %v1082
  %v1158 = vadd.f32 %v1012, %v1084
  %v1159 = vadd.f32 %v1013, %v1153
  %v1160 = vadd.f32 %v1014, %v1155
  %v1161 = vxor.u32 %v1157, 2147483648
  %v1162 = vmul.f32 %v1161, 1.442695
  %v1163 = vpow.pop %v1162
  %v1164 = vadd.f32 %v1163, 1.0
  %v1165 = vrcp.pop %v1164
  %v1166 = vmul.f32 1.0, %v1165
  %v1167 = vxor.u32 %v1158, 2147483648
  %v1168 = vmul.f32 %v1167, 1.442695
  %v1169 = vpow.pop %v1168
  %v1170 = vadd.f32 %v1169, 1.0
  %v1171 = vrcp.pop %v1170
  %v1172 = vmul.f32 1.0, %v1171
  %v1173 = vtanh.pop %v1159
  %v1174 = vxor.u32 %v1160, 2147483648
  %v1175 = vmul.f32 %v1174, 1.442695
  %v1176 = vpow.pop %v1175
  %v1177 = vadd.f32 %v1176, 1.0
  %v1178 = vrcp.pop %v1177
  %v1179 = vmul.f32 1.0, %v1178
  %v1180 = vmul.f32 %v1172, %v969
  %v1181 = vmul.f32 %v1166, %v1173
  %v1182 = vadd.f32 %v1180, %v1181
  %v1183 = vtanh.pop %v1182
  %v1184 = vmul.f32 %v1179, %v1183
  %v1186 = vrot.slane %v1184, 6
  %1188 = vst [vmem:[%s4] sm:$0xc] %v1186
  %1189 = vst [vmem:[%s4 + $0x18] sm:$0x30] %v1186
  %v1190 = vmul.f32 %v1184, %v775
  %v1191 = vmul.f32 %v1184, %v776
  %v1192 = vld [vmem:[#allocation2] sm:$0x30]
  %v1193 = vld [vmem:[#allocation2 + $0x8] sm:$0x30]
  %v1194 = vld [vmem:[#allocation2 + $0x10] sm:$0x30]
  %v1195 = vld [vmem:[#allocation2 + $0x18] sm:$0x30]
  %v1196 = vld [vmem:[#allocation2 + $0x60] sm:$0xc]
  %v1197 = vld [vmem:[#allocation2 + $0x68] sm:$0xc]
  %v1198 = vld [vmem:[#allocation2 + $0x70] sm:$0xc]
  %v1199 = vld [vmem:[#allocation2 + $0x78] sm:$0xc]
  %v1204 = vrot.slane %v1192, 4
  %v1205 = vrot.slane %v1193, 4
  %v1206 = vrot.slane %v1194, 4
  %v1207 = vrot.slane %v1195, 4
  %v1212 = vsel %vm797, %v1204, %v1196
  %v1213 = vsel %vm797, %v1205, %v1197
  %v1214 = vsel %vm797, %v1206, %v1198
  %v1215 = vsel %vm797, %v1207, %v1199
  %1216 = vmatprep.subr.mxu0 %v644
  %1217 = vmatpush1.msra.mxu0 %v643
  %1218 = vmatprep.subr.mxu0 %v648
  %1219 = vmatpush1.msra.mxu0 %v647
  %1220 = vmatprep.subr.mxu0 %v652
  %1221 = vmatpush1.msra.mxu0 %v651
  %1222 = vmatprep.subr.mxu0 %v656
  %1223 = vmatpush1.msra.mxu0 %v655
  %1224 = vmatprep.subr.mxu0 %v660
  %1225 = vmatpush1.msra.mxu0 %v659
  %1226 = vmatprep.subr.mxu0 %v664
  %1227 = vmatpush1.msra.mxu0 %v663
  %1228 = vmatprep.subr.mxu0 %v668
  %1229 = vmatpush1.msra.mxu0 %v667
  %1230 = vmatprep.subr.mxu0 %v672
  %1231 = vmatpush1.msra.mxu0 %v671
  %1232 = vmatprep.subr.mxu0 %v676
  %1233 = vmatpush1.msra.mxu0 %v675
  %1234 = vmatprep.subr.mxu0 %v680
  %1235 = vmatpush1.msra.mxu0 %v679
  %1236 = vmatprep.subr.mxu0 %v684
  %1237 = vmatpush1.msra.mxu0 %v683
  %1238 = vmatprep.subr.mxu0 %v688
  %1239 = vmatpush1.msra.mxu0 %v687
  %1240 = vmatprep.subr.mxu0 %v692
  %1241 = vmatpush1.msra.mxu0 %v691
  %1242 = vmatprep.subr.mxu0 %v696
  %1243 = vmatpush1.msra.mxu0 %v695
  %1244 = vmatprep.subr.mxu0 %v700
  %1245 = vmatpush1.msra.mxu0 %v699
  %1246 = vmatprep.subr.mxu0 %v704
  %1247 = vmatpush1.msra.mxu0 %v703
  %1248 = vmatprep.subr.mxu0 %v708
  %1249 = vmatpush1.msra.mxu0 %v707
  %1250 = vmatprep.subr.mxu0 %v712
  %1251 = vmatpush1.msra.mxu0 %v711
  %1252 = vmatprep.subr.mxu0 %v716
  %1253 = vmatpush1.msra.mxu0 %v715
  %1254 = vmatprep.subr.mxu0 %v720
  %1255 = vmatpush1.msra.mxu0 %v719
  %1256 = vmatprep.subr.mxu0 %v724
  %1257 = vmatpush1.msra.mxu0 %v723
  %1258 = vmatprep.subr.mxu0 %v728
  %1259 = vmatpush1.msra.mxu0 %v727
  %1260 = vmatprep.subr.mxu0 %v732
  %1261 = vmatpush1.msra.mxu0 %v731
  %1262 = vmatprep.subr.mxu0 %v736
  %1263 = vmatpush1.msra.mxu0 %v735
  %1264 = vmatprep.subr.mxu0 %v740
  %1265 = vmatpush1.msra.mxu0 %v739
  %1266 = vmatprep.subr.mxu0 %v744
  %1267 = vmatpush1.msra.mxu0 %v743
  %1268 = vmatprep.subr.mxu0 %v748
  %1269 = vmatpush1.msra.mxu0 %v747
  %1270 = vmatprep.subr.mxu0 %v752
  %1271 = vmatpush1.msra.mxu0 %v751
  %1272 = vmatprep.subr.mxu0 %v756
  %1273 = vmatpush1.msra.mxu0 %v755
  %1274 = vmatprep.subr.mxu0 %v760
  %1275 = vmatpush1.msra.mxu0 %v759
  %1276 = vmatprep.subr.mxu0 %v764
  %1277 = vmatpush1.msra.mxu0 %v763
  %1278 = vmatprep.subr.mxu0 %v768
  %1279 = vmatpush1.msra.mxu0 %v767
  %1280 = vmatprep.mubr.f32.mxu0 %v1191
  %1281 = vmatmul.mubr.f32.gmra.mrb[0].mxu0 %v1190
  %v1282 = vpop.f32.mrb[0].mxu0
  %v1283 = vadd.f32 0.0, %v1282
  %v1284 = vpop.f32.mrb[0].mxu0
  %v1285 = vadd.f32 0.0, %v1284
  %1286 = vdwg.mxu0
  %1287 = vmatprep.subr.mxu0 %v646
  %1288 = vmatpush1.msra.mxu0 %v645
  %1289 = vmatprep.subr.mxu0 %v650
  %1290 = vmatpush1.msra.mxu0 %v649
  %1291 = vmatprep.subr.mxu0 %v654
  %1292 = vmatpush1.msra.mxu0 %v653
  %1293 = vmatprep.subr.mxu0 %v658
  %1294 = vmatpush1.msra.mxu0 %v657
  %1295 = vmatprep.subr.mxu0 %v662
  %1296 = vmatpush1.msra.mxu0 %v661
  %1297 = vmatprep.subr.mxu0 %v666
  %1298 = vmatpush1.msra.mxu0 %v665
  %1299 = vmatprep.subr.mxu0 %v670
  %1300 = vmatpush1.msra.mxu0 %v669
  %1301 = vmatprep.subr.mxu0 %v674
  %1302 = vmatpush1.msra.mxu0 %v673
  %1303 = vmatprep.subr.mxu0 %v678
  %1304 = vmatpush1.msra.mxu0 %v677
  %1305 = vmatprep.subr.mxu0 %v682
  %1306 = vmatpush1.msra.mxu0 %v681
  %1307 = vmatprep.subr.mxu0 %v686
  %1308 = vmatpush1.msra.mxu0 %v685
  %1309 = vmatprep.subr.mxu0 %v690
  %1310 = vmatpush1.msra.mxu0 %v689
  %1311 = vmatprep.subr.mxu0 %v694
  %1312 = vmatpush1.msra.mxu0 %v693
  %1313 = vmatprep.subr.mxu0 %v698
  %1314 = vmatpush1.msra.mxu0 %v697
  %1315 = vmatprep.subr.mxu0 %v702
  %1316 = vmatpush1.msra.mxu0 %v701
  %1317 = vmatprep.subr.mxu0 %v706
  %1318 = vmatpush1.msra.mxu0 %v705
  %1319 = vmatprep.subr.mxu0 %v710
  %1320 = vmatpush1.msra.mxu0 %v709
  %1321 = vmatprep.subr.mxu0 %v714
  %1322 = vmatpush1.msra.mxu0 %v713
  %1323 = vmatprep.subr.mxu0 %v718
  %1324 = vmatpush1.msra.mxu0 %v717
  %1325 = vmatprep.subr.mxu0 %v722
  %1326 = vmatpush1.msra.mxu0 %v721
  %1327 = vmatprep.subr.mxu0 %v726
  %1328 = vmatpush1.msra.mxu0 %v725
  %1329 = vmatprep.subr.mxu0 %v730
  %1330 = vmatpush1.msra.mxu0 %v729
  %1331 = vmatprep.subr.mxu0 %v734
  %1332 = vmatpush1.msra.mxu0 %v733
  %1333 = vmatprep.subr.mxu0 %v738
  %1334 = vmatpush1.msra.mxu0 %v737
  %1335 = vmatprep.subr.mxu0 %v742
  %1336 = vmatpush1.msra.mxu0 %v741
  %1337 = vmatprep.subr.mxu0 %v746
  %1338 = vmatpush1.msra.mxu0 %v745
  %1339 = vmatprep.subr.mxu0 %v750
  %1340 = vmatpush1.msra.mxu0 %v749
  %1341 = vmatprep.subr.mxu0 %v754
  %1342 = vmatpush1.msra.mxu0 %v753
  %1343 = vmatprep.subr.mxu0 %v758
  %1344 = vmatpush1.msra.mxu0 %v757
  %1345 = vmatprep.subr.mxu0 %v762
  %1346 = vmatpush1.msra.mxu0 %v761
  %1347 = vmatprep.subr.mxu0 %v766
  %1348 = vmatpush1.msra.mxu0 %v765
  %1349 = vmatprep.subr.mxu0 %v770
  %1350 = vmatpush1.msra.mxu0 %v769
  %1351 = vmatprep.mubr.f32.mxu0 %v1191
  %1352 = vmatmul.mubr.f32.gmra.mrb[0].mxu0 %v1190
  %v1353 = vpop.f32.mrb[0].mxu0
  %v1354 = vadd.f32 0.0, %v1353
  %v1355 = vpop.f32.mrb[0].mxu0
  %v1356 = vadd.f32 0.0, %v1355
  %1357 = vdwg.mxu0
  %v1358 = vadd.f32 %v1212, %v1283
  %v1359 = vadd.f32 %v1213, %v1285
  %v1360 = vadd.f32 %v1214, %v1354
  %v1361 = vadd.f32 %v1215, %v1356
  %v1362 = vxor.u32 %v1358, 2147483648
  %v1363 = vmul.f32 %v1362, 1.442695
  %v1364 = vpow.pop %v1363
  %v1365 = vadd.f32 %v1364, 1.0
  %v1366 = vrcp.pop %v1365
  %v1367 = vmul.f32 1.0, %v1366
  %v1368 = vxor.u32 %v1359, 2147483648
  %v1369 = vmul.f32 %v1368, 1.442695
  %v1370 = vpow.pop %v1369
  %v1371 = vadd.f32 %v1370, 1.0
  %v1372 = vrcp.pop %v1371
  %v1373 = vmul.f32 1.0, %v1372
  %v1374 = vtanh.pop %v1360
  %v1375 = vxor.u32 %v1361, 2147483648
  %v1376 = vmul.f32 %v1375, 1.442695
  %v1377 = vpow.pop %v1376
  %v1378 = vadd.f32 %v1377, 1.0
  %v1379 = vrcp.pop %v1378
  %v1380 = vmul.f32 1.0, %v1379
  %v1381 = vmul.f32 %v1373, %v1182
  %v1382 = vmul.f32 %v1367, %v1374
  %v1383 = vadd.f32 %v1381, %v1382
  %v1384 = vtanh.pop %v1383
  %v1385 = vmul.f32 %v1380, %v1384
  %v1387 = vrot.slane %v1385, 4
  %1389 = vst [vmem:[%s4] sm:$0x30] %v1387
  %1390 = vst [vmem:[%s4 + $0x18] sm:$0xc] %v1385
  %v1391 = vmul.f32 %v1385, %v775
  %v1392 = vmul.f32 %v1385, %v776
  %v1393 = vld [vmem:[#allocation2] sm:$0xc0]
  %v1394 = vld [vmem:[#allocation2 + $0x8] sm:$0xc0]
  %v1395 = vld [vmem:[#allocation2 + $0x10] sm:$0xc0]
  %v1396 = vld [vmem:[#allocation2 + $0x18] sm:$0xc0]
  %v1397 = vld [vmem:[#allocation2 + $0x60] sm:$0x3]
  %v1398 = vld [vmem:[#allocation2 + $0x68] sm:$0x3]
  %v1399 = vld [vmem:[#allocation2 + $0x70] sm:$0x3]
  %v1400 = vld [vmem:[#allocation2 + $0x78] sm:$0x3]
  %v1405 = vrot.slane %v1393, 6
  %v1406 = vrot.slane %v1394, 6
  %v1407 = vrot.slane %v1395, 6
  %v1408 = vrot.slane %v1396, 6
  %v1417 = vrot.slane %v1397, 6
  %v1418 = vrot.slane %v1398, 6
  %v1419 = vrot.slane %v1399, 6
  %v1420 = vrot.slane %v1400, 6
  %v1425 = vsel %vm797, %v1405, %v1417
  %v1426 = vsel %vm797, %v1406, %v1418
  %v1427 = vsel %vm797, %v1407, %v1419
  %v1428 = vsel %vm797, %v1408, %v1420
  %1429 = vmatprep.subr.mxu0 %v644
  %1430 = vmatpush1.msra.mxu0 %v643
  %1431 = vmatprep.subr.mxu0 %v648
  %1432 = vmatpush1.msra.mxu0 %v647
  %1433 = vmatprep.subr.mxu0 %v652
  %1434 = vmatpush1.msra.mxu0 %v651
  %1435 = vmatprep.subr.mxu0 %v656
  %1436 = vmatpush1.msra.mxu0 %v655
  %1437 = vmatprep.subr.mxu0 %v660
  %1438 = vmatpush1.msra.mxu0 %v659
  %1439 = vmatprep.subr.mxu0 %v664
  %1440 = vmatpush1.msra.mxu0 %v663
  %1441 = vmatprep.subr.mxu0 %v668
  %1442 = vmatpush1.msra.mxu0 %v667
  %1443 = vmatprep.subr.mxu0 %v672
  %1444 = vmatpush1.msra.mxu0 %v671
  %1445 = vmatprep.subr.mxu0 %v676
  %1446 = vmatpush1.msra.mxu0 %v675
  %1447 = vmatprep.subr.mxu0 %v680
  %1448 = vmatpush1.msra.mxu0 %v679
  %1449 = vmatprep.subr.mxu0 %v684
  %1450 = vmatpush1.msra.mxu0 %v683
  %1451 = vmatprep.subr.mxu0 %v688
  %1452 = vmatpush1.msra.mxu0 %v687
  %1453 = vmatprep.subr.mxu0 %v692
  %1454 = vmatpush1.msra.mxu0 %v691
  %1455 = vmatprep.subr.mxu0 %v696
  %1456 = vmatpush1.msra.mxu0 %v695
  %1457 = vmatprep.subr.mxu0 %v700
  %1458 = vmatpush1.msra.mxu0 %v699
  %1459 = vmatprep.subr.mxu0 %v704
  %1460 = vmatpush1.msra.mxu0 %v703
  %1461 = vmatprep.subr.mxu0 %v708
  %1462 = vmatpush1.msra.mxu0 %v707
  %1463 = vmatprep.subr.mxu0 %v712
  %1464 = vmatpush1.msra.mxu0 %v711
  %1465 = vmatprep.subr.mxu0 %v716
  %1466 = vmatpush1.msra.mxu0 %v715
  %1467 = vmatprep.subr.mxu0 %v720
  %1468 = vmatpush1.msra.mxu0 %v719
  %1469 = vmatprep.subr.mxu0 %v724
  %1470 = vmatpush1.msra.mxu0 %v723
  %1471 = vmatprep.subr.mxu0 %v728
  %1472 = vmatpush1.msra.mxu0 %v727
  %1473 = vmatprep.subr.mxu0 %v732
  %1474 = vmatpush1.msra.mxu0 %v731
  %1475 = vmatprep.subr.mxu0 %v736
  %1476 = vmatpush1.msra.mxu0 %v735
  %1477 = vmatprep.subr.mxu0 %v740
  %1478 = vmatpush1.msra.mxu0 %v739
  %1479 = vmatprep.subr.mxu0 %v744
  %1480 = vmatpush1.msra.mxu0 %v743
  %1481 = vmatprep.subr.mxu0 %v748
  %1482 = vmatpush1.msra.mxu0 %v747
  %1483 = vmatprep.subr.mxu0 %v752
  %1484 = vmatpush1.msra.mxu0 %v751
  %1485 = vmatprep.subr.mxu0 %v756
  %1486 = vmatpush1.msra.mxu0 %v755
  %1487 = vmatprep.subr.mxu0 %v760
  %1488 = vmatpush1.msra.mxu0 %v759
  %1489 = vmatprep.subr.mxu0 %v764
  %1490 = vmatpush1.msra.mxu0 %v763
  %1491 = vmatprep.subr.mxu0 %v768
  %1492 = vmatpush1.msra.mxu0 %v767
  %1493 = vmatprep.mubr.f32.mxu0 %v1392
  %1494 = vmatmul.mubr.f32.gmra.mrb[0].mxu0 %v1391
  %v1495 = vpop.f32.mrb[0].mxu0
  %v1496 = vadd.f32 0.0, %v1495
  %v1497 = vpop.f32.mrb[0].mxu0
  %v1498 = vadd.f32 0.0, %v1497
  %1499 = vdwg.mxu0
  %1500 = vmatprep.subr.mxu0 %v646
  %1501 = vmatpush1.msra.mxu0 %v645
  %1502 = vmatprep.subr.mxu0 %v650
  %1503 = vmatpush1.msra.mxu0 %v649
  %1504 = vmatprep.subr.mxu0 %v654
  %1505 = vmatpush1.msra.mxu0 %v653
  %1506 = vmatprep.subr.mxu0 %v658
  %1507 = vmatpush1.msra.mxu0 %v657
  %1508 = vmatprep.subr.mxu0 %v662
  %1509 = vmatpush1.msra.mxu0 %v661
  %1510 = vmatprep.subr.mxu0 %v666
  %1511 = vmatpush1.msra.mxu0 %v665
  %1512 = vmatprep.subr.mxu0 %v670
  %1513 = vmatpush1.msra.mxu0 %v669
  %1514 = vmatprep.subr.mxu0 %v674
  %1515 = vmatpush1.msra.mxu0 %v673
  %1516 = vmatprep.subr.mxu0 %v678
  %1517 = vmatpush1.msra.mxu0 %v677
  %1518 = vmatprep.subr.mxu0 %v682
  %1519 = vmatpush1.msra.mxu0 %v681
  %1520 = vmatprep.subr.mxu0 %v686
  %1521 = vmatpush1.msra.mxu0 %v685
  %1522 = vmatprep.subr.mxu0 %v690
  %1523 = vmatpush1.msra.mxu0 %v689
  %1524 = vmatprep.subr.mxu0 %v694
  %1525 = vmatpush1.msra.mxu0 %v693
  %1526 = vmatprep.subr.mxu0 %v698
  %1527 = vmatpush1.msra.mxu0 %v697
  %1528 = vmatprep.subr.mxu0 %v702
  %1529 = vmatpush1.msra.mxu0 %v701
  %1530 = vmatprep.subr.mxu0 %v706
  %1531 = vmatpush1.msra.mxu0 %v705
  %1532 = vmatprep.subr.mxu0 %v710
  %1533 = vmatpush1.msra.mxu0 %v709
  %1534 = vmatprep.subr.mxu0 %v714
  %1535 = vmatpush1.msra.mxu0 %v713
  %1536 = vmatprep.subr.mxu0 %v718
  %1537 = vmatpush1.msra.mxu0 %v717
  %1538 = vmatprep.subr.mxu0 %v722
  %1539 = vmatpush1.msra.mxu0 %v721
  %1540 = vmatprep.subr.mxu0 %v726
  %1541 = vmatpush1.msra.mxu0 %v725
  %1542 = vmatprep.subr.mxu0 %v730
  %1543 = vmatpush1.msra.mxu0 %v729
  %1544 = vmatprep.subr.mxu0 %v734
  %1545 = vmatpush1.msra.mxu0 %v733
  %1546 = vmatprep.subr.mxu0 %v738
  %1547 = vmatpush1.msra.mxu0 %v737
  %1548 = vmatprep.subr.mxu0 %v742
  %1549 = vmatpush1.msra.mxu0 %v741
  %1550 = vmatprep.subr.mxu0 %v746
  %1551 = vmatpush1.msra.mxu0 %v745
  %1552 = vmatprep.subr.mxu0 %v750
  %1553 = vmatpush1.msra.mxu0 %v749
  %1554 = vmatprep.subr.mxu0 %v754
  %1555 = vmatpush1.msra.mxu0 %v753
  %1556 = vmatprep.subr.mxu0 %v758
  %1557 = vmatpush1.msra.mxu0 %v757
  %1558 = vmatprep.subr.mxu0 %v762
  %1559 = vmatpush1.msra.mxu0 %v761
  %1560 = vmatprep.subr.mxu0 %v766
  %1561 = vmatpush1.msra.mxu0 %v765
  %1562 = vmatprep.subr.mxu0 %v770
  %1563 = vmatpush1.msra.mxu0 %v769
  %1564 = vmatprep.mubr.f32.mxu0 %v1392
  %1565 = vmatmul.mubr.f32.gmra.mrb[0].mxu0 %v1391
  %v1566 = vpop.f32.mrb[0].mxu0
  %v1567 = vadd.f32 0.0, %v1566
  %v1568 = vpop.f32.mrb[0].mxu0
  %v1569 = vadd.f32 0.0, %v1568
  %1570 = vdwg.mxu0
  %v1571 = vadd.f32 %v1425, %v1496
  %v1572 = vadd.f32 %v1426, %v1498
  %v1573 = vadd.f32 %v1427, %v1567
  %v1574 = vadd.f32 %v1428, %v1569
  %v1575 = vxor.u32 %v1571, 2147483648
  %v1576 = vmul.f32 %v1575, 1.442695
  %v1577 = vpow.pop %v1576
  %v1578 = vadd.f32 %v1577, 1.0
  %v1579 = vrcp.pop %v1578
  %v1580 = vmul.f32 1.0, %v1579
  %v1581 = vxor.u32 %v1572, 2147483648
  %v1582 = vmul.f32 %v1581, 1.442695
  %v1583 = vpow.pop %v1582
  %v1584 = vadd.f32 %v1583, 1.0
  %v1585 = vrcp.pop %v1584
  %v1586 = vmul.f32 1.0, %v1585
  %v1587 = vtanh.pop %v1573
  %v1588 = vxor.u32 %v1574, 2147483648
  %v1589 = vmul.f32 %v1588, 1.442695
  %v1590 = vpow.pop %v1589
  %v1591 = vadd.f32 %v1590, 1.0
  %v1592 = vrcp.pop %v1591
  %v1593 = vmul.f32 1.0, %v1592
  %v1594 = vmul.f32 %v1586, %v1383
  %v1595 = vmul.f32 %v1580, %v1587
  %v1596 = vadd.f32 %v1594, %v1595
  %v1597 = vtanh.pop %v1596
  %v1598 = vmul.f32 %v1593, %v1597
  %v1600 = vrot.slane %v1598, 2
  %1602 = vst [vmem:[%s4] sm:$0xc0] %v1600
  %1603 = vst [vmem:[%s4 + $0x18] sm:$0x3] %v1600
  %v1604 = vmul.f32 %v1598, %v775
  %v1605 = vmul.f32 %v1598, %v776
  %v1606 = vld [vmem:[#allocation2 + $0x40] sm:$0x3]
  %v1607 = vld [vmem:[#allocation2 + $0x48] sm:$0x3]
  %v1608 = vld [vmem:[#allocation2 + $0x50] sm:$0x3]
  %v1609 = vld [vmem:[#allocation2 + $0x58] sm:$0x3]
  %v1610 = vld [vmem:[#allocation2 + $0x20] sm:$0xc0]
  %v1611 = vld [vmem:[#allocation2 + $0x28] sm:$0xc0]
  %v1612 = vld [vmem:[#allocation2 + $0x30] sm:$0xc0]
  %v1613 = vld [vmem:[#allocation2 + $0x38] sm:$0xc0]
  %v1618 = vrot.slane %v1610, 4
  %v1619 = vrot.slane %v1611, 4
  %v1620 = vrot.slane %v1612, 4
  %v1621 = vrot.slane %v1613, 4
  %v1626 = vsel %vm797, %v1606, %v1618
  %v1627 = vsel %vm797, %v1607, %v1619
  %v1628 = vsel %vm797, %v1608, %v1620
  %v1629 = vsel %vm797, %v1609, %v1621
  %1630 = vmatprep.subr.mxu0 %v644
  %1631 = vmatpush1.msra.mxu0 %v643
  %1632 = vmatprep.subr.mxu0 %v648
  %1633 = vmatpush1.msra.mxu0 %v647
  %1634 = vmatprep.subr.mxu0 %v652
  %1635 = vmatpush1.msra.mxu0 %v651
  %1636 = vmatprep.subr.mxu0 %v656
  %1637 = vmatpush1.msra.mxu0 %v655
  %1638 = vmatprep.subr.mxu0 %v660
  %1639 = vmatpush1.msra.mxu0 %v659
  %1640 = vmatprep.subr.mxu0 %v664
  %1641 = vmatpush1.msra.mxu0 %v663
  %1642 = vmatprep.subr.mxu0 %v668
  %1643 = vmatpush1.msra.mxu0 %v667
  %1644 = vmatprep.subr.mxu0 %v672
  %1645 = vmatpush1.msra.mxu0 %v671
  %1646 = vmatprep.subr.mxu0 %v676
  %1647 = vmatpush1.msra.mxu0 %v675
  %1648 = vmatprep.subr.mxu0 %v680
  %1649 = vmatpush1.msra.mxu0 %v679
  %1650 = vmatprep.subr.mxu0 %v684
  %1651 = vmatpush1.msra.mxu0 %v683
  %1652 = vmatprep.subr.mxu0 %v688
  %1653 = vmatpush1.msra.mxu0 %v687
  %1654 = vmatprep.subr.mxu0 %v692
  %1655 = vmatpush1.msra.mxu0 %v691
  %1656 = vmatprep.subr.mxu0 %v696
  %1657 = vmatpush1.msra.mxu0 %v695
  %1658 = vmatprep.subr.mxu0 %v700
  %1659 = vmatpush1.msra.mxu0 %v699
  %1660 = vmatprep.subr.mxu0 %v704
  %1661 = vmatpush1.msra.mxu0 %v703
  %1662 = vmatprep.subr.mxu0 %v708
  %1663 = vmatpush1.msra.mxu0 %v707
  %1664 = vmatprep.subr.mxu0 %v712
  %1665 = vmatpush1.msra.mxu0 %v711
  %1666 = vmatprep.subr.mxu0 %v716
  %1667 = vmatpush1.msra.mxu0 %v715
  %1668 = vmatprep.subr.mxu0 %v720
  %1669 = vmatpush1.msra.mxu0 %v719
  %1670 = vmatprep.subr.mxu0 %v724
  %1671 = vmatpush1.msra.mxu0 %v723
  %1672 = vmatprep.subr.mxu0 %v728
  %1673 = vmatpush1.msra.mxu0 %v727
  %1674 = vmatprep.subr.mxu0 %v732
  %1675 = vmatpush1.msra.mxu0 %v731
  %1676 = vmatprep.subr.mxu0 %v736
  %1677 = vmatpush1.msra.mxu0 %v735
  %1678 = vmatprep.subr.mxu0 %v740
  %1679 = vmatpush1.msra.mxu0 %v739
  %1680 = vmatprep.subr.mxu0 %v744
  %1681 = vmatpush1.msra.mxu0 %v743
  %1682 = vmatprep.subr.mxu0 %v748
  %1683 = vmatpush1.msra.mxu0 %v747
  %1684 = vmatprep.subr.mxu0 %v752
  %1685 = vmatpush1.msra.mxu0 %v751
  %1686 = vmatprep.subr.mxu0 %v756
  %1687 = vmatpush1.msra.mxu0 %v755
  %1688 = vmatprep.subr.mxu0 %v760
  %1689 = vmatpush1.msra.mxu0 %v759
  %1690 = vmatprep.subr.mxu0 %v764
  %1691 = vmatpush1.msra.mxu0 %v763
  %1692 = vmatprep.subr.mxu0 %v768
  %1693 = vmatpush1.msra.mxu0 %v767
  %1694 = vmatprep.mubr.f32.mxu0 %v1605
  %1695 = vmatmul.mubr.f32.gmra.mrb[0].mxu0 %v1604
  %v1696 = vpop.f32.mrb[0].mxu0
  %v1697 = vadd.f32 0.0, %v1696
  %v1698 = vpop.f32.mrb[0].mxu0
  %v1699 = vadd.f32 0.0, %v1698
  %1700 = vdwg.mxu0
  %1701 = vmatprep.subr.mxu0 %v646
  %1702 = vmatpush1.msra.mxu0 %v645
  %1703 = vmatprep.subr.mxu0 %v650
  %1704 = vmatpush1.msra.mxu0 %v649
  %1705 = vmatprep.subr.mxu0 %v654
  %1706 = vmatpush1.msra.mxu0 %v653
  %1707 = vmatprep.subr.mxu0 %v658
  %1708 = vmatpush1.msra.mxu0 %v657
  %1709 = vmatprep.subr.mxu0 %v662
  %1710 = vmatpush1.msra.mxu0 %v661
  %1711 = vmatprep.subr.mxu0 %v666
  %1712 = vmatpush1.msra.mxu0 %v665
  %1713 = vmatprep.subr.mxu0 %v670
  %1714 = vmatpush1.msra.mxu0 %v669
  %1715 = vmatprep.subr.mxu0 %v674
  %1716 = vmatpush1.msra.mxu0 %v673
  %1717 = vmatprep.subr.mxu0 %v678
  %1718 = vmatpush1.msra.mxu0 %v677
  %1719 = vmatprep.subr.mxu0 %v682
  %1720 = vmatpush1.msra.mxu0 %v681
  %1721 = vmatprep.subr.mxu0 %v686
  %1722 = vmatpush1.msra.mxu0 %v685
  %1723 = vmatprep.subr.mxu0 %v690
  %1724 = vmatpush1.msra.mxu0 %v689
  %1725 = vmatprep.subr.mxu0 %v694
  %1726 = vmatpush1.msra.mxu0 %v693
  %1727 = vmatprep.subr.mxu0 %v698
  %1728 = vmatpush1.msra.mxu0 %v697
  %1729 = vmatprep.subr.mxu0 %v702
  %1730 = vmatpush1.msra.mxu0 %v701
  %1731 = vmatprep.subr.mxu0 %v706
  %1732 = vmatpush1.msra.mxu0 %v705
  %1733 = vmatprep.subr.mxu0 %v710
  %1734 = vmatpush1.msra.mxu0 %v709
  %1735 = vmatprep.subr.mxu0 %v714
  %1736 = vmatpush1.msra.mxu0 %v713
  %1737 = vmatprep.subr.mxu0 %v718
  %1738 = vmatpush1.msra.mxu0 %v717
  %1739 = vmatprep.subr.mxu0 %v722
  %1740 = vmatpush1.msra.mxu0 %v721
  %1741 = vmatprep.subr.mxu0 %v726
  %1742 = vmatpush1.msra.mxu0 %v725
  %1743 = vmatprep.subr.mxu0 %v730
  %1744 = vmatpush1.msra.mxu0 %v729
  %1745 = vmatprep.subr.mxu0 %v734
  %1746 = vmatpush1.msra.mxu0 %v733
  %1747 = vmatprep.subr.mxu0 %v738
  %1748 = vmatpush1.msra.mxu0 %v737
  %1749 = vmatprep.subr.mxu0 %v742
  %1750 = vmatpush1.msra.mxu0 %v741
  %1751 = vmatprep.subr.mxu0 %v746
  %1752 = vmatpush1.msra.mxu0 %v745
  %1753 = vmatprep.subr.mxu0 %v750
  %1754 = vmatpush1.msra.mxu0 %v749
  %1755 = vmatprep.subr.mxu0 %v754
  %1756 = vmatpush1.msra.mxu0 %v753
  %1757 = vmatprep.subr.mxu0 %v758
  %1758 = vmatpush1.msra.mxu0 %v757
  %1759 = vmatprep.subr.mxu0 %v762
  %1760 = vmatpush1.msra.mxu0 %v761
  %1761 = vmatprep.subr.mxu0 %v766
  %1762 = vmatpush1.msra.mxu0 %v765
  %1763 = vmatprep.subr.mxu0 %v770
  %1764 = vmatpush1.msra.mxu0 %v769
  %1765 = vmatprep.mubr.f32.mxu0 %v1605
  %1766 = vmatmul.mubr.f32.gmra.mrb[0].mxu0 %v1604
  %v1767 = vpop.f32.mrb[0].mxu0
  %v1768 = vadd.f32 0.0, %v1767
  %v1769 = vpop.f32.mrb[0].mxu0
  %v1770 = vadd.f32 0.0, %v1769
  %1771 = vdwg.mxu0
  %v1772 = vadd.f32 %v1626, %v1697
  %v1773 = vadd.f32 %v1627, %v1699
  %v1774 = vadd.f32 %v1628, %v1768
  %v1775 = vadd.f32 %v1629, %v1770
  %v1776 = vxor.u32 %v1772, 2147483648
  %v1777 = vmul.f32 %v1776, 1.442695
  %v1778 = vpow.pop %v1777
  %v1779 = vadd.f32 %v1778, 1.0
  %v1780 = vrcp.pop %v1779
  %v1781 = vmul.f32 1.0, %v1780
  %v1782 = vxor.u32 %v1773, 2147483648
  %v1783 = vmul.f32 %v1782, 1.442695
  %v1784 = vpow.pop %v1783
  %v1785 = vadd.f32 %v1784, 1.0
  %v1786 = vrcp.pop %v1785
  %v1787 = vmul.f32 1.0, %v1786
  %v1788 = vtanh.pop %v1774
  %v1789 = vxor.u32 %v1775, 2147483648
  %v1790 = vmul.f32 %v1789, 1.442695
  %v1791 = vpow.pop %v1790
  %v1792 = vadd.f32 %v1791, 1.0
  %v1793 = vrcp.pop %v1792
  %v1794 = vmul.f32 1.0, %v1793
  %v1795 = vmul.f32 %v1787, %v1596
  %v1796 = vmul.f32 %v1781, %v1788
  %v1797 = vadd.f32 %v1795, %v1796
  %v1798 = vtanh.pop %v1797
  %v1799 = vmul.f32 %v1794, %v1798
  %1800 = vst [vmem:[%s4 + $0x10] sm:$0x3] %v1799
  %v1802 = vrot.slane %v1799, 4
  %1804 = vst [vmem:[%s4 + $0x8] sm:$0xc0] %v1802
  %v1805 = vmul.f32 %v1799, %v775
  %v1806 = vmul.f32 %v1799, %v776
  %v1807 = vld [vmem:[#allocation2 + $0x40] sm:$0xc]
  %v1808 = vld [vmem:[#allocation2 + $0x48] sm:$0xc]
  %v1809 = vld [vmem:[#allocation2 + $0x50] sm:$0xc]
  %v1810 = vld [vmem:[#allocation2 + $0x58] sm:$0xc]
  %v1811 = vld [vmem:[#allocation2 + $0x20] sm:$0x30]
  %v1812 = vld [vmem:[#allocation2 + $0x28] sm:$0x30]
  %v1813 = vld [vmem:[#allocation2 + $0x30] sm:$0x30]
  %v1814 = vld [vmem:[#allocation2 + $0x38] sm:$0x30]
  %v1819 = vrot.slane %v1807, 2
  %v1820 = vrot.slane %v1808, 2
  %v1821 = vrot.slane %v1809, 2
  %v1822 = vrot.slane %v1810, 2
  %v1831 = vrot.slane %v1811, 2
  %v1832 = vrot.slane %v1812, 2
  %v1833 = vrot.slane %v1813, 2
  %v1834 = vrot.slane %v1814, 2
  %v1839 = vsel %vm797, %v1819, %v1831
  %v1840 = vsel %vm797, %v1820, %v1832
  %v1841 = vsel %vm797, %v1821, %v1833
  %v1842 = vsel %vm797, %v1822, %v1834
  %1843 = vmatprep.subr.mxu0 %v644
  %1844 = vmatpush1.msra.mxu0 %v643
  %1845 = vmatprep.subr.mxu0 %v648
  %1846 = vmatpush1.msra.mxu0 %v647
  %1847 = vmatprep.subr.mxu0 %v652
  %1848 = vmatpush1.msra.mxu0 %v651
  %1849 = vmatprep.subr.mxu0 %v656
  %1850 = vmatpush1.msra.mxu0 %v655
  %1851 = vmatprep.subr.mxu0 %v660
  %1852 = vmatpush1.msra.mxu0 %v659
  %1853 = vmatprep.subr.mxu0 %v664
  %1854 = vmatpush1.msra.mxu0 %v663
  %1855 = vmatprep.subr.mxu0 %v668
  %1856 = vmatpush1.msra.mxu0 %v667
  %1857 = vmatprep.subr.mxu0 %v672
  %1858 = vmatpush1.msra.mxu0 %v671
  %1859 = vmatprep.subr.mxu0 %v676
  %1860 = vmatpush1.msra.mxu0 %v675
  %1861 = vmatprep.subr.mxu0 %v680
  %1862 = vmatpush1.msra.mxu0 %v679
  %1863 = vmatprep.subr.mxu0 %v684
  %1864 = vmatpush1.msra.mxu0 %v683
  %1865 = vmatprep.subr.mxu0 %v688
  %1866 = vmatpush1.msra.mxu0 %v687
  %1867 = vmatprep.subr.mxu0 %v692
  %1868 = vmatpush1.msra.mxu0 %v691
  %1869 = vmatprep.subr.mxu0 %v696
  %1870 = vmatpush1.msra.mxu0 %v695
  %1871 = vmatprep.subr.mxu0 %v700
  %1872 = vmatpush1.msra.mxu0 %v699
  %1873 = vmatprep.subr.mxu0 %v704
  %1874 = vmatpush1.msra.mxu0 %v703
  %1875 = vmatprep.subr.mxu0 %v708
  %1876 = vmatpush1.msra.mxu0 %v707
  %1877 = vmatprep.subr.mxu0 %v712
  %1878 = vmatpush1.msra.mxu0 %v711
  %1879 = vmatprep.subr.mxu0 %v716
  %1880 = vmatpush1.msra.mxu0 %v715
  %1881 = vmatprep.subr.mxu0 %v720
  %1882 = vmatpush1.msra.mxu0 %v719
  %1883 = vmatprep.subr.mxu0 %v724
  %1884 = vmatpush1.msra.mxu0 %v723
  %1885 = vmatprep.subr.mxu0 %v728
  %1886 = vmatpush1.msra.mxu0 %v727
  %1887 = vmatprep.subr.mxu0 %v732
  %1888 = vmatpush1.msra.mxu0 %v731
  %1889 = vmatprep.subr.mxu0 %v736
  %1890 = vmatpush1.msra.mxu0 %v735
  %1891 = vmatprep.subr.mxu0 %v740
  %1892 = vmatpush1.msra.mxu0 %v739
  %1893 = vmatprep.subr.mxu0 %v744
  %1894 = vmatpush1.msra.mxu0 %v743
  %1895 = vmatprep.subr.mxu0 %v748
  %1896 = vmatpush1.msra.mxu0 %v747
  %1897 = vmatprep.subr.mxu0 %v752
  %1898 = vmatpush1.msra.mxu0 %v751
  %1899 = vmatprep.subr.mxu0 %v756
  %1900 = vmatpush1.msra.mxu0 %v755
  %1901 = vmatprep.subr.mxu0 %v760
  %1902 = vmatpush1.msra.mxu0 %v759
  %1903 = vmatprep.subr.mxu0 %v764
  %1904 = vmatpush1.msra.mxu0 %v763
  %1905 = vmatprep.subr.mxu0 %v768
  %1906 = vmatpush1.msra.mxu0 %v767
  %1907 = vmatprep.mubr.f32.mxu0 %v1806
  %1908 = vmatmul.mubr.f32.gmra.mrb[0].mxu0 %v1805
  %v1909 = vpop.f32.mrb[0].mxu0
  %v1910 = vadd.f32 0.0, %v1909
  %v1911 = vpop.f32.mrb[0].mxu0
  %v1912 = vadd.f32 0.0, %v1911
  %1913 = vdwg.mxu0
  %1914 = vmatprep.subr.mxu0 %v646
  %1915 = vmatpush1.msra.mxu0 %v645
  %1916 = vmatprep.subr.mxu0 %v650
  %1917 = vmatpush1.msra.mxu0 %v649
  %1918 = vmatprep.subr.mxu0 %v654
  %1919 = vmatpush1.msra.mxu0 %v653
  %1920 = vmatprep.subr.mxu0 %v658
  %1921 = vmatpush1.msra.mxu0 %v657
  %1922 = vmatprep.subr.mxu0 %v662
  %1923 = vmatpush1.msra.mxu0 %v661
  %1924 = vmatprep.subr.mxu0 %v666
  %1925 = vmatpush1.msra.mxu0 %v665
  %1926 = vmatprep.subr.mxu0 %v670
  %1927 = vmatpush1.msra.mxu0 %v669
  %1928 = vmatprep.subr.mxu0 %v674
  %1929 = vmatpush1.msra.mxu0 %v673
  %1930 = vmatprep.subr.mxu0 %v678
  %1931 = vmatpush1.msra.mxu0 %v677
  %1932 = vmatprep.subr.mxu0 %v682
  %1933 = vmatpush1.msra.mxu0 %v681
  %1934 = vmatprep.subr.mxu0 %v686
  %1935 = vmatpush1.msra.mxu0 %v685
  %1936 = vmatprep.subr.mxu0 %v690
  %1937 = vmatpush1.msra.mxu0 %v689
  %1938 = vmatprep.subr.mxu0 %v694
  %1939 = vmatpush1.msra.mxu0 %v693
  %1940 = vmatprep.subr.mxu0 %v698
  %1941 = vmatpush1.msra.mxu0 %v697
  %1942 = vmatprep.subr.mxu0 %v702
  %1943 = vmatpush1.msra.mxu0 %v701
  %1944 = vmatprep.subr.mxu0 %v706
  %1945 = vmatpush1.msra.mxu0 %v705
  %1946 = vmatprep.subr.mxu0 %v710
  %1947 = vmatpush1.msra.mxu0 %v709
  %1948 = vmatprep.subr.mxu0 %v714
  %1949 = vmatpush1.msra.mxu0 %v713
  %1950 = vmatprep.subr.mxu0 %v718
  %1951 = vmatpush1.msra.mxu0 %v717
  %1952 = vmatprep.subr.mxu0 %v722
  %1953 = vmatpush1.msra.mxu0 %v721
  %1954 = vmatprep.subr.mxu0 %v726
  %1955 = vmatpush1.msra.mxu0 %v725
  %1956 = vmatprep.subr.mxu0 %v730
  %1957 = vmatpush1.msra.mxu0 %v729
  %1958 = vmatprep.subr.mxu0 %v734
  %1959 = vmatpush1.msra.mxu0 %v733
  %1960 = vmatprep.subr.mxu0 %v738
  %1961 = vmatpush1.msra.mxu0 %v737
  %1962 = vmatprep.subr.mxu0 %v742
  %1963 = vmatpush1.msra.mxu0 %v741
  %1964 = vmatprep.subr.mxu0 %v746
  %1965 = vmatpush1.msra.mxu0 %v745
  %1966 = vmatprep.subr.mxu0 %v750
  %1967 = vmatpush1.msra.mxu0 %v749
  %1968 = vmatprep.subr.mxu0 %v754
  %1969 = vmatpush1.msra.mxu0 %v753
  %1970 = vmatprep.subr.mxu0 %v758
  %1971 = vmatpush1.msra.mxu0 %v757
  %1972 = vmatprep.subr.mxu0 %v762
  %1973 = vmatpush1.msra.mxu0 %v761
  %1974 = vmatprep.subr.mxu0 %v766
  %1975 = vmatpush1.msra.mxu0 %v765
  %1976 = vmatprep.subr.mxu0 %v770
  %1977 = vmatpush1.msra.mxu0 %v769
  %1978 = vmatprep.mubr.f32.mxu0 %v1806
  %1979 = vmatmul.mubr.f32.gmra.mrb[0].mxu0 %v1805
  %v1980 = vpop.f32.mrb[0].mxu0
  %v1981 = vadd.f32 0.0, %v1980
  %v1982 = vpop.f32.mrb[0].mxu0
  %v1983 = vadd.f32 0.0, %v1982
  %1984 = vdwg.mxu0
  %v1985 = vadd.f32 %v1839, %v1910
  %v1986 = vadd.f32 %v1840, %v1912
  %v1987 = vadd.f32 %v1841, %v1981
  %v1988 = vadd.f32 %v1842, %v1983
  %v1989 = vxor.u32 %v1985, 2147483648
  %v1990 = vmul.f32 %v1989, 1.442695
  %v1991 = vpow.pop %v1990
  %v1992 = vadd.f32 %v1991, 1.0
  %v1993 = vrcp.pop %v1992
  %v1994 = vmul.f32 1.0, %v1993
  %v1995 = vxor.u32 %v1986, 2147483648
  %v1996 = vmul.f32 %v1995, 1.442695
  %v1997 = vpow.pop %v1996
  %v1998 = vadd.f32 %v1997, 1.0
  %v1999 = vrcp.pop %v1998
  %v2000 = vmul.f32 1.0, %v1999
  %v2001 = vtanh.pop %v1987
  %v2002 = vxor.u32 %v1988, 2147483648
  %v2003 = vmul.f32 %v2002, 1.442695
  %v2004 = vpow.pop %v2003
  %v2005 = vadd.f32 %v2004, 1.0
  %v2006 = vrcp.pop %v2005
  %v2007 = vmul.f32 1.0, %v2006
  %v2008 = vmul.f32 %v2000, %v1797
  %v2009 = vmul.f32 %v1994, %v2001
  %v2010 = vadd.f32 %v2008, %v2009
  %v2011 = vtanh.pop %v2010
  %v2012 = vmul.f32 %v2007, %v2011
  %v2014 = vrot.slane %v2012, 6
  %2016 = vst [vmem:[%s4 + $0x10] sm:$0xc] %v2014
  %2017 = vst [vmem:[%s4 + $0x8] sm:$0x30] %v2014
  %v2018 = vmul.f32 %v2012, %v775
  %v2019 = vmul.f32 %v2012, %v776
  %v2020 = vld [vmem:[#allocation2 + $0x40] sm:$0x30]
  %v2021 = vld [vmem:[#allocation2 + $0x48] sm:$0x30]
  %v2022 = vld [vmem:[#allocation2 + $0x50] sm:$0x30]
  %v2023 = vld [vmem:[#allocation2 + $0x58] sm:$0x30]
  %v2024 = vld [vmem:[#allocation2 + $0x20] sm:$0xc]
  %v2025 = vld [vmem:[#allocation2 + $0x28] sm:$0xc]
  %v2026 = vld [vmem:[#allocation2 + $0x30] sm:$0xc]
  %v2027 = vld [vmem:[#allocation2 + $0x38] sm:$0xc]
  %v2032 = vrot.slane %v2020, 4
  %v2033 = vrot.slane %v2021, 4
  %v2034 = vrot.slane %v2022, 4
  %v2035 = vrot.slane %v2023, 4
  %v2040 = vsel %vm797, %v2032, %v2024
  %v2041 = vsel %vm797, %v2033, %v2025
  %v2042 = vsel %vm797, %v2034, %v2026
  %v2043 = vsel %vm797, %v2035, %v2027
  %2044 = vmatprep.subr.mxu0 %v644
  %2045 = vmatpush1.msra.mxu0 %v643
  %2046 = vmatprep.subr.mxu0 %v648
  %2047 = vmatpush1.msra.mxu0 %v647
  %2048 = vmatprep.subr.mxu0 %v652
  %2049 = vmatpush1.msra.mxu0 %v651
  %2050 = vmatprep.subr.mxu0 %v656
  %2051 = vmatpush1.msra.mxu0 %v655
  %2052 = vmatprep.subr.mxu0 %v660
  %2053 = vmatpush1.msra.mxu0 %v659
  %2054 = vmatprep.subr.mxu0 %v664
  %2055 = vmatpush1.msra.mxu0 %v663
  %2056 = vmatprep.subr.mxu0 %v668
  %2057 = vmatpush1.msra.mxu0 %v667
  %2058 = vmatprep.subr.mxu0 %v672
  %2059 = vmatpush1.msra.mxu0 %v671
  %2060 = vmatprep.subr.mxu0 %v676
  %2061 = vmatpush1.msra.mxu0 %v675
  %2062 = vmatprep.subr.mxu0 %v680
  %2063 = vmatpush1.msra.mxu0 %v679
  %2064 = vmatprep.subr.mxu0 %v684
  %2065 = vmatpush1.msra.mxu0 %v683
  %2066 = vmatprep.subr.mxu0 %v688
  %2067 = vmatpush1.msra.mxu0 %v687
  %2068 = vmatprep.subr.mxu0 %v692
  %2069 = vmatpush1.msra.mxu0 %v691
  %2070 = vmatprep.subr.mxu0 %v696
  %2071 = vmatpush1.msra.mxu0 %v695
  %2072 = vmatprep.subr.mxu0 %v700
  %2073 = vmatpush1.msra.mxu0 %v699
  %2074 = vmatprep.subr.mxu0 %v704
  %2075 = vmatpush1.msra.mxu0 %v703
  %2076 = vmatprep.subr.mxu0 %v708
  %2077 = vmatpush1.msra.mxu0 %v707
  %2078 = vmatprep.subr.mxu0 %v712
  %2079 = vmatpush1.msra.mxu0 %v711
  %2080 = vmatprep.subr.mxu0 %v716
  %2081 = vmatpush1.msra.mxu0 %v715
  %2082 = vmatprep.subr.mxu0 %v720
  %2083 = vmatpush1.msra.mxu0 %v719
  %2084 = vmatprep.subr.mxu0 %v724
  %2085 = vmatpush1.msra.mxu0 %v723
  %2086 = vmatprep.subr.mxu0 %v728
  %2087 = vmatpush1.msra.mxu0 %v727
  %2088 = vmatprep.subr.mxu0 %v732
  %2089 = vmatpush1.msra.mxu0 %v731
  %2090 = vmatprep.subr.mxu0 %v736
  %2091 = vmatpush1.msra.mxu0 %v735
  %2092 = vmatprep.subr.mxu0 %v740
  %2093 = vmatpush1.msra.mxu0 %v739
  %2094 = vmatprep.subr.mxu0 %v744
  %2095 = vmatpush1.msra.mxu0 %v743
  %2096 = vmatprep.subr.mxu0 %v748
  %2097 = vmatpush1.msra.mxu0 %v747
  %2098 = vmatprep.subr.mxu0 %v752
  %2099 = vmatpush1.msra.mxu0 %v751
  %2100 = vmatprep.subr.mxu0 %v756
  %2101 = vmatpush1.msra.mxu0 %v755
  %2102 = vmatprep.subr.mxu0 %v760
  %2103 = vmatpush1.msra.mxu0 %v759
  %2104 = vmatprep.subr.mxu0 %v764
  %2105 = vmatpush1.msra.mxu0 %v763
  %2106 = vmatprep.subr.mxu0 %v768
  %2107 = vmatpush1.msra.mxu0 %v767
  %2108 = vmatprep.mubr.f32.mxu0 %v2019
  %2109 = vmatmul.mubr.f32.gmra.mrb[0].mxu0 %v2018
  %v2110 = vpop.f32.mrb[0].mxu0
  %v2111 = vadd.f32 0.0, %v2110
  %v2112 = vpop.f32.mrb[0].mxu0
  %v2113 = vadd.f32 0.0, %v2112
  %2114 = vdwg.mxu0
  %2115 = vmatprep.subr.mxu0 %v646
  %2116 = vmatpush1.msra.mxu0 %v645
  %2117 = vmatprep.subr.mxu0 %v650
  %2118 = vmatpush1.msra.mxu0 %v649
  %2119 = vmatprep.subr.mxu0 %v654
  %2120 = vmatpush1.msra.mxu0 %v653
  %2121 = vmatprep.subr.mxu0 %v658
  %2122 = vmatpush1.msra.mxu0 %v657
  %2123 = vmatprep.subr.mxu0 %v662
  %2124 = vmatpush1.msra.mxu0 %v661
  %2125 = vmatprep.subr.mxu0 %v666
  %2126 = vmatpush1.msra.mxu0 %v665
  %2127 = vmatprep.subr.mxu0 %v670
  %2128 = vmatpush1.msra.mxu0 %v669
  %2129 = vmatprep.subr.mxu0 %v674
  %2130 = vmatpush1.msra.mxu0 %v673
  %2131 = vmatprep.subr.mxu0 %v678
  %2132 = vmatpush1.msra.mxu0 %v677
  %2133 = vmatprep.subr.mxu0 %v682
  %2134 = vmatpush1.msra.mxu0 %v681
  %2135 = vmatprep.subr.mxu0 %v686
  %2136 = vmatpush1.msra.mxu0 %v685
  %2137 = vmatprep.subr.mxu0 %v690
  %2138 = vmatpush1.msra.mxu0 %v689
  %2139 = vmatprep.subr.mxu0 %v694
  %2140 = vmatpush1.msra.mxu0 %v693
  %2141 = vmatprep.subr.mxu0 %v698
  %2142 = vmatpush1.msra.mxu0 %v697
  %2143 = vmatprep.subr.mxu0 %v702
  %2144 = vmatpush1.msra.mxu0 %v701
  %2145 = vmatprep.subr.mxu0 %v706
  %2146 = vmatpush1.msra.mxu0 %v705
  %2147 = vmatprep.subr.mxu0 %v710
  %2148 = vmatpush1.msra.mxu0 %v709
  %2149 = vmatprep.subr.mxu0 %v714
  %2150 = vmatpush1.msra.mxu0 %v713
  %2151 = vmatprep.subr.mxu0 %v718
  %2152 = vmatpush1.msra.mxu0 %v717
  %2153 = vmatprep.subr.mxu0 %v722
  %2154 = vmatpush1.msra.mxu0 %v721
  %2155 = vmatprep.subr.mxu0 %v726
  %2156 = vmatpush1.msra.mxu0 %v725
  %2157 = vmatprep.subr.mxu0 %v730
  %2158 = vmatpush1.msra.mxu0 %v729
  %2159 = vmatprep.subr.mxu0 %v734
  %2160 = vmatpush1.msra.mxu0 %v733
  %2161 = vmatprep.subr.mxu0 %v738
  %2162 = vmatpush1.msra.mxu0 %v737
  %2163 = vmatprep.subr.mxu0 %v742
  %2164 = vmatpush1.msra.mxu0 %v741
  %2165 = vmatprep.subr.mxu0 %v746
  %2166 = vmatpush1.msra.mxu0 %v745
  %2167 = vmatprep.subr.mxu0 %v750
  %2168 = vmatpush1.msra.mxu0 %v749
  %2169 = vmatprep.subr.mxu0 %v754
  %2170 = vmatpush1.msra.mxu0 %v753
  %2171 = vmatprep.subr.mxu0 %v758
  %2172 = vmatpush1.msra.mxu0 %v757
  %2173 = vmatprep.subr.mxu0 %v762
  %2174 = vmatpush1.msra.mxu0 %v761
  %2175 = vmatprep.subr.mxu0 %v766
  %2176 = vmatpush1.msra.mxu0 %v765
  %2177 = vmatprep.subr.mxu0 %v770
  %2178 = vmatpush1.msra.mxu0 %v769
  %2179 = vmatprep.mubr.f32.mxu0 %v2019
  %2180 = vmatmul.mubr.f32.gmra.mrb[0].mxu0 %v2018
  %v2181 = vpop.f32.mrb[0].mxu0
  %v2182 = vadd.f32 0.0, %v2181
  %v2183 = vpop.f32.mrb[0].mxu0
  %v2184 = vadd.f32 0.0, %v2183
  %2185 = vdwg.mxu0
  %v2186 = vadd.f32 %v2040, %v2111
  %v2187 = vadd.f32 %v2041, %v2113
  %v2188 = vadd.f32 %v2042, %v2182
  %v2189 = vadd.f32 %v2043, %v2184
  %v2190 = vxor.u32 %v2186, 2147483648
  %v2191 = vmul.f32 %v2190, 1.442695
  %v2192 = vpow.pop %v2191
  %v2193 = vadd.f32 %v2192, 1.0
  %v2194 = vrcp.pop %v2193
  %v2195 = vmul.f32 1.0, %v2194
  %v2196 = vxor.u32 %v2187, 2147483648
  %v2197 = vmul.f32 %v2196, 1.442695
  %v2198 = vpow.pop %v2197
  %v2199 = vadd.f32 %v2198, 1.0
  %v2200 = vrcp.pop %v2199
  %v2201 = vmul.f32 1.0, %v2200
  %v2202 = vtanh.pop %v2188
  %v2203 = vxor.u32 %v2189, 2147483648
  %v2204 = vmul.f32 %v2203, 1.442695
  %v2205 = vpow.pop %v2204
  %v2206 = vadd.f32 %v2205, 1.0
  %v2207 = vrcp.pop %v2206
  %v2208 = vmul.f32 1.0, %v2207
  %v2209 = vmul.f32 %v2201, %v2010
  %v2210 = vmul.f32 %v2195, %v2202
  %v2211 = vadd.f32 %v2209, %v2210
  %v2212 = vtanh.pop %v2211
  %v2213 = vmul.f32 %v2208, %v2212
  %v2215 = vrot.slane %v2213, 4
  %2217 = vst [vmem:[%s4 + $0x10] sm:$0x30] %v2215
  %2218 = vst [vmem:[%s4 + $0x8] sm:$0xc] %v2213
  %v2219 = vmul.f32 %v2213, %v775
  %v2220 = vmul.f32 %v2213, %v776
  %v2221 = vld [vmem:[#allocation2 + $0x40] sm:$0xc0]
  %v2222 = vld [vmem:[#allocation2 + $0x48] sm:$0xc0]
  %v2223 = vld [vmem:[#allocation2 + $0x50] sm:$0xc0]
  %v2224 = vld [vmem:[#allocation2 + $0x58] sm:$0xc0]
  %v2225 = vld [vmem:[#allocation2 + $0x20] sm:$0x3]
  %v2226 = vld [vmem:[#allocation2 + $0x28] sm:$0x3]
  %v2227 = vld [vmem:[#allocation2 + $0x30] sm:$0x3]
  %v2228 = vld [vmem:[#allocation2 + $0x38] sm:$0x3]
  %v2233 = vrot.slane %v2221, 6
  %v2234 = vrot.slane %v2222, 6
  %v2235 = vrot.slane %v2223, 6
  %v2236 = vrot.slane %v2224, 6
  %v2245 = vrot.slane %v2225, 6
  %v2246 = vrot.slane %v2226, 6
  %v2247 = vrot.slane %v2227, 6
  %v2248 = vrot.slane %v2228, 6
  %v2253 = vsel %vm797, %v2233, %v2245
  %v2254 = vsel %vm797, %v2234, %v2246
  %v2255 = vsel %vm797, %v2235, %v2247
  %v2256 = vsel %vm797, %v2236, %v2248
  %2257 = vmatprep.subr.mxu0 %v644
  %2258 = vmatpush1.msra.mxu0 %v643
  %2259 = vmatprep.subr.mxu0 %v648
  %2260 = vmatpush1.msra.mxu0 %v647
  %2261 = vmatprep.subr.mxu0 %v652
  %2262 = vmatpush1.msra.mxu0 %v651
  %2263 = vmatprep.subr.mxu0 %v656
  %2264 = vmatpush1.msra.mxu0 %v655
  %2265 = vmatprep.subr.mxu0 %v660
  %2266 = vmatpush1.msra.mxu0 %v659
  %2267 = vmatprep.subr.mxu0 %v664
  %2268 = vmatpush1.msra.mxu0 %v663
  %2269 = vmatprep.subr.mxu0 %v668
  %2270 = vmatpush1.msra.mxu0 %v667
  %2271 = vmatprep.subr.mxu0 %v672
  %2272 = vmatpush1.msra.mxu0 %v671
  %2273 = vmatprep.subr.mxu0 %v676
  %2274 = vmatpush1.msra.mxu0 %v675
  %2275 = vmatprep.subr.mxu0 %v680
  %2276 = vmatpush1.msra.mxu0 %v679
  %2277 = vmatprep.subr.mxu0 %v684
  %2278 = vmatpush1.msra.mxu0 %v683
  %2279 = vmatprep.subr.mxu0 %v688
  %2280 = vmatpush1.msra.mxu0 %v687
  %2281 = vmatprep.subr.mxu0 %v692
  %2282 = vmatpush1.msra.mxu0 %v691
  %2283 = vmatprep.subr.mxu0 %v696
  %2284 = vmatpush1.msra.mxu0 %v695
  %2285 = vmatprep.subr.mxu0 %v700
  %2286 = vmatpush1.msra.mxu0 %v699
  %2287 = vmatprep.subr.mxu0 %v704
  %2288 = vmatpush1.msra.mxu0 %v703
  %2289 = vmatprep.subr.mxu0 %v708
  %2290 = vmatpush1.msra.mxu0 %v707
  %2291 = vmatprep.subr.mxu0 %v712
  %2292 = vmatpush1.msra.mxu0 %v711
  %2293 = vmatprep.subr.mxu0 %v716
  %2294 = vmatpush1.msra.mxu0 %v715
  %2295 = vmatprep.subr.mxu0 %v720
  %2296 = vmatpush1.msra.mxu0 %v719
  %2297 = vmatprep.subr.mxu0 %v724
  %2298 = vmatpush1.msra.mxu0 %v723
  %2299 = vmatprep.subr.mxu0 %v728
  %2300 = vmatpush1.msra.mxu0 %v727
  %2301 = vmatprep.subr.mxu0 %v732
  %2302 = vmatpush1.msra.mxu0 %v731
  %2303 = vmatprep.subr.mxu0 %v736
  %2304 = vmatpush1.msra.mxu0 %v735
  %2305 = vmatprep.subr.mxu0 %v740
  %2306 = vmatpush1.msra.mxu0 %v739
  %2307 = vmatprep.subr.mxu0 %v744
  %2308 = vmatpush1.msra.mxu0 %v743
  %2309 = vmatprep.subr.mxu0 %v748
  %2310 = vmatpush1.msra.mxu0 %v747
  %2311 = vmatprep.subr.mxu0 %v752
  %2312 = vmatpush1.msra.mxu0 %v751
  %2313 = vmatprep.subr.mxu0 %v756
  %2314 = vmatpush1.msra.mxu0 %v755
  %2315 = vmatprep.subr.mxu0 %v760
  %2316 = vmatpush1.msra.mxu0 %v759
  %2317 = vmatprep.subr.mxu0 %v764
  %2318 = vmatpush1.msra.mxu0 %v763
  %2319 = vmatprep.subr.mxu0 %v768
  %2320 = vmatpush1.msra.mxu0 %v767
  %2321 = vmatprep.mubr.f32.mxu0 %v2220
  %2322 = vmatmul.mubr.f32.gmra.mrb[0].mxu0 %v2219
  %v2323 = vpop.f32.mrb[0].mxu0
  %v2324 = vadd.f32 0.0, %v2323
  %v2325 = vpop.f32.mrb[0].mxu0
  %v2326 = vadd.f32 0.0, %v2325
  %2327 = vdwg.mxu0
  %2328 = vmatprep.subr.mxu0 %v646
  %2329 = vmatpush1.msra.mxu0 %v645
  %2330 = vmatprep.subr.mxu0 %v650
  %2331 = vmatpush1.msra.mxu0 %v649
  %2332 = vmatprep.subr.mxu0 %v654
  %2333 = vmatpush1.msra.mxu0 %v653
  %2334 = vmatprep.subr.mxu0 %v658
  %2335 = vmatpush1.msra.mxu0 %v657
  %2336 = vmatprep.subr.mxu0 %v662
  %2337 = vmatpush1.msra.mxu0 %v661
  %2338 = vmatprep.subr.mxu0 %v666
  %2339 = vmatpush1.msra.mxu0 %v665
  %2340 = vmatprep.subr.mxu0 %v670
  %2341 = vmatpush1.msra.mxu0 %v669
  %2342 = vmatprep.subr.mxu0 %v674
  %2343 = vmatpush1.msra.mxu0 %v673
  %2344 = vmatprep.subr.mxu0 %v678
  %2345 = vmatpush1.msra.mxu0 %v677
  %2346 = vmatprep.subr.mxu0 %v682
  %2347 = vmatpush1.msra.mxu0 %v681
  %2348 = vmatprep.subr.mxu0 %v686
  %2349 = vmatpush1.msra.mxu0 %v685
  %2350 = vmatprep.subr.mxu0 %v690
  %2351 = vmatpush1.msra.mxu0 %v689
  %2352 = vmatprep.subr.mxu0 %v694
  %2353 = vmatpush1.msra.mxu0 %v693
  %2354 = vmatprep.subr.mxu0 %v698
  %2355 = vmatpush1.msra.mxu0 %v697
  %2356 = vmatprep.subr.mxu0 %v702
  %2357 = vmatpush1.msra.mxu0 %v701
  %2358 = vmatprep.subr.mxu0 %v706
  %2359 = vmatpush1.msra.mxu0 %v705
  %2360 = vmatprep.subr.mxu0 %v710
  %2361 = vmatpush1.msra.mxu0 %v709
  %2362 = vmatprep.subr.mxu0 %v714
  %2363 = vmatpush1.msra.mxu0 %v713
  %2364 = vmatprep.subr.mxu0 %v718
  %2365 = vmatpush1.msra.mxu0 %v717
  %2366 = vmatprep.subr.mxu0 %v722
  %2367 = vmatpush1.msra.mxu0 %v721
  %2368 = vmatprep.subr.mxu0 %v726
  %2369 = vmatpush1.msra.mxu0 %v725
  %2370 = vmatprep.subr.mxu0 %v730
  %2371 = vmatpush1.msra.mxu0 %v729
  %2372 = vmatprep.subr.mxu0 %v734
  %2373 = vmatpush1.msra.mxu0 %v733
  %2374 = vmatprep.subr.mxu0 %v738
  %2375 = vmatpush1.msra.mxu0 %v737
  %2376 = vmatprep.subr.mxu0 %v742
  %2377 = vmatpush1.msra.mxu0 %v741
  %2378 = vmatprep.subr.mxu0 %v746
  %2379 = vmatpush1.msra.mxu0 %v745
  %2380 = vmatprep.subr.mxu0 %v750
  %2381 = vmatpush1.msra.mxu0 %v749
  %2382 = vmatprep.subr.mxu0 %v754
  %2383 = vmatpush1.msra.mxu0 %v753
  %2384 = vmatprep.subr.mxu0 %v758
  %2385 = vmatpush1.msra.mxu0 %v757
  %2386 = vmatprep.subr.mxu0 %v762
  %2387 = vmatpush1.msra.mxu0 %v761
  %2388 = vmatprep.subr.mxu0 %v766
  %2389 = vmatpush1.msra.mxu0 %v765
  %2390 = vmatprep.subr.mxu0 %v770
  %2391 = vmatpush1.msra.mxu0 %v769
  %2392 = vmatprep.mubr.f32.mxu0 %v2220
  %2393 = vmatmul.mubr.f32.gmra.mrb[0].mxu0 %v2219
  %v2394 = vpop.f32.mrb[0].mxu0
  %v2395 = vadd.f32 0.0, %v2394
  %v2396 = vpop.f32.mrb[0].mxu0
  %v2397 = vadd.f32 0.0, %v2396
  %2398 = vdwg.mxu0
  %v2399 = vadd.f32 %v2253, %v2324
  %v2400 = vadd.f32 %v2254, %v2326
  %v2401 = vadd.f32 %v2255, %v2395
  %v2402 = vadd.f32 %v2256, %v2397
  %v2403 = vxor.u32 %v2399, 2147483648
  %v2404 = vmul.f32 %v2403, 1.442695
  %v2405 = vpow.pop %v2404
  %v2406 = vadd.f32 %v2405, 1.0
  %v2407 = vrcp.pop %v2406
  %v2408 = vmul.f32 1.0, %v2407
  %v2409 = vxor.u32 %v2400, 2147483648
  %v2410 = vmul.f32 %v2409, 1.442695
  %v2411 = vpow.pop %v2410
  %v2412 = vadd.f32 %v2411, 1.0
  %v2413 = vrcp.pop %v2412
  %v2414 = vmul.f32 1.0, %v2413
  %v2415 = vtanh.pop %v2401
  %v2416 = vxor.u32 %v2402, 2147483648
  %v2417 = vmul.f32 %v2416, 1.442695
  %v2418 = vpow.pop %v2417
  %v2419 = vadd.f32 %v2418, 1.0
  %v2420 = vrcp.pop %v2419
  %v2421 = vmul.f32 1.0, %v2420
  %v2422 = vmul.f32 %v2414, %v2211
  %v2423 = vmul.f32 %v2408, %v2415
  %v2424 = vadd.f32 %v2422, %v2423
  %v2425 = vtanh.pop %v2424
  %v2426 = vmul.f32 %v2421, %v2425
  %v2428 = vrot.slane %v2426, 2
  %2430 = vst [vmem:[%s4 + $0x10] sm:$0xc0] %v2428
  %2431 = vst [vmem:[%s4 + $0x8] sm:$0x3] %v2428
  // Predicated region
  $region18: #{spec_metric_predictor.6} parent=0 // pred_check
    _
  $region19: #{spec_metric_predictor.6} parent=0 // pred_check_branch
    %2433 = sbr.rel (0) target = $region21
  $region20: #{spec_metric_predictor.6} parent=0 // pred_region
    _
  $region21: #{spec_metric_predictor.6} parent=0 // pred_fallthru
    _
  // Predicated region
  $region22: #{spec_metric_predictor.6} parent=0 // pred_check
    _
  $region23: #{spec_metric_predictor.6} parent=0 // pred_check_branch
    %2435 = sbr.rel (0) target = $region25
  $region24: #{spec_metric_predictor.6} parent=0 // pred_region
    _
  $region25: #{spec_metric_predictor.6} parent=0 // pred_fallthru
    _

</llo_original>
